<compile_context>
chip_gen: v7x
topology: tpu7x:2x2x1
jax: 0.10.0
libtpu: 0.0.40
codegen_flags: <defaults>
</compile_context>

<pallas_src>
import jax
import jax.numpy as jnp
import numpy as np
from jax import lax
from jax.experimental import pallas as pl
from jax.experimental.pallas import tpu as pltpu

KERN = 4
H = W = 78
CH = H - KERN + 1            # 75  (conv output side)
PH = CH // 2                 # 37  (pooled output side)
P2 = 2 * PH                  # 74  (max-pool input window side)
FLAT = PH * PH               # 1369
HID1, HID2, OUT = 300, 50, 5

# padded sizes (explicit zero padding, done once at prep time)
GJ = 48                      # pooled row width padded to bf16 sublane pack (16)
HID1_P = 384                 # >= 300
HID2_P = 128                 # >= 50
OUT_P = 128                  # >= 5

# w1 is DMA'd in chunks so later chunks overlap the first linear1 matmuls.
W1_CHUNKS = ((0, 10), (10, 20), (20, 30), (30, PH))
N_SEMS = len(W1_CHUNKS) + 2          # + w2 + w3


# --------------------------------------------------------------------------
# Fused kernel: conv(4x4) + bias + ReLU + maxpool(2x2,/2) + 3 Linear layers
# --------------------------------------------------------------------------
def convnet2_kernel(wc_ref, bc_ref, x_ref, b1_ref, b2_ref, b3_ref,
                    w1_hbm, w2_hbm, w3_hbm, out_ref,
                    w1_buf, w2_buf, w3_buf, cols_ref, sems):
    # ---- kick off ALL weight DMAs first so they overlap conv/pool compute ---
    w1_cps = []
    for c, (lo, hi) in enumerate(W1_CHUNKS):
        cp = pltpu.make_async_copy(w1_hbm.at[lo:hi], w1_buf.at[lo:hi],
                                   sems.at[c])
        cp.start()
        w1_cps.append(cp)
    w2_cp = pltpu.make_async_copy(w2_hbm, w2_buf, sems.at[len(W1_CHUNKS)])
    w3_cp = pltpu.make_async_copy(w3_hbm, w3_buf, sems.at[len(W1_CHUNKS) + 1])
    w2_cp.start()
    w3_cp.start()

    # ---- conv 4x4 valid (shifted-sum) + bias + ReLU, f32 on the VPU ---------
    # Lane (column) shifts hoisted: 4 lane slices, 16 sublane slices.
    x = x_ref[...]                                              # (78, 78)
    acc = jnp.zeros((CH, CH), jnp.float32)
    for dj in range(KERN):
        xc = x[:, dj:dj + CH]                                   # (78, 75)
        for di in range(KERN):
            acc = acc + wc_ref[di * KERN + dj] * xc[di:di + CH, :]
    c = jnp.maximum(acc + bc_ref[0], 0.0)                       # (75, 75)

    # ---- 2x2 max-pool window (stride-2 handled by the even selections) ------
    a = jnp.maximum(
        jnp.maximum(c[0:P2, 0:P2], c[1:P2 + 1, 0:P2]),
        jnp.maximum(c[0:P2, 1:P2 + 1], c[1:P2 + 1, 1:P2 + 1]),
    )                                                           # (74, 74)

    # even-column selection matrix built in-kernel (no HBM traffic):
    # sel[q, j] = 1 iff q == 2j  (columns 37..47 are all-zero automatically)
    qi = lax.broadcasted_iota(jnp.int32, (P2, GJ), 0)
    ji = lax.broadcasted_iota(jnp.int32, (P2, GJ), 1)
    sel = (qi == 2 * ji).astype(jnp.float32)                    # (74, 48)
    # cols[q, j] = a[q, 2j]; stored to scratch so pooled rows are cheap vlds.
    cols_ref[...] = jnp.dot(a, sel, preferred_element_type=jnp.float32)

    # ---- Linear(1369 -> 300): pooled row i is cols[2i, :].  Contract against
    #      the row-grouped bf16 weight slab w1_buf[i] with 4 independent
    #      partial accumulators (breaks the serial MXU-pop -> VPU-add chain).
    parts = [jnp.zeros((1, HID1_P), jnp.float32) for _ in range(4)]
    next_chunk = 0
    for i in range(PH):
        if next_chunk < len(W1_CHUNKS) and i == W1_CHUNKS[next_chunk][0]:
            w1_cps[next_chunk].wait()          # only wait for the chunk we need
            next_chunk += 1
        row = cols_ref[2 * i:2 * i + 1, :].astype(jnp.bfloat16)  # (1, 48)
        parts[i % 4] = parts[i % 4] + jnp.dot(
            row, w1_buf[i], preferred_element_type=jnp.float32)
    h1 = jnp.maximum(
        (parts[0] + parts[1]) + (parts[2] + parts[3]) + b1_ref[...], 0.0)
    # TODO(synk): Dropout(p=0.25) treated as identity (inference mode).

    # ---- Linear(300 -> 50) + ReLU, Linear(50 -> 5) (bf16 MXU, f32 accum) ----
    w2_cp.wait()
    h2 = jnp.maximum(
        jnp.dot(h1.astype(jnp.bfloat16), w2_buf[...],
                preferred_element_type=jnp.float32) + b2_ref[...],
        0.0,
    )                                                           # (1, 128)
    w3_cp.wait()
    out_ref[...] = (
        jnp.dot(h2.astype(jnp.bfloat16), w3_buf[...],
                preferred_element_type=jnp.float32) + b3_ref[...]
    )


# --------------------------------------------------------------------------
# One-time parameter prep (OUTSIDE the jitted forward): pad + bf16-cast
# --------------------------------------------------------------------------
def prepare_params(params):
    wc, bc, w1, b1, w2, b2, w3, b3 = params
    # W1 grouped by pooled row: w1g[i, j, k] = w1[37*i + j, k], zero-padded.
    w1g = jnp.zeros((PH, GJ, HID1_P), jnp.float32)
    w1g = w1g.at[:, :PH, :HID1].set(w1.reshape(PH, PH, HID1))
    w1g = w1g.astype(jnp.bfloat16)             # dominant DMA stored in bf16
    b1p = jnp.zeros((1, HID1_P), jnp.float32).at[0, :HID1].set(b1)
    w2p = (jnp.zeros((HID1_P, HID2_P), jnp.float32)
           .at[:HID1, :HID2].set(w2).astype(jnp.bfloat16))
    b2p = jnp.zeros((1, HID2_P), jnp.float32).at[0, :HID2].set(b2)
    w3p = (jnp.zeros((HID2_P, OUT_P), jnp.float32)
           .at[:HID2, :OUT].set(w3).astype(jnp.bfloat16))
    b3p = jnp.zeros((1, OUT_P), jnp.float32).at[0, :OUT].set(b3)
    return (wc.reshape(KERN * KERN).astype(jnp.float32),
            bc.reshape(1).astype(jnp.float32),
            w1g, b1p, w2p, b2p, w3p, b3p)


_COST = pl.CostEstimate(
    flops=2 * (KERN * KERN * CH * CH        # conv shifted-sum
               + P2 * P2 * GJ               # even-column selection matmul
               + PH * GJ * HID1_P           # linear1 (row-grouped)
               + HID1_P * HID2_P            # linear2
               + HID2_P * OUT_P),           # linear3
    transcendentals=0,
    bytes_accessed=(H * W * 4
                    + PH * GJ * HID1_P * 2          # bf16 w1
                    + HID1_P * HID2_P * 2           # bf16 w2
                    + HID2_P * OUT_P * 2            # bf16 w3
                    + (HID1_P + HID2_P + OUT_P + OUT_P) * 4),
)


@jax.jit
def convnet2_forward(x, prepped):
    wcf, bcf, w1g, b1p, w2p, b2p, w3p, b3p = prepped
    smem = pl.BlockSpec(memory_space=pltpu.MemorySpace.SMEM)
    vmem = pl.BlockSpec(memory_space=pltpu.MemorySpace.VMEM)
    hbm = pl.BlockSpec(memory_space=pl.ANY)     # weights: manual overlapped DMA
    out = pl.pallas_call(
        convnet2_kernel,
        out_shape=jax.ShapeDtypeStruct((1, OUT_P), jnp.float32),
        in_specs=[smem, smem, vmem, vmem, vmem, vmem, hbm, hbm, hbm],
        out_specs=vmem,
        scratch_shapes=[
            pltpu.VMEM((PH, GJ, HID1_P), jnp.bfloat16),   # w1 staging
            pltpu.VMEM((HID1_P, HID2_P), jnp.bfloat16),   # w2 staging
            pltpu.VMEM((HID2_P, OUT_P), jnp.bfloat16),    # w3 staging
            pltpu.VMEM((P2, GJ), jnp.float32),            # cols (pooled rows)
            pltpu.SemaphoreType.DMA((N_SEMS,)),
        ],
        cost_estimate=_COST,
    )(wcf, bcf, x, b1p, b2p, b3p, w1g, w2p, w3p)
    return out[:, :OUT]                                         # (1, 5)


# --------------------------------------------------------------------------
# Pure-JAX reference (mirrors the PyTorch forward, dropout = identity)
# --------------------------------------------------------------------------
def reference_forward(x, params):
    wc, bc, w1, b1, w2, b2, w3, b3 = params
    hi = jax.lax.Precision.HIGHEST
    c = jnp.zeros((CH, CH), jnp.float32)
    for di in range(KERN):
        for dj in range(KERN):
            c = c + wc[di, dj] * x[di:di + CH, dj:dj + CH]
    c = jnp.maximum(c + bc[0], 0.0)
    a = c[:P2, :P2].reshape(PH, 2, PH, 2).max(axis=(1, 3))
    v = a.reshape(1, FLAT)
    h1 = jnp.maximum(jnp.dot(v, w1, precision=hi) + b1, 0.0)
    h2 = jnp.maximum(jnp.dot(h1, w2, precision=hi) + b2, 0.0)
    return jnp.dot(h2, w3, precision=hi) + b3


def init_params(key):
    ks = jax.random.split(key, 8)

    def unif(k, shape, fan_in):
        bound = 1.0 / np.sqrt(fan_in)
        return jax.random.uniform(
            k, shape, jnp.float32, minval=-bound, maxval=bound
        )

    wc = unif(ks[0], (KERN, KERN), KERN * KERN)        # Conv2d(1, 1, 4) weight
    bc = unif(ks[1], (1,), KERN * KERN)                # Conv2d bias
    w1 = unif(ks[2], (FLAT, HID1), FLAT)               # Linear(1369, 300)
    b1 = unif(ks[3], (HID1,), FLAT)
    w2 = unif(ks[4], (HID1, HID2), HID1)               # Linear(300, 50)
    b2 = unif(ks[5], (HID2,), HID1)
    w3 = unif(ks[6], (HID2, OUT), HID2)                # Linear(50, 5)
    b3 = unif(ks[7], (OUT,), HID2)
    return (wc, bc, w1, b1, w2, b2, w3, b3)


if __name__ == "__main__":
    key = jax.random.PRNGKey(0)
    k_param, k_x = jax.random.split(key)
    params = init_params(k_param)
    prepped = prepare_params(params)        # one-time prep, outside the jit
    x = jax.random.normal(k_x, (H, W), dtype=jnp.float32)   # 78x78 image

    out = convnet2_forward(x, prepped)
    out = jax.block_until_ready(out)
    assert out.shape == (1, OUT), out.shape

    ref = reference_forward(x, params)
    np.testing.assert_allclose(np.asarray(out), np.asarray(ref),
                               rtol=5e-2, atol=5e-2)
    print("KERNEL_OK")
</pallas_src>

<mosaic_0001>
module attributes {stable_mosaic.version = 11 : i64} {
  func.func @convnet2_kernel(%arg0: memref<16xf32, #tpu.memory_space<smem>>, %arg1: memref<1xf32, #tpu.memory_space<smem>>, %arg2: memref<78x78xf32, #tpu.memory_space<vmem>>, %arg3: memref<1x384xf32, #tpu.memory_space<vmem>>, %arg4: memref<1x128xf32, #tpu.memory_space<vmem>>, %arg5: memref<1x128xf32, #tpu.memory_space<vmem>>, %arg6: memref<37x48x384xbf16, #tpu.memory_space<any>>, %arg7: memref<384x128xbf16, #tpu.memory_space<any>>, %arg8: memref<128x128xbf16, #tpu.memory_space<any>>, %arg9: memref<1x128xf32, #tpu.memory_space<vmem>>, %arg10: memref<37x48x384xbf16, #tpu.memory_space<vmem>>, %arg11: memref<384x128xbf16, #tpu.memory_space<vmem>>, %arg12: memref<128x128xbf16, #tpu.memory_space<vmem>>, %arg13: memref<74x48xf32, #tpu.memory_space<vmem>>, %arg14: memref<6x!tpu.dma_semaphore, #tpu.memory_space<semaphore_mem>>) attributes {dimension_semantics = [], scalar_prefetch = 0 : i64, scratch_operands = 5 : i64, tpu.core_type = #tpu.core_type<tc>} {
    %c0_i32 = arith.constant 0 : i32
    %c0_i32_0 = arith.constant 0 : i32
    %c0_i32_1 = arith.constant 0 : i32
    %c0_i32_2 = arith.constant 0 : i32
    %0 = tpu.memref_slice %arg6[%c0_i32_0, %c0_i32_1, %c0_i32_2] : memref<37x48x384xbf16, #tpu.memory_space<any>> -> memref<10x48x384xbf16, #tpu.memory_space<any>>
    %c0_i32_3 = arith.constant 0 : i32
    %c0_i32_4 = arith.constant 0 : i32
    %c0_i32_5 = arith.constant 0 : i32
    %1 = tpu.memref_slice %arg10[%c0_i32_3, %c0_i32_4, %c0_i32_5] : memref<37x48x384xbf16, #tpu.memory_space<vmem>> -> memref<10x48x384xbf16, #tpu.memory_space<vmem>>
    %2 = tpu.memref_slice %arg14[%c0_i32] : memref<6x!tpu.dma_semaphore, #tpu.memory_space<semaphore_mem>> -> memref<1x!tpu.dma_semaphore, #tpu.memory_space<semaphore_mem>>
    %3 = tpu.memref_squeeze %2 : memref<1x!tpu.dma_semaphore, #tpu.memory_space<semaphore_mem>> -> memref<!tpu.dma_semaphore, #tpu.memory_space<semaphore_mem>>
    tpu.enqueue_dma source(%0 : memref<10x48x384xbf16, #tpu.memory_space<any>>) target(%1 : memref<10x48x384xbf16, #tpu.memory_space<vmem>>) target_semaphore(%3 : memref<!tpu.dma_semaphore, #tpu.memory_space<semaphore_mem>>)
    %c1_i32 = arith.constant 1 : i32
    %c10_i32 = arith.constant 10 : i32
    %c0_i32_6 = arith.constant 0 : i32
    %c0_i32_7 = arith.constant 0 : i32
    %4 = tpu.memref_slice %arg6[%c10_i32, %c0_i32_6, %c0_i32_7] : memref<37x48x384xbf16, #tpu.memory_space<any>> -> memref<10x48x384xbf16, #tpu.memory_space<any>>
    %c10_i32_8 = arith.constant 10 : i32
    %c0_i32_9 = arith.constant 0 : i32
    %c0_i32_10 = arith.constant 0 : i32
    %5 = tpu.memref_slice %arg10[%c10_i32_8, %c0_i32_9, %c0_i32_10] : memref<37x48x384xbf16, #tpu.memory_space<vmem>> -> memref<10x48x384xbf16, #tpu.memory_space<vmem>>
    %6 = tpu.memref_slice %arg14[%c1_i32] : memref<6x!tpu.dma_semaphore, #tpu.memory_space<semaphore_mem>> -> memref<1x!tpu.dma_semaphore, #tpu.memory_space<semaphore_mem>>
    %7 = tpu.memref_squeeze %6 : memref<1x!tpu.dma_semaphore, #tpu.memory_space<semaphore_mem>> -> memref<!tpu.dma_semaphore, #tpu.memory_space<semaphore_mem>>
    tpu.enqueue_dma source(%4 : memref<10x48x384xbf16, #tpu.memory_space<any>>) target(%5 : memref<10x48x384xbf16, #tpu.memory_space<vmem>>) target_semaphore(%7 : memref<!tpu.dma_semaphore, #tpu.memory_space<semaphore_mem>>)
    %c2_i32 = arith.constant 2 : i32
    %c20_i32 = arith.constant 20 : i32
    %c0_i32_11 = arith.constant 0 : i32
    %c0_i32_12 = arith.constant 0 : i32
    %8 = tpu.memref_slice %arg6[%c20_i32, %c0_i32_11, %c0_i32_12] : memref<37x48x384xbf16, #tpu.memory_space<any>> -> memref<10x48x384xbf16, #tpu.memory_space<any>>
    %c20_i32_13 = arith.constant 20 : i32
    %c0_i32_14 = arith.constant 0 : i32
    %c0_i32_15 = arith.constant 0 : i32
    %9 = tpu.memref_slice %arg10[%c20_i32_13, %c0_i32_14, %c0_i32_15] : memref<37x48x384xbf16, #tpu.memory_space<vmem>> -> memref<10x48x384xbf16, #tpu.memory_space<vmem>>
    %10 = tpu.memref_slice %arg14[%c2_i32] : memref<6x!tpu.dma_semaphore, #tpu.memory_space<semaphore_mem>> -> memref<1x!tpu.dma_semaphore, #tpu.memory_space<semaphore_mem>>
    %11 = tpu.memref_squeeze %10 : memref<1x!tpu.dma_semaphore, #tpu.memory_space<semaphore_mem>> -> memref<!tpu.dma_semaphore, #tpu.memory_space<semaphore_mem>>
    tpu.enqueue_dma source(%8 : memref<10x48x384xbf16, #tpu.memory_space<any>>) target(%9 : memref<10x48x384xbf16, #tpu.memory_space<vmem>>) target_semaphore(%11 : memref<!tpu.dma_semaphore, #tpu.memory_space<semaphore_mem>>)
    %c3_i32 = arith.constant 3 : i32
    %c30_i32 = arith.constant 30 : i32
    %c0_i32_16 = arith.constant 0 : i32
    %c0_i32_17 = arith.constant 0 : i32
    %12 = tpu.memref_slice %arg6[%c30_i32, %c0_i32_16, %c0_i32_17] : memref<37x48x384xbf16, #tpu.memory_space<any>> -> memref<7x48x384xbf16, #tpu.memory_space<any>>
    %c30_i32_18 = arith.constant 30 : i32
    %c0_i32_19 = arith.constant 0 : i32
    %c0_i32_20 = arith.constant 0 : i32
    %13 = tpu.memref_slice %arg10[%c30_i32_18, %c0_i32_19, %c0_i32_20] : memref<37x48x384xbf16, #tpu.memory_space<vmem>> -> memref<7x48x384xbf16, #tpu.memory_space<vmem>>
    %14 = tpu.memref_slice %arg14[%c3_i32] : memref<6x!tpu.dma_semaphore, #tpu.memory_space<semaphore_mem>> -> memref<1x!tpu.dma_semaphore, #tpu.memory_space<semaphore_mem>>
    %15 = tpu.memref_squeeze %14 : memref<1x!tpu.dma_semaphore, #tpu.memory_space<semaphore_mem>> -> memref<!tpu.dma_semaphore, #tpu.memory_space<semaphore_mem>>
    tpu.enqueue_dma source(%12 : memref<7x48x384xbf16, #tpu.memory_space<any>>) target(%13 : memref<7x48x384xbf16, #tpu.memory_space<vmem>>) target_semaphore(%15 : memref<!tpu.dma_semaphore, #tpu.memory_space<semaphore_mem>>)
    %c4_i32 = arith.constant 4 : i32
    %16 = tpu.memref_slice %arg14[%c4_i32] : memref<6x!tpu.dma_semaphore, #tpu.memory_space<semaphore_mem>> -> memref<1x!tpu.dma_semaphore, #tpu.memory_space<semaphore_mem>>
    %17 = tpu.memref_squeeze %16 : memref<1x!tpu.dma_semaphore, #tpu.memory_space<semaphore_mem>> -> memref<!tpu.dma_semaphore, #tpu.memory_space<semaphore_mem>>
    tpu.enqueue_dma source(%arg7 : memref<384x128xbf16, #tpu.memory_space<any>>) target(%arg11 : memref<384x128xbf16, #tpu.memory_space<vmem>>) target_semaphore(%17 : memref<!tpu.dma_semaphore, #tpu.memory_space<semaphore_mem>>)
    %c5_i32 = arith.constant 5 : i32
    %18 = tpu.memref_slice %arg14[%c5_i32] : memref<6x!tpu.dma_semaphore, #tpu.memory_space<semaphore_mem>> -> memref<1x!tpu.dma_semaphore, #tpu.memory_space<semaphore_mem>>
    %19 = tpu.memref_squeeze %18 : memref<1x!tpu.dma_semaphore, #tpu.memory_space<semaphore_mem>> -> memref<!tpu.dma_semaphore, #tpu.memory_space<semaphore_mem>>
    tpu.enqueue_dma source(%arg8 : memref<128x128xbf16, #tpu.memory_space<any>>) target(%arg12 : memref<128x128xbf16, #tpu.memory_space<vmem>>) target_semaphore(%19 : memref<!tpu.dma_semaphore, #tpu.memory_space<semaphore_mem>>)
    %c0 = arith.constant 0 : index
    %c0_21 = arith.constant 0 : index
    %20 = vector.load %arg2[%c0, %c0_21] : memref<78x78xf32, #tpu.memory_space<vmem>>, vector<78x78xf32>
    %cst = arith.constant 0.000000e+00 : f32
    %21 = vector.broadcast %cst : f32 to vector<75x75xf32>
    %22 = vector.extract_strided_slice %20 {offsets = [0, 0], sizes = [78, 75], strides = [1, 1]} : vector<78x78xf32> to vector<78x75xf32>
    %c0_22 = arith.constant 0 : index
    %23 = memref.load %arg0[%c0_22] : memref<16xf32, #tpu.memory_space<smem>>
    %24 = vector.extract_strided_slice %22 {offsets = [0, 0], sizes = [75, 75], strides = [1, 1]} : vector<78x75xf32> to vector<75x75xf32>
    %25 = vector.broadcast %23 : f32 to vector<75x75xf32>
    %26 = arith.mulf %25, %24 : vector<75x75xf32>
    %27 = arith.addf %21, %26 : vector<75x75xf32>
    %c4 = arith.constant 4 : index
    %28 = memref.load %arg0[%c4] : memref<16xf32, #tpu.memory_space<smem>>
    %29 = vector.extract_strided_slice %22 {offsets = [1, 0], sizes = [75, 75], strides = [1, 1]} : vector<78x75xf32> to vector<75x75xf32>
    %30 = vector.broadcast %28 : f32 to vector<75x75xf32>
    %31 = arith.mulf %30, %29 : vector<75x75xf32>
    %32 = arith.addf %27, %31 : vector<75x75xf32>
    %c8 = arith.constant 8 : index
    %33 = memref.load %arg0[%c8] : memref<16xf32, #tpu.memory_space<smem>>
    %34 = vector.extract_strided_slice %22 {offsets = [2, 0], sizes = [75, 75], strides = [1, 1]} : vector<78x75xf32> to vector<75x75xf32>
    %35 = vector.broadcast %33 : f32 to vector<75x75xf32>
    %36 = arith.mulf %35, %34 : vector<75x75xf32>
    %37 = arith.addf %32, %36 : vector<75x75xf32>
    %c12 = arith.constant 12 : index
    %38 = memref.load %arg0[%c12] : memref<16xf32, #tpu.memory_space<smem>>
    %39 = vector.extract_strided_slice %22 {offsets = [3, 0], sizes = [75, 75], strides = [1, 1]} : vector<78x75xf32> to vector<75x75xf32>
    %40 = vector.broadcast %38 : f32 to vector<75x75xf32>
    %41 = arith.mulf %40, %39 : vector<75x75xf32>
    %42 = arith.addf %37, %41 : vector<75x75xf32>
    %43 = vector.extract_strided_slice %20 {offsets = [0, 1], sizes = [78, 75], strides = [1, 1]} : vector<78x78xf32> to vector<78x75xf32>
    %c1 = arith.constant 1 : index
    %44 = memref.load %arg0[%c1] : memref<16xf32, #tpu.memory_space<smem>>
    %45 = vector.extract_strided_slice %43 {offsets = [0, 0], sizes = [75, 75], strides = [1, 1]} : vector<78x75xf32> to vector<75x75xf32>
    %46 = vector.broadcast %44 : f32 to vector<75x75xf32>
    %47 = arith.mulf %46, %45 : vector<75x75xf32>
    %48 = arith.addf %42, %47 : vector<75x75xf32>
    %c5 = arith.constant 5 : index
    %49 = memref.load %arg0[%c5] : memref<16xf32, #tpu.memory_space<smem>>
    %50 = vector.extract_strided_slice %43 {offsets = [1, 0], sizes = [75, 75], strides = [1, 1]} : vector<78x75xf32> to vector<75x75xf32>
    %51 = vector.broadcast %49 : f32 to vector<75x75xf32>
    %52 = arith.mulf %51, %50 : vector<75x75xf32>
    %53 = arith.addf %48, %52 : vector<75x75xf32>
    %c9 = arith.constant 9 : index
    %54 = memref.load %arg0[%c9] : memref<16xf32, #tpu.memory_space<smem>>
    %55 = vector.extract_strided_slice %43 {offsets = [2, 0], sizes = [75, 75], strides = [1, 1]} : vector<78x75xf32> to vector<75x75xf32>
    %56 = vector.broadcast %54 : f32 to vector<75x75xf32>
    %57 = arith.mulf %56, %55 : vector<75x75xf32>
    %58 = arith.addf %53, %57 : vector<75x75xf32>
    %c13 = arith.constant 13 : index
    %59 = memref.load %arg0[%c13] : memref<16xf32, #tpu.memory_space<smem>>
    %60 = vector.extract_strided_slice %43 {offsets = [3, 0], sizes = [75, 75], strides = [1, 1]} : vector<78x75xf32> to vector<75x75xf32>
    %61 = vector.broadcast %59 : f32 to vector<75x75xf32>
    %62 = arith.mulf %61, %60 : vector<75x75xf32>
    %63 = arith.addf %58, %62 : vector<75x75xf32>
    %64 = vector.extract_strided_slice %20 {offsets = [0, 2], sizes = [78, 75], strides = [1, 1]} : vector<78x78xf32> to vector<78x75xf32>
    %c2 = arith.constant 2 : index
    %65 = memref.load %arg0[%c2] : memref<16xf32, #tpu.memory_space<smem>>
    %66 = vector.extract_strided_slice %64 {offsets = [0, 0], sizes = [75, 75], strides = [1, 1]} : vector<78x75xf32> to vector<75x75xf32>
    %67 = vector.broadcast %65 : f32 to vector<75x75xf32>
    %68 = arith.mulf %67, %66 : vector<75x75xf32>
    %69 = arith.addf %63, %68 : vector<75x75xf32>
    %c6 = arith.constant 6 : index
    %70 = memref.load %arg0[%c6] : memref<16xf32, #tpu.memory_space<smem>>
    %71 = vector.extract_strided_slice %64 {offsets = [1, 0], sizes = [75, 75], strides = [1, 1]} : vector<78x75xf32> to vector<75x75xf32>
    %72 = vector.broadcast %70 : f32 to vector<75x75xf32>
    %73 = arith.mulf %72, %71 : vector<75x75xf32>
    %74 = arith.addf %69, %73 : vector<75x75xf32>
    %c10 = arith.constant 10 : index
    %75 = memref.load %arg0[%c10] : memref<16xf32, #tpu.memory_space<smem>>
    %76 = vector.extract_strided_slice %64 {offsets = [2, 0], sizes = [75, 75], strides = [1, 1]} : vector<78x75xf32> to vector<75x75xf32>
    %77 = vector.broadcast %75 : f32 to vector<75x75xf32>
    %78 = arith.mulf %77, %76 : vector<75x75xf32>
    %79 = arith.addf %74, %78 : vector<75x75xf32>
    %c14 = arith.constant 14 : index
    %80 = memref.load %arg0[%c14] : memref<16xf32, #tpu.memory_space<smem>>
    %81 = vector.extract_strided_slice %64 {offsets = [3, 0], sizes = [75, 75], strides = [1, 1]} : vector<78x75xf32> to vector<75x75xf32>
    %82 = vector.broadcast %80 : f32 to vector<75x75xf32>
    %83 = arith.mulf %82, %81 : vector<75x75xf32>
    %84 = arith.addf %79, %83 : vector<75x75xf32>
    %85 = vector.extract_strided_slice %20 {offsets = [0, 3], sizes = [78, 75], strides = [1, 1]} : vector<78x78xf32> to vector<78x75xf32>
    %c3 = arith.constant 3 : index
    %86 = memref.load %arg0[%c3] : memref<16xf32, #tpu.memory_space<smem>>
    %87 = vector.extract_strided_slice %85 {offsets = [0, 0], sizes = [75, 75], strides = [1, 1]} : vector<78x75xf32> to vector<75x75xf32>
    %88 = vector.broadcast %86 : f32 to vector<75x75xf32>
    %89 = arith.mulf %88, %87 : vector<75x75xf32>
    %90 = arith.addf %84, %89 : vector<75x75xf32>
    %c7 = arith.constant 7 : index
    %91 = memref.load %arg0[%c7] : memref<16xf32, #tpu.memory_space<smem>>
    %92 = vector.extract_strided_slice %85 {offsets = [1, 0], sizes = [75, 75], strides = [1, 1]} : vector<78x75xf32> to vector<75x75xf32>
    %93 = vector.broadcast %91 : f32 to vector<75x75xf32>
    %94 = arith.mulf %93, %92 : vector<75x75xf32>
    %95 = arith.addf %90, %94 : vector<75x75xf32>
    %c11 = arith.constant 11 : index
    %96 = memref.load %arg0[%c11] : memref<16xf32, #tpu.memory_space<smem>>
    %97 = vector.extract_strided_slice %85 {offsets = [2, 0], sizes = [75, 75], strides = [1, 1]} : vector<78x75xf32> to vector<75x75xf32>
    %98 = vector.broadcast %96 : f32 to vector<75x75xf32>
    %99 = arith.mulf %98, %97 : vector<75x75xf32>
    %100 = arith.addf %95, %99 : vector<75x75xf32>
    %c15 = arith.constant 15 : index
    %101 = memref.load %arg0[%c15] : memref<16xf32, #tpu.memory_space<smem>>
    %102 = vector.extract_strided_slice %85 {offsets = [3, 0], sizes = [75, 75], strides = [1, 1]} : vector<78x75xf32> to vector<75x75xf32>
    %103 = vector.broadcast %101 : f32 to vector<75x75xf32>
    %104 = arith.mulf %103, %102 : vector<75x75xf32>
    %105 = arith.addf %100, %104 : vector<75x75xf32>
    %c0_23 = arith.constant 0 : index
    %106 = memref.load %arg1[%c0_23] : memref<1xf32, #tpu.memory_space<smem>>
    %107 = vector.broadcast %106 : f32 to vector<75x75xf32>
    %108 = arith.addf %105, %107 : vector<75x75xf32>
    %cst_24 = arith.constant 0.000000e+00 : f32
    %109 = vector.broadcast %cst_24 : f32 to vector<75x75xf32>
    %110 = arith.maximumf %108, %109 : vector<75x75xf32>
    %111 = vector.extract_strided_slice %110 {offsets = [0, 0], sizes = [74, 74], strides = [1, 1]} : vector<75x75xf32> to vector<74x74xf32>
    %112 = vector.extract_strided_slice %110 {offsets = [1, 0], sizes = [74, 74], strides = [1, 1]} : vector<75x75xf32> to vector<74x74xf32>
    %113 = arith.maximumf %111, %112 : vector<74x74xf32>
    %114 = vector.extract_strided_slice %110 {offsets = [0, 1], sizes = [74, 74], strides = [1, 1]} : vector<75x75xf32> to vector<74x74xf32>
    %115 = vector.extract_strided_slice %110 {offsets = [1, 1], sizes = [74, 74], strides = [1, 1]} : vector<75x75xf32> to vector<74x74xf32>
    %116 = arith.maximumf %114, %115 : vector<74x74xf32>
    %117 = arith.maximumf %113, %116 : vector<74x74xf32>
    %118 = tpu.iota {dimensions = array<i32: 0>} : vector<74x48xi32>
    %119 = tpu.iota {dimensions = array<i32: 1>} : vector<74x48xi32>
    %c2_i32_25 = arith.constant 2 : i32
    %120 = vector.broadcast %c2_i32_25 : i32 to vector<74x48xi32>
    %121 = arith.muli %120, %119 : vector<74x48xi32>
    %122 = arith.cmpi eq, %118, %121 : vector<74x48xi32>
    %123 = arith.extui %122 : vector<74x48xi1> to vector<74x48xi32>
    %124 = arith.sitofp %123 : vector<74x48xi32> to vector<74x48xf32>
    %cst_26 = arith.constant dense<0.000000e+00> : vector<74x48xf32>
    %125 = tpu.matmul %117, %124, %cst_26 {dimension_numbers = #tpu.dot_dimension_numbers<[1], [0], [0], [1], [0, 0, 1, 1], [], []>} : vector<74x74xf32>, vector<74x48xf32>, vector<74x48xf32> -> vector<74x48xf32>
    %c0_27 = arith.constant 0 : index
    %c0_28 = arith.constant 0 : index
    %126 = vector.load %arg13[%c0_27, %c0_28] : memref<74x48xf32, #tpu.memory_space<vmem>>, vector<74x48xf32>
    tpu.vector_store %arg13[%c0_27, %c0_28], %125 {strides = array<i32>} : memref<74x48xf32, #tpu.memory_space<vmem>>, vector<74x48xf32>,
    %cst_29 = arith.constant 0.000000e+00 : f32
    %127 = vector.broadcast %cst_29 : f32 to vector<1x384xf32>
    %cst_30 = arith.constant 0.000000e+00 : f32
    %128 = vector.broadcast %cst_30 : f32 to vector<1x384xf32>
    %cst_31 = arith.constant 0.000000e+00 : f32
    %129 = vector.broadcast %cst_31 : f32 to vector<1x384xf32>
    %cst_32 = arith.constant 0.000000e+00 : f32
    %130 = vector.broadcast %cst_32 : f32 to vector<1x384xf32>
    %c0_i32_33 = arith.constant 0 : i32
    %c0_i32_34 = arith.constant 0 : i32
    %c0_i32_35 = arith.constant 0 : i32
    %c0_i32_36 = arith.constant 0 : i32
    %131 = tpu.memref_slice %arg6[%c0_i32_34, %c0_i32_35, %c0_i32_36] : memref<37x48x384xbf16, #tpu.memory_space<any>> -> memref<10x48x384xbf16, #tpu.memory_space<any>>
    %c0_i32_37 = arith.constant 0 : i32
    %c0_i32_38 = arith.constant 0 : i32
    %c0_i32_39 = arith.constant 0 : i32
    %132 = tpu.memref_slice %arg10[%c0_i32_37, %c0_i32_38, %c0_i32_39] : memref<37x48x384xbf16, #tpu.memory_space<vmem>> -> memref<10x48x384xbf16, #tpu.memory_space<vmem>>
    %133 = tpu.memref_slice %arg14[%c0_i32_33] : memref<6x!tpu.dma_semaphore, #tpu.memory_space<semaphore_mem>> -> memref<1x!tpu.dma_semaphore, #tpu.memory_space<semaphore_mem>>
    %134 = tpu.memref_squeeze %133 : memref<1x!tpu.dma_semaphore, #tpu.memory_space<semaphore_mem>> -> memref<!tpu.dma_semaphore, #tpu.memory_space<semaphore_mem>>
    tpu.wait_dma2 semaphore(%134 : memref<!tpu.dma_semaphore, #tpu.memory_space<semaphore_mem>>) src(%131 : memref<10x48x384xbf16, #tpu.memory_space<any>>) dst(%132 : memref<10x48x384xbf16, #tpu.memory_space<vmem>>)
    %c0_40 = arith.constant 0 : index
    %c0_41 = arith.constant 0 : index
    %135 = vector.load %arg13[%c0_40, %c0_41] : memref<74x48xf32, #tpu.memory_space<vmem>>, vector<1x48xf32>
    %136 = arith.truncf %135 : vector<1x48xf32> to vector<1x48xbf16>
    %c0_42 = arith.constant 0 : index
    %c0_43 = arith.constant 0 : index
    %c0_44 = arith.constant 0 : index
    %137 = vector.load %arg10[%c0_42, %c0_43, %c0_44] : memref<37x48x384xbf16, #tpu.memory_space<vmem>>, vector<1x48x384xbf16>
    %138 = vector.shape_cast %137 : vector<1x48x384xbf16> to vector<48x384xbf16>
    %cst_45 = arith.constant dense<0.000000e+00> : vector<1x384xf32>
    %139 = tpu.matmul %136, %138, %cst_45 {dimension_numbers = #tpu.dot_dimension_numbers<[1], [0], [0], [1], [0, 0, 1, 1], [], []>} : vector<1x48xbf16>, vector<48x384xbf16>, vector<1x384xf32> -> vector<1x384xf32>
    %140 = arith.addf %127, %139 : vector<1x384xf32>
    %c2_46 = arith.constant 2 : index
    %c0_47 = arith.constant 0 : index
    %141 = vector.load %arg13[%c2_46, %c0_47] : memref<74x48xf32, #tpu.memory_space<vmem>>, vector<1x48xf32>
    %142 = arith.truncf %141 : vector<1x48xf32> to vector<1x48xbf16>
    %c1_48 = arith.constant 1 : index
    %c0_49 = arith.constant 0 : index
    %c0_50 = arith.constant 0 : index
    %143 = vector.load %arg10[%c1_48, %c0_49, %c0_50] : memref<37x48x384xbf16, #tpu.memory_space<vmem>>, vector<1x48x384xbf16>
    %144 = vector.shape_cast %143 : vector<1x48x384xbf16> to vector<48x384xbf16>
    %cst_51 = arith.constant dense<0.000000e+00> : vector<1x384xf32>
    %145 = tpu.matmul %142, %144, %cst_51 {dimension_numbers = #tpu.dot_dimension_numbers<[1], [0], [0], [1], [0, 0, 1, 1], [], []>} : vector<1x48xbf16>, vector<48x384xbf16>, vector<1x384xf32> -> vector<1x384xf32>
    %146 = arith.addf %128, %145 : vector<1x384xf32>
    %c4_52 = arith.constant 4 : index
    %c0_53 = arith.constant 0 : index
    %147 = vector.load %arg13[%c4_52, %c0_53] : memref<74x48xf32, #tpu.memory_space<vmem>>, vector<1x48xf32>
    %148 = arith.truncf %147 : vector<1x48xf32> to vector<1x48xbf16>
    %c2_54 = arith.constant 2 : index
    %c0_55 = arith.constant 0 : index
    %c0_56 = arith.constant 0 : index
    %149 = vector.load %arg10[%c2_54, %c0_55, %c0_56] : memref<37x48x384xbf16, #tpu.memory_space<vmem>>, vector<1x48x384xbf16>
    %150 = vector.shape_cast %149 : vector<1x48x384xbf16> to vector<48x384xbf16>
    %cst_57 = arith.constant dense<0.000000e+00> : vector<1x384xf32>
    %151 = tpu.matmul %148, %150, %cst_57 {dimension_numbers = #tpu.dot_dimension_numbers<[1], [0], [0], [1], [0, 0, 1, 1], [], []>} : vector<1x48xbf16>, vector<48x384xbf16>, vector<1x384xf32> -> vector<1x384xf32>
    %152 = arith.addf %129, %151 : vector<1x384xf32>
    %c6_58 = arith.constant 6 : index
    %c0_59 = arith.constant 0 : index
    %153 = vector.load %arg13[%c6_58, %c0_59] : memref<74x48xf32, #tpu.memory_space<vmem>>, vector<1x48xf32>
    %154 = arith.truncf %153 : vector<1x48xf32> to vector<1x48xbf16>
    %c3_60 = arith.constant 3 : index
    %c0_61 = arith.constant 0 : index
    %c0_62 = arith.constant 0 : index
    %155 = vector.load %arg10[%c3_60, %c0_61, %c0_62] : memref<37x48x384xbf16, #tpu.memory_space<vmem>>, vector<1x48x384xbf16>
    %156 = vector.shape_cast %155 : vector<1x48x384xbf16> to vector<48x384xbf16>
    %cst_63 = arith.constant dense<0.000000e+00> : vector<1x384xf32>
    %157 = tpu.matmul %154, %156, %cst_63 {dimension_numbers = #tpu.dot_dimension_numbers<[1], [0], [0], [1], [0, 0, 1, 1], [], []>} : vector<1x48xbf16>, vector<48x384xbf16>, vector<1x384xf32> -> vector<1x384xf32>
    %158 = arith.addf %130, %157 : vector<1x384xf32>
    %c8_64 = arith.constant 8 : index
    %c0_65 = arith.constant 0 : index
    %159 = vector.load %arg13[%c8_64, %c0_65] : memref<74x48xf32, #tpu.memory_space<vmem>>, vector<1x48xf32>
    %160 = arith.truncf %159 : vector<1x48xf32> to vector<1x48xbf16>
    %c4_66 = arith.constant 4 : index
    %c0_67 = arith.constant 0 : index
    %c0_68 = arith.constant 0 : index
    %161 = vector.load %arg10[%c4_66, %c0_67, %c0_68] : memref<37x48x384xbf16, #tpu.memory_space<vmem>>, vector<1x48x384xbf16>
    %162 = vector.shape_cast %161 : vector<1x48x384xbf16> to vector<48x384xbf16>
    %cst_69 = arith.constant dense<0.000000e+00> : vector<1x384xf32>
    %163 = tpu.matmul %160, %162, %cst_69 {dimension_numbers = #tpu.dot_dimension_numbers<[1], [0], [0], [1], [0, 0, 1, 1], [], []>} : vector<1x48xbf16>, vector<48x384xbf16>, vector<1x384xf32> -> vector<1x384xf32>
    %164 = arith.addf %140, %163 : vector<1x384xf32>
    %c10_70 = arith.constant 10 : index
    %c0_71 = arith.constant 0 : index
    %165 = vector.load %arg13[%c10_70, %c0_71] : memref<74x48xf32, #tpu.memory_space<vmem>>, vector<1x48xf32>
    %166 = arith.truncf %165 : vector<1x48xf32> to vector<1x48xbf16>
    %c5_72 = arith.constant 5 : index
    %c0_73 = arith.constant 0 : index
    %c0_74 = arith.constant 0 : index
    %167 = vector.load %arg10[%c5_72, %c0_73, %c0_74] : memref<37x48x384xbf16, #tpu.memory_space<vmem>>, vector<1x48x384xbf16>
    %168 = vector.shape_cast %167 : vector<1x48x384xbf16> to vector<48x384xbf16>
    %cst_75 = arith.constant dense<0.000000e+00> : vector<1x384xf32>
    %169 = tpu.matmul %166, %168, %cst_75 {dimension_numbers = #tpu.dot_dimension_numbers<[1], [0], [0], [1], [0, 0, 1, 1], [], []>} : vector<1x48xbf16>, vector<48x384xbf16>, vector<1x384xf32> -> vector<1x384xf32>
    %170 = arith.addf %146, %169 : vector<1x384xf32>
    %c12_76 = arith.constant 12 : index
    %c0_77 = arith.constant 0 : index
    %171 = vector.load %arg13[%c12_76, %c0_77] : memref<74x48xf32, #tpu.memory_space<vmem>>, vector<1x48xf32>
    %172 = arith.truncf %171 : vector<1x48xf32> to vector<1x48xbf16>
    %c6_78 = arith.constant 6 : index
    %c0_79 = arith.constant 0 : index
    %c0_80 = arith.constant 0 : index
    %173 = vector.load %arg10[%c6_78, %c0_79, %c0_80] : memref<37x48x384xbf16, #tpu.memory_space<vmem>>, vector<1x48x384xbf16>
    %174 = vector.shape_cast %173 : vector<1x48x384xbf16> to vector<48x384xbf16>
    %cst_81 = arith.constant dense<0.000000e+00> : vector<1x384xf32>
    %175 = tpu.matmul %172, %174, %cst_81 {dimension_numbers = #tpu.dot_dimension_numbers<[1], [0], [0], [1], [0, 0, 1, 1], [], []>} : vector<1x48xbf16>, vector<48x384xbf16>, vector<1x384xf32> -> vector<1x384xf32>
    %176 = arith.addf %152, %175 : vector<1x384xf32>
    %c14_82 = arith.constant 14 : index
    %c0_83 = arith.constant 0 : index
    %177 = vector.load %arg13[%c14_82, %c0_83] : memref<74x48xf32, #tpu.memory_space<vmem>>, vector<1x48xf32>
    %178 = arith.truncf %177 : vector<1x48xf32> to vector<1x48xbf16>
    %c7_84 = arith.constant 7 : index
    %c0_85 = arith.constant 0 : index
    %c0_86 = arith.constant 0 : index
    %179 = vector.load %arg10[%c7_84, %c0_85, %c0_86] : memref<37x48x384xbf16, #tpu.memory_space<vmem>>, vector<1x48x384xbf16>
    %180 = vector.shape_cast %179 : vector<1x48x384xbf16> to vector<48x384xbf16>
    %cst_87 = arith.constant dense<0.000000e+00> : vector<1x384xf32>
    %181 = tpu.matmul %178, %180, %cst_87 {dimension_numbers = #tpu.dot_dimension_numbers<[1], [0], [0], [1], [0, 0, 1, 1], [], []>} : vector<1x48xbf16>, vector<48x384xbf16>, vector<1x384xf32> -> vector<1x384xf32>
    %182 = arith.addf %158, %181 : vector<1x384xf32>
    %c16 = arith.constant 16 : index
    %c0_88 = arith.constant 0 : index
    %183 = vector.load %arg13[%c16, %c0_88] : memref<74x48xf32, #tpu.memory_space<vmem>>, vector<1x48xf32>
    %184 = arith.truncf %183 : vector<1x48xf32> to vector<1x48xbf16>
    %c8_89 = arith.constant 8 : index
    %c0_90 = arith.constant 0 : index
    %c0_91 = arith.constant 0 : index
    %185 = vector.load %arg10[%c8_89, %c0_90, %c0_91] : memref<37x48x384xbf16, #tpu.memory_space<vmem>>, vector<1x48x384xbf16>
    %186 = vector.shape_cast %185 : vector<1x48x384xbf16> to vector<48x384xbf16>
    %cst_92 = arith.constant dense<0.000000e+00> : vector<1x384xf32>
    %187 = tpu.matmul %184, %186, %cst_92 {dimension_numbers = #tpu.dot_dimension_numbers<[1], [0], [0], [1], [0, 0, 1, 1], [], []>} : vector<1x48xbf16>, vector<48x384xbf16>, vector<1x384xf32> -> vector<1x384xf32>
    %188 = arith.addf %164, %187 : vector<1x384xf32>
    %c18 = arith.constant 18 : index
    %c0_93 = arith.constant 0 : index
    %189 = vector.load %arg13[%c18, %c0_93] : memref<74x48xf32, #tpu.memory_space<vmem>>, vector<1x48xf32>
    %190 = arith.truncf %189 : vector<1x48xf32> to vector<1x48xbf16>
    %c9_94 = arith.constant 9 : index
    %c0_95 = arith.constant 0 : index
    %c0_96 = arith.constant 0 : index
    %191 = vector.load %arg10[%c9_94, %c0_95, %c0_96] : memref<37x48x384xbf16, #tpu.memory_space<vmem>>, vector<1x48x384xbf16>
    %192 = vector.shape_cast %191 : vector<1x48x384xbf16> to vector<48x384xbf16>
    %cst_97 = arith.constant dense<0.000000e+00> : vector<1x384xf32>
    %193 = tpu.matmul %190, %192, %cst_97 {dimension_numbers = #tpu.dot_dimension_numbers<[1], [0], [0], [1], [0, 0, 1, 1], [], []>} : vector<1x48xbf16>, vector<48x384xbf16>, vector<1x384xf32> -> vector<1x384xf32>
    %194 = arith.addf %170, %193 : vector<1x384xf32>
    %c1_i32_98 = arith.constant 1 : i32
    %c10_i32_99 = arith.constant 10 : i32
    %c0_i32_100 = arith.constant 0 : i32
    %c0_i32_101 = arith.constant 0 : i32
    %195 = tpu.memref_slice %arg6[%c10_i32_99, %c0_i32_100, %c0_i32_101] : memref<37x48x384xbf16, #tpu.memory_space<any>> -> memref<10x48x384xbf16, #tpu.memory_space<any>>
    %c10_i32_102 = arith.constant 10 : i32
    %c0_i32_103 = arith.constant 0 : i32
    %c0_i32_104 = arith.constant 0 : i32
    %196 = tpu.memref_slice %arg10[%c10_i32_102, %c0_i32_103, %c0_i32_104] : memref<37x48x384xbf16, #tpu.memory_space<vmem>> -> memref<10x48x384xbf16, #tpu.memory_space<vmem>>
    %197 = tpu.memref_slice %arg14[%c1_i32_98] : memref<6x!tpu.dma_semaphore, #tpu.memory_space<semaphore_mem>> -> memref<1x!tpu.dma_semaphore, #tpu.memory_space<semaphore_mem>>
    %198 = tpu.memref_squeeze %197 : memref<1x!tpu.dma_semaphore, #tpu.memory_space<semaphore_mem>> -> memref<!tpu.dma_semaphore, #tpu.memory_space<semaphore_mem>>
    tpu.wait_dma2 semaphore(%198 : memref<!tpu.dma_semaphore, #tpu.memory_space<semaphore_mem>>) src(%195 : memref<10x48x384xbf16, #tpu.memory_space<any>>) dst(%196 : memref<10x48x384xbf16, #tpu.memory_space<vmem>>)
    %c20 = arith.constant 20 : index
    %c0_105 = arith.constant 0 : index
    %199 = vector.load %arg13[%c20, %c0_105] : memref<74x48xf32, #tpu.memory_space<vmem>>, vector<1x48xf32>
    %200 = arith.truncf %199 : vector<1x48xf32> to vector<1x48xbf16>
    %c10_106 = arith.constant 10 : index
    %c0_107 = arith.constant 0 : index
    %c0_108 = arith.constant 0 : index
    %201 = vector.load %arg10[%c10_106, %c0_107, %c0_108] : memref<37x48x384xbf16, #tpu.memory_space<vmem>>, vector<1x48x384xbf16>
    %202 = vector.shape_cast %201 : vector<1x48x384xbf16> to vector<48x384xbf16>
    %cst_109 = arith.constant dense<0.000000e+00> : vector<1x384xf32>
    %203 = tpu.matmul %200, %202, %cst_109 {dimension_numbers = #tpu.dot_dimension_numbers<[1], [0], [0], [1], [0, 0, 1, 1], [], []>} : vector<1x48xbf16>, vector<48x384xbf16>, vector<1x384xf32> -> vector<1x384xf32>
    %204 = arith.addf %176, %203 : vector<1x384xf32>
    %c22 = arith.constant 22 : index
    %c0_110 = arith.constant 0 : index
    %205 = vector.load %arg13[%c22, %c0_110] : memref<74x48xf32, #tpu.memory_space<vmem>>, vector<1x48xf32>
    %206 = arith.truncf %205 : vector<1x48xf32> to vector<1x48xbf16>
    %c11_111 = arith.constant 11 : index
    %c0_112 = arith.constant 0 : index
    %c0_113 = arith.constant 0 : index
    %207 = vector.load %arg10[%c11_111, %c0_112, %c0_113] : memref<37x48x384xbf16, #tpu.memory_space<vmem>>, vector<1x48x384xbf16>
    %208 = vector.shape_cast %207 : vector<1x48x384xbf16> to vector<48x384xbf16>
    %cst_114 = arith.constant dense<0.000000e+00> : vector<1x384xf32>
    %209 = tpu.matmul %206, %208, %cst_114 {dimension_numbers = #tpu.dot_dimension_numbers<[1], [0], [0], [1], [0, 0, 1, 1], [], []>} : vector<1x48xbf16>, vector<48x384xbf16>, vector<1x384xf32> -> vector<1x384xf32>
    %210 = arith.addf %182, %209 : vector<1x384xf32>
    %c24 = arith.constant 24 : index
    %c0_115 = arith.constant 0 : index
    %211 = vector.load %arg13[%c24, %c0_115] : memref<74x48xf32, #tpu.memory_space<vmem>>, vector<1x48xf32>
    %212 = arith.truncf %211 : vector<1x48xf32> to vector<1x48xbf16>
    %c12_116 = arith.constant 12 : index
    %c0_117 = arith.constant 0 : index
    %c0_118 = arith.constant 0 : index
    %213 = vector.load %arg10[%c12_116, %c0_117, %c0_118] : memref<37x48x384xbf16, #tpu.memory_space<vmem>>, vector<1x48x384xbf16>
    %214 = vector.shape_cast %213 : vector<1x48x384xbf16> to vector<48x384xbf16>
    %cst_119 = arith.constant dense<0.000000e+00> : vector<1x384xf32>
    %215 = tpu.matmul %212, %214, %cst_119 {dimension_numbers = #tpu.dot_dimension_numbers<[1], [0], [0], [1], [0, 0, 1, 1], [], []>} : vector<1x48xbf16>, vector<48x384xbf16>, vector<1x384xf32> -> vector<1x384xf32>
    %216 = arith.addf %188, %215 : vector<1x384xf32>
    %c26 = arith.constant 26 : index
    %c0_120 = arith.constant 0 : index
    %217 = vector.load %arg13[%c26, %c0_120] : memref<74x48xf32, #tpu.memory_space<vmem>>, vector<1x48xf32>
    %218 = arith.truncf %217 : vector<1x48xf32> to vector<1x48xbf16>
    %c13_121 = arith.constant 13 : index
    %c0_122 = arith.constant 0 : index
    %c0_123 = arith.constant 0 : index
    %219 = vector.load %arg10[%c13_121, %c0_122, %c0_123] : memref<37x48x384xbf16, #tpu.memory_space<vmem>>, vector<1x48x384xbf16>
    %220 = vector.shape_cast %219 : vector<1x48x384xbf16> to vector<48x384xbf16>
    %cst_124 = arith.constant dense<0.000000e+00> : vector<1x384xf32>
    %221 = tpu.matmul %218, %220, %cst_124 {dimension_numbers = #tpu.dot_dimension_numbers<[1], [0], [0], [1], [0, 0, 1, 1], [], []>} : vector<1x48xbf16>, vector<48x384xbf16>, vector<1x384xf32> -> vector<1x384xf32>
    %222 = arith.addf %194, %221 : vector<1x384xf32>
    %c28 = arith.constant 28 : index
    %c0_125 = arith.constant 0 : index
    %223 = vector.load %arg13[%c28, %c0_125] : memref<74x48xf32, #tpu.memory_space<vmem>>, vector<1x48xf32>
    %224 = arith.truncf %223 : vector<1x48xf32> to vector<1x48xbf16>
    %c14_126 = arith.constant 14 : index
    %c0_127 = arith.constant 0 : index
    %c0_128 = arith.constant 0 : index
    %225 = vector.load %arg10[%c14_126, %c0_127, %c0_128] : memref<37x48x384xbf16, #tpu.memory_space<vmem>>, vector<1x48x384xbf16>
    %226 = vector.shape_cast %225 : vector<1x48x384xbf16> to vector<48x384xbf16>
    %cst_129 = arith.constant dense<0.000000e+00> : vector<1x384xf32>
    %227 = tpu.matmul %224, %226, %cst_129 {dimension_numbers = #tpu.dot_dimension_numbers<[1], [0], [0], [1], [0, 0, 1, 1], [], []>} : vector<1x48xbf16>, vector<48x384xbf16>, vector<1x384xf32> -> vector<1x384xf32>
    %228 = arith.addf %204, %227 : vector<1x384xf32>
    %c30 = arith.constant 30 : index
    %c0_130 = arith.constant 0 : index
    %229 = vector.load %arg13[%c30, %c0_130] : memref<74x48xf32, #tpu.memory_space<vmem>>, vector<1x48xf32>
    %230 = arith.truncf %229 : vector<1x48xf32> to vector<1x48xbf16>
    %c15_131 = arith.constant 15 : index
    %c0_132 = arith.constant 0 : index
    %c0_133 = arith.constant 0 : index
    %231 = vector.load %arg10[%c15_131, %c0_132, %c0_133] : memref<37x48x384xbf16, #tpu.memory_space<vmem>>, vector<1x48x384xbf16>
    %232 = vector.shape_cast %231 : vector<1x48x384xbf16> to vector<48x384xbf16>
    %cst_134 = arith.constant dense<0.000000e+00> : vector<1x384xf32>
    %233 = tpu.matmul %230, %232, %cst_134 {dimension_numbers = #tpu.dot_dimension_numbers<[1], [0], [0], [1], [0, 0, 1, 1], [], []>} : vector<1x48xbf16>, vector<48x384xbf16>, vector<1x384xf32> -> vector<1x384xf32>
    %234 = arith.addf %210, %233 : vector<1x384xf32>
    %c32 = arith.constant 32 : index
    %c0_135 = arith.constant 0 : index
    %235 = vector.load %arg13[%c32, %c0_135] : memref<74x48xf32, #tpu.memory_space<vmem>>, vector<1x48xf32>
    %236 = arith.truncf %235 : vector<1x48xf32> to vector<1x48xbf16>
    %c16_136 = arith.constant 16 : index
    %c0_137 = arith.constant 0 : index
    %c0_138 = arith.constant 0 : index
    %237 = vector.load %arg10[%c16_136, %c0_137, %c0_138] : memref<37x48x384xbf16, #tpu.memory_space<vmem>>, vector<1x48x384xbf16>
    %238 = vector.shape_cast %237 : vector<1x48x384xbf16> to vector<48x384xbf16>
    %cst_139 = arith.constant dense<0.000000e+00> : vector<1x384xf32>
    %239 = tpu.matmul %236, %238, %cst_139 {dimension_numbers = #tpu.dot_dimension_numbers<[1], [0], [0], [1], [0, 0, 1, 1], [], []>} : vector<1x48xbf16>, vector<48x384xbf16>, vector<1x384xf32> -> vector<1x384xf32>
    %240 = arith.addf %216, %239 : vector<1x384xf32>
    %c34 = arith.constant 34 : index
    %c0_140 = arith.constant 0 : index
    %241 = vector.load %arg13[%c34, %c0_140] : memref<74x48xf32, #tpu.memory_space<vmem>>, vector<1x48xf32>
    %242 = arith.truncf %241 : vector<1x48xf32> to vector<1x48xbf16>
    %c17 = arith.constant 17 : index
    %c0_141 = arith.constant 0 : index
    %c0_142 = arith.constant 0 : index
    %243 = vector.load %arg10[%c17, %c0_141, %c0_142] : memref<37x48x384xbf16, #tpu.memory_space<vmem>>, vector<1x48x384xbf16>
    %244 = vector.shape_cast %243 : vector<1x48x384xbf16> to vector<48x384xbf16>
    %cst_143 = arith.constant dense<0.000000e+00> : vector<1x384xf32>
    %245 = tpu.matmul %242, %244, %cst_143 {dimension_numbers = #tpu.dot_dimension_numbers<[1], [0], [0], [1], [0, 0, 1, 1], [], []>} : vector<1x48xbf16>, vector<48x384xbf16>, vector<1x384xf32> -> vector<1x384xf32>
    %246 = arith.addf %222, %245 : vector<1x384xf32>
    %c36 = arith.constant 36 : index
    %c0_144 = arith.constant 0 : index
    %247 = vector.load %arg13[%c36, %c0_144] : memref<74x48xf32, #tpu.memory_space<vmem>>, vector<1x48xf32>
    %248 = arith.truncf %247 : vector<1x48xf32> to vector<1x48xbf16>
    %c18_145 = arith.constant 18 : index
    %c0_146 = arith.constant 0 : index
    %c0_147 = arith.constant 0 : index
    %249 = vector.load %arg10[%c18_145, %c0_146, %c0_147] : memref<37x48x384xbf16, #tpu.memory_space<vmem>>, vector<1x48x384xbf16>
    %250 = vector.shape_cast %249 : vector<1x48x384xbf16> to vector<48x384xbf16>
    %cst_148 = arith.constant dense<0.000000e+00> : vector<1x384xf32>
    %251 = tpu.matmul %248, %250, %cst_148 {dimension_numbers = #tpu.dot_dimension_numbers<[1], [0], [0], [1], [0, 0, 1, 1], [], []>} : vector<1x48xbf16>, vector<48x384xbf16>, vector<1x384xf32> -> vector<1x384xf32>
    %252 = arith.addf %228, %251 : vector<1x384xf32>
    %c38 = arith.constant 38 : index
    %c0_149 = arith.constant 0 : index
    %253 = vector.load %arg13[%c38, %c0_149] : memref<74x48xf32, #tpu.memory_space<vmem>>, vector<1x48xf32>
    %254 = arith.truncf %253 : vector<1x48xf32> to vector<1x48xbf16>
    %c19 = arith.constant 19 : index
    %c0_150 = arith.constant 0 : index
    %c0_151 = arith.constant 0 : index
    %255 = vector.load %arg10[%c19, %c0_150, %c0_151] : memref<37x48x384xbf16, #tpu.memory_space<vmem>>, vector<1x48x384xbf16>
    %256 = vector.shape_cast %255 : vector<1x48x384xbf16> to vector<48x384xbf16>
    %cst_152 = arith.constant dense<0.000000e+00> : vector<1x384xf32>
    %257 = tpu.matmul %254, %256, %cst_152 {dimension_numbers = #tpu.dot_dimension_numbers<[1], [0], [0], [1], [0, 0, 1, 1], [], []>} : vector<1x48xbf16>, vector<48x384xbf16>, vector<1x384xf32> -> vector<1x384xf32>
    %258 = arith.addf %234, %257 : vector<1x384xf32>
    %c2_i32_153 = arith.constant 2 : i32
    %c20_i32_154 = arith.constant 20 : i32
    %c0_i32_155 = arith.constant 0 : i32
    %c0_i32_156 = arith.constant 0 : i32
    %259 = tpu.memref_slice %arg6[%c20_i32_154, %c0_i32_155, %c0_i32_156] : memref<37x48x384xbf16, #tpu.memory_space<any>> -> memref<10x48x384xbf16, #tpu.memory_space<any>>
    %c20_i32_157 = arith.constant 20 : i32
    %c0_i32_158 = arith.constant 0 : i32
    %c0_i32_159 = arith.constant 0 : i32
    %260 = tpu.memref_slice %arg10[%c20_i32_157, %c0_i32_158, %c0_i32_159] : memref<37x48x384xbf16, #tpu.memory_space<vmem>> -> memref<10x48x384xbf16, #tpu.memory_space<vmem>>
    %261 = tpu.memref_slice %arg14[%c2_i32_153] : memref<6x!tpu.dma_semaphore, #tpu.memory_space<semaphore_mem>> -> memref<1x!tpu.dma_semaphore, #tpu.memory_space<semaphore_mem>>
    %262 = tpu.memref_squeeze %261 : memref<1x!tpu.dma_semaphore, #tpu.memory_space<semaphore_mem>> -> memref<!tpu.dma_semaphore, #tpu.memory_space<semaphore_mem>>
    tpu.wait_dma2 semaphore(%262 : memref<!tpu.dma_semaphore, #tpu.memory_space<semaphore_mem>>) src(%259 : memref<10x48x384xbf16, #tpu.memory_space<any>>) dst(%260 : memref<10x48x384xbf16, #tpu.memory_space<vmem>>)
    %c40 = arith.constant 40 : index
    %c0_160 = arith.constant 0 : index
    %263 = vector.load %arg13[%c40, %c0_160] : memref<74x48xf32, #tpu.memory_space<vmem>>, vector<1x48xf32>
    %264 = arith.truncf %263 : vector<1x48xf32> to vector<1x48xbf16>
    %c20_161 = arith.constant 20 : index
    %c0_162 = arith.constant 0 : index
    %c0_163 = arith.constant 0 : index
    %265 = vector.load %arg10[%c20_161, %c0_162, %c0_163] : memref<37x48x384xbf16, #tpu.memory_space<vmem>>, vector<1x48x384xbf16>
    %266 = vector.shape_cast %265 : vector<1x48x384xbf16> to vector<48x384xbf16>
    %cst_164 = arith.constant dense<0.000000e+00> : vector<1x384xf32>
    %267 = tpu.matmul %264, %266, %cst_164 {dimension_numbers = #tpu.dot_dimension_numbers<[1], [0], [0], [1], [0, 0, 1, 1], [], []>} : vector<1x48xbf16>, vector<48x384xbf16>, vector<1x384xf32> -> vector<1x384xf32>
    %268 = arith.addf %240, %267 : vector<1x384xf32>
    %c42 = arith.constant 42 : index
    %c0_165 = arith.constant 0 : index
    %269 = vector.load %arg13[%c42, %c0_165] : memref<74x48xf32, #tpu.memory_space<vmem>>, vector<1x48xf32>
    %270 = arith.truncf %269 : vector<1x48xf32> to vector<1x48xbf16>
    %c21 = arith.constant 21 : index
    %c0_166 = arith.constant 0 : index
    %c0_167 = arith.constant 0 : index
    %271 = vector.load %arg10[%c21, %c0_166, %c0_167] : memref<37x48x384xbf16, #tpu.memory_space<vmem>>, vector<1x48x384xbf16>
    %272 = vector.shape_cast %271 : vector<1x48x384xbf16> to vector<48x384xbf16>
    %cst_168 = arith.constant dense<0.000000e+00> : vector<1x384xf32>
    %273 = tpu.matmul %270, %272, %cst_168 {dimension_numbers = #tpu.dot_dimension_numbers<[1], [0], [0], [1], [0, 0, 1, 1], [], []>} : vector<1x48xbf16>, vector<48x384xbf16>, vector<1x384xf32> -> vector<1x384xf32>
    %274 = arith.addf %246, %273 : vector<1x384xf32>
    %c44 = arith.constant 44 : index
    %c0_169 = arith.constant 0 : index
    %275 = vector.load %arg13[%c44, %c0_169] : memref<74x48xf32, #tpu.memory_space<vmem>>, vector<1x48xf32>
    %276 = arith.truncf %275 : vector<1x48xf32> to vector<1x48xbf16>
    %c22_170 = arith.constant 22 : index
    %c0_171 = arith.constant 0 : index
    %c0_172 = arith.constant 0 : index
    %277 = vector.load %arg10[%c22_170, %c0_171, %c0_172] : memref<37x48x384xbf16, #tpu.memory_space<vmem>>, vector<1x48x384xbf16>
    %278 = vector.shape_cast %277 : vector<1x48x384xbf16> to vector<48x384xbf16>
    %cst_173 = arith.constant dense<0.000000e+00> : vector<1x384xf32>
    %279 = tpu.matmul %276, %278, %cst_173 {dimension_numbers = #tpu.dot_dimension_numbers<[1], [0], [0], [1], [0, 0, 1, 1], [], []>} : vector<1x48xbf16>, vector<48x384xbf16>, vector<1x384xf32> -> vector<1x384xf32>
    %280 = arith.addf %252, %279 : vector<1x384xf32>
    %c46 = arith.constant 46 : index
    %c0_174 = arith.constant 0 : index
    %281 = vector.load %arg13[%c46, %c0_174] : memref<74x48xf32, #tpu.memory_space<vmem>>, vector<1x48xf32>
    %282 = arith.truncf %281 : vector<1x48xf32> to vector<1x48xbf16>
    %c23 = arith.constant 23 : index
    %c0_175 = arith.constant 0 : index
    %c0_176 = arith.constant 0 : index
    %283 = vector.load %arg10[%c23, %c0_175, %c0_176] : memref<37x48x384xbf16, #tpu.memory_space<vmem>>, vector<1x48x384xbf16>
    %284 = vector.shape_cast %283 : vector<1x48x384xbf16> to vector<48x384xbf16>
    %cst_177 = arith.constant dense<0.000000e+00> : vector<1x384xf32>
    %285 = tpu.matmul %282, %284, %cst_177 {dimension_numbers = #tpu.dot_dimension_numbers<[1], [0], [0], [1], [0, 0, 1, 1], [], []>} : vector<1x48xbf16>, vector<48x384xbf16>, vector<1x384xf32> -> vector<1x384xf32>
    %286 = arith.addf %258, %285 : vector<1x384xf32>
    %c48 = arith.constant 48 : index
    %c0_178 = arith.constant 0 : index
    %287 = vector.load %arg13[%c48, %c0_178] : memref<74x48xf32, #tpu.memory_space<vmem>>, vector<1x48xf32>
    %288 = arith.truncf %287 : vector<1x48xf32> to vector<1x48xbf16>
    %c24_179 = arith.constant 24 : index
    %c0_180 = arith.constant 0 : index
    %c0_181 = arith.constant 0 : index
    %289 = vector.load %arg10[%c24_179, %c0_180, %c0_181] : memref<37x48x384xbf16, #tpu.memory_space<vmem>>, vector<1x48x384xbf16>
    %290 = vector.shape_cast %289 : vector<1x48x384xbf16> to vector<48x384xbf16>
    %cst_182 = arith.constant dense<0.000000e+00> : vector<1x384xf32>
    %291 = tpu.matmul %288, %290, %cst_182 {dimension_numbers = #tpu.dot_dimension_numbers<[1], [0], [0], [1], [0, 0, 1, 1], [], []>} : vector<1x48xbf16>, vector<48x384xbf16>, vector<1x384xf32> -> vector<1x384xf32>
    %292 = arith.addf %268, %291 : vector<1x384xf32>
    %c50 = arith.constant 50 : index
    %c0_183 = arith.constant 0 : index
    %293 = vector.load %arg13[%c50, %c0_183] : memref<74x48xf32, #tpu.memory_space<vmem>>, vector<1x48xf32>
    %294 = arith.truncf %293 : vector<1x48xf32> to vector<1x48xbf16>
    %c25 = arith.constant 25 : index
    %c0_184 = arith.constant 0 : index
    %c0_185 = arith.constant 0 : index
    %295 = vector.load %arg10[%c25, %c0_184, %c0_185] : memref<37x48x384xbf16, #tpu.memory_space<vmem>>, vector<1x48x384xbf16>
    %296 = vector.shape_cast %295 : vector<1x48x384xbf16> to vector<48x384xbf16>
    %cst_186 = arith.constant dense<0.000000e+00> : vector<1x384xf32>
    %297 = tpu.matmul %294, %296, %cst_186 {dimension_numbers = #tpu.dot_dimension_numbers<[1], [0], [0], [1], [0, 0, 1, 1], [], []>} : vector<1x48xbf16>, vector<48x384xbf16>, vector<1x384xf32> -> vector<1x384xf32>
    %298 = arith.addf %274, %297 : vector<1x384xf32>
    %c52 = arith.constant 52 : index
    %c0_187 = arith.constant 0 : index
    %299 = vector.load %arg13[%c52, %c0_187] : memref<74x48xf32, #tpu.memory_space<vmem>>, vector<1x48xf32>
    %300 = arith.truncf %299 : vector<1x48xf32> to vector<1x48xbf16>
    %c26_188 = arith.constant 26 : index
    %c0_189 = arith.constant 0 : index
    %c0_190 = arith.constant 0 : index
    %301 = vector.load %arg10[%c26_188, %c0_189, %c0_190] : memref<37x48x384xbf16, #tpu.memory_space<vmem>>, vector<1x48x384xbf16>
    %302 = vector.shape_cast %301 : vector<1x48x384xbf16> to vector<48x384xbf16>
    %cst_191 = arith.constant dense<0.000000e+00> : vector<1x384xf32>
    %303 = tpu.matmul %300, %302, %cst_191 {dimension_numbers = #tpu.dot_dimension_numbers<[1], [0], [0], [1], [0, 0, 1, 1], [], []>} : vector<1x48xbf16>, vector<48x384xbf16>, vector<1x384xf32> -> vector<1x384xf32>
    %304 = arith.addf %280, %303 : vector<1x384xf32>
    %c54 = arith.constant 54 : index
    %c0_192 = arith.constant 0 : index
    %305 = vector.load %arg13[%c54, %c0_192] : memref<74x48xf32, #tpu.memory_space<vmem>>, vector<1x48xf32>
    %306 = arith.truncf %305 : vector<1x48xf32> to vector<1x48xbf16>
    %c27 = arith.constant 27 : index
    %c0_193 = arith.constant 0 : index
    %c0_194 = arith.constant 0 : index
    %307 = vector.load %arg10[%c27, %c0_193, %c0_194] : memref<37x48x384xbf16, #tpu.memory_space<vmem>>, vector<1x48x384xbf16>
    %308 = vector.shape_cast %307 : vector<1x48x384xbf16> to vector<48x384xbf16>
    %cst_195 = arith.constant dense<0.000000e+00> : vector<1x384xf32>
    %309 = tpu.matmul %306, %308, %cst_195 {dimension_numbers = #tpu.dot_dimension_numbers<[1], [0], [0], [1], [0, 0, 1, 1], [], []>} : vector<1x48xbf16>, vector<48x384xbf16>, vector<1x384xf32> -> vector<1x384xf32>
    %310 = arith.addf %286, %309 : vector<1x384xf32>
    %c56 = arith.constant 56 : index
    %c0_196 = arith.constant 0 : index
    %311 = vector.load %arg13[%c56, %c0_196] : memref<74x48xf32, #tpu.memory_space<vmem>>, vector<1x48xf32>
    %312 = arith.truncf %311 : vector<1x48xf32> to vector<1x48xbf16>
    %c28_197 = arith.constant 28 : index
    %c0_198 = arith.constant 0 : index
    %c0_199 = arith.constant 0 : index
    %313 = vector.load %arg10[%c28_197, %c0_198, %c0_199] : memref<37x48x384xbf16, #tpu.memory_space<vmem>>, vector<1x48x384xbf16>
    %314 = vector.shape_cast %313 : vector<1x48x384xbf16> to vector<48x384xbf16>
    %cst_200 = arith.constant dense<0.000000e+00> : vector<1x384xf32>
    %315 = tpu.matmul %312, %314, %cst_200 {dimension_numbers = #tpu.dot_dimension_numbers<[1], [0], [0], [1], [0, 0, 1, 1], [], []>} : vector<1x48xbf16>, vector<48x384xbf16>, vector<1x384xf32> -> vector<1x384xf32>
    %316 = arith.addf %292, %315 : vector<1x384xf32>
    %c58 = arith.constant 58 : index
    %c0_201 = arith.constant 0 : index
    %317 = vector.load %arg13[%c58, %c0_201] : memref<74x48xf32, #tpu.memory_space<vmem>>, vector<1x48xf32>
    %318 = arith.truncf %317 : vector<1x48xf32> to vector<1x48xbf16>
    %c29 = arith.constant 29 : index
    %c0_202 = arith.constant 0 : index
    %c0_203 = arith.constant 0 : index
    %319 = vector.load %arg10[%c29, %c0_202, %c0_203] : memref<37x48x384xbf16, #tpu.memory_space<vmem>>, vector<1x48x384xbf16>
    %320 = vector.shape_cast %319 : vector<1x48x384xbf16> to vector<48x384xbf16>
    %cst_204 = arith.constant dense<0.000000e+00> : vector<1x384xf32>
    %321 = tpu.matmul %318, %320, %cst_204 {dimension_numbers = #tpu.dot_dimension_numbers<[1], [0], [0], [1], [0, 0, 1, 1], [], []>} : vector<1x48xbf16>, vector<48x384xbf16>, vector<1x384xf32> -> vector<1x384xf32>
    %322 = arith.addf %298, %321 : vector<1x384xf32>
    %c3_i32_205 = arith.constant 3 : i32
    %c30_i32_206 = arith.constant 30 : i32
    %c0_i32_207 = arith.constant 0 : i32
    %c0_i32_208 = arith.constant 0 : i32
    %323 = tpu.memref_slice %arg6[%c30_i32_206, %c0_i32_207, %c0_i32_208] : memref<37x48x384xbf16, #tpu.memory_space<any>> -> memref<7x48x384xbf16, #tpu.memory_space<any>>
    %c30_i32_209 = arith.constant 30 : i32
    %c0_i32_210 = arith.constant 0 : i32
    %c0_i32_211 = arith.constant 0 : i32
    %324 = tpu.memref_slice %arg10[%c30_i32_209, %c0_i32_210, %c0_i32_211] : memref<37x48x384xbf16, #tpu.memory_space<vmem>> -> memref<7x48x384xbf16, #tpu.memory_space<vmem>>
    %325 = tpu.memref_slice %arg14[%c3_i32_205] : memref<6x!tpu.dma_semaphore, #tpu.memory_space<semaphore_mem>> -> memref<1x!tpu.dma_semaphore, #tpu.memory_space<semaphore_mem>>
    %326 = tpu.memref_squeeze %325 : memref<1x!tpu.dma_semaphore, #tpu.memory_space<semaphore_mem>> -> memref<!tpu.dma_semaphore, #tpu.memory_space<semaphore_mem>>
    tpu.wait_dma2 semaphore(%326 : memref<!tpu.dma_semaphore, #tpu.memory_space<semaphore_mem>>) src(%323 : memref<7x48x384xbf16, #tpu.memory_space<any>>) dst(%324 : memref<7x48x384xbf16, #tpu.memory_space<vmem>>)
    %c60 = arith.constant 60 : index
    %c0_212 = arith.constant 0 : index
    %327 = vector.load %arg13[%c60, %c0_212] : memref<74x48xf32, #tpu.memory_space<vmem>>, vector<1x48xf32>
    %328 = arith.truncf %327 : vector<1x48xf32> to vector<1x48xbf16>
    %c30_213 = arith.constant 30 : index
    %c0_214 = arith.constant 0 : index
    %c0_215 = arith.constant 0 : index
    %329 = vector.load %arg10[%c30_213, %c0_214, %c0_215] : memref<37x48x384xbf16, #tpu.memory_space<vmem>>, vector<1x48x384xbf16>
    %330 = vector.shape_cast %329 : vector<1x48x384xbf16> to vector<48x384xbf16>
    %cst_216 = arith.constant dense<0.000000e+00> : vector<1x384xf32>
    %331 = tpu.matmul %328, %330, %cst_216 {dimension_numbers = #tpu.dot_dimension_numbers<[1], [0], [0], [1], [0, 0, 1, 1], [], []>} : vector<1x48xbf16>, vector<48x384xbf16>, vector<1x384xf32> -> vector<1x384xf32>
    %332 = arith.addf %304, %331 : vector<1x384xf32>
    %c62 = arith.constant 62 : index
    %c0_217 = arith.constant 0 : index
    %333 = vector.load %arg13[%c62, %c0_217] : memref<74x48xf32, #tpu.memory_space<vmem>>, vector<1x48xf32>
    %334 = arith.truncf %333 : vector<1x48xf32> to vector<1x48xbf16>
    %c31 = arith.constant 31 : index
    %c0_218 = arith.constant 0 : index
    %c0_219 = arith.constant 0 : index
    %335 = vector.load %arg10[%c31, %c0_218, %c0_219] : memref<37x48x384xbf16, #tpu.memory_space<vmem>>, vector<1x48x384xbf16>
    %336 = vector.shape_cast %335 : vector<1x48x384xbf16> to vector<48x384xbf16>
    %cst_220 = arith.constant dense<0.000000e+00> : vector<1x384xf32>
    %337 = tpu.matmul %334, %336, %cst_220 {dimension_numbers = #tpu.dot_dimension_numbers<[1], [0], [0], [1], [0, 0, 1, 1], [], []>} : vector<1x48xbf16>, vector<48x384xbf16>, vector<1x384xf32> -> vector<1x384xf32>
    %338 = arith.addf %310, %337 : vector<1x384xf32>
    %c64 = arith.constant 64 : index
    %c0_221 = arith.constant 0 : index
    %339 = vector.load %arg13[%c64, %c0_221] : memref<74x48xf32, #tpu.memory_space<vmem>>, vector<1x48xf32>
    %340 = arith.truncf %339 : vector<1x48xf32> to vector<1x48xbf16>
    %c32_222 = arith.constant 32 : index
    %c0_223 = arith.constant 0 : index
    %c0_224 = arith.constant 0 : index
    %341 = vector.load %arg10[%c32_222, %c0_223, %c0_224] : memref<37x48x384xbf16, #tpu.memory_space<vmem>>, vector<1x48x384xbf16>
    %342 = vector.shape_cast %341 : vector<1x48x384xbf16> to vector<48x384xbf16>
    %cst_225 = arith.constant dense<0.000000e+00> : vector<1x384xf32>
    %343 = tpu.matmul %340, %342, %cst_225 {dimension_numbers = #tpu.dot_dimension_numbers<[1], [0], [0], [1], [0, 0, 1, 1], [], []>} : vector<1x48xbf16>, vector<48x384xbf16>, vector<1x384xf32> -> vector<1x384xf32>
    %344 = arith.addf %316, %343 : vector<1x384xf32>
    %c66 = arith.constant 66 : index
    %c0_226 = arith.constant 0 : index
    %345 = vector.load %arg13[%c66, %c0_226] : memref<74x48xf32, #tpu.memory_space<vmem>>, vector<1x48xf32>
    %346 = arith.truncf %345 : vector<1x48xf32> to vector<1x48xbf16>
    %c33 = arith.constant 33 : index
    %c0_227 = arith.constant 0 : index
    %c0_228 = arith.constant 0 : index
    %347 = vector.load %arg10[%c33, %c0_227, %c0_228] : memref<37x48x384xbf16, #tpu.memory_space<vmem>>, vector<1x48x384xbf16>
    %348 = vector.shape_cast %347 : vector<1x48x384xbf16> to vector<48x384xbf16>
    %cst_229 = arith.constant dense<0.000000e+00> : vector<1x384xf32>
    %349 = tpu.matmul %346, %348, %cst_229 {dimension_numbers = #tpu.dot_dimension_numbers<[1], [0], [0], [1], [0, 0, 1, 1], [], []>} : vector<1x48xbf16>, vector<48x384xbf16>, vector<1x384xf32> -> vector<1x384xf32>
    %350 = arith.addf %322, %349 : vector<1x384xf32>
    %c68 = arith.constant 68 : index
    %c0_230 = arith.constant 0 : index
    %351 = vector.load %arg13[%c68, %c0_230] : memref<74x48xf32, #tpu.memory_space<vmem>>, vector<1x48xf32>
    %352 = arith.truncf %351 : vector<1x48xf32> to vector<1x48xbf16>
    %c34_231 = arith.constant 34 : index
    %c0_232 = arith.constant 0 : index
    %c0_233 = arith.constant 0 : index
    %353 = vector.load %arg10[%c34_231, %c0_232, %c0_233] : memref<37x48x384xbf16, #tpu.memory_space<vmem>>, vector<1x48x384xbf16>
    %354 = vector.shape_cast %353 : vector<1x48x384xbf16> to vector<48x384xbf16>
    %cst_234 = arith.constant dense<0.000000e+00> : vector<1x384xf32>
    %355 = tpu.matmul %352, %354, %cst_234 {dimension_numbers = #tpu.dot_dimension_numbers<[1], [0], [0], [1], [0, 0, 1, 1], [], []>} : vector<1x48xbf16>, vector<48x384xbf16>, vector<1x384xf32> -> vector<1x384xf32>
    %356 = arith.addf %332, %355 : vector<1x384xf32>
    %c70 = arith.constant 70 : index
    %c0_235 = arith.constant 0 : index
    %357 = vector.load %arg13[%c70, %c0_235] : memref<74x48xf32, #tpu.memory_space<vmem>>, vector<1x48xf32>
    %358 = arith.truncf %357 : vector<1x48xf32> to vector<1x48xbf16>
    %c35 = arith.constant 35 : index
    %c0_236 = arith.constant 0 : index
    %c0_237 = arith.constant 0 : index
    %359 = vector.load %arg10[%c35, %c0_236, %c0_237] : memref<37x48x384xbf16, #tpu.memory_space<vmem>>, vector<1x48x384xbf16>
    %360 = vector.shape_cast %359 : vector<1x48x384xbf16> to vector<48x384xbf16>
    %cst_238 = arith.constant dense<0.000000e+00> : vector<1x384xf32>
    %361 = tpu.matmul %358, %360, %cst_238 {dimension_numbers = #tpu.dot_dimension_numbers<[1], [0], [0], [1], [0, 0, 1, 1], [], []>} : vector<1x48xbf16>, vector<48x384xbf16>, vector<1x384xf32> -> vector<1x384xf32>
    %362 = arith.addf %338, %361 : vector<1x384xf32>
    %c72 = arith.constant 72 : index
    %c0_239 = arith.constant 0 : index
    %363 = vector.load %arg13[%c72, %c0_239] : memref<74x48xf32, #tpu.memory_space<vmem>>, vector<1x48xf32>
    %364 = arith.truncf %363 : vector<1x48xf32> to vector<1x48xbf16>
    %c36_240 = arith.constant 36 : index
    %c0_241 = arith.constant 0 : index
    %c0_242 = arith.constant 0 : index
    %365 = vector.load %arg10[%c36_240, %c0_241, %c0_242] : memref<37x48x384xbf16, #tpu.memory_space<vmem>>, vector<1x48x384xbf16>
    %366 = vector.shape_cast %365 : vector<1x48x384xbf16> to vector<48x384xbf16>
    %cst_243 = arith.constant dense<0.000000e+00> : vector<1x384xf32>
    %367 = tpu.matmul %364, %366, %cst_243 {dimension_numbers = #tpu.dot_dimension_numbers<[1], [0], [0], [1], [0, 0, 1, 1], [], []>} : vector<1x48xbf16>, vector<48x384xbf16>, vector<1x384xf32> -> vector<1x384xf32>
    %368 = arith.addf %344, %367 : vector<1x384xf32>
    %369 = arith.addf %368, %350 : vector<1x384xf32>
    %370 = arith.addf %356, %362 : vector<1x384xf32>
    %371 = arith.addf %369, %370 : vector<1x384xf32>
    %c0_244 = arith.constant 0 : index
    %c0_245 = arith.constant 0 : index
    %372 = vector.load %arg3[%c0_244, %c0_245] : memref<1x384xf32, #tpu.memory_space<vmem>>, vector<1x384xf32>
    %373 = arith.addf %371, %372 : vector<1x384xf32>
    %cst_246 = arith.constant 0.000000e+00 : f32
    %374 = vector.broadcast %cst_246 : f32 to vector<1x384xf32>
    %375 = arith.maximumf %373, %374 : vector<1x384xf32>
    %c4_i32_247 = arith.constant 4 : i32
    %376 = tpu.memref_slice %arg14[%c4_i32_247] : memref<6x!tpu.dma_semaphore, #tpu.memory_space<semaphore_mem>> -> memref<1x!tpu.dma_semaphore, #tpu.memory_space<semaphore_mem>>
    %377 = tpu.memref_squeeze %376 : memref<1x!tpu.dma_semaphore, #tpu.memory_space<semaphore_mem>> -> memref<!tpu.dma_semaphore, #tpu.memory_space<semaphore_mem>>
    tpu.wait_dma2 semaphore(%377 : memref<!tpu.dma_semaphore, #tpu.memory_space<semaphore_mem>>) src(%arg7 : memref<384x128xbf16, #tpu.memory_space<any>>) dst(%arg11 : memref<384x128xbf16, #tpu.memory_space<vmem>>)
    %378 = arith.truncf %375 : vector<1x384xf32> to vector<1x384xbf16>
    %c0_248 = arith.constant 0 : index
    %c0_249 = arith.constant 0 : index
    %379 = vector.load %arg11[%c0_248, %c0_249] : memref<384x128xbf16, #tpu.memory_space<vmem>>, vector<384x128xbf16>
    %cst_250 = arith.constant dense<0.000000e+00> : vector<1x128xf32>
    %380 = tpu.matmul %378, %379, %cst_250 {dimension_numbers = #tpu.dot_dimension_numbers<[1], [0], [0], [1], [0, 0, 1, 1], [], []>} : vector<1x384xbf16>, vector<384x128xbf16>, vector<1x128xf32> -> vector<1x128xf32>
    %c0_251 = arith.constant 0 : index
    %c0_252 = arith.constant 0 : index
    %381 = vector.load %arg4[%c0_251, %c0_252] : memref<1x128xf32, #tpu.memory_space<vmem>>, vector<1x128xf32>
    %382 = arith.addf %380, %381 : vector<1x128xf32>
    %cst_253 = arith.constant 0.000000e+00 : f32
    %383 = vector.broadcast %cst_253 : f32 to vector<1x128xf32>
    %384 = arith.maximumf %382, %383 : vector<1x128xf32>
    %c5_i32_254 = arith.constant 5 : i32
    %385 = tpu.memref_slice %arg14[%c5_i32_254] : memref<6x!tpu.dma_semaphore, #tpu.memory_space<semaphore_mem>> -> memref<1x!tpu.dma_semaphore, #tpu.memory_space<semaphore_mem>>
    %386 = tpu.memref_squeeze %385 : memref<1x!tpu.dma_semaphore, #tpu.memory_space<semaphore_mem>> -> memref<!tpu.dma_semaphore, #tpu.memory_space<semaphore_mem>>
    tpu.wait_dma2 semaphore(%386 : memref<!tpu.dma_semaphore, #tpu.memory_space<semaphore_mem>>) src(%arg8 : memref<128x128xbf16, #tpu.memory_space<any>>) dst(%arg12 : memref<128x128xbf16, #tpu.memory_space<vmem>>)
    %387 = arith.truncf %384 : vector<1x128xf32> to vector<1x128xbf16>
    %c0_255 = arith.constant 0 : index
    %c0_256 = arith.constant 0 : index
    %388 = vector.load %arg12[%c0_255, %c0_256] : memref<128x128xbf16, #tpu.memory_space<vmem>>, vector<128x128xbf16>
    %cst_257 = arith.constant dense<0.000000e+00> : vector<1x128xf32>
    %389 = tpu.matmul %387, %388, %cst_257 {dimension_numbers = #tpu.dot_dimension_numbers<[1], [0], [0], [1], [0, 0, 1, 1], [], []>} : vector<1x128xbf16>, vector<128x128xbf16>, vector<1x128xf32> -> vector<1x128xf32>
    %c0_258 = arith.constant 0 : index
    %c0_259 = arith.constant 0 : index
    %390 = vector.load %arg5[%c0_258, %c0_259] : memref<1x128xf32, #tpu.memory_space<vmem>>, vector<1x128xf32>
    %391 = arith.addf %389, %390 : vector<1x128xf32>
    %c0_260 = arith.constant 0 : index
    %c0_261 = arith.constant 0 : index
    %392 = vector.load %arg9[%c0_260, %c0_261] : memref<1x128xf32, #tpu.memory_space<vmem>>, vector<1x128xf32>
    tpu.vector_store %arg9[%c0_260, %c0_261], %391 {strides = array<i32>} : memref<1x128xf32, #tpu.memory_space<vmem>>, vector<1x128xf32>,
    return
  }
}

</mosaic_0001>

<llo_original>
// kernel: convnet2_forward.1
$region0: #{convnet2_forward.1}
  #allocation0 [shape = 'u32[]', space=smem, size = 0x4, offset = 0x4, fixed_abs, tag = 'smem constant byte address 0x4 - core index']
  #allocation1 [shape = 'u32[144,128]{1,0:T(1,128)}', space=vmem, size = 0x12000, scoped, tag = 'internal scratch']
  #allocation2 [shape = 'bf16[37,48,384]{2,1,0:T(16,128)(2,1)}', space=vmem, size = 0x14d000, scoped, tag = 'scratch operand']
  #allocation3 [shape = 'bf16[384,128]{1,0:T(16,128)(2,1)}', space=vmem, size = 0x18000, scoped, tag = 'scratch operand']
  #allocation4 [shape = 'bf16[128,128]{1,0:T(16,128)(2,1)}', space=vmem, size = 0x8000, scoped, tag = 'scratch operand']
  #allocation5 [shape = 'f32[74,48]{1,0:T(8,128)}', space=vmem, size = 0xa000, scoped, tag = 'scratch operand']
  #allocation6 [shape = 's32[6]{0}', space=sflag, size = 0x18, scoped, tag = 'scratch operand']
  #allocation7 [shape = 'f32[1]{0:T(128)S(6)}', space=smem, size = 0x200, scoped, tag = 'scoped memory for convnet2_forward.1']
  #allocation19 [shape = 's32[]', space=sflag, size = 0x4, offset = 0, fixed_abs, tag = 'sflag constant byte address 0x0 - dummy sync flag']
  #allocation21 [shape = 's32[]', space=sflag, size = 0x4, offset = 0, fixed_abs, tag = 'sflag constant byte address 0x0 - dummy sync flag']
  #allocation23 [shape = 's32[]', space=sflag, size = 0x4, offset = 0, fixed_abs, tag = 'sflag constant byte address 0x0 - dummy sync flag']
  #allocation25 [shape = 's32[]', space=sflag, size = 0x4, offset = 0, fixed_abs, tag = 'sflag constant byte address 0x0 - dummy sync flag']
  #allocation27 [shape = 's32[]', space=sflag, size = 0x4, offset = 0, fixed_abs, tag = 'sflag constant byte address 0x0 - dummy sync flag']
  #allocation28 [shape = 's32[]', space=sflag, size = 0x4, offset = 0, fixed_abs, tag = 'sflag constant byte address 0x0 - dummy sync flag']
  #allocation29 [shape = 'u32[]', space=smem, size = 0x4, offset = 0x44, fixed_abs, tag = 'smem constant byte address 0x44 - assertion arg 0']
  #allocation30 [shape = 'u32[]', space=smem, size = 0x4, offset = 0x48, fixed_abs, tag = 'smem constant byte address 0x48 - assertion arg 1']
  #allocation31 [shape = 's32[]', space=sflag, size = 0x4, offset = 0, fixed_abs, tag = 'sflag constant byte address 0x0 - dummy sync flag']
  #allocation32 [shape = 's32[]', space=sflag, size = 0x4, offset = 0, fixed_abs, tag = 'sflag constant byte address 0x0 - dummy sync flag']
  %s0 = inlined_call_operand.hbm [shape: f32[16], index: 0, kind: input, shape index: {}]
  %s1 = inlined_call_operand.<no memory space> [shape: f32[1], index: 1, kind: input, shape index: {}]
  %s2 = inlined_call_operand.hbm [shape: f32[78,78], index: 2, kind: input, shape index: {}]
  %s3 = inlined_call_operand.hbm [shape: f32[1,384], index: 3, kind: input, shape index: {}]
  %s4 = inlined_call_operand.hbm [shape: f32[1,128], index: 4, kind: input, shape index: {}]
  %s5 = inlined_call_operand.hbm [shape: f32[1,128], index: 5, kind: input, shape index: {}]
  %s6 = inlined_call_operand.hbm [shape: bf16[37,48,384], index: 6, kind: input, shape index: {}]
  %s7 = inlined_call_operand.hbm [shape: bf16[384,128], index: 7, kind: input, shape index: {}]
  %s8 = inlined_call_operand.hbm [shape: bf16[128,128], index: 8, kind: input, shape index: {}]
  %s9 = inlined_call_operand.hbm [shape: f32[1,128], index: 9, kind: output, shape index: {}]
  %s10 = sld [smem:[#allocation0]]
  $region62: #{convnet2_forward.1} parent=0
    _
  %s12 = ssub.s32 1, %s10
  %s13 = scalar_select 0, %s12, %s10
  %14 = sst [smem:[#allocation7]] %s1
  $region1: #{convnet2_forward.1} parent=0
    #allocation8 [shape = 'u8[512]{0}', space=smem, size = 0x200, scoped, tag = 'input window, operand 0, single buffered']
    #allocation9 [shape = 's32[1]{0}', space=sflag, size = 0x4, scoped, tag = 'scoped memory for convnet2_forward.1']
    #allocation10 [shape = 's32[1]{0}', space=sflag, size = 0x4, scoped, tag = 'scoped memory for convnet2_forward.1']
    #allocation11 [shape = 's32[1]{0}', space=sflag, size = 0x4, scoped, tag = 'scoped memory for convnet2_forward.1']
    #allocation12 [shape = 'u8[40960]{0}', space=vmem, size = 0xa000, scoped, tag = 'input window, operand 2, single buffered']
    #allocation13 [shape = 'u8[1536]{0}', space=vmem, size = 0x800, scoped, tag = 'input window, operand 3, single buffered']
    #allocation14 [shape = 's32[1]{0}', space=sflag, size = 0x4, scoped, tag = 'scoped memory for convnet2_forward.1']
    #allocation15 [shape = 'u8[512]{0}', space=vmem, size = 0x400, scoped, tag = 'input window, operand 4, single buffered']
    #allocation16 [shape = 'u8[512]{0}', space=vmem, size = 0x400, scoped, tag = 'input window, operand 5, single buffered']
    #allocation17 [shape = 's32[1]{0}', space=sflag, size = 0x4, scoped, tag = 'scoped memory for convnet2_forward.1']
    #allocation18 [shape = 'u8[512]{0}', space=vmem, size = 0x400, scoped, tag = 'output window, operand 0, single buffered']
    #allocation20 [shape = 'u32[9]{0}', space=smem, size = 0x24, scoped, tag = 'DMA stride descriptor']
    #allocation22 [shape = 'u32[9]{0}', space=smem, size = 0x24, scoped, tag = 'DMA stride descriptor']
    #allocation24 [shape = 'u32[9]{0}', space=smem, size = 0x24, scoped, tag = 'DMA stride descriptor']
    #allocation26 [shape = 'u32[9]{0}', space=smem, size = 0x24, scoped, tag = 'DMA stride descriptor']
    %15 = vsyncpa [#allocation11], 0
    %16 = vsyncpa [#allocation9], 0
    %17 = vsyncpa [#allocation14], 0
    %18 = vsyncpa [#allocation17], 0
    %19 = vsyncpa [#allocation10], 0
    // Predicated region
    $region2: #{convnet2_forward.1} parent=1 // pred_check
      _
    $region3: #{convnet2_forward.1} parent=1 // pred_check_branch
      %21 = sbr.rel (0) target = $region5
    $region4: #{convnet2_forward.1} parent=1 // pred_region
      %s23 = ssub.s32 16, 16
      %24 = vsyncadd [#allocation11], %s23
      %27 = dma.hbm_to_smem %s0, 16, [#allocation8], [#allocation11]
    $region5: #{convnet2_forward.1} parent=1 // pred_fallthru
      _
    // Predicated region
    $region6: #{convnet2_forward.1} parent=1 // pred_check
      _
    $region7: #{convnet2_forward.1} parent=1 // pred_check_branch
      %29 = sbr.rel (0) target = $region9
    $region8: #{convnet2_forward.1} parent=1 // pred_region
      _
    $region9: #{convnet2_forward.1} parent=1 // pred_fallthru
      _
    // Predicated region
    $region10: #{convnet2_forward.1} parent=1 // pred_check
      _
    $region11: #{convnet2_forward.1} parent=1 // pred_check_branch
      %31 = sbr.rel (0) target = $region13
    $region12: #{convnet2_forward.1} parent=1 // pred_region
      %s33 = ssub.s32 1280, 1280
      %34 = vsyncadd [#allocation9], %s33
      %s35 = sshll.u32 [#allocation12], 4
      %s36 = int_to_ptr.vmem [resolvable:$true] %s35
      %41 = dma.hbm_to_vmem [thread:$0]  %s2, 1280, %s36, [#allocation9], 128, 128, 8
    $region13: #{convnet2_forward.1} parent=1 // pred_fallthru
      _
    // Predicated region
    $region14: #{convnet2_forward.1} parent=1 // pred_check
      _
    $region15: #{convnet2_forward.1} parent=1 // pred_check_branch
      %43 = sbr.rel (0) target = $region17
    $region16: #{convnet2_forward.1} parent=1 // pred_region
      %s45 = ssub.s32 48, 48
      %46 = vsyncadd [#allocation14], %s45
      %s48 = sshll.u32 [#allocation13], 4
      %s49 = int_to_ptr.vmem [resolvable:$true] %s48
      %51 = dma.hbm_to_vmem [thread:$0]  %s3, 48, %s49, [#allocation14]
    $region17: #{convnet2_forward.1} parent=1 // pred_fallthru
      _
    // Predicated region
    $region18: #{convnet2_forward.1} parent=1 // pred_check
      _
    $region19: #{convnet2_forward.1} parent=1 // pred_check_branch
      %53 = sbr.rel (0) target = $region21
    $region20: #{convnet2_forward.1} parent=1 // pred_region
      %s55 = ssub.s32 16, 16
      %56 = vsyncadd [#allocation14], %s55
      %s58 = sshll.u32 [#allocation15], 4
      %s59 = int_to_ptr.vmem [resolvable:$true] %s58
      %61 = dma.hbm_to_vmem [thread:$0]  %s4, 16, %s59, [#allocation14]
    $region21: #{convnet2_forward.1} parent=1 // pred_fallthru
      _
    // Predicated region
    $region22: #{convnet2_forward.1} parent=1 // pred_check
      _
    $region23: #{convnet2_forward.1} parent=1 // pred_check_branch
      %63 = sbr.rel (0) target = $region25
    $region24: #{convnet2_forward.1} parent=1 // pred_region
      %s65 = ssub.s32 16, 16
      %66 = vsyncadd [#allocation17], %s65
      %s68 = sshll.u32 [#allocation16], 4
      %s69 = int_to_ptr.vmem [resolvable:$true] %s68
      %71 = dma.hbm_to_vmem [thread:$0]  %s5, 16, %s69, [#allocation17]
    $region25: #{convnet2_forward.1} parent=1 // pred_fallthru
      _
    // Predicated region
    $region26: #{convnet2_forward.1} parent=1 // pred_check
      _
    $region27: #{convnet2_forward.1} parent=1 // pred_check_branch
      %73 = sbr.rel (0) target = $region29
    $region28: #{convnet2_forward.1} parent=1 // pred_region
      %74 = dma.done [#allocation11], 16
    $region29: #{convnet2_forward.1} parent=1 // pred_fallthru
      _
    // Predicated region
    $region30: #{convnet2_forward.1} parent=1 // pred_check
      _
    $region31: #{convnet2_forward.1} parent=1 // pred_check_branch
      %76 = sbr.rel (0) target = $region33
    $region32: #{convnet2_forward.1} parent=1 // pred_region
      %77 = dma.done [#allocation9], 1280
    $region33: #{convnet2_forward.1} parent=1 // pred_fallthru
      _
    // Predicated region
    $region34: #{convnet2_forward.1} parent=1 // pred_check
      _
    $region35: #{convnet2_forward.1} parent=1 // pred_check_branch
      %79 = sbr.rel (0) target = $region37
    $region36: #{convnet2_forward.1} parent=1 // pred_region
      %80 = dma.done [#allocation14], 48
    $region37: #{convnet2_forward.1} parent=1 // pred_fallthru
      _
    // Predicated region
    $region38: #{convnet2_forward.1} parent=1 // pred_check
      _
    $region39: #{convnet2_forward.1} parent=1 // pred_check_branch
      %82 = sbr.rel (0) target = $region41
    $region40: #{convnet2_forward.1} parent=1 // pred_region
      %83 = dma.done [#allocation14], 16
    $region41: #{convnet2_forward.1} parent=1 // pred_fallthru
      _
    // Predicated region
    $region42: #{convnet2_forward.1} parent=1 // pred_check
      _
    $region43: #{convnet2_forward.1} parent=1 // pred_check_branch
      %85 = sbr.rel (0) target = $region45
    $region44: #{convnet2_forward.1} parent=1 // pred_region
      %86 = dma.done [#allocation17], 16
    $region45: #{convnet2_forward.1} parent=1 // pred_fallthru
      _
    %87 = sfence
    %s90 = sshll.u32 1, 14
    %s91 = sxor.u32 4294967295, %s90
    %s93 = sld [smem:[#allocation0]]
    %s94 = sadd.s32 2, %s93
    %s96 = sshll.u32 7, 26
    %s97 = sxor.u32 4294967295, %s96
    %s98 = sand.u32 0, %s97
    %s99 = sshll.u32 %s94, 26
    %s100 = sor.u32 %s98, %s99
    %s101 = sshll.u32 [#allocation2], 4
    %s102 = int_to_ptr.vmem [resolvable:$true] %s101
    %105 = sst [smem:[#allocation20]] 384
    %s106 = scalar_lea.smem [#allocation20], 1
    %107 = sst [smem:[%s106]] 384
    %s108 = scalar_lea.smem [#allocation20], 2
    %109 = sst [smem:[%s108]] 3
    %s110 = scalar_lea.smem [#allocation20], 3
    %111 = sst [smem:[%s110]] 64
    %s112 = scalar_lea.smem [#allocation20], 4
    %113 = sst [smem:[%s112]] 128
    %s114 = scalar_lea.smem [#allocation20], 5
    %115 = sst [smem:[%s114]] 2
    %s116 = scalar_lea.smem [#allocation20], 6
    %117 = sst [smem:[%s116]] 192
    %s118 = scalar_lea.smem [#allocation20], 7
    %119 = sst [smem:[%s118]] 64
    %s120 = scalar_lea.smem [#allocation20], 8
    %121 = sst [smem:[%s120]] 4
    %123 = dma.general %s6, 11520, %s102, [#allocation6], [#allocation19], [#allocation20], %s100, 0
    %s124 = scalar_lea.hbm %s6, 11520
    %s125 = scalar_lea.vmem [#allocation2], 720
    %s126 = scalar_lea.sflag [#allocation6], 1
    %s128 = sshll.u32 1, 14
    %s129 = sxor.u32 4294967295, %s128
    %s131 = sadd.s32 2, %s93
    %s133 = sshll.u32 7, 26
    %s134 = sxor.u32 4294967295, %s133
    %s135 = sand.u32 0, %s134
    %s136 = sshll.u32 %s131, 26
    %s137 = sor.u32 %s135, %s136
    %s138 = sshll.u32 %s125, 4
    %s139 = int_to_ptr.vmem [resolvable:$true] %s138
    %142 = sst [smem:[#allocation22]] 384
    %s143 = scalar_lea.smem [#allocation22], 1
    %144 = sst [smem:[%s143]] 384
    %s145 = scalar_lea.smem [#allocation22], 2
    %146 = sst [smem:[%s145]] 3
    %s147 = scalar_lea.smem [#allocation22], 3
    %148 = sst [smem:[%s147]] 64
    %s149 = scalar_lea.smem [#allocation22], 4
    %150 = sst [smem:[%s149]] 128
    %s151 = scalar_lea.smem [#allocation22], 5
    %152 = sst [smem:[%s151]] 2
    %s153 = scalar_lea.smem [#allocation22], 6
    %154 = sst [smem:[%s153]] 192
    %s155 = scalar_lea.smem [#allocation22], 7
    %156 = sst [smem:[%s155]] 64
    %s157 = scalar_lea.smem [#allocation22], 8
    %158 = sst [smem:[%s157]] 4
    %160 = dma.general %s124, 11520, %s139, %s126, [#allocation21], [#allocation22], %s137, 0
    %s161 = scalar_lea.hbm %s6, 23040
    %s162 = scalar_lea.vmem [#allocation2], 1440
    %s163 = scalar_lea.sflag [#allocation6], 2
    %s165 = sshll.u32 1, 14
    %s166 = sxor.u32 4294967295, %s165
    %s168 = sadd.s32 2, %s93
    %s170 = sshll.u32 7, 26
    %s171 = sxor.u32 4294967295, %s170
    %s172 = sand.u32 0, %s171
    %s173 = sshll.u32 %s168, 26
    %s174 = sor.u32 %s172, %s173
    %s175 = sshll.u32 %s162, 4
    %s176 = int_to_ptr.vmem [resolvable:$true] %s175
    %179 = sst [smem:[#allocation24]] 384
    %s180 = scalar_lea.smem [#allocation24], 1
    %181 = sst [smem:[%s180]] 384
    %s182 = scalar_lea.smem [#allocation24], 2
    %183 = sst [smem:[%s182]] 3
    %s184 = scalar_lea.smem [#allocation24], 3
    %185 = sst [smem:[%s184]] 64
    %s186 = scalar_lea.smem [#allocation24], 4
    %187 = sst [smem:[%s186]] 128
    %s188 = scalar_lea.smem [#allocation24], 5
    %189 = sst [smem:[%s188]] 2
    %s190 = scalar_lea.smem [#allocation24], 6
    %191 = sst [smem:[%s190]] 192
    %s192 = scalar_lea.smem [#allocation24], 7
    %193 = sst [smem:[%s192]] 64
    %s194 = scalar_lea.smem [#allocation24], 8
    %195 = sst [smem:[%s194]] 4
    %197 = dma.general %s161, 11520, %s176, %s163, [#allocation23], [#allocation24], %s174, 0
    %s198 = scalar_lea.hbm %s6, 34560
    %s199 = scalar_lea.vmem [#allocation2], 2160
    %s200 = scalar_lea.sflag [#allocation6], 3
    %s202 = sshll.u32 1, 14
    %s203 = sxor.u32 4294967295, %s202
    %s205 = sadd.s32 2, %s93
    %s207 = sshll.u32 7, 26
    %s208 = sxor.u32 4294967295, %s207
    %s209 = sand.u32 0, %s208
    %s210 = sshll.u32 %s205, 26
    %s211 = sor.u32 %s209, %s210
    %s212 = sshll.u32 %s199, 4
    %s213 = int_to_ptr.vmem [resolvable:$true] %s212
    %216 = sst [smem:[#allocation26]] 384
    %s217 = scalar_lea.smem [#allocation26], 1
    %218 = sst [smem:[%s217]] 384
    %s219 = scalar_lea.smem [#allocation26], 2
    %220 = sst [smem:[%s219]] 3
    %s221 = scalar_lea.smem [#allocation26], 3
    %222 = sst [smem:[%s221]] 64
    %s223 = scalar_lea.smem [#allocation26], 4
    %224 = sst [smem:[%s223]] 128
    %s225 = scalar_lea.smem [#allocation26], 5
    %226 = sst [smem:[%s225]] 2
    %s227 = scalar_lea.smem [#allocation26], 6
    %228 = sst [smem:[%s227]] 192
    %s229 = scalar_lea.smem [#allocation26], 7
    %230 = sst [smem:[%s229]] 64
    %s231 = scalar_lea.smem [#allocation26], 8
    %232 = sst [smem:[%s231]] 4
    %234 = dma.general %s198, 8064, %s213, %s200, [#allocation25], [#allocation26], %s211, 0
    %s235 = scalar_lea.sflag [#allocation6], 4
    // Predicated region
    $region46: #{convnet2_forward.1} parent=1 // pred_check
      _
    $region47: #{convnet2_forward.1} parent=1 // pred_check_branch
      %237 = sbr.rel target = $region49
    $region48: #{convnet2_forward.1} parent=1 // pred_region
      %238 = sst [smem:[#allocation29]] [#allocation28]
      %239 = sst [smem:[#allocation30]] [#allocation27]
    $region49: #{convnet2_forward.1} parent=1 // pred_fallthru
      _
    %241 = shalt.err (0)
    %s243 = sshll.u32 [#allocation3], 4
    %s244 = int_to_ptr.vmem [resolvable:$true] %s243
    %246 = dma.hbm_to_vmem [thread:$0]  %s7, 3072, %s244, %s235
    %s247 = scalar_lea.sflag [#allocation6], 5
    // Predicated region
    $region50: #{convnet2_forward.1} parent=1 // pred_check
      _
    $region51: #{convnet2_forward.1} parent=1 // pred_check_branch
      %249 = sbr.rel target = $region53
    $region52: #{convnet2_forward.1} parent=1 // pred_region
      %250 = sst [smem:[#allocation29]] [#allocation32]
      %251 = sst [smem:[#allocation30]] [#allocation31]
    $region53: #{convnet2_forward.1} parent=1 // pred_fallthru
      _
    %253 = shalt.err (0)
    %s255 = sshll.u32 [#allocation4], 4
    %s256 = int_to_ptr.vmem [resolvable:$true] %s255
    %258 = dma.hbm_to_vmem [thread:$0]  %s8, 1024, %s256, %s247
    %v259 = vld [vmem:[#allocation12] sm:$0xff]
    %v260 = vld [vmem:[#allocation12 + $0x8] sm:$0xff]
    %v261 = vld [vmem:[#allocation12 + $0x10] sm:$0xff]
    %v262 = vld [vmem:[#allocation12 + $0x18] sm:$0xff]
    %v263 = vld [vmem:[#allocation12 + $0x20] sm:$0xff]
    %v264 = vld [vmem:[#allocation12 + $0x28] sm:$0xff]
    %v265 = vld [vmem:[#allocation12 + $0x30] sm:$0xff]
    %v266 = vld [vmem:[#allocation12 + $0x38] sm:$0xff]
    %v267 = vld [vmem:[#allocation12 + $0x40] sm:$0xff]
    %v268 = vld [vmem:[#allocation12 + $0x48] sm:$0x3f]
    %s269 = sld [smem:[#allocation8]]
    %v270 = vstv %s269
    %v271 = vmul.f32 %v270, %v259
    %v272 = vmul.f32 %v270, %v260
    %v273 = vmul.f32 %v270, %v261
    %v274 = vmul.f32 %v270, %v262
    %v275 = vmul.f32 %v270, %v263
    %v276 = vmul.f32 %v270, %v264
    %v277 = vmul.f32 %v270, %v265
    %v278 = vmul.f32 %v270, %v266
    %v279 = vmul.f32 %v270, %v267
    %v280 = vmul.f32 %v270, %v268
    %v281 = vadd.f32 %v271, 0.0
    %v282 = vadd.f32 %v272, 0.0
    %v283 = vadd.f32 %v273, 0.0
    %v284 = vadd.f32 %v274, 0.0
    %v285 = vadd.f32 %v275, 0.0
    %v286 = vadd.f32 %v276, 0.0
    %v287 = vadd.f32 %v277, 0.0
    %v288 = vadd.f32 %v278, 0.0
    %v289 = vadd.f32 %v279, 0.0
    %v290 = vadd.f32 %v280, 0.0
    %s291 = sld [smem:[#allocation8 + $0x4]]
    %v292 = vstv %s291
    %v293 = vmul.f32 %v292, %v259
    %v294 = vmul.f32 %v292, %v260
    %v295 = vmul.f32 %v292, %v261
    %v296 = vmul.f32 %v292, %v262
    %v297 = vmul.f32 %v292, %v263
    %v298 = vmul.f32 %v292, %v264
    %v299 = vmul.f32 %v292, %v265
    %v300 = vmul.f32 %v292, %v266
    %v301 = vmul.f32 %v292, %v267
    %v302 = vmul.f32 %v292, %v268
    %vm313 = vcmask 1046528
    %v314 = vrot.slane %v293, 1
    %v315 = vrot.slane %v294, 1
    %v316 = vsel %vm313, %v314, %v315
    %v317 = vrot.slane %v295, 1
    %v318 = vsel %vm313, %v315, %v317
    %v319 = vrot.slane %v296, 1
    %v320 = vsel %vm313, %v317, %v319
    %v321 = vrot.slane %v297, 1
    %v322 = vsel %vm313, %v319, %v321
    %v323 = vrot.slane %v298, 1
    %v324 = vsel %vm313, %v321, %v323
    %v325 = vrot.slane %v299, 1
    %v326 = vsel %vm313, %v323, %v325
    %v327 = vrot.slane %v300, 1
    %v328 = vsel %vm313, %v325, %v327
    %v329 = vrot.slane %v301, 1
    %v330 = vsel %vm313, %v327, %v329
    %v331 = vrot.slane %v302, 1
    %v332 = vsel %vm313, %v329, %v331
    %v343 = vadd.f32 %v281, %v316
    %v344 = vadd.f32 %v282, %v318
    %v345 = vadd.f32 %v283, %v320
    %v346 = vadd.f32 %v284, %v322
    %v347 = vadd.f32 %v285, %v324
    %v348 = vadd.f32 %v286, %v326
    %v349 = vadd.f32 %v287, %v328
    %v350 = vadd.f32 %v288, %v330
    %v351 = vadd.f32 %v289, %v332
    %v352 = vadd.f32 %v290, %v331
    %s353 = sld [smem:[#allocation8 + $0x8]]
    %v354 = vstv %s353
    %v355 = vmul.f32 %v354, %v259
    %v356 = vmul.f32 %v354, %v260
    %v357 = vmul.f32 %v354, %v261
    %v358 = vmul.f32 %v354, %v262
    %v359 = vmul.f32 %v354, %v263
    %v360 = vmul.f32 %v354, %v264
    %v361 = vmul.f32 %v354, %v265
    %v362 = vmul.f32 %v354, %v266
    %v363 = vmul.f32 %v354, %v267
    %v364 = vmul.f32 %v354, %v268
    %vm375 = vcmask 1045504
    %v376 = vrot.slane %v355, 2
    %v377 = vrot.slane %v356, 2
    %v378 = vsel %vm375, %v376, %v377
    %v379 = vrot.slane %v357, 2
    %v380 = vsel %vm375, %v377, %v379
    %v381 = vrot.slane %v358, 2
    %v382 = vsel %vm375, %v379, %v381
    %v383 = vrot.slane %v359, 2
    %v384 = vsel %vm375, %v381, %v383
    %v385 = vrot.slane %v360, 2
    %v386 = vsel %vm375, %v383, %v385
    %v387 = vrot.slane %v361, 2
    %v388 = vsel %vm375, %v385, %v387
    %v389 = vrot.slane %v362, 2
    %v390 = vsel %vm375, %v387, %v389
    %v391 = vrot.slane %v363, 2
    %v392 = vsel %vm375, %v389, %v391
    %v393 = vrot.slane %v364, 2
    %v394 = vsel %vm375, %v391, %v393
    %v405 = vadd.f32 %v343, %v378
    %v406 = vadd.f32 %v344, %v380
    %v407 = vadd.f32 %v345, %v382
    %v408 = vadd.f32 %v346, %v384
    %v409 = vadd.f32 %v347, %v386
    %v410 = vadd.f32 %v348, %v388
    %v411 = vadd.f32 %v349, %v390
    %v412 = vadd.f32 %v350, %v392
    %v413 = vadd.f32 %v351, %v394
    %v414 = vadd.f32 %v352, %v393
    %s415 = sld [smem:[#allocation8 + $0xc]]
    %v416 = vstv %s415
    %v417 = vmul.f32 %v416, %v259
    %v418 = vmul.f32 %v416, %v260
    %v419 = vmul.f32 %v416, %v261
    %v420 = vmul.f32 %v416, %v262
    %v421 = vmul.f32 %v416, %v263
    %v422 = vmul.f32 %v416, %v264
    %v423 = vmul.f32 %v416, %v265
    %v424 = vmul.f32 %v416, %v266
    %v425 = vmul.f32 %v416, %v267
    %v426 = vmul.f32 %v416, %v268
    %vm437 = vcmask 1044480
    %v438 = vrot.slane %v417, 3
    %v439 = vrot.slane %v418, 3
    %v440 = vsel %vm437, %v438, %v439
    %v441 = vrot.slane %v419, 3
    %v442 = vsel %vm437, %v439, %v441
    %v443 = vrot.slane %v420, 3
    %v444 = vsel %vm437, %v441, %v443
    %v445 = vrot.slane %v421, 3
    %v446 = vsel %vm437, %v443, %v445
    %v447 = vrot.slane %v422, 3
    %v448 = vsel %vm437, %v445, %v447
    %v449 = vrot.slane %v423, 3
    %v450 = vsel %vm437, %v447, %v449
    %v451 = vrot.slane %v424, 3
    %v452 = vsel %vm437, %v449, %v451
    %v453 = vrot.slane %v425, 3
    %v454 = vsel %vm437, %v451, %v453
    %v455 = vrot.slane %v426, 3
    %v456 = vsel %vm437, %v453, %v455
    %v467 = vadd.f32 %v405, %v440
    %v468 = vadd.f32 %v406, %v442
    %v469 = vadd.f32 %v407, %v444
    %v470 = vadd.f32 %v408, %v446
    %v471 = vadd.f32 %v409, %v448
    %v472 = vadd.f32 %v410, %v450
    %v473 = vadd.f32 %v411, %v452
    %v474 = vadd.f32 %v412, %v454
    %v475 = vadd.f32 %v413, %v456
    %v476 = vadd.f32 %v414, %v455
    %s477 = sld [smem:[#allocation8 + $0x1]]
    %v478 = vstv %s477
    %v479 = vmul.f32 %v478, %v259
    %v480 = vmul.f32 %v478, %v260
    %v481 = vmul.f32 %v478, %v261
    %v482 = vmul.f32 %v478, %v262
    %v483 = vmul.f32 %v478, %v263
    %v484 = vmul.f32 %v478, %v264
    %v485 = vmul.f32 %v478, %v265
    %v486 = vmul.f32 %v478, %v266
    %v487 = vmul.f32 %v478, %v267
    %v488 = vmul.f32 %v478, %v268
    %499 = vrot.lane.b32.xlu0 %v479, 127
    %v500 = vpop.permute.xlu0 %499
    %501 = vrot.lane.b32.xlu0 %v480, 127
    %v502 = vpop.permute.xlu0 %501
    %503 = vrot.lane.b32.xlu0 %v481, 127
    %v504 = vpop.permute.xlu0 %503
    %505 = vrot.lane.b32.xlu0 %v482, 127
    %v506 = vpop.permute.xlu0 %505
    %507 = vrot.lane.b32.xlu0 %v483, 127
    %v508 = vpop.permute.xlu0 %507
    %509 = vrot.lane.b32.xlu0 %v484, 127
    %v510 = vpop.permute.xlu0 %509
    %511 = vrot.lane.b32.xlu0 %v485, 127
    %v512 = vpop.permute.xlu0 %511
    %513 = vrot.lane.b32.xlu0 %v486, 127
    %v514 = vpop.permute.xlu0 %513
    %515 = vrot.lane.b32.xlu0 %v487, 127
    %v516 = vpop.permute.xlu0 %515
    %517 = vrot.lane.b32.xlu0 %v488, 127
    %v518 = vpop.permute.xlu0 %517
    %v529 = vadd.f32 %v467, %v500
    %v530 = vadd.f32 %v468, %v502
    %v531 = vadd.f32 %v469, %v504
    %v532 = vadd.f32 %v470, %v506
    %v533 = vadd.f32 %v471, %v508
    %v534 = vadd.f32 %v472, %v510
    %v535 = vadd.f32 %v473, %v512
    %v536 = vadd.f32 %v474, %v514
    %v537 = vadd.f32 %v475, %v516
    %v538 = vadd.f32 %v476, %v518
    %s539 = sld [smem:[#allocation8 + $0x5]]
    %v540 = vstv %s539
    %v541 = vmul.f32 %v540, %v259
    %v542 = vmul.f32 %v540, %v260
    %v543 = vmul.f32 %v540, %v261
    %v544 = vmul.f32 %v540, %v262
    %v545 = vmul.f32 %v540, %v263
    %v546 = vmul.f32 %v540, %v264
    %v547 = vmul.f32 %v540, %v265
    %v548 = vmul.f32 %v540, %v266
    %v549 = vmul.f32 %v540, %v267
    %v550 = vmul.f32 %v540, %v268
    %v561 = vrot.slane %v541, 1
    %v562 = vrot.slane %v542, 1
    %v563 = vsel %vm313, %v561, %v562
    %v564 = vrot.slane %v543, 1
    %v565 = vsel %vm313, %v562, %v564
    %v566 = vrot.slane %v544, 1
    %v567 = vsel %vm313, %v564, %v566
    %v568 = vrot.slane %v545, 1
    %v569 = vsel %vm313, %v566, %v568
    %v570 = vrot.slane %v546, 1
    %v571 = vsel %vm313, %v568, %v570
    %v572 = vrot.slane %v547, 1
    %v573 = vsel %vm313, %v570, %v572
    %v574 = vrot.slane %v548, 1
    %v575 = vsel %vm313, %v572, %v574
    %v576 = vrot.slane %v549, 1
    %v577 = vsel %vm313, %v574, %v576
    %v578 = vrot.slane %v550, 1
    %v579 = vsel %vm313, %v576, %v578
    %580 = vrot.lane.b32.xlu0 %v563, 127
    %v581 = vpop.permute.xlu0 %580
    %582 = vrot.lane.b32.xlu0 %v565, 127
    %v583 = vpop.permute.xlu0 %582
    %584 = vrot.lane.b32.xlu0 %v567, 127
    %v585 = vpop.permute.xlu0 %584
    %586 = vrot.lane.b32.xlu0 %v569, 127
    %v587 = vpop.permute.xlu0 %586
    %588 = vrot.lane.b32.xlu0 %v571, 127
    %v589 = vpop.permute.xlu0 %588
    %590 = vrot.lane.b32.xlu0 %v573, 127
    %v591 = vpop.permute.xlu0 %590
    %592 = vrot.lane.b32.xlu0 %v575, 127
    %v593 = vpop.permute.xlu0 %592
    %594 = vrot.lane.b32.xlu0 %v577, 127
    %v595 = vpop.permute.xlu0 %594
    %596 = vrot.lane.b32.xlu0 %v579, 127
    %v597 = vpop.permute.xlu0 %596
    %598 = vrot.lane.b32.xlu0 %v578, 127
    %v599 = vpop.permute.xlu0 %598
    %v610 = vadd.f32 %v529, %v581
    %v611 = vadd.f32 %v530, %v583
    %v612 = vadd.f32 %v531, %v585
    %v613 = vadd.f32 %v532, %v587
    %v614 = vadd.f32 %v533, %v589
    %v615 = vadd.f32 %v534, %v591
    %v616 = vadd.f32 %v535, %v593
    %v617 = vadd.f32 %v536, %v595
    %v618 = vadd.f32 %v537, %v597
    %v619 = vadd.f32 %v538, %v599
    %s620 = sld [smem:[#allocation8 + $0x9]]
    %v621 = vstv %s620
    %v622 = vmul.f32 %v621, %v259
    %v623 = vmul.f32 %v621, %v260
    %v624 = vmul.f32 %v621, %v261
    %v625 = vmul.f32 %v621, %v262
    %v626 = vmul.f32 %v621, %v263
    %v627 = vmul.f32 %v621, %v264
    %v628 = vmul.f32 %v621, %v265
    %v629 = vmul.f32 %v621, %v266
    %v630 = vmul.f32 %v621, %v267
    %v631 = vmul.f32 %v621, %v268
    %v642 = vrot.slane %v622, 2
    %v643 = vrot.slane %v623, 2
    %v644 = vsel %vm375, %v642, %v643
    %v645 = vrot.slane %v624, 2
    %v646 = vsel %vm375, %v643, %v645
    %v647 = vrot.slane %v625, 2
    %v648 = vsel %vm375, %v645, %v647
    %v649 = vrot.slane %v626, 2
    %v650 = vsel %vm375, %v647, %v649
    %v651 = vrot.slane %v627, 2
    %v652 = vsel %vm375, %v649, %v651
    %v653 = vrot.slane %v628, 2
    %v654 = vsel %vm375, %v651, %v653
    %v655 = vrot.slane %v629, 2
    %v656 = vsel %vm375, %v653, %v655
    %v657 = vrot.slane %v630, 2
    %v658 = vsel %vm375, %v655, %v657
    %v659 = vrot.slane %v631, 2
    %v660 = vsel %vm375, %v657, %v659
    %661 = vrot.lane.b32.xlu0 %v644, 127
    %v662 = vpop.permute.xlu0 %661
    %663 = vrot.lane.b32.xlu0 %v646, 127
    %v664 = vpop.permute.xlu0 %663
    %665 = vrot.lane.b32.xlu0 %v648, 127
    %v666 = vpop.permute.xlu0 %665
    %667 = vrot.lane.b32.xlu0 %v650, 127
    %v668 = vpop.permute.xlu0 %667
    %669 = vrot.lane.b32.xlu0 %v652, 127
    %v670 = vpop.permute.xlu0 %669
    %671 = vrot.lane.b32.xlu0 %v654, 127
    %v672 = vpop.permute.xlu0 %671
    %673 = vrot.lane.b32.xlu0 %v656, 127
    %v674 = vpop.permute.xlu0 %673
    %675 = vrot.lane.b32.xlu0 %v658, 127
    %v676 = vpop.permute.xlu0 %675
    %677 = vrot.lane.b32.xlu0 %v660, 127
    %v678 = vpop.permute.xlu0 %677
    %679 = vrot.lane.b32.xlu0 %v659, 127
    %v680 = vpop.permute.xlu0 %679
    %v691 = vadd.f32 %v610, %v662
    %v692 = vadd.f32 %v611, %v664
    %v693 = vadd.f32 %v612, %v666
    %v694 = vadd.f32 %v613, %v668
    %v695 = vadd.f32 %v614, %v670
    %v696 = vadd.f32 %v615, %v672
    %v697 = vadd.f32 %v616, %v674
    %v698 = vadd.f32 %v617, %v676
    %v699 = vadd.f32 %v618, %v678
    %v700 = vadd.f32 %v619, %v680
    %s701 = sld [smem:[#allocation8 + $0xd]]
    %v702 = vstv %s701
    %v703 = vmul.f32 %v702, %v259
    %v704 = vmul.f32 %v702, %v260
    %v705 = vmul.f32 %v702, %v261
    %v706 = vmul.f32 %v702, %v262
    %v707 = vmul.f32 %v702, %v263
    %v708 = vmul.f32 %v702, %v264
    %v709 = vmul.f32 %v702, %v265
    %v710 = vmul.f32 %v702, %v266
    %v711 = vmul.f32 %v702, %v267
    %v712 = vmul.f32 %v702, %v268
    %v723 = vrot.slane %v703, 3
    %v724 = vrot.slane %v704, 3
    %v725 = vsel %vm437, %v723, %v724
    %v726 = vrot.slane %v705, 3
    %v727 = vsel %vm437, %v724, %v726
    %v728 = vrot.slane %v706, 3
    %v729 = vsel %vm437, %v726, %v728
    %v730 = vrot.slane %v707, 3
    %v731 = vsel %vm437, %v728, %v730
    %v732 = vrot.slane %v708, 3
    %v733 = vsel %vm437, %v730, %v732
    %v734 = vrot.slane %v709, 3
    %v735 = vsel %vm437, %v732, %v734
    %v736 = vrot.slane %v710, 3
    %v737 = vsel %vm437, %v734, %v736
    %v738 = vrot.slane %v711, 3
    %v739 = vsel %vm437, %v736, %v738
    %v740 = vrot.slane %v712, 3
    %v741 = vsel %vm437, %v738, %v740
    %742 = vrot.lane.b32.xlu0 %v725, 127
    %v743 = vpop.permute.xlu0 %742
    %744 = vrot.lane.b32.xlu0 %v727, 127
    %v745 = vpop.permute.xlu0 %744
    %746 = vrot.lane.b32.xlu0 %v729, 127
    %v747 = vpop.permute.xlu0 %746
    %748 = vrot.lane.b32.xlu0 %v731, 127
    %v749 = vpop.permute.xlu0 %748
    %750 = vrot.lane.b32.xlu0 %v733, 127
    %v751 = vpop.permute.xlu0 %750
    %752 = vrot.lane.b32.xlu0 %v735, 127
    %v753 = vpop.permute.xlu0 %752
    %754 = vrot.lane.b32.xlu0 %v737, 127
    %v755 = vpop.permute.xlu0 %754
    %756 = vrot.lane.b32.xlu0 %v739, 127
    %v757 = vpop.permute.xlu0 %756
    %758 = vrot.lane.b32.xlu0 %v741, 127
    %v759 = vpop.permute.xlu0 %758
    %760 = vrot.lane.b32.xlu0 %v740, 127
    %v761 = vpop.permute.xlu0 %760
    %v772 = vadd.f32 %v691, %v743
    %v773 = vadd.f32 %v692, %v745
    %v774 = vadd.f32 %v693, %v747
    %v775 = vadd.f32 %v694, %v749
    %v776 = vadd.f32 %v695, %v751
    %v777 = vadd.f32 %v696, %v753
    %v778 = vadd.f32 %v697, %v755
    %v779 = vadd.f32 %v698, %v757
    %v780 = vadd.f32 %v699, %v759
    %v781 = vadd.f32 %v700, %v761
    %s782 = sld [smem:[#allocation8 + $0x2]]
    %v783 = vstv %s782
    %v784 = vmul.f32 %v783, %v259
    %v785 = vmul.f32 %v783, %v260
    %v786 = vmul.f32 %v783, %v261
    %v787 = vmul.f32 %v783, %v262
    %v788 = vmul.f32 %v783, %v263
    %v789 = vmul.f32 %v783, %v264
    %v790 = vmul.f32 %v783, %v265
    %v791 = vmul.f32 %v783, %v266
    %v792 = vmul.f32 %v783, %v267
    %v793 = vmul.f32 %v783, %v268
    %804 = vrot.lane.b32.xlu0 %v784, 126
    %v805 = vpop.permute.xlu0 %804
    %806 = vrot.lane.b32.xlu0 %v785, 126
    %v807 = vpop.permute.xlu0 %806
    %808 = vrot.lane.b32.xlu0 %v786, 126
    %v809 = vpop.permute.xlu0 %808
    %810 = vrot.lane.b32.xlu0 %v787, 126
    %v811 = vpop.permute.xlu0 %810
    %812 = vrot.lane.b32.xlu0 %v788, 126
    %v813 = vpop.permute.xlu0 %812
    %814 = vrot.lane.b32.xlu0 %v789, 126
    %v815 = vpop.permute.xlu0 %814
    %816 = vrot.lane.b32.xlu0 %v790, 126
    %v817 = vpop.permute.xlu0 %816
    %818 = vrot.lane.b32.xlu0 %v791, 126
    %v819 = vpop.permute.xlu0 %818
    %820 = vrot.lane.b32.xlu0 %v792, 126
    %v821 = vpop.permute.xlu0 %820
    %822 = vrot.lane.b32.xlu0 %v793, 126
    %v823 = vpop.permute.xlu0 %822
    %v834 = vadd.f32 %v772, %v805
    %v835 = vadd.f32 %v773, %v807
    %v836 = vadd.f32 %v774, %v809
    %v837 = vadd.f32 %v775, %v811
    %v838 = vadd.f32 %v776, %v813
    %v839 = vadd.f32 %v777, %v815
    %v840 = vadd.f32 %v778, %v817
    %v841 = vadd.f32 %v779, %v819
    %v842 = vadd.f32 %v780, %v821
    %v843 = vadd.f32 %v781, %v823
    %s844 = sld [smem:[#allocation8 + $0x6]]
    %v845 = vstv %s844
    %v846 = vmul.f32 %v845, %v259
    %v847 = vmul.f32 %v845, %v260
    %v848 = vmul.f32 %v845, %v261
    %v849 = vmul.f32 %v845, %v262
    %v850 = vmul.f32 %v845, %v263
    %v851 = vmul.f32 %v845, %v264
    %v852 = vmul.f32 %v845, %v265
    %v853 = vmul.f32 %v845, %v266
    %v854 = vmul.f32 %v845, %v267
    %v855 = vmul.f32 %v845, %v268
    %v866 = vrot.slane %v846, 1
    %v867 = vrot.slane %v847, 1
    %v868 = vsel %vm313, %v866, %v867
    %v869 = vrot.slane %v848, 1
    %v870 = vsel %vm313, %v867, %v869
    %v871 = vrot.slane %v849, 1
    %v872 = vsel %vm313, %v869, %v871
    %v873 = vrot.slane %v850, 1
    %v874 = vsel %vm313, %v871, %v873
    %v875 = vrot.slane %v851, 1
    %v876 = vsel %vm313, %v873, %v875
    %v877 = vrot.slane %v852, 1
    %v878 = vsel %vm313, %v875, %v877
    %v879 = vrot.slane %v853, 1
    %v880 = vsel %vm313, %v877, %v879
    %v881 = vrot.slane %v854, 1
    %v882 = vsel %vm313, %v879, %v881
    %v883 = vrot.slane %v855, 1
    %v884 = vsel %vm313, %v881, %v883
    %885 = vrot.lane.b32.xlu0 %v868, 126
    %v886 = vpop.permute.xlu0 %885
    %887 = vrot.lane.b32.xlu0 %v870, 126
    %v888 = vpop.permute.xlu0 %887
    %889 = vrot.lane.b32.xlu0 %v872, 126
    %v890 = vpop.permute.xlu0 %889
    %891 = vrot.lane.b32.xlu0 %v874, 126
    %v892 = vpop.permute.xlu0 %891
    %893 = vrot.lane.b32.xlu0 %v876, 126
    %v894 = vpop.permute.xlu0 %893
    %895 = vrot.lane.b32.xlu0 %v878, 126
    %v896 = vpop.permute.xlu0 %895
    %897 = vrot.lane.b32.xlu0 %v880, 126
    %v898 = vpop.permute.xlu0 %897
    %899 = vrot.lane.b32.xlu0 %v882, 126
    %v900 = vpop.permute.xlu0 %899
    %901 = vrot.lane.b32.xlu0 %v884, 126
    %v902 = vpop.permute.xlu0 %901
    %903 = vrot.lane.b32.xlu0 %v883, 126
    %v904 = vpop.permute.xlu0 %903
    %v915 = vadd.f32 %v834, %v886
    %v916 = vadd.f32 %v835, %v888
    %v917 = vadd.f32 %v836, %v890
    %v918 = vadd.f32 %v837, %v892
    %v919 = vadd.f32 %v838, %v894
    %v920 = vadd.f32 %v839, %v896
    %v921 = vadd.f32 %v840, %v898
    %v922 = vadd.f32 %v841, %v900
    %v923 = vadd.f32 %v842, %v902
    %v924 = vadd.f32 %v843, %v904
    %s925 = sld [smem:[#allocation8 + $0xa]]
    %v926 = vstv %s925
    %v927 = vmul.f32 %v926, %v259
    %v928 = vmul.f32 %v926, %v260
    %v929 = vmul.f32 %v926, %v261
    %v930 = vmul.f32 %v926, %v262
    %v931 = vmul.f32 %v926, %v263
    %v932 = vmul.f32 %v926, %v264
    %v933 = vmul.f32 %v926, %v265
    %v934 = vmul.f32 %v926, %v266
    %v935 = vmul.f32 %v926, %v267
    %v936 = vmul.f32 %v926, %v268
    %v947 = vrot.slane %v927, 2
    %v948 = vrot.slane %v928, 2
    %v949 = vsel %vm375, %v947, %v948
    %v950 = vrot.slane %v929, 2
    %v951 = vsel %vm375, %v948, %v950
    %v952 = vrot.slane %v930, 2
    %v953 = vsel %vm375, %v950, %v952
    %v954 = vrot.slane %v931, 2
    %v955 = vsel %vm375, %v952, %v954
    %v956 = vrot.slane %v932, 2
    %v957 = vsel %vm375, %v954, %v956
    %v958 = vrot.slane %v933, 2
    %v959 = vsel %vm375, %v956, %v958
    %v960 = vrot.slane %v934, 2
    %v961 = vsel %vm375, %v958, %v960
    %v962 = vrot.slane %v935, 2
    %v963 = vsel %vm375, %v960, %v962
    %v964 = vrot.slane %v936, 2
    %v965 = vsel %vm375, %v962, %v964
    %966 = vrot.lane.b32.xlu0 %v949, 126
    %v967 = vpop.permute.xlu0 %966
    %968 = vrot.lane.b32.xlu0 %v951, 126
    %v969 = vpop.permute.xlu0 %968
    %970 = vrot.lane.b32.xlu0 %v953, 126
    %v971 = vpop.permute.xlu0 %970
    %972 = vrot.lane.b32.xlu0 %v955, 126
    %v973 = vpop.permute.xlu0 %972
    %974 = vrot.lane.b32.xlu0 %v957, 126
    %v975 = vpop.permute.xlu0 %974
    %976 = vrot.lane.b32.xlu0 %v959, 126
    %v977 = vpop.permute.xlu0 %976
    %978 = vrot.lane.b32.xlu0 %v961, 126
    %v979 = vpop.permute.xlu0 %978
    %980 = vrot.lane.b32.xlu0 %v963, 126
    %v981 = vpop.permute.xlu0 %980
    %982 = vrot.lane.b32.xlu0 %v965, 126
    %v983 = vpop.permute.xlu0 %982
    %984 = vrot.lane.b32.xlu0 %v964, 126
    %v985 = vpop.permute.xlu0 %984
    %v996 = vadd.f32 %v915, %v967
    %v997 = vadd.f32 %v916, %v969
    %v998 = vadd.f32 %v917, %v971
    %v999 = vadd.f32 %v918, %v973
    %v1000 = vadd.f32 %v919, %v975
    %v1001 = vadd.f32 %v920, %v977
    %v1002 = vadd.f32 %v921, %v979
    %v1003 = vadd.f32 %v922, %v981
    %v1004 = vadd.f32 %v923, %v983
    %v1005 = vadd.f32 %v924, %v985
    %s1006 = sld [smem:[#allocation8 + $0xe]]
    %v1007 = vstv %s1006
    %v1008 = vmul.f32 %v1007, %v259
    %v1009 = vmul.f32 %v1007, %v260
    %v1010 = vmul.f32 %v1007, %v261
    %v1011 = vmul.f32 %v1007, %v262
    %v1012 = vmul.f32 %v1007, %v263
    %v1013 = vmul.f32 %v1007, %v264
    %v1014 = vmul.f32 %v1007, %v265
    %v1015 = vmul.f32 %v1007, %v266
    %v1016 = vmul.f32 %v1007, %v267
    %v1017 = vmul.f32 %v1007, %v268
    %v1028 = vrot.slane %v1008, 3
    %v1029 = vrot.slane %v1009, 3
    %v1030 = vsel %vm437, %v1028, %v1029
    %v1031 = vrot.slane %v1010, 3
    %v1032 = vsel %vm437, %v1029, %v1031
    %v1033 = vrot.slane %v1011, 3
    %v1034 = vsel %vm437, %v1031, %v1033
    %v1035 = vrot.slane %v1012, 3
    %v1036 = vsel %vm437, %v1033, %v1035
    %v1037 = vrot.slane %v1013, 3
    %v1038 = vsel %vm437, %v1035, %v1037
    %v1039 = vrot.slane %v1014, 3
    %v1040 = vsel %vm437, %v1037, %v1039
    %v1041 = vrot.slane %v1015, 3
    %v1042 = vsel %vm437, %v1039, %v1041
    %v1043 = vrot.slane %v1016, 3
    %v1044 = vsel %vm437, %v1041, %v1043
    %v1045 = vrot.slane %v1017, 3
    %v1046 = vsel %vm437, %v1043, %v1045
    %1047 = vrot.lane.b32.xlu0 %v1030, 126
    %v1048 = vpop.permute.xlu0 %1047
    %1049 = vrot.lane.b32.xlu0 %v1032, 126
    %v1050 = vpop.permute.xlu0 %1049
    %1051 = vrot.lane.b32.xlu0 %v1034, 126
    %v1052 = vpop.permute.xlu0 %1051
    %1053 = vrot.lane.b32.xlu0 %v1036, 126
    %v1054 = vpop.permute.xlu0 %1053
    %1055 = vrot.lane.b32.xlu0 %v1038, 126
    %v1056 = vpop.permute.xlu0 %1055
    %1057 = vrot.lane.b32.xlu0 %v1040, 126
    %v1058 = vpop.permute.xlu0 %1057
    %1059 = vrot.lane.b32.xlu0 %v1042, 126
    %v1060 = vpop.permute.xlu0 %1059
    %1061 = vrot.lane.b32.xlu0 %v1044, 126
    %v1062 = vpop.permute.xlu0 %1061
    %1063 = vrot.lane.b32.xlu0 %v1046, 126
    %v1064 = vpop.permute.xlu0 %1063
    %1065 = vrot.lane.b32.xlu0 %v1045, 126
    %v1066 = vpop.permute.xlu0 %1065
    %v1077 = vadd.f32 %v996, %v1048
    %v1078 = vadd.f32 %v997, %v1050
    %v1079 = vadd.f32 %v998, %v1052
    %v1080 = vadd.f32 %v999, %v1054
    %v1081 = vadd.f32 %v1000, %v1056
    %v1082 = vadd.f32 %v1001, %v1058
    %v1083 = vadd.f32 %v1002, %v1060
    %v1084 = vadd.f32 %v1003, %v1062
    %v1085 = vadd.f32 %v1004, %v1064
    %v1086 = vadd.f32 %v1005, %v1066
    %s1087 = sld [smem:[#allocation8 + $0x3]]
    %v1088 = vstv %s1087
    %v1089 = vmul.f32 %v1088, %v259
    %v1090 = vmul.f32 %v1088, %v260
    %v1091 = vmul.f32 %v1088, %v261
    %v1092 = vmul.f32 %v1088, %v262
    %v1093 = vmul.f32 %v1088, %v263
    %v1094 = vmul.f32 %v1088, %v264
    %v1095 = vmul.f32 %v1088, %v265
    %v1096 = vmul.f32 %v1088, %v266
    %v1097 = vmul.f32 %v1088, %v267
    %v1098 = vmul.f32 %v1088, %v268
    %1109 = vrot.lane.b32.xlu0 %v1089, 125
    %v1110 = vpop.permute.xlu0 %1109
    %1111 = vrot.lane.b32.xlu0 %v1090, 125
    %v1112 = vpop.permute.xlu0 %1111
    %1113 = vrot.lane.b32.xlu0 %v1091, 125
    %v1114 = vpop.permute.xlu0 %1113
    %1115 = vrot.lane.b32.xlu0 %v1092, 125
    %v1116 = vpop.permute.xlu0 %1115
    %1117 = vrot.lane.b32.xlu0 %v1093, 125
    %v1118 = vpop.permute.xlu0 %1117
    %1119 = vrot.lane.b32.xlu0 %v1094, 125
    %v1120 = vpop.permute.xlu0 %1119
    %1121 = vrot.lane.b32.xlu0 %v1095, 125
    %v1122 = vpop.permute.xlu0 %1121
    %1123 = vrot.lane.b32.xlu0 %v1096, 125
    %v1124 = vpop.permute.xlu0 %1123
    %1125 = vrot.lane.b32.xlu0 %v1097, 125
    %v1126 = vpop.permute.xlu0 %1125
    %1127 = vrot.lane.b32.xlu0 %v1098, 125
    %v1128 = vpop.permute.xlu0 %1127
    %v1139 = vadd.f32 %v1077, %v1110
    %v1140 = vadd.f32 %v1078, %v1112
    %v1141 = vadd.f32 %v1079, %v1114
    %v1142 = vadd.f32 %v1080, %v1116
    %v1143 = vadd.f32 %v1081, %v1118
    %v1144 = vadd.f32 %v1082, %v1120
    %v1145 = vadd.f32 %v1083, %v1122
    %v1146 = vadd.f32 %v1084, %v1124
    %v1147 = vadd.f32 %v1085, %v1126
    %v1148 = vadd.f32 %v1086, %v1128
    %s1149 = sld [smem:[#allocation8 + $0x7]]
    %v1150 = vstv %s1149
    %v1151 = vmul.f32 %v1150, %v259
    %v1152 = vmul.f32 %v1150, %v260
    %v1153 = vmul.f32 %v1150, %v261
    %v1154 = vmul.f32 %v1150, %v262
    %v1155 = vmul.f32 %v1150, %v263
    %v1156 = vmul.f32 %v1150, %v264
    %v1157 = vmul.f32 %v1150, %v265
    %v1158 = vmul.f32 %v1150, %v266
    %v1159 = vmul.f32 %v1150, %v267
    %v1160 = vmul.f32 %v1150, %v268
    %v1171 = vrot.slane %v1151, 1
    %v1172 = vrot.slane %v1152, 1
    %v1173 = vsel %vm313, %v1171, %v1172
    %v1174 = vrot.slane %v1153, 1
    %v1175 = vsel %vm313, %v1172, %v1174
    %v1176 = vrot.slane %v1154, 1
    %v1177 = vsel %vm313, %v1174, %v1176
    %v1178 = vrot.slane %v1155, 1
    %v1179 = vsel %vm313, %v1176, %v1178
    %v1180 = vrot.slane %v1156, 1
    %v1181 = vsel %vm313, %v1178, %v1180
    %v1182 = vrot.slane %v1157, 1
    %v1183 = vsel %vm313, %v1180, %v1182
    %v1184 = vrot.slane %v1158, 1
    %v1185 = vsel %vm313, %v1182, %v1184
    %v1186 = vrot.slane %v1159, 1
    %v1187 = vsel %vm313, %v1184, %v1186
    %v1188 = vrot.slane %v1160, 1
    %v1189 = vsel %vm313, %v1186, %v1188
    %1190 = vrot.lane.b32.xlu0 %v1173, 125
    %v1191 = vpop.permute.xlu0 %1190
    %1192 = vrot.lane.b32.xlu0 %v1175, 125
    %v1193 = vpop.permute.xlu0 %1192
    %1194 = vrot.lane.b32.xlu0 %v1177, 125
    %v1195 = vpop.permute.xlu0 %1194
    %1196 = vrot.lane.b32.xlu0 %v1179, 125
    %v1197 = vpop.permute.xlu0 %1196
    %1198 = vrot.lane.b32.xlu0 %v1181, 125
    %v1199 = vpop.permute.xlu0 %1198
    %1200 = vrot.lane.b32.xlu0 %v1183, 125
    %v1201 = vpop.permute.xlu0 %1200
    %1202 = vrot.lane.b32.xlu0 %v1185, 125
    %v1203 = vpop.permute.xlu0 %1202
    %1204 = vrot.lane.b32.xlu0 %v1187, 125
    %v1205 = vpop.permute.xlu0 %1204
    %1206 = vrot.lane.b32.xlu0 %v1189, 125
    %v1207 = vpop.permute.xlu0 %1206
    %1208 = vrot.lane.b32.xlu0 %v1188, 125
    %v1209 = vpop.permute.xlu0 %1208
    %v1220 = vadd.f32 %v1139, %v1191
    %v1221 = vadd.f32 %v1140, %v1193
    %v1222 = vadd.f32 %v1141, %v1195
    %v1223 = vadd.f32 %v1142, %v1197
    %v1224 = vadd.f32 %v1143, %v1199
    %v1225 = vadd.f32 %v1144, %v1201
    %v1226 = vadd.f32 %v1145, %v1203
    %v1227 = vadd.f32 %v1146, %v1205
    %v1228 = vadd.f32 %v1147, %v1207
    %v1229 = vadd.f32 %v1148, %v1209
    %s1230 = sld [smem:[#allocation8 + $0xb]]
    %v1231 = vstv %s1230
    %v1232 = vmul.f32 %v1231, %v259
    %v1233 = vmul.f32 %v1231, %v260
    %v1234 = vmul.f32 %v1231, %v261
    %v1235 = vmul.f32 %v1231, %v262
    %v1236 = vmul.f32 %v1231, %v263
    %v1237 = vmul.f32 %v1231, %v264
    %v1238 = vmul.f32 %v1231, %v265
    %v1239 = vmul.f32 %v1231, %v266
    %v1240 = vmul.f32 %v1231, %v267
    %v1241 = vmul.f32 %v1231, %v268
    %v1252 = vrot.slane %v1232, 2
    %v1253 = vrot.slane %v1233, 2
    %v1254 = vsel %vm375, %v1252, %v1253
    %v1255 = vrot.slane %v1234, 2
    %v1256 = vsel %vm375, %v1253, %v1255
    %v1257 = vrot.slane %v1235, 2
    %v1258 = vsel %vm375, %v1255, %v1257
    %v1259 = vrot.slane %v1236, 2
    %v1260 = vsel %vm375, %v1257, %v1259
    %v1261 = vrot.slane %v1237, 2
    %v1262 = vsel %vm375, %v1259, %v1261
    %v1263 = vrot.slane %v1238, 2
    %v1264 = vsel %vm375, %v1261, %v1263
    %v1265 = vrot.slane %v1239, 2
    %v1266 = vsel %vm375, %v1263, %v1265
    %v1267 = vrot.slane %v1240, 2
    %v1268 = vsel %vm375, %v1265, %v1267
    %v1269 = vrot.slane %v1241, 2
    %v1270 = vsel %vm375, %v1267, %v1269
    %1271 = vrot.lane.b32.xlu0 %v1254, 125
    %v1272 = vpop.permute.xlu0 %1271
    %1273 = vrot.lane.b32.xlu0 %v1256, 125
    %v1274 = vpop.permute.xlu0 %1273
    %1275 = vrot.lane.b32.xlu0 %v1258, 125
    %v1276 = vpop.permute.xlu0 %1275
    %1277 = vrot.lane.b32.xlu0 %v1260, 125
    %v1278 = vpop.permute.xlu0 %1277
    %1279 = vrot.lane.b32.xlu0 %v1262, 125
    %v1280 = vpop.permute.xlu0 %1279
    %1281 = vrot.lane.b32.xlu0 %v1264, 125
    %v1282 = vpop.permute.xlu0 %1281
    %1283 = vrot.lane.b32.xlu0 %v1266, 125
    %v1284 = vpop.permute.xlu0 %1283
    %1285 = vrot.lane.b32.xlu0 %v1268, 125
    %v1286 = vpop.permute.xlu0 %1285
    %1287 = vrot.lane.b32.xlu0 %v1270, 125
    %v1288 = vpop.permute.xlu0 %1287
    %1289 = vrot.lane.b32.xlu0 %v1269, 125
    %v1290 = vpop.permute.xlu0 %1289
    %v1301 = vadd.f32 %v1220, %v1272
    %v1302 = vadd.f32 %v1221, %v1274
    %v1303 = vadd.f32 %v1222, %v1276
    %v1304 = vadd.f32 %v1223, %v1278
    %v1305 = vadd.f32 %v1224, %v1280
    %v1306 = vadd.f32 %v1225, %v1282
    %v1307 = vadd.f32 %v1226, %v1284
    %v1308 = vadd.f32 %v1227, %v1286
    %v1309 = vadd.f32 %v1228, %v1288
    %v1310 = vadd.f32 %v1229, %v1290
    %s1311 = sld [smem:[#allocation8 + $0xf]]
    %v1312 = vstv %s1311
    %v1313 = vmul.f32 %v1312, %v259
    %v1314 = vmul.f32 %v1312, %v260
    %v1315 = vmul.f32 %v1312, %v261
    %v1316 = vmul.f32 %v1312, %v262
    %v1317 = vmul.f32 %v1312, %v263
    %v1318 = vmul.f32 %v1312, %v264
    %v1319 = vmul.f32 %v1312, %v265
    %v1320 = vmul.f32 %v1312, %v266
    %v1321 = vmul.f32 %v1312, %v267
    %v1322 = vmul.f32 %v1312, %v268
    %v1333 = vrot.slane %v1313, 3
    %v1334 = vrot.slane %v1314, 3
    %v1335 = vsel %vm437, %v1333, %v1334
    %v1336 = vrot.slane %v1315, 3
    %v1337 = vsel %vm437, %v1334, %v1336
    %v1338 = vrot.slane %v1316, 3
    %v1339 = vsel %vm437, %v1336, %v1338
    %v1340 = vrot.slane %v1317, 3
    %v1341 = vsel %vm437, %v1338, %v1340
    %v1342 = vrot.slane %v1318, 3
    %v1343 = vsel %vm437, %v1340, %v1342
    %v1344 = vrot.slane %v1319, 3
    %v1345 = vsel %vm437, %v1342, %v1344
    %v1346 = vrot.slane %v1320, 3
    %v1347 = vsel %vm437, %v1344, %v1346
    %v1348 = vrot.slane %v1321, 3
    %v1349 = vsel %vm437, %v1346, %v1348
    %v1350 = vrot.slane %v1322, 3
    %v1351 = vsel %vm437, %v1348, %v1350
    %1352 = vrot.lane.b32.xlu0 %v1335, 125
    %v1353 = vpop.permute.xlu0 %1352
    %1354 = vrot.lane.b32.xlu0 %v1337, 125
    %v1355 = vpop.permute.xlu0 %1354
    %1356 = vrot.lane.b32.xlu0 %v1339, 125
    %v1357 = vpop.permute.xlu0 %1356
    %1358 = vrot.lane.b32.xlu0 %v1341, 125
    %v1359 = vpop.permute.xlu0 %1358
    %1360 = vrot.lane.b32.xlu0 %v1343, 125
    %v1361 = vpop.permute.xlu0 %1360
    %1362 = vrot.lane.b32.xlu0 %v1345, 125
    %v1363 = vpop.permute.xlu0 %1362
    %1364 = vrot.lane.b32.xlu0 %v1347, 125
    %v1365 = vpop.permute.xlu0 %1364
    %1366 = vrot.lane.b32.xlu0 %v1349, 125
    %v1367 = vpop.permute.xlu0 %1366
    %1368 = vrot.lane.b32.xlu0 %v1351, 125
    %v1369 = vpop.permute.xlu0 %1368
    %1370 = vrot.lane.b32.xlu0 %v1350, 125
    %v1371 = vpop.permute.xlu0 %1370
    %v1382 = vadd.f32 %v1301, %v1353
    %v1383 = vadd.f32 %v1302, %v1355
    %v1384 = vadd.f32 %v1303, %v1357
    %v1385 = vadd.f32 %v1304, %v1359
    %v1386 = vadd.f32 %v1305, %v1361
    %v1387 = vadd.f32 %v1306, %v1363
    %v1388 = vadd.f32 %v1307, %v1365
    %v1389 = vadd.f32 %v1308, %v1367
    %v1390 = vadd.f32 %v1309, %v1369
    %v1391 = vadd.f32 %v1310, %v1371
    %s1392 = sld [smem:[#allocation7]]
    %v1393 = vstv %s1392
    %v1394 = vadd.f32 %v1382, %v1393
    %v1395 = vadd.f32 %v1383, %v1393
    %v1396 = vadd.f32 %v1384, %v1393
    %v1397 = vadd.f32 %v1385, %v1393
    %v1398 = vadd.f32 %v1386, %v1393
    %v1399 = vadd.f32 %v1387, %v1393
    %v1400 = vadd.f32 %v1388, %v1393
    %v1401 = vadd.f32 %v1389, %v1393
    %v1402 = vadd.f32 %v1390, %v1393
    %v1403 = vadd.f32 %v1391, %v1393
    %v1404 = vmax.f32 %v1394, 0.0
    %v1405 = vmax.f32 %v1395, 0.0
    %v1406 = vmax.f32 %v1396, 0.0
    %v1407 = vmax.f32 %v1397, 0.0
    %v1408 = vmax.f32 %v1398, 0.0
    %v1409 = vmax.f32 %v1399, 0.0
    %v1410 = vmax.f32 %v1400, 0.0
    %v1411 = vmax.f32 %v1401, 0.0
    %v1412 = vmax.f32 %v1402, 0.0
    %v1413 = vmax.f32 %v1403, 0.0
    %v1424 = vrot.slane %v1404, 1
    %v1425 = vrot.slane %v1405, 1
    %v1426 = vsel %vm313, %v1424, %v1425
    %v1427 = vrot.slane %v1406, 1
    %v1428 = vsel %vm313, %v1425, %v1427
    %v1429 = vrot.slane %v1407, 1
    %v1430 = vsel %vm313, %v1427, %v1429
    %v1431 = vrot.slane %v1408, 1
    %v1432 = vsel %vm313, %v1429, %v1431
    %v1433 = vrot.slane %v1409, 1
    %v1434 = vsel %vm313, %v1431, %v1433
    %v1435 = vrot.slane %v1410, 1
    %v1436 = vsel %vm313, %v1433, %v1435
    %v1437 = vrot.slane %v1411, 1
    %v1438 = vsel %vm313, %v1435, %v1437
    %v1439 = vrot.slane %v1412, 1
    %v1440 = vsel %vm313, %v1437, %v1439
    %v1441 = vrot.slane %v1413, 1
    %v1442 = vsel %vm313, %v1439, %v1441
    %v1453 = vmax.f32 %v1404, %v1426
    %v1454 = vmax.f32 %v1405, %v1428
    %v1455 = vmax.f32 %v1406, %v1430
    %v1456 = vmax.f32 %v1407, %v1432
    %v1457 = vmax.f32 %v1408, %v1434
    %v1458 = vmax.f32 %v1409, %v1436
    %v1459 = vmax.f32 %v1410, %v1438
    %v1460 = vmax.f32 %v1411, %v1440
    %v1461 = vmax.f32 %v1412, %v1442
    %v1462 = vmax.f32 %v1413, %v1441
    %1473 = vrot.lane.b32.xlu0 %v1453, 127
    %v1474 = vpop.permute.xlu0 %1473
    %1475 = vrot.lane.b32.xlu0 %v1454, 127
    %v1476 = vpop.permute.xlu0 %1475
    %1477 = vrot.lane.b32.xlu0 %v1455, 127
    %v1478 = vpop.permute.xlu0 %1477
    %1479 = vrot.lane.b32.xlu0 %v1456, 127
    %v1480 = vpop.permute.xlu0 %1479
    %1481 = vrot.lane.b32.xlu0 %v1457, 127
    %v1482 = vpop.permute.xlu0 %1481
    %1483 = vrot.lane.b32.xlu0 %v1458, 127
    %v1484 = vpop.permute.xlu0 %1483
    %1485 = vrot.lane.b32.xlu0 %v1459, 127
    %v1486 = vpop.permute.xlu0 %1485
    %1487 = vrot.lane.b32.xlu0 %v1460, 127
    %v1488 = vpop.permute.xlu0 %1487
    %1489 = vrot.lane.b32.xlu0 %v1461, 127
    %v1490 = vpop.permute.xlu0 %1489
    %1491 = vrot.lane.b32.xlu0 %v1462, 127
    %v1492 = vpop.permute.xlu0 %1491
    %v1503 = vmax.f32 %v1453, %v1474
    %v1504 = vmax.f32 %v1454, %v1476
    %v1505 = vmax.f32 %v1455, %v1478
    %v1506 = vmax.f32 %v1456, %v1480
    %v1507 = vmax.f32 %v1457, %v1482
    %v1508 = vmax.f32 %v1458, %v1484
    %v1509 = vmax.f32 %v1459, %v1486
    %v1510 = vmax.f32 %v1460, %v1488
    %v1511 = vmax.f32 %v1461, %v1490
    %v1512 = vmax.f32 %v1462, %v1492
    %v1513 = vlaneseq
    %v1514 = vshrl.u32 %v1513, 7
    %v1515 = vadd.s32 %v1514, 8
    %v1516 = vadd.s32 %v1514, 16
    %v1517 = vadd.s32 %v1514, 24
    %v1518 = vadd.s32 %v1514, 32
    %v1519 = vadd.s32 %v1514, 40
    %v1520 = vadd.s32 %v1514, 48
    %v1521 = vadd.s32 %v1514, 56
    %v1522 = vadd.s32 %v1514, 64
    %v1523 = vadd.s32 %v1514, 72
    %v1524 = vlaneseq
    %v1525 = vand.u32 %v1524, 127
    %v1526 = vmul.u32 %v1525, 2
    %vm1527 = vcmp.eq.s32.totalorder %v1514, %v1526
    %vm1528 = vcmp.eq.s32.totalorder %v1515, %v1526
    %vm1529 = vcmp.eq.s32.totalorder %v1516, %v1526
    %vm1530 = vcmp.eq.s32.totalorder %v1517, %v1526
    %vm1531 = vcmp.eq.s32.totalorder %v1518, %v1526
    %vm1532 = vcmp.eq.s32.totalorder %v1519, %v1526
    %vm1533 = vcmp.eq.s32.totalorder %v1520, %v1526
    %vm1534 = vcmp.eq.s32.totalorder %v1521, %v1526
    %vm1535 = vcmp.eq.s32.totalorder %v1522, %v1526
    %vm1536 = vcmp.eq.s32.totalorder %v1523, %v1526
    %v1537 = vsel %vm1527, 1, 0
    %v1538 = vsel %vm1528, 1, 0
    %v1539 = vsel %vm1529, 1, 0
    %v1540 = vsel %vm1530, 1, 0
    %v1541 = vsel %vm1531, 1, 0
    %v1542 = vsel %vm1532, 1, 0
    %v1543 = vsel %vm1533, 1, 0
    %v1544 = vsel %vm1534, 1, 0
    %v1545 = vsel %vm1535, 1, 0
    %v1546 = vsel %vm1536, 1, 0
    %v1547 = vcvt.s32.f32 %v1537
    %v1548 = vcvt.s32.f32 %v1538
    %v1549 = vcvt.s32.f32 %v1539
    %v1550 = vcvt.s32.f32 %v1540
    %v1551 = vcvt.s32.f32 %v1541
    %v1552 = vcvt.s32.f32 %v1542
    %v1553 = vcvt.s32.f32 %v1543
    %v1554 = vcvt.s32.f32 %v1544
    %v1555 = vcvt.s32.f32 %v1545
    %v1556 = vcvt.s32.f32 %v1546
    %vm1557 = vcmask 605184
    %v1559 = vsel %vm1557, %v1503, 0
    %v1562 = vsel %vm1557, %v1504, 0
    %v1565 = vsel %vm1557, %v1505, 0
    %v1568 = vsel %vm1557, %v1506, 0
    %v1571 = vsel %vm1557, %v1507, 0
    %v1574 = vsel %vm1557, %v1508, 0
    %v1577 = vsel %vm1557, %v1509, 0
    %v1580 = vsel %vm1557, %v1510, 0
    %v1583 = vsel %vm1557, %v1511, 0
    %v1586 = vsel %vm1557, %v1512, 0
    %vm1588 = vcmask 1041408
    %v1590 = vsel %vm1588, %v1556, 0
    %1592 = vmatprep.subr.mxu0 0.0
    %1593 = vmatpush1.msra.mxu0 %v1547
    %1594 = vmatprep.subr.mxu0 0.0
    %1595 = vmatpush1.msra.mxu0 %v1548
    %1596 = vmatprep.subr.mxu0 0.0
    %1597 = vmatpush1.msra.mxu0 %v1549
    %1598 = vmatprep.subr.mxu0 0.0
    %1599 = vmatpush1.msra.mxu0 %v1550
    %1600 = vmatprep.subr.mxu0 0.0
    %1601 = vmatpush1.msra.mxu0 %v1551
    %1602 = vmatprep.subr.mxu0 0.0
    %1603 = vmatpush1.msra.mxu0 %v1552
    %1604 = vmatprep.subr.mxu0 0.0
    %1605 = vmatpush1.msra.mxu0 %v1553
    %1606 = vmatprep.subr.mxu0 0.0
    %1607 = vmatpush1.msra.mxu0 %v1554
    %1608 = vmatprep.subr.mxu0 0.0
    %1609 = vmatpush1.msra.mxu0 %v1555
    %1610 = vmatprep.subr.mxu0 0.0
    %1611 = vmatpush1.msra.mxu0 %v1590
    %1612 = vmatprep.subr.mxu0 0.0
    %1613 = vmatpush1.msra.mxu0 0.0
    %1614 = vmatprep.subr.mxu0 0.0
    %1615 = vmatpush1.msra.mxu0 0.0
    %1616 = vmatprep.subr.mxu0 0.0
    %1617 = vmatpush1.msra.mxu0 0.0
    %1618 = vmatprep.subr.mxu0 0.0
    %1619 = vmatpush1.msra.mxu0 0.0
    %1620 = vmatprep.subr.mxu0 0.0
    %1621 = vmatpush1.msra.mxu0 0.0
    %1622 = vmatprep.subr.mxu0 0.0
    %1623 = vmatpush1.msra.mxu0 0.0
    %1624 = vmatprep.subr.mxu0 0.0
    %1625 = vmatpush1.msra.mxu0 0.0
    %1626 = vmatprep.subr.mxu0 0.0
    %1627 = vmatpush1.msra.mxu0 0.0
    %1628 = vmatprep.subr.mxu0 0.0
    %1629 = vmatpush1.msra.mxu0 0.0
    %1630 = vmatprep.subr.mxu0 0.0
    %1631 = vmatpush1.msra.mxu0 0.0
    %1632 = vmatprep.subr.mxu0 0.0
    %1633 = vmatpush1.msra.mxu0 0.0
    %1634 = vmatprep.subr.mxu0 0.0
    %1635 = vmatpush1.msra.mxu0 0.0
    %1636 = vmatprep.subr.mxu0 0.0
    %1637 = vmatpush1.msra.mxu0 0.0
    %1638 = vmatprep.subr.mxu0 0.0
    %1639 = vmatpush1.msra.mxu0 0.0
    %1640 = vmatprep.subr.mxu0 0.0
    %1641 = vmatpush1.msra.mxu0 0.0
    %1642 = vmatprep.subr.mxu0 0.0
    %1643 = vmatpush1.msra.mxu0 0.0
    %1644 = vmatprep.subr.mxu0 0.0
    %1645 = vmatpush1.msra.mxu0 0.0
    %1646 = vmatprep.subr.mxu0 0.0
    %1647 = vmatpush1.msra.mxu0 0.0
    %1648 = vmatprep.subr.mxu0 0.0
    %1649 = vmatpush1.msra.mxu0 0.0
    %1650 = vmatprep.subr.mxu0 0.0
    %1651 = vmatpush1.msra.mxu0 0.0
    %1652 = vmatprep.subr.mxu0 0.0
    %1653 = vmatpush1.msra.mxu0 0.0
    %1654 = vmatprep.subr.mxu0 0.0
    %1655 = vmatpush1.msra.mxu0 0.0
    %1656 = vmatprep.mubr.f32.mxu0 0.0
    %1657 = vmatmul.mubr.f32.gmra.mrb[0].mxu0 %v1559
    %v1658 = vpop.f32.mrb[0].mxu0
    %v1659 = vadd.f32 0.0, %v1658
    %v1660 = vpop.f32.mrb[0].mxu0
    %1661 = vmatprep.mubr.f32.mxu0 0.0
    %1662 = vmatmul.mubr.f32.gmra.mrb[0].mxu0 %v1562
    %v1663 = vpop.f32.mrb[0].mxu0
    %v1664 = vadd.f32 0.0, %v1663
    %v1665 = vpop.f32.mrb[0].mxu0
    %1666 = vmatprep.mubr.f32.mxu0 0.0
    %1667 = vmatmul.mubr.f32.gmra.mrb[0].mxu0 %v1565
    %v1668 = vpop.f32.mrb[0].mxu0
    %v1669 = vadd.f32 0.0, %v1668
    %v1670 = vpop.f32.mrb[0].mxu0
    %1671 = vmatprep.mubr.f32.mxu0 0.0
    %1672 = vmatmul.mubr.f32.gmra.mrb[0].mxu0 %v1568
    %v1673 = vpop.f32.mrb[0].mxu0
    %v1674 = vadd.f32 0.0, %v1673
    %v1675 = vpop.f32.mrb[0].mxu0
    %1676 = vmatprep.mubr.f32.mxu0 0.0
    %1677 = vmatmul.mubr.f32.gmra.mrb[0].mxu0 %v1571
    %v1678 = vpop.f32.mrb[0].mxu0
    %v1679 = vadd.f32 0.0, %v1678
    %v1680 = vpop.f32.mrb[0].mxu0
    %1681 = vmatprep.mubr.f32.mxu0 0.0
    %1682 = vmatmul.mubr.f32.gmra.mrb[0].mxu0 %v1574
    %v1683 = vpop.f32.mrb[0].mxu0
    %v1684 = vadd.f32 0.0, %v1683
    %v1685 = vpop.f32.mrb[0].mxu0
    %1686 = vmatprep.mubr.f32.mxu0 0.0
    %1687 = vmatmul.mubr.f32.gmra.mrb[0].mxu0 %v1577
    %v1688 = vpop.f32.mrb[0].mxu0
    %v1689 = vadd.f32 0.0, %v1688
    %v1690 = vpop.f32.mrb[0].mxu0
    %1691 = vmatprep.mubr.f32.mxu0 0.0
    %1692 = vmatmul.mubr.f32.gmra.mrb[0].mxu0 %v1580
    %v1693 = vpop.f32.mrb[0].mxu0
    %v1694 = vadd.f32 0.0, %v1693
    %v1695 = vpop.f32.mrb[0].mxu0
    %1696 = vmatprep.mubr.f32.mxu0 0.0
    %1697 = vmatmul.mubr.f32.gmra.mrb[0].mxu0 %v1583
    %v1698 = vpop.f32.mrb[0].mxu0
    %v1699 = vadd.f32 0.0, %v1698
    %v1700 = vpop.f32.mrb[0].mxu0
    %1701 = vmatprep.mubr.f32.mxu0 0.0
    %1702 = vmatmul.mubr.f32.gmra.mrb[0].mxu0 %v1586
    %v1703 = vpop.f32.mrb[0].mxu0
    %v1704 = vadd.f32 0.0, %v1703
    %v1705 = vpop.f32.mrb[0].mxu0
    %1706 = vdwg.mxu0
    %vm1707 = vcmask 392192
    %1708 = vst.msk [vmem:[#allocation5] sm:$0xff] %vm1707, %v1659
    %1709 = vst.msk [vmem:[#allocation5 + $0x8] sm:$0xff] %vm1707, %v1664
    %1710 = vst.msk [vmem:[#allocation5 + $0x10] sm:$0xff] %vm1707, %v1669
    %1711 = vst.msk [vmem:[#allocation5 + $0x18] sm:$0xff] %vm1707, %v1674
    %1712 = vst.msk [vmem:[#allocation5 + $0x20] sm:$0xff] %vm1707, %v1679
    %1713 = vst.msk [vmem:[#allocation5 + $0x28] sm:$0xff] %vm1707, %v1684
    %1714 = vst.msk [vmem:[#allocation5 + $0x30] sm:$0xff] %vm1707, %v1689
    %1715 = vst.msk [vmem:[#allocation5 + $0x38] sm:$0xff] %vm1707, %v1694
    %1716 = vst.msk [vmem:[#allocation5 + $0x40] sm:$0xff] %vm1707, %v1699
    %vm1717 = vcmask 386048
    %1718 = vst.msk [vmem:[#allocation5 + $0x48] sm:$0x3] %vm1717, %v1704
    %s1719 = smul.u32 4, 10
    %s1720 = smul.u32 %s1719, 6
    %s1721 = smul.u32 %s1720, 3
    %s1722 = sshll.u32 %s1721, 4
    %1723 = dma.done [#allocation6], %s1722
    %v1724 = vld [vmem:[#allocation5] sm:$0x1]
    %v1725 = vpack.c.bf16 %v1724, %v1724
    %v1726 = vld [vmem:[#allocation2] sm:$0xff]
    %v1727 = vld [vmem:[#allocation2 + $0x8] sm:$0xff]
    %v1728 = vld [vmem:[#allocation2 + $0x10] sm:$0xff]
    %v1729 = vld [vmem:[#allocation2 + $0x18] sm:$0xff]
    %v1730 = vld [vmem:[#allocation2 + $0x20] sm:$0xff]
    %v1731 = vld [vmem:[#allocation2 + $0x28] sm:$0xff]
    %v1732 = vld [vmem:[#allocation2 + $0x30] sm:$0xff]
    %v1733 = vld [vmem:[#allocation2 + $0x38] sm:$0xff]
    %v1734 = vld [vmem:[#allocation2 + $0x40] sm:$0xff]
    %v1735 = vld [vmem:[#allocation5 + $0x2] sm:$0x1]
    %v1736 = vpack.c.bf16 %v1735, %v1735
    %s1737 = scalar_lea.vmem [#allocation2], 72
    %v1738 = vld [vmem:[%s1737] sm:$0xff]
    %v1739 = vld [vmem:[%s1737 + $0x8] sm:$0xff]
    %v1740 = vld [vmem:[%s1737 + $0x10] sm:$0xff]
    %v1741 = vld [vmem:[%s1737 + $0x18] sm:$0xff]
    %v1742 = vld [vmem:[%s1737 + $0x20] sm:$0xff]
    %v1743 = vld [vmem:[%s1737 + $0x28] sm:$0xff]
    %v1744 = vld [vmem:[%s1737 + $0x30] sm:$0xff]
    %v1745 = vld [vmem:[%s1737 + $0x38] sm:$0xff]
    %v1746 = vld [vmem:[%s1737 + $0x40] sm:$0xff]
    %v1747 = vld [vmem:[#allocation5 + $0x4] sm:$0x1]
    %v1748 = vpack.c.bf16 %v1747, %v1747
    %s1749 = scalar_lea.vmem [#allocation2], 144
    %v1750 = vld [vmem:[%s1749] sm:$0xff]
    %v1751 = vld [vmem:[%s1749 + $0x8] sm:$0xff]
    %v1752 = vld [vmem:[%s1749 + $0x10] sm:$0xff]
    %v1753 = vld [vmem:[%s1749 + $0x18] sm:$0xff]
    %v1754 = vld [vmem:[%s1749 + $0x20] sm:$0xff]
    %v1755 = vld [vmem:[%s1749 + $0x28] sm:$0xff]
    %v1756 = vld [vmem:[%s1749 + $0x30] sm:$0xff]
    %v1757 = vld [vmem:[%s1749 + $0x38] sm:$0xff]
    %v1758 = vld [vmem:[%s1749 + $0x40] sm:$0xff]
    %v1759 = vld [vmem:[#allocation5 + $0x6] sm:$0x1]
    %v1760 = vpack.c.bf16 %v1759, %v1759
    %s1761 = scalar_lea.vmem [#allocation2], 216
    %v1762 = vld [vmem:[%s1761] sm:$0xff]
    %v1763 = vld [vmem:[%s1761 + $0x8] sm:$0xff]
    %v1764 = vld [vmem:[%s1761 + $0x10] sm:$0xff]
    %v1765 = vld [vmem:[%s1761 + $0x18] sm:$0xff]
    %v1766 = vld [vmem:[%s1761 + $0x20] sm:$0xff]
    %v1767 = vld [vmem:[%s1761 + $0x28] sm:$0xff]
    %v1768 = vld [vmem:[%s1761 + $0x30] sm:$0xff]
    %v1769 = vld [vmem:[%s1761 + $0x38] sm:$0xff]
    %v1770 = vld [vmem:[%s1761 + $0x40] sm:$0xff]
    %v1771 = vld [vmem:[#allocation5 + $0x8] sm:$0x1]
    %v1772 = vpack.c.bf16 %v1771, %v1771
    %s1773 = scalar_lea.vmem [#allocation2], 288
    %v1774 = vld [vmem:[%s1773] sm:$0xff]
    %v1775 = vld [vmem:[%s1773 + $0x8] sm:$0xff]
    %v1776 = vld [vmem:[%s1773 + $0x10] sm:$0xff]
    %v1777 = vld [vmem:[%s1773 + $0x18] sm:$0xff]
    %v1778 = vld [vmem:[%s1773 + $0x20] sm:$0xff]
    %v1779 = vld [vmem:[%s1773 + $0x28] sm:$0xff]
    %v1780 = vld [vmem:[%s1773 + $0x30] sm:$0xff]
    %v1781 = vld [vmem:[%s1773 + $0x38] sm:$0xff]
    %v1782 = vld [vmem:[%s1773 + $0x40] sm:$0xff]
    %v1784 = vsel %vm1707, %v1772, 0
    %1786 = vmatprep.subr.bf16.mxu0 %v1775
    %1787 = vmatpush1.bf16.msra.mxu0 %v1774
    %1788 = vmatprep.subr.bf16.mxu0 %v1778
    %1789 = vmatpush1.bf16.msra.mxu0 %v1777
    %1790 = vmatprep.subr.bf16.mxu0 %v1781
    %1791 = vmatpush1.bf16.msra.mxu0 %v1780
    %1792 = vmatprep.subr.bf16.mxu0 0
    %1793 = vmatpush1.bf16.msra.mxu0 0
    %1794 = vmatprep.subr.bf16.mxu0 0
    %1795 = vmatpush1.bf16.msra.mxu0 0
    %1796 = vmatprep.subr.bf16.mxu0 0
    %1797 = vmatpush1.bf16.msra.mxu0 0
    %1798 = vmatprep.subr.bf16.mxu0 0
    %1799 = vmatpush1.bf16.msra.mxu0 0
    %1800 = vmatprep.subr.bf16.mxu0 0
    %1801 = vmatpush1.bf16.msra.mxu0 0
    %1802 = vmatprep.subr.bf16.mxu0 0
    %1803 = vmatpush1.bf16.msra.mxu0 0
    %1804 = vmatprep.subr.bf16.mxu0 0
    %1805 = vmatpush1.bf16.msra.mxu0 0
    %1806 = vmatprep.subr.bf16.mxu0 0
    %1807 = vmatpush1.bf16.msra.mxu0 0
    %1808 = vmatprep.subr.bf16.mxu0 0
    %1809 = vmatpush1.bf16.msra.mxu0 0
    %1810 = vmatprep.subr.bf16.mxu0 0
    %1811 = vmatpush1.bf16.msra.mxu0 0
    %1812 = vmatprep.subr.bf16.mxu0 0
    %1813 = vmatpush1.bf16.msra.mxu0 0
    %1814 = vmatprep.subr.bf16.mxu0 0
    %1815 = vmatpush1.bf16.msra.mxu0 0
    %1816 = vmatprep.subr.bf16.mxu0 0
    %1817 = vmatpush1.bf16.msra.mxu0 0
    %1818 = vmatprep.mubr.bf16.mxu0 0
    %1819 = vmatmul.mubr.bf16.gmra.mrb[0].mxu0 %v1784
    %v1820 = vpop.f32.mrb[0].mxu0
    %v1821 = vadd.f32 0.0, %v1820
    %v1822 = vpop.f32.mrb[0].mxu0
    %v1823 = vadd.f32 0.0, %v1822
    %v1824 = vpop.f32.mrb[0].mxu0
    %v1825 = vpop.f32.mrb[0].mxu0
    %1826 = vdwg.mxu0
    %1827 = vmatprep.subr.bf16.mxu0 0
    %1828 = vmatpush1.bf16.msra.mxu0 %v1776
    %1829 = vmatprep.subr.bf16.mxu0 0
    %1830 = vmatpush1.bf16.msra.mxu0 %v1779
    %1831 = vmatprep.subr.bf16.mxu0 0
    %1832 = vmatpush1.bf16.msra.mxu0 %v1782
    %1833 = vmatprep.subr.bf16.mxu0 0
    %1834 = vmatpush1.bf16.msra.mxu0 0
    %1835 = vmatprep.subr.bf16.mxu0 0
    %1836 = vmatpush1.bf16.msra.mxu0 0
    %1837 = vmatprep.subr.bf16.mxu0 0
    %1838 = vmatpush1.bf16.msra.mxu0 0
    %1839 = vmatprep.subr.bf16.mxu0 0
    %1840 = vmatpush1.bf16.msra.mxu0 0
    %1841 = vmatprep.subr.bf16.mxu0 0
    %1842 = vmatpush1.bf16.msra.mxu0 0
    %1843 = vmatprep.subr.bf16.mxu0 0
    %1844 = vmatpush1.bf16.msra.mxu0 0
    %1845 = vmatprep.subr.bf16.mxu0 0
    %1846 = vmatpush1.bf16.msra.mxu0 0
    %1847 = vmatprep.subr.bf16.mxu0 0
    %1848 = vmatpush1.bf16.msra.mxu0 0
    %1849 = vmatprep.subr.bf16.mxu0 0
    %1850 = vmatpush1.bf16.msra.mxu0 0
    %1851 = vmatprep.subr.bf16.mxu0 0
    %1852 = vmatpush1.bf16.msra.mxu0 0
    %1853 = vmatprep.subr.bf16.mxu0 0
    %1854 = vmatpush1.bf16.msra.mxu0 0
    %1855 = vmatprep.subr.bf16.mxu0 0
    %1856 = vmatpush1.bf16.msra.mxu0 0
    %1857 = vmatprep.subr.bf16.mxu0 0
    %1858 = vmatpush1.bf16.msra.mxu0 0
    %1859 = vmatprep.mubr.bf16.mxu0 0
    %1860 = vmatmul.mubr.bf16.gmra.mrb[0].mxu0 %v1784
    %v1861 = vpop.f32.mrb[0].mxu0
    %v1862 = vadd.f32 0.0, %v1861
    %v1863 = vpop.f32.mrb[0].mxu0
    %v1864 = vpop.f32.mrb[0].mxu0
    %v1865 = vpop.f32.mrb[0].mxu0
    %1866 = vdwg.mxu0
    %v1868 = vsel %vm1707, %v1725, 0
    %1870 = vmatprep.subr.bf16.mxu0 %v1727
    %1871 = vmatpush1.bf16.msra.mxu0 %v1726
    %1872 = vmatprep.subr.bf16.mxu0 %v1730
    %1873 = vmatpush1.bf16.msra.mxu0 %v1729
    %1874 = vmatprep.subr.bf16.mxu0 %v1733
    %1875 = vmatpush1.bf16.msra.mxu0 %v1732
    %1876 = vmatprep.subr.bf16.mxu0 0
    %1877 = vmatpush1.bf16.msra.mxu0 0
    %1878 = vmatprep.subr.bf16.mxu0 0
    %1879 = vmatpush1.bf16.msra.mxu0 0
    %1880 = vmatprep.subr.bf16.mxu0 0
    %1881 = vmatpush1.bf16.msra.mxu0 0
    %1882 = vmatprep.subr.bf16.mxu0 0
    %1883 = vmatpush1.bf16.msra.mxu0 0
    %1884 = vmatprep.subr.bf16.mxu0 0
    %1885 = vmatpush1.bf16.msra.mxu0 0
    %1886 = vmatprep.subr.bf16.mxu0 0
    %1887 = vmatpush1.bf16.msra.mxu0 0
    %1888 = vmatprep.subr.bf16.mxu0 0
    %1889 = vmatpush1.bf16.msra.mxu0 0
    %1890 = vmatprep.subr.bf16.mxu0 0
    %1891 = vmatpush1.bf16.msra.mxu0 0
    %1892 = vmatprep.subr.bf16.mxu0 0
    %1893 = vmatpush1.bf16.msra.mxu0 0
    %1894 = vmatprep.subr.bf16.mxu0 0
    %1895 = vmatpush1.bf16.msra.mxu0 0
    %1896 = vmatprep.subr.bf16.mxu0 0
    %1897 = vmatpush1.bf16.msra.mxu0 0
    %1898 = vmatprep.subr.bf16.mxu0 0
    %1899 = vmatpush1.bf16.msra.mxu0 0
    %1900 = vmatprep.subr.bf16.mxu0 0
    %1901 = vmatpush1.bf16.msra.mxu0 0
    %1902 = vmatprep.mubr.bf16.mxu0 0
    %1903 = vmatmul.mubr.bf16.gmra.mrb[0].mxu0 %v1868
    %v1904 = vpop.f32.mrb[0].mxu0
    %v1905 = vadd.f32 %v1821, %v1904
    %v1906 = vpop.f32.mrb[0].mxu0
    %v1907 = vadd.f32 %v1823, %v1906
    %v1908 = vpop.f32.mrb[0].mxu0
    %v1909 = vpop.f32.mrb[0].mxu0
    %1910 = vdwg.mxu0
    %1911 = vmatprep.subr.bf16.mxu0 0
    %1912 = vmatpush1.bf16.msra.mxu0 %v1728
    %1913 = vmatprep.subr.bf16.mxu0 0
    %1914 = vmatpush1.bf16.msra.mxu0 %v1731
    %1915 = vmatprep.subr.bf16.mxu0 0
    %1916 = vmatpush1.bf16.msra.mxu0 %v1734
    %1917 = vmatprep.subr.bf16.mxu0 0
    %1918 = vmatpush1.bf16.msra.mxu0 0
    %1919 = vmatprep.subr.bf16.mxu0 0
    %1920 = vmatpush1.bf16.msra.mxu0 0
    %1921 = vmatprep.subr.bf16.mxu0 0
    %1922 = vmatpush1.bf16.msra.mxu0 0
    %1923 = vmatprep.subr.bf16.mxu0 0
    %1924 = vmatpush1.bf16.msra.mxu0 0
    %1925 = vmatprep.subr.bf16.mxu0 0
    %1926 = vmatpush1.bf16.msra.mxu0 0
    %1927 = vmatprep.subr.bf16.mxu0 0
    %1928 = vmatpush1.bf16.msra.mxu0 0
    %1929 = vmatprep.subr.bf16.mxu0 0
    %1930 = vmatpush1.bf16.msra.mxu0 0
    %1931 = vmatprep.subr.bf16.mxu0 0
    %1932 = vmatpush1.bf16.msra.mxu0 0
    %1933 = vmatprep.subr.bf16.mxu0 0
    %1934 = vmatpush1.bf16.msra.mxu0 0
    %1935 = vmatprep.subr.bf16.mxu0 0
    %1936 = vmatpush1.bf16.msra.mxu0 0
    %1937 = vmatprep.subr.bf16.mxu0 0
    %1938 = vmatpush1.bf16.msra.mxu0 0
    %1939 = vmatprep.subr.bf16.mxu0 0
    %1940 = vmatpush1.bf16.msra.mxu0 0
    %1941 = vmatprep.subr.bf16.mxu0 0
    %1942 = vmatpush1.bf16.msra.mxu0 0
    %1943 = vmatprep.mubr.bf16.mxu0 0
    %1944 = vmatmul.mubr.bf16.gmra.mrb[0].mxu0 %v1868
    %v1945 = vpop.f32.mrb[0].mxu0
    %v1946 = vadd.f32 %v1862, %v1945
    %v1947 = vpop.f32.mrb[0].mxu0
    %v1948 = vpop.f32.mrb[0].mxu0
    %v1949 = vpop.f32.mrb[0].mxu0
    %1950 = vdwg.mxu0
    %v1951 = vld [vmem:[#allocation5 + $0xa] sm:$0x1]
    %v1952 = vpack.c.bf16 %v1951, %v1951
    %s1953 = scalar_lea.vmem [#allocation2], 360
    %v1954 = vld [vmem:[%s1953] sm:$0xff]
    %v1955 = vld [vmem:[%s1953 + $0x8] sm:$0xff]
    %v1956 = vld [vmem:[%s1953 + $0x10] sm:$0xff]
    %v1957 = vld [vmem:[%s1953 + $0x18] sm:$0xff]
    %v1958 = vld [vmem:[%s1953 + $0x20] sm:$0xff]
    %v1959 = vld [vmem:[%s1953 + $0x28] sm:$0xff]
    %v1960 = vld [vmem:[%s1953 + $0x30] sm:$0xff]
    %v1961 = vld [vmem:[%s1953 + $0x38] sm:$0xff]
    %v1962 = vld [vmem:[%s1953 + $0x40] sm:$0xff]
    %v1964 = vsel %vm1707, %v1952, 0
    %1966 = vmatprep.subr.bf16.mxu0 %v1955
    %1967 = vmatpush1.bf16.msra.mxu0 %v1954
    %1968 = vmatprep.subr.bf16.mxu0 %v1958
    %1969 = vmatpush1.bf16.msra.mxu0 %v1957
    %1970 = vmatprep.subr.bf16.mxu0 %v1961
    %1971 = vmatpush1.bf16.msra.mxu0 %v1960
    %1972 = vmatprep.subr.bf16.mxu0 0
    %1973 = vmatpush1.bf16.msra.mxu0 0
    %1974 = vmatprep.subr.bf16.mxu0 0
    %1975 = vmatpush1.bf16.msra.mxu0 0
    %1976 = vmatprep.subr.bf16.mxu0 0
    %1977 = vmatpush1.bf16.msra.mxu0 0
    %1978 = vmatprep.subr.bf16.mxu0 0
    %1979 = vmatpush1.bf16.msra.mxu0 0
    %1980 = vmatprep.subr.bf16.mxu0 0
    %1981 = vmatpush1.bf16.msra.mxu0 0
    %1982 = vmatprep.subr.bf16.mxu0 0
    %1983 = vmatpush1.bf16.msra.mxu0 0
    %1984 = vmatprep.subr.bf16.mxu0 0
    %1985 = vmatpush1.bf16.msra.mxu0 0
    %1986 = vmatprep.subr.bf16.mxu0 0
    %1987 = vmatpush1.bf16.msra.mxu0 0
    %1988 = vmatprep.subr.bf16.mxu0 0
    %1989 = vmatpush1.bf16.msra.mxu0 0
    %1990 = vmatprep.subr.bf16.mxu0 0
    %1991 = vmatpush1.bf16.msra.mxu0 0
    %1992 = vmatprep.subr.bf16.mxu0 0
    %1993 = vmatpush1.bf16.msra.mxu0 0
    %1994 = vmatprep.subr.bf16.mxu0 0
    %1995 = vmatpush1.bf16.msra.mxu0 0
    %1996 = vmatprep.subr.bf16.mxu0 0
    %1997 = vmatpush1.bf16.msra.mxu0 0
    %1998 = vmatprep.mubr.bf16.mxu0 0
    %1999 = vmatmul.mubr.bf16.gmra.mrb[0].mxu0 %v1964
    %v2000 = vpop.f32.mrb[0].mxu0
    %v2001 = vadd.f32 0.0, %v2000
    %v2002 = vpop.f32.mrb[0].mxu0
    %v2003 = vadd.f32 0.0, %v2002
    %v2004 = vpop.f32.mrb[0].mxu0
    %v2005 = vpop.f32.mrb[0].mxu0
    %2006 = vdwg.mxu0
    %2007 = vmatprep.subr.bf16.mxu0 0
    %2008 = vmatpush1.bf16.msra.mxu0 %v1956
    %2009 = vmatprep.subr.bf16.mxu0 0
    %2010 = vmatpush1.bf16.msra.mxu0 %v1959
    %2011 = vmatprep.subr.bf16.mxu0 0
    %2012 = vmatpush1.bf16.msra.mxu0 %v1962
    %2013 = vmatprep.subr.bf16.mxu0 0
    %2014 = vmatpush1.bf16.msra.mxu0 0
    %2015 = vmatprep.subr.bf16.mxu0 0
    %2016 = vmatpush1.bf16.msra.mxu0 0
    %2017 = vmatprep.subr.bf16.mxu0 0
    %2018 = vmatpush1.bf16.msra.mxu0 0
    %2019 = vmatprep.subr.bf16.mxu0 0
    %2020 = vmatpush1.bf16.msra.mxu0 0
    %2021 = vmatprep.subr.bf16.mxu0 0
    %2022 = vmatpush1.bf16.msra.mxu0 0
    %2023 = vmatprep.subr.bf16.mxu0 0
    %2024 = vmatpush1.bf16.msra.mxu0 0
    %2025 = vmatprep.subr.bf16.mxu0 0
    %2026 = vmatpush1.bf16.msra.mxu0 0
    %2027 = vmatprep.subr.bf16.mxu0 0
    %2028 = vmatpush1.bf16.msra.mxu0 0
    %2029 = vmatprep.subr.bf16.mxu0 0
    %2030 = vmatpush1.bf16.msra.mxu0 0
    %2031 = vmatprep.subr.bf16.mxu0 0
    %2032 = vmatpush1.bf16.msra.mxu0 0
    %2033 = vmatprep.subr.bf16.mxu0 0
    %2034 = vmatpush1.bf16.msra.mxu0 0
    %2035 = vmatprep.subr.bf16.mxu0 0
    %2036 = vmatpush1.bf16.msra.mxu0 0
    %2037 = vmatprep.subr.bf16.mxu0 0
    %2038 = vmatpush1.bf16.msra.mxu0 0
    %2039 = vmatprep.mubr.bf16.mxu0 0
    %2040 = vmatmul.mubr.bf16.gmra.mrb[0].mxu0 %v1964
    %v2041 = vpop.f32.mrb[0].mxu0
    %v2042 = vadd.f32 0.0, %v2041
    %v2043 = vpop.f32.mrb[0].mxu0
    %v2044 = vpop.f32.mrb[0].mxu0
    %v2045 = vpop.f32.mrb[0].mxu0
    %2046 = vdwg.mxu0
    %v2048 = vsel %vm1707, %v1736, 0
    %2050 = vmatprep.subr.bf16.mxu0 %v1739
    %2051 = vmatpush1.bf16.msra.mxu0 %v1738
    %2052 = vmatprep.subr.bf16.mxu0 %v1742
    %2053 = vmatpush1.bf16.msra.mxu0 %v1741
    %2054 = vmatprep.subr.bf16.mxu0 %v1745
    %2055 = vmatpush1.bf16.msra.mxu0 %v1744
    %2056 = vmatprep.subr.bf16.mxu0 0
    %2057 = vmatpush1.bf16.msra.mxu0 0
    %2058 = vmatprep.subr.bf16.mxu0 0
    %2059 = vmatpush1.bf16.msra.mxu0 0
    %2060 = vmatprep.subr.bf16.mxu0 0
    %2061 = vmatpush1.bf16.msra.mxu0 0
    %2062 = vmatprep.subr.bf16.mxu0 0
    %2063 = vmatpush1.bf16.msra.mxu0 0
    %2064 = vmatprep.subr.bf16.mxu0 0
    %2065 = vmatpush1.bf16.msra.mxu0 0
    %2066 = vmatprep.subr.bf16.mxu0 0
    %2067 = vmatpush1.bf16.msra.mxu0 0
    %2068 = vmatprep.subr.bf16.mxu0 0
    %2069 = vmatpush1.bf16.msra.mxu0 0
    %2070 = vmatprep.subr.bf16.mxu0 0
    %2071 = vmatpush1.bf16.msra.mxu0 0
    %2072 = vmatprep.subr.bf16.mxu0 0
    %2073 = vmatpush1.bf16.msra.mxu0 0
    %2074 = vmatprep.subr.bf16.mxu0 0
    %2075 = vmatpush1.bf16.msra.mxu0 0
    %2076 = vmatprep.subr.bf16.mxu0 0
    %2077 = vmatpush1.bf16.msra.mxu0 0
    %2078 = vmatprep.subr.bf16.mxu0 0
    %2079 = vmatpush1.bf16.msra.mxu0 0
    %2080 = vmatprep.subr.bf16.mxu0 0
    %2081 = vmatpush1.bf16.msra.mxu0 0
    %2082 = vmatprep.mubr.bf16.mxu0 0
    %2083 = vmatmul.mubr.bf16.gmra.mrb[0].mxu0 %v2048
    %v2084 = vpop.f32.mrb[0].mxu0
    %v2085 = vadd.f32 %v2001, %v2084
    %v2086 = vpop.f32.mrb[0].mxu0
    %v2087 = vadd.f32 %v2003, %v2086
    %v2088 = vpop.f32.mrb[0].mxu0
    %v2089 = vpop.f32.mrb[0].mxu0
    %2090 = vdwg.mxu0
    %2091 = vmatprep.subr.bf16.mxu0 0
    %2092 = vmatpush1.bf16.msra.mxu0 %v1740
    %2093 = vmatprep.subr.bf16.mxu0 0
    %2094 = vmatpush1.bf16.msra.mxu0 %v1743
    %2095 = vmatprep.subr.bf16.mxu0 0
    %2096 = vmatpush1.bf16.msra.mxu0 %v1746
    %2097 = vmatprep.subr.bf16.mxu0 0
    %2098 = vmatpush1.bf16.msra.mxu0 0
    %2099 = vmatprep.subr.bf16.mxu0 0
    %2100 = vmatpush1.bf16.msra.mxu0 0
    %2101 = vmatprep.subr.bf16.mxu0 0
    %2102 = vmatpush1.bf16.msra.mxu0 0
    %2103 = vmatprep.subr.bf16.mxu0 0
    %2104 = vmatpush1.bf16.msra.mxu0 0
    %2105 = vmatprep.subr.bf16.mxu0 0
    %2106 = vmatpush1.bf16.msra.mxu0 0
    %2107 = vmatprep.subr.bf16.mxu0 0
    %2108 = vmatpush1.bf16.msra.mxu0 0
    %2109 = vmatprep.subr.bf16.mxu0 0
    %2110 = vmatpush1.bf16.msra.mxu0 0
    %2111 = vmatprep.subr.bf16.mxu0 0
    %2112 = vmatpush1.bf16.msra.mxu0 0
    %2113 = vmatprep.subr.bf16.mxu0 0
    %2114 = vmatpush1.bf16.msra.mxu0 0
    %2115 = vmatprep.subr.bf16.mxu0 0
    %2116 = vmatpush1.bf16.msra.mxu0 0
    %2117 = vmatprep.subr.bf16.mxu0 0
    %2118 = vmatpush1.bf16.msra.mxu0 0
    %2119 = vmatprep.subr.bf16.mxu0 0
    %2120 = vmatpush1.bf16.msra.mxu0 0
    %2121 = vmatprep.subr.bf16.mxu0 0
    %2122 = vmatpush1.bf16.msra.mxu0 0
    %2123 = vmatprep.mubr.bf16.mxu0 0
    %2124 = vmatmul.mubr.bf16.gmra.mrb[0].mxu0 %v2048
    %v2125 = vpop.f32.mrb[0].mxu0
    %v2126 = vadd.f32 %v2042, %v2125
    %v2127 = vpop.f32.mrb[0].mxu0
    %v2128 = vpop.f32.mrb[0].mxu0
    %v2129 = vpop.f32.mrb[0].mxu0
    %2130 = vdwg.mxu0
    %v2131 = vld [vmem:[#allocation5 + $0xc] sm:$0x1]
    %v2132 = vpack.c.bf16 %v2131, %v2131
    %s2133 = scalar_lea.vmem [#allocation2], 432
    %v2134 = vld [vmem:[%s2133] sm:$0xff]
    %v2135 = vld [vmem:[%s2133 + $0x8] sm:$0xff]
    %v2136 = vld [vmem:[%s2133 + $0x10] sm:$0xff]
    %v2137 = vld [vmem:[%s2133 + $0x18] sm:$0xff]
    %v2138 = vld [vmem:[%s2133 + $0x20] sm:$0xff]
    %v2139 = vld [vmem:[%s2133 + $0x28] sm:$0xff]
    %v2140 = vld [vmem:[%s2133 + $0x30] sm:$0xff]
    %v2141 = vld [vmem:[%s2133 + $0x38] sm:$0xff]
    %v2142 = vld [vmem:[%s2133 + $0x40] sm:$0xff]
    %v2144 = vsel %vm1707, %v2132, 0
    %2146 = vmatprep.subr.bf16.mxu0 %v2135
    %2147 = vmatpush1.bf16.msra.mxu0 %v2134
    %2148 = vmatprep.subr.bf16.mxu0 %v2138
    %2149 = vmatpush1.bf16.msra.mxu0 %v2137
    %2150 = vmatprep.subr.bf16.mxu0 %v2141
    %2151 = vmatpush1.bf16.msra.mxu0 %v2140
    %2152 = vmatprep.subr.bf16.mxu0 0
    %2153 = vmatpush1.bf16.msra.mxu0 0
    %2154 = vmatprep.subr.bf16.mxu0 0
    %2155 = vmatpush1.bf16.msra.mxu0 0
    %2156 = vmatprep.subr.bf16.mxu0 0
    %2157 = vmatpush1.bf16.msra.mxu0 0
    %2158 = vmatprep.subr.bf16.mxu0 0
    %2159 = vmatpush1.bf16.msra.mxu0 0
    %2160 = vmatprep.subr.bf16.mxu0 0
    %2161 = vmatpush1.bf16.msra.mxu0 0
    %2162 = vmatprep.subr.bf16.mxu0 0
    %2163 = vmatpush1.bf16.msra.mxu0 0
    %2164 = vmatprep.subr.bf16.mxu0 0
    %2165 = vmatpush1.bf16.msra.mxu0 0
    %2166 = vmatprep.subr.bf16.mxu0 0
    %2167 = vmatpush1.bf16.msra.mxu0 0
    %2168 = vmatprep.subr.bf16.mxu0 0
    %2169 = vmatpush1.bf16.msra.mxu0 0
    %2170 = vmatprep.subr.bf16.mxu0 0
    %2171 = vmatpush1.bf16.msra.mxu0 0
    %2172 = vmatprep.subr.bf16.mxu0 0
    %2173 = vmatpush1.bf16.msra.mxu0 0
    %2174 = vmatprep.subr.bf16.mxu0 0
    %2175 = vmatpush1.bf16.msra.mxu0 0
    %2176 = vmatprep.subr.bf16.mxu0 0
    %2177 = vmatpush1.bf16.msra.mxu0 0
    %2178 = vmatprep.mubr.bf16.mxu0 0
    %2179 = vmatmul.mubr.bf16.gmra.mrb[0].mxu0 %v2144
    %v2180 = vpop.f32.mrb[0].mxu0
    %v2181 = vadd.f32 0.0, %v2180
    %v2182 = vpop.f32.mrb[0].mxu0
    %v2183 = vadd.f32 0.0, %v2182
    %v2184 = vpop.f32.mrb[0].mxu0
    %v2185 = vpop.f32.mrb[0].mxu0
    %2186 = vdwg.mxu0
    %2187 = vmatprep.subr.bf16.mxu0 0
    %2188 = vmatpush1.bf16.msra.mxu0 %v2136
    %2189 = vmatprep.subr.bf16.mxu0 0
    %2190 = vmatpush1.bf16.msra.mxu0 %v2139
    %2191 = vmatprep.subr.bf16.mxu0 0
    %2192 = vmatpush1.bf16.msra.mxu0 %v2142
    %2193 = vmatprep.subr.bf16.mxu0 0
    %2194 = vmatpush1.bf16.msra.mxu0 0
    %2195 = vmatprep.subr.bf16.mxu0 0
    %2196 = vmatpush1.bf16.msra.mxu0 0
    %2197 = vmatprep.subr.bf16.mxu0 0
    %2198 = vmatpush1.bf16.msra.mxu0 0
    %2199 = vmatprep.subr.bf16.mxu0 0
    %2200 = vmatpush1.bf16.msra.mxu0 0
    %2201 = vmatprep.subr.bf16.mxu0 0
    %2202 = vmatpush1.bf16.msra.mxu0 0
    %2203 = vmatprep.subr.bf16.mxu0 0
    %2204 = vmatpush1.bf16.msra.mxu0 0
    %2205 = vmatprep.subr.bf16.mxu0 0
    %2206 = vmatpush1.bf16.msra.mxu0 0
    %2207 = vmatprep.subr.bf16.mxu0 0
    %2208 = vmatpush1.bf16.msra.mxu0 0
    %2209 = vmatprep.subr.bf16.mxu0 0
    %2210 = vmatpush1.bf16.msra.mxu0 0
    %2211 = vmatprep.subr.bf16.mxu0 0
    %2212 = vmatpush1.bf16.msra.mxu0 0
    %2213 = vmatprep.subr.bf16.mxu0 0
    %2214 = vmatpush1.bf16.msra.mxu0 0
    %2215 = vmatprep.subr.bf16.mxu0 0
    %2216 = vmatpush1.bf16.msra.mxu0 0
    %2217 = vmatprep.subr.bf16.mxu0 0
    %2218 = vmatpush1.bf16.msra.mxu0 0
    %2219 = vmatprep.mubr.bf16.mxu0 0
    %2220 = vmatmul.mubr.bf16.gmra.mrb[0].mxu0 %v2144
    %v2221 = vpop.f32.mrb[0].mxu0
    %v2222 = vadd.f32 0.0, %v2221
    %v2223 = vpop.f32.mrb[0].mxu0
    %v2224 = vpop.f32.mrb[0].mxu0
    %v2225 = vpop.f32.mrb[0].mxu0
    %2226 = vdwg.mxu0
    %v2228 = vsel %vm1707, %v1748, 0
    %2230 = vmatprep.subr.bf16.mxu0 %v1751
    %2231 = vmatpush1.bf16.msra.mxu0 %v1750
    %2232 = vmatprep.subr.bf16.mxu0 %v1754
    %2233 = vmatpush1.bf16.msra.mxu0 %v1753
    %2234 = vmatprep.subr.bf16.mxu0 %v1757
    %2235 = vmatpush1.bf16.msra.mxu0 %v1756
    %2236 = vmatprep.subr.bf16.mxu0 0
    %2237 = vmatpush1.bf16.msra.mxu0 0
    %2238 = vmatprep.subr.bf16.mxu0 0
    %2239 = vmatpush1.bf16.msra.mxu0 0
    %2240 = vmatprep.subr.bf16.mxu0 0
    %2241 = vmatpush1.bf16.msra.mxu0 0
    %2242 = vmatprep.subr.bf16.mxu0 0
    %2243 = vmatpush1.bf16.msra.mxu0 0
    %2244 = vmatprep.subr.bf16.mxu0 0
    %2245 = vmatpush1.bf16.msra.mxu0 0
    %2246 = vmatprep.subr.bf16.mxu0 0
    %2247 = vmatpush1.bf16.msra.mxu0 0
    %2248 = vmatprep.subr.bf16.mxu0 0
    %2249 = vmatpush1.bf16.msra.mxu0 0
    %2250 = vmatprep.subr.bf16.mxu0 0
    %2251 = vmatpush1.bf16.msra.mxu0 0
    %2252 = vmatprep.subr.bf16.mxu0 0
    %2253 = vmatpush1.bf16.msra.mxu0 0
    %2254 = vmatprep.subr.bf16.mxu0 0
    %2255 = vmatpush1.bf16.msra.mxu0 0
    %2256 = vmatprep.subr.bf16.mxu0 0
    %2257 = vmatpush1.bf16.msra.mxu0 0
    %2258 = vmatprep.subr.bf16.mxu0 0
    %2259 = vmatpush1.bf16.msra.mxu0 0
    %2260 = vmatprep.subr.bf16.mxu0 0
    %2261 = vmatpush1.bf16.msra.mxu0 0
    %2262 = vmatprep.mubr.bf16.mxu0 0
    %2263 = vmatmul.mubr.bf16.gmra.mrb[0].mxu0 %v2228
    %v2264 = vpop.f32.mrb[0].mxu0
    %v2265 = vadd.f32 %v2181, %v2264
    %v2266 = vpop.f32.mrb[0].mxu0
    %v2267 = vadd.f32 %v2183, %v2266
    %v2268 = vpop.f32.mrb[0].mxu0
    %v2269 = vpop.f32.mrb[0].mxu0
    %2270 = vdwg.mxu0
    %2271 = vmatprep.subr.bf16.mxu0 0
    %2272 = vmatpush1.bf16.msra.mxu0 %v1752
    %2273 = vmatprep.subr.bf16.mxu0 0
    %2274 = vmatpush1.bf16.msra.mxu0 %v1755
    %2275 = vmatprep.subr.bf16.mxu0 0
    %2276 = vmatpush1.bf16.msra.mxu0 %v1758
    %2277 = vmatprep.subr.bf16.mxu0 0
    %2278 = vmatpush1.bf16.msra.mxu0 0
    %2279 = vmatprep.subr.bf16.mxu0 0
    %2280 = vmatpush1.bf16.msra.mxu0 0
    %2281 = vmatprep.subr.bf16.mxu0 0
    %2282 = vmatpush1.bf16.msra.mxu0 0
    %2283 = vmatprep.subr.bf16.mxu0 0
    %2284 = vmatpush1.bf16.msra.mxu0 0
    %2285 = vmatprep.subr.bf16.mxu0 0
    %2286 = vmatpush1.bf16.msra.mxu0 0
    %2287 = vmatprep.subr.bf16.mxu0 0
    %2288 = vmatpush1.bf16.msra.mxu0 0
    %2289 = vmatprep.subr.bf16.mxu0 0
    %2290 = vmatpush1.bf16.msra.mxu0 0
    %2291 = vmatprep.subr.bf16.mxu0 0
    %2292 = vmatpush1.bf16.msra.mxu0 0
    %2293 = vmatprep.subr.bf16.mxu0 0
    %2294 = vmatpush1.bf16.msra.mxu0 0
    %2295 = vmatprep.subr.bf16.mxu0 0
    %2296 = vmatpush1.bf16.msra.mxu0 0
    %2297 = vmatprep.subr.bf16.mxu0 0
    %2298 = vmatpush1.bf16.msra.mxu0 0
    %2299 = vmatprep.subr.bf16.mxu0 0
    %2300 = vmatpush1.bf16.msra.mxu0 0
    %2301 = vmatprep.subr.bf16.mxu0 0
    %2302 = vmatpush1.bf16.msra.mxu0 0
    %2303 = vmatprep.mubr.bf16.mxu0 0
    %2304 = vmatmul.mubr.bf16.gmra.mrb[0].mxu0 %v2228
    %v2305 = vpop.f32.mrb[0].mxu0
    %v2306 = vadd.f32 %v2222, %v2305
    %v2307 = vpop.f32.mrb[0].mxu0
    %v2308 = vpop.f32.mrb[0].mxu0
    %v2309 = vpop.f32.mrb[0].mxu0
    %2310 = vdwg.mxu0
    %v2311 = vld [vmem:[#allocation5 + $0xe] sm:$0x1]
    %v2312 = vpack.c.bf16 %v2311, %v2311
    %s2313 = scalar_lea.vmem [#allocation2], 504
    %v2314 = vld [vmem:[%s2313] sm:$0xff]
    %v2315 = vld [vmem:[%s2313 + $0x8] sm:$0xff]
    %v2316 = vld [vmem:[%s2313 + $0x10] sm:$0xff]
    %v2317 = vld [vmem:[%s2313 + $0x18] sm:$0xff]
    %v2318 = vld [vmem:[%s2313 + $0x20] sm:$0xff]
    %v2319 = vld [vmem:[%s2313 + $0x28] sm:$0xff]
    %v2320 = vld [vmem:[%s2313 + $0x30] sm:$0xff]
    %v2321 = vld [vmem:[%s2313 + $0x38] sm:$0xff]
    %v2322 = vld [vmem:[%s2313 + $0x40] sm:$0xff]
    %v2324 = vsel %vm1707, %v2312, 0
    %2326 = vmatprep.subr.bf16.mxu0 %v2315
    %2327 = vmatpush1.bf16.msra.mxu0 %v2314
    %2328 = vmatprep.subr.bf16.mxu0 %v2318
    %2329 = vmatpush1.bf16.msra.mxu0 %v2317
    %2330 = vmatprep.subr.bf16.mxu0 %v2321
    %2331 = vmatpush1.bf16.msra.mxu0 %v2320
    %2332 = vmatprep.subr.bf16.mxu0 0
    %2333 = vmatpush1.bf16.msra.mxu0 0
    %2334 = vmatprep.subr.bf16.mxu0 0
    %2335 = vmatpush1.bf16.msra.mxu0 0
    %2336 = vmatprep.subr.bf16.mxu0 0
    %2337 = vmatpush1.bf16.msra.mxu0 0
    %2338 = vmatprep.subr.bf16.mxu0 0
    %2339 = vmatpush1.bf16.msra.mxu0 0
    %2340 = vmatprep.subr.bf16.mxu0 0
    %2341 = vmatpush1.bf16.msra.mxu0 0
    %2342 = vmatprep.subr.bf16.mxu0 0
    %2343 = vmatpush1.bf16.msra.mxu0 0
    %2344 = vmatprep.subr.bf16.mxu0 0
    %2345 = vmatpush1.bf16.msra.mxu0 0
    %2346 = vmatprep.subr.bf16.mxu0 0
    %2347 = vmatpush1.bf16.msra.mxu0 0
    %2348 = vmatprep.subr.bf16.mxu0 0
    %2349 = vmatpush1.bf16.msra.mxu0 0
    %2350 = vmatprep.subr.bf16.mxu0 0
    %2351 = vmatpush1.bf16.msra.mxu0 0
    %2352 = vmatprep.subr.bf16.mxu0 0
    %2353 = vmatpush1.bf16.msra.mxu0 0
    %2354 = vmatprep.subr.bf16.mxu0 0
    %2355 = vmatpush1.bf16.msra.mxu0 0
    %2356 = vmatprep.subr.bf16.mxu0 0
    %2357 = vmatpush1.bf16.msra.mxu0 0
    %2358 = vmatprep.mubr.bf16.mxu0 0
    %2359 = vmatmul.mubr.bf16.gmra.mrb[0].mxu0 %v2324
    %v2360 = vpop.f32.mrb[0].mxu0
    %v2361 = vadd.f32 0.0, %v2360
    %v2362 = vpop.f32.mrb[0].mxu0
    %v2363 = vadd.f32 0.0, %v2362
    %v2364 = vpop.f32.mrb[0].mxu0
    %v2365 = vpop.f32.mrb[0].mxu0
    %2366 = vdwg.mxu0
    %2367 = vmatprep.subr.bf16.mxu0 0
    %2368 = vmatpush1.bf16.msra.mxu0 %v2316
    %2369 = vmatprep.subr.bf16.mxu0 0
    %2370 = vmatpush1.bf16.msra.mxu0 %v2319
    %2371 = vmatprep.subr.bf16.mxu0 0
    %2372 = vmatpush1.bf16.msra.mxu0 %v2322
    %2373 = vmatprep.subr.bf16.mxu0 0
    %2374 = vmatpush1.bf16.msra.mxu0 0
    %2375 = vmatprep.subr.bf16.mxu0 0
    %2376 = vmatpush1.bf16.msra.mxu0 0
    %2377 = vmatprep.subr.bf16.mxu0 0
    %2378 = vmatpush1.bf16.msra.mxu0 0
    %2379 = vmatprep.subr.bf16.mxu0 0
    %2380 = vmatpush1.bf16.msra.mxu0 0
    %2381 = vmatprep.subr.bf16.mxu0 0
    %2382 = vmatpush1.bf16.msra.mxu0 0
    %2383 = vmatprep.subr.bf16.mxu0 0
    %2384 = vmatpush1.bf16.msra.mxu0 0
    %2385 = vmatprep.subr.bf16.mxu0 0
    %2386 = vmatpush1.bf16.msra.mxu0 0
    %2387 = vmatprep.subr.bf16.mxu0 0
    %2388 = vmatpush1.bf16.msra.mxu0 0
    %2389 = vmatprep.subr.bf16.mxu0 0
    %2390 = vmatpush1.bf16.msra.mxu0 0
    %2391 = vmatprep.subr.bf16.mxu0 0
    %2392 = vmatpush1.bf16.msra.mxu0 0
    %2393 = vmatprep.subr.bf16.mxu0 0
    %2394 = vmatpush1.bf16.msra.mxu0 0
    %2395 = vmatprep.subr.bf16.mxu0 0
    %2396 = vmatpush1.bf16.msra.mxu0 0
    %2397 = vmatprep.subr.bf16.mxu0 0
    %2398 = vmatpush1.bf16.msra.mxu0 0
    %2399 = vmatprep.mubr.bf16.mxu0 0
    %2400 = vmatmul.mubr.bf16.gmra.mrb[0].mxu0 %v2324
    %v2401 = vpop.f32.mrb[0].mxu0
    %v2402 = vadd.f32 0.0, %v2401
    %v2403 = vpop.f32.mrb[0].mxu0
    %v2404 = vpop.f32.mrb[0].mxu0
    %v2405 = vpop.f32.mrb[0].mxu0
    %2406 = vdwg.mxu0
    %v2408 = vsel %vm1707, %v1760, 0
    %2410 = vmatprep.subr.bf16.mxu0 %v1763
    %2411 = vmatpush1.bf16.msra.mxu0 %v1762
    %2412 = vmatprep.subr.bf16.mxu0 %v1766
    %2413 = vmatpush1.bf16.msra.mxu0 %v1765
    %2414 = vmatprep.subr.bf16.mxu0 %v1769
    %2415 = vmatpush1.bf16.msra.mxu0 %v1768
    %2416 = vmatprep.subr.bf16.mxu0 0
    %2417 = vmatpush1.bf16.msra.mxu0 0
    %2418 = vmatprep.subr.bf16.mxu0 0
    %2419 = vmatpush1.bf16.msra.mxu0 0
    %2420 = vmatprep.subr.bf16.mxu0 0
    %2421 = vmatpush1.bf16.msra.mxu0 0
    %2422 = vmatprep.subr.bf16.mxu0 0
    %2423 = vmatpush1.bf16.msra.mxu0 0
    %2424 = vmatprep.subr.bf16.mxu0 0
    %2425 = vmatpush1.bf16.msra.mxu0 0
    %2426 = vmatprep.subr.bf16.mxu0 0
    %2427 = vmatpush1.bf16.msra.mxu0 0
    %2428 = vmatprep.subr.bf16.mxu0 0
    %2429 = vmatpush1.bf16.msra.mxu0 0
    %2430 = vmatprep.subr.bf16.mxu0 0
    %2431 = vmatpush1.bf16.msra.mxu0 0
    %2432 = vmatprep.subr.bf16.mxu0 0
    %2433 = vmatpush1.bf16.msra.mxu0 0
    %2434 = vmatprep.subr.bf16.mxu0 0
    %2435 = vmatpush1.bf16.msra.mxu0 0
    %2436 = vmatprep.subr.bf16.mxu0 0
    %2437 = vmatpush1.bf16.msra.mxu0 0
    %2438 = vmatprep.subr.bf16.mxu0 0
    %2439 = vmatpush1.bf16.msra.mxu0 0
    %2440 = vmatprep.subr.bf16.mxu0 0
    %2441 = vmatpush1.bf16.msra.mxu0 0
    %2442 = vmatprep.mubr.bf16.mxu0 0
    %2443 = vmatmul.mubr.bf16.gmra.mrb[0].mxu0 %v2408
    %v2444 = vpop.f32.mrb[0].mxu0
    %v2445 = vadd.f32 %v2361, %v2444
    %v2446 = vpop.f32.mrb[0].mxu0
    %v2447 = vadd.f32 %v2363, %v2446
    %v2448 = vpop.f32.mrb[0].mxu0
    %v2449 = vpop.f32.mrb[0].mxu0
    %2450 = vdwg.mxu0
    %2451 = vmatprep.subr.bf16.mxu0 0
    %2452 = vmatpush1.bf16.msra.mxu0 %v1764
    %2453 = vmatprep.subr.bf16.mxu0 0
    %2454 = vmatpush1.bf16.msra.mxu0 %v1767
    %2455 = vmatprep.subr.bf16.mxu0 0
    %2456 = vmatpush1.bf16.msra.mxu0 %v1770
    %2457 = vmatprep.subr.bf16.mxu0 0
    %2458 = vmatpush1.bf16.msra.mxu0 0
    %2459 = vmatprep.subr.bf16.mxu0 0
    %2460 = vmatpush1.bf16.msra.mxu0 0
    %2461 = vmatprep.subr.bf16.mxu0 0
    %2462 = vmatpush1.bf16.msra.mxu0 0
    %2463 = vmatprep.subr.bf16.mxu0 0
    %2464 = vmatpush1.bf16.msra.mxu0 0
    %2465 = vmatprep.subr.bf16.mxu0 0
    %2466 = vmatpush1.bf16.msra.mxu0 0
    %2467 = vmatprep.subr.bf16.mxu0 0
    %2468 = vmatpush1.bf16.msra.mxu0 0
    %2469 = vmatprep.subr.bf16.mxu0 0
    %2470 = vmatpush1.bf16.msra.mxu0 0
    %2471 = vmatprep.subr.bf16.mxu0 0
    %2472 = vmatpush1.bf16.msra.mxu0 0
    %2473 = vmatprep.subr.bf16.mxu0 0
    %2474 = vmatpush1.bf16.msra.mxu0 0
    %2475 = vmatprep.subr.bf16.mxu0 0
    %2476 = vmatpush1.bf16.msra.mxu0 0
    %2477 = vmatprep.subr.bf16.mxu0 0
    %2478 = vmatpush1.bf16.msra.mxu0 0
    %2479 = vmatprep.subr.bf16.mxu0 0
    %2480 = vmatpush1.bf16.msra.mxu0 0
    %2481 = vmatprep.subr.bf16.mxu0 0
    %2482 = vmatpush1.bf16.msra.mxu0 0
    %2483 = vmatprep.mubr.bf16.mxu0 0
    %2484 = vmatmul.mubr.bf16.gmra.mrb[0].mxu0 %v2408
    %v2485 = vpop.f32.mrb[0].mxu0
    %v2486 = vadd.f32 %v2402, %v2485
    %v2487 = vpop.f32.mrb[0].mxu0
    %v2488 = vpop.f32.mrb[0].mxu0
    %v2489 = vpop.f32.mrb[0].mxu0
    %2490 = vdwg.mxu0
    %v2491 = vld [vmem:[#allocation5 + $0x10] sm:$0x1]
    %v2492 = vpack.c.bf16 %v2491, %v2491
    %s2493 = scalar_lea.vmem [#allocation2], 576
    %v2494 = vld [vmem:[%s2493] sm:$0xff]
    %v2495 = vld [vmem:[%s2493 + $0x8] sm:$0xff]
    %v2496 = vld [vmem:[%s2493 + $0x10] sm:$0xff]
    %v2497 = vld [vmem:[%s2493 + $0x18] sm:$0xff]
    %v2498 = vld [vmem:[%s2493 + $0x20] sm:$0xff]
    %v2499 = vld [vmem:[%s2493 + $0x28] sm:$0xff]
    %v2500 = vld [vmem:[%s2493 + $0x30] sm:$0xff]
    %v2501 = vld [vmem:[%s2493 + $0x38] sm:$0xff]
    %v2502 = vld [vmem:[%s2493 + $0x40] sm:$0xff]
    %v2504 = vsel %vm1707, %v2492, 0
    %2506 = vmatprep.subr.bf16.mxu0 %v2495
    %2507 = vmatpush1.bf16.msra.mxu0 %v2494
    %2508 = vmatprep.subr.bf16.mxu0 %v2498
    %2509 = vmatpush1.bf16.msra.mxu0 %v2497
    %2510 = vmatprep.subr.bf16.mxu0 %v2501
    %2511 = vmatpush1.bf16.msra.mxu0 %v2500
    %2512 = vmatprep.subr.bf16.mxu0 0
    %2513 = vmatpush1.bf16.msra.mxu0 0
    %2514 = vmatprep.subr.bf16.mxu0 0
    %2515 = vmatpush1.bf16.msra.mxu0 0
    %2516 = vmatprep.subr.bf16.mxu0 0
    %2517 = vmatpush1.bf16.msra.mxu0 0
    %2518 = vmatprep.subr.bf16.mxu0 0
    %2519 = vmatpush1.bf16.msra.mxu0 0
    %2520 = vmatprep.subr.bf16.mxu0 0
    %2521 = vmatpush1.bf16.msra.mxu0 0
    %2522 = vmatprep.subr.bf16.mxu0 0
    %2523 = vmatpush1.bf16.msra.mxu0 0
    %2524 = vmatprep.subr.bf16.mxu0 0
    %2525 = vmatpush1.bf16.msra.mxu0 0
    %2526 = vmatprep.subr.bf16.mxu0 0
    %2527 = vmatpush1.bf16.msra.mxu0 0
    %2528 = vmatprep.subr.bf16.mxu0 0
    %2529 = vmatpush1.bf16.msra.mxu0 0
    %2530 = vmatprep.subr.bf16.mxu0 0
    %2531 = vmatpush1.bf16.msra.mxu0 0
    %2532 = vmatprep.subr.bf16.mxu0 0
    %2533 = vmatpush1.bf16.msra.mxu0 0
    %2534 = vmatprep.subr.bf16.mxu0 0
    %2535 = vmatpush1.bf16.msra.mxu0 0
    %2536 = vmatprep.subr.bf16.mxu0 0
    %2537 = vmatpush1.bf16.msra.mxu0 0
    %2538 = vmatprep.mubr.bf16.mxu0 0
    %2539 = vmatmul.mubr.bf16.gmra.mrb[0].mxu0 %v2504
    %v2540 = vpop.f32.mrb[0].mxu0
    %v2541 = vadd.f32 0.0, %v2540
    %v2542 = vpop.f32.mrb[0].mxu0
    %v2543 = vadd.f32 0.0, %v2542
    %v2544 = vpop.f32.mrb[0].mxu0
    %v2545 = vpop.f32.mrb[0].mxu0
    %2546 = vdwg.mxu0
    %2547 = vmatprep.subr.bf16.mxu0 0
    %2548 = vmatpush1.bf16.msra.mxu0 %v2496
    %2549 = vmatprep.subr.bf16.mxu0 0
    %2550 = vmatpush1.bf16.msra.mxu0 %v2499
    %2551 = vmatprep.subr.bf16.mxu0 0
    %2552 = vmatpush1.bf16.msra.mxu0 %v2502
    %2553 = vmatprep.subr.bf16.mxu0 0
    %2554 = vmatpush1.bf16.msra.mxu0 0
    %2555 = vmatprep.subr.bf16.mxu0 0
    %2556 = vmatpush1.bf16.msra.mxu0 0
    %2557 = vmatprep.subr.bf16.mxu0 0
    %2558 = vmatpush1.bf16.msra.mxu0 0
    %2559 = vmatprep.subr.bf16.mxu0 0
    %2560 = vmatpush1.bf16.msra.mxu0 0
    %2561 = vmatprep.subr.bf16.mxu0 0
    %2562 = vmatpush1.bf16.msra.mxu0 0
    %2563 = vmatprep.subr.bf16.mxu0 0
    %2564 = vmatpush1.bf16.msra.mxu0 0
    %2565 = vmatprep.subr.bf16.mxu0 0
    %2566 = vmatpush1.bf16.msra.mxu0 0
    %2567 = vmatprep.subr.bf16.mxu0 0
    %2568 = vmatpush1.bf16.msra.mxu0 0
    %2569 = vmatprep.subr.bf16.mxu0 0
    %2570 = vmatpush1.bf16.msra.mxu0 0
    %2571 = vmatprep.subr.bf16.mxu0 0
    %2572 = vmatpush1.bf16.msra.mxu0 0
    %2573 = vmatprep.subr.bf16.mxu0 0
    %2574 = vmatpush1.bf16.msra.mxu0 0
    %2575 = vmatprep.subr.bf16.mxu0 0
    %2576 = vmatpush1.bf16.msra.mxu0 0
    %2577 = vmatprep.subr.bf16.mxu0 0
    %2578 = vmatpush1.bf16.msra.mxu0 0
    %2579 = vmatprep.mubr.bf16.mxu0 0
    %2580 = vmatmul.mubr.bf16.gmra.mrb[0].mxu0 %v2504
    %v2581 = vpop.f32.mrb[0].mxu0
    %v2582 = vadd.f32 0.0, %v2581
    %v2583 = vpop.f32.mrb[0].mxu0
    %v2584 = vpop.f32.mrb[0].mxu0
    %v2585 = vpop.f32.mrb[0].mxu0
    %2586 = vdwg.mxu0
    %v2587 = vadd.f32 %v1905, %v2541
    %v2588 = vadd.f32 %v1907, %v2543
    %v2589 = vadd.f32 %v1946, %v2582
    %v2590 = vld [vmem:[#allocation5 + $0x12] sm:$0x1]
    %v2591 = vpack.c.bf16 %v2590, %v2590
    %s2592 = scalar_lea.vmem [#allocation2], 648
    %v2593 = vld [vmem:[%s2592] sm:$0xff]
    %v2594 = vld [vmem:[%s2592 + $0x8] sm:$0xff]
    %v2595 = vld [vmem:[%s2592 + $0x10] sm:$0xff]
    %v2596 = vld [vmem:[%s2592 + $0x18] sm:$0xff]
    %v2597 = vld [vmem:[%s2592 + $0x20] sm:$0xff]
    %v2598 = vld [vmem:[%s2592 + $0x28] sm:$0xff]
    %v2599 = vld [vmem:[%s2592 + $0x30] sm:$0xff]
    %v2600 = vld [vmem:[%s2592 + $0x38] sm:$0xff]
    %v2601 = vld [vmem:[%s2592 + $0x40] sm:$0xff]
    %v2603 = vsel %vm1707, %v2591, 0
    %2605 = vmatprep.subr.bf16.mxu0 %v2594
    %2606 = vmatpush1.bf16.msra.mxu0 %v2593
    %2607 = vmatprep.subr.bf16.mxu0 %v2597
    %2608 = vmatpush1.bf16.msra.mxu0 %v2596
    %2609 = vmatprep.subr.bf16.mxu0 %v2600
    %2610 = vmatpush1.bf16.msra.mxu0 %v2599
    %2611 = vmatprep.subr.bf16.mxu0 0
    %2612 = vmatpush1.bf16.msra.mxu0 0
    %2613 = vmatprep.subr.bf16.mxu0 0
    %2614 = vmatpush1.bf16.msra.mxu0 0
    %2615 = vmatprep.subr.bf16.mxu0 0
    %2616 = vmatpush1.bf16.msra.mxu0 0
    %2617 = vmatprep.subr.bf16.mxu0 0
    %2618 = vmatpush1.bf16.msra.mxu0 0
    %2619 = vmatprep.subr.bf16.mxu0 0
    %2620 = vmatpush1.bf16.msra.mxu0 0
    %2621 = vmatprep.subr.bf16.mxu0 0
    %2622 = vmatpush1.bf16.msra.mxu0 0
    %2623 = vmatprep.subr.bf16.mxu0 0
    %2624 = vmatpush1.bf16.msra.mxu0 0
    %2625 = vmatprep.subr.bf16.mxu0 0
    %2626 = vmatpush1.bf16.msra.mxu0 0
    %2627 = vmatprep.subr.bf16.mxu0 0
    %2628 = vmatpush1.bf16.msra.mxu0 0
    %2629 = vmatprep.subr.bf16.mxu0 0
    %2630 = vmatpush1.bf16.msra.mxu0 0
    %2631 = vmatprep.subr.bf16.mxu0 0
    %2632 = vmatpush1.bf16.msra.mxu0 0
    %2633 = vmatprep.subr.bf16.mxu0 0
    %2634 = vmatpush1.bf16.msra.mxu0 0
    %2635 = vmatprep.subr.bf16.mxu0 0
    %2636 = vmatpush1.bf16.msra.mxu0 0
    %2637 = vmatprep.mubr.bf16.mxu0 0
    %2638 = vmatmul.mubr.bf16.gmra.mrb[0].mxu0 %v2603
    %v2639 = vpop.f32.mrb[0].mxu0
    %v2640 = vadd.f32 0.0, %v2639
    %v2641 = vpop.f32.mrb[0].mxu0
    %v2642 = vadd.f32 0.0, %v2641
    %v2643 = vpop.f32.mrb[0].mxu0
    %v2644 = vpop.f32.mrb[0].mxu0
    %2645 = vdwg.mxu0
    %2646 = vmatprep.subr.bf16.mxu0 0
    %2647 = vmatpush1.bf16.msra.mxu0 %v2595
    %2648 = vmatprep.subr.bf16.mxu0 0
    %2649 = vmatpush1.bf16.msra.mxu0 %v2598
    %2650 = vmatprep.subr.bf16.mxu0 0
    %2651 = vmatpush1.bf16.msra.mxu0 %v2601
    %2652 = vmatprep.subr.bf16.mxu0 0
    %2653 = vmatpush1.bf16.msra.mxu0 0
    %2654 = vmatprep.subr.bf16.mxu0 0
    %2655 = vmatpush1.bf16.msra.mxu0 0
    %2656 = vmatprep.subr.bf16.mxu0 0
    %2657 = vmatpush1.bf16.msra.mxu0 0
    %2658 = vmatprep.subr.bf16.mxu0 0
    %2659 = vmatpush1.bf16.msra.mxu0 0
    %2660 = vmatprep.subr.bf16.mxu0 0
    %2661 = vmatpush1.bf16.msra.mxu0 0
    %2662 = vmatprep.subr.bf16.mxu0 0
    %2663 = vmatpush1.bf16.msra.mxu0 0
    %2664 = vmatprep.subr.bf16.mxu0 0
    %2665 = vmatpush1.bf16.msra.mxu0 0
    %2666 = vmatprep.subr.bf16.mxu0 0
    %2667 = vmatpush1.bf16.msra.mxu0 0
    %2668 = vmatprep.subr.bf16.mxu0 0
    %2669 = vmatpush1.bf16.msra.mxu0 0
    %2670 = vmatprep.subr.bf16.mxu0 0
    %2671 = vmatpush1.bf16.msra.mxu0 0
    %2672 = vmatprep.subr.bf16.mxu0 0
    %2673 = vmatpush1.bf16.msra.mxu0 0
    %2674 = vmatprep.subr.bf16.mxu0 0
    %2675 = vmatpush1.bf16.msra.mxu0 0
    %2676 = vmatprep.subr.bf16.mxu0 0
    %2677 = vmatpush1.bf16.msra.mxu0 0
    %2678 = vmatprep.mubr.bf16.mxu0 0
    %2679 = vmatmul.mubr.bf16.gmra.mrb[0].mxu0 %v2603
    %v2680 = vpop.f32.mrb[0].mxu0
    %v2681 = vadd.f32 0.0, %v2680
    %v2682 = vpop.f32.mrb[0].mxu0
    %v2683 = vpop.f32.mrb[0].mxu0
    %v2684 = vpop.f32.mrb[0].mxu0
    %2685 = vdwg.mxu0
    %v2686 = vadd.f32 %v2085, %v2640
    %v2687 = vadd.f32 %v2087, %v2642
    %v2688 = vadd.f32 %v2126, %v2681
    %s2689 = sshll.u32 %s1721, 4
    %2690 = dma.done %s126, %s2689
    %v2691 = vld [vmem:[#allocation5 + $0x14] sm:$0x1]
    %v2692 = vpack.c.bf16 %v2691, %v2691
    %v2693 = vld [vmem:[%s125] sm:$0xff]
    %v2694 = vld [vmem:[%s125 + $0x8] sm:$0xff]
    %v2695 = vld [vmem:[%s125 + $0x10] sm:$0xff]
    %v2696 = vld [vmem:[%s125 + $0x18] sm:$0xff]
    %v2697 = vld [vmem:[%s125 + $0x20] sm:$0xff]
    %v2698 = vld [vmem:[%s125 + $0x28] sm:$0xff]
    %v2699 = vld [vmem:[%s125 + $0x30] sm:$0xff]
    %v2700 = vld [vmem:[%s125 + $0x38] sm:$0xff]
    %v2701 = vld [vmem:[%s125 + $0x40] sm:$0xff]
    %v2703 = vsel %vm1707, %v2692, 0
    %2705 = vmatprep.subr.bf16.mxu0 %v2694
    %2706 = vmatpush1.bf16.msra.mxu0 %v2693
    %2707 = vmatprep.subr.bf16.mxu0 %v2697
    %2708 = vmatpush1.bf16.msra.mxu0 %v2696
    %2709 = vmatprep.subr.bf16.mxu0 %v2700
    %2710 = vmatpush1.bf16.msra.mxu0 %v2699
    %2711 = vmatprep.subr.bf16.mxu0 0
    %2712 = vmatpush1.bf16.msra.mxu0 0
    %2713 = vmatprep.subr.bf16.mxu0 0
    %2714 = vmatpush1.bf16.msra.mxu0 0
    %2715 = vmatprep.subr.bf16.mxu0 0
    %2716 = vmatpush1.bf16.msra.mxu0 0
    %2717 = vmatprep.subr.bf16.mxu0 0
    %2718 = vmatpush1.bf16.msra.mxu0 0
    %2719 = vmatprep.subr.bf16.mxu0 0
    %2720 = vmatpush1.bf16.msra.mxu0 0
    %2721 = vmatprep.subr.bf16.mxu0 0
    %2722 = vmatpush1.bf16.msra.mxu0 0
    %2723 = vmatprep.subr.bf16.mxu0 0
    %2724 = vmatpush1.bf16.msra.mxu0 0
    %2725 = vmatprep.subr.bf16.mxu0 0
    %2726 = vmatpush1.bf16.msra.mxu0 0
    %2727 = vmatprep.subr.bf16.mxu0 0
    %2728 = vmatpush1.bf16.msra.mxu0 0
    %2729 = vmatprep.subr.bf16.mxu0 0
    %2730 = vmatpush1.bf16.msra.mxu0 0
    %2731 = vmatprep.subr.bf16.mxu0 0
    %2732 = vmatpush1.bf16.msra.mxu0 0
    %2733 = vmatprep.subr.bf16.mxu0 0
    %2734 = vmatpush1.bf16.msra.mxu0 0
    %2735 = vmatprep.subr.bf16.mxu0 0
    %2736 = vmatpush1.bf16.msra.mxu0 0
    %2737 = vmatprep.mubr.bf16.mxu0 0
    %2738 = vmatmul.mubr.bf16.gmra.mrb[0].mxu0 %v2703
    %v2739 = vpop.f32.mrb[0].mxu0
    %v2740 = vadd.f32 0.0, %v2739
    %v2741 = vpop.f32.mrb[0].mxu0
    %v2742 = vadd.f32 0.0, %v2741
    %v2743 = vpop.f32.mrb[0].mxu0
    %v2744 = vpop.f32.mrb[0].mxu0
    %2745 = vdwg.mxu0
    %2746 = vmatprep.subr.bf16.mxu0 0
    %2747 = vmatpush1.bf16.msra.mxu0 %v2695
    %2748 = vmatprep.subr.bf16.mxu0 0
    %2749 = vmatpush1.bf16.msra.mxu0 %v2698
    %2750 = vmatprep.subr.bf16.mxu0 0
    %2751 = vmatpush1.bf16.msra.mxu0 %v2701
    %2752 = vmatprep.subr.bf16.mxu0 0
    %2753 = vmatpush1.bf16.msra.mxu0 0
    %2754 = vmatprep.subr.bf16.mxu0 0
    %2755 = vmatpush1.bf16.msra.mxu0 0
    %2756 = vmatprep.subr.bf16.mxu0 0
    %2757 = vmatpush1.bf16.msra.mxu0 0
    %2758 = vmatprep.subr.bf16.mxu0 0
    %2759 = vmatpush1.bf16.msra.mxu0 0
    %2760 = vmatprep.subr.bf16.mxu0 0
    %2761 = vmatpush1.bf16.msra.mxu0 0
    %2762 = vmatprep.subr.bf16.mxu0 0
    %2763 = vmatpush1.bf16.msra.mxu0 0
    %2764 = vmatprep.subr.bf16.mxu0 0
    %2765 = vmatpush1.bf16.msra.mxu0 0
    %2766 = vmatprep.subr.bf16.mxu0 0
    %2767 = vmatpush1.bf16.msra.mxu0 0
    %2768 = vmatprep.subr.bf16.mxu0 0
    %2769 = vmatpush1.bf16.msra.mxu0 0
    %2770 = vmatprep.subr.bf16.mxu0 0
    %2771 = vmatpush1.bf16.msra.mxu0 0
    %2772 = vmatprep.subr.bf16.mxu0 0
    %2773 = vmatpush1.bf16.msra.mxu0 0
    %2774 = vmatprep.subr.bf16.mxu0 0
    %2775 = vmatpush1.bf16.msra.mxu0 0
    %2776 = vmatprep.subr.bf16.mxu0 0
    %2777 = vmatpush1.bf16.msra.mxu0 0
    %2778 = vmatprep.mubr.bf16.mxu0 0
    %2779 = vmatmul.mubr.bf16.gmra.mrb[0].mxu0 %v2703
    %v2780 = vpop.f32.mrb[0].mxu0
    %v2781 = vadd.f32 0.0, %v2780
    %v2782 = vpop.f32.mrb[0].mxu0
    %v2783 = vpop.f32.mrb[0].mxu0
    %v2784 = vpop.f32.mrb[0].mxu0
    %2785 = vdwg.mxu0
    %v2786 = vadd.f32 %v2265, %v2740
    %v2787 = vadd.f32 %v2267, %v2742
    %v2788 = vadd.f32 %v2306, %v2781
    %v2789 = vld [vmem:[#allocation5 + $0x16] sm:$0x1]
    %v2790 = vpack.c.bf16 %v2789, %v2789
    %s2791 = scalar_lea.vmem [#allocation2], 792
    %v2792 = vld [vmem:[%s2791] sm:$0xff]
    %v2793 = vld [vmem:[%s2791 + $0x8] sm:$0xff]
    %v2794 = vld [vmem:[%s2791 + $0x10] sm:$0xff]
    %v2795 = vld [vmem:[%s2791 + $0x18] sm:$0xff]
    %v2796 = vld [vmem:[%s2791 + $0x20] sm:$0xff]
    %v2797 = vld [vmem:[%s2791 + $0x28] sm:$0xff]
    %v2798 = vld [vmem:[%s2791 + $0x30] sm:$0xff]
    %v2799 = vld [vmem:[%s2791 + $0x38] sm:$0xff]
    %v2800 = vld [vmem:[%s2791 + $0x40] sm:$0xff]
    %v2802 = vsel %vm1707, %v2790, 0
    %2804 = vmatprep.subr.bf16.mxu0 %v2793
    %2805 = vmatpush1.bf16.msra.mxu0 %v2792
    %2806 = vmatprep.subr.bf16.mxu0 %v2796
    %2807 = vmatpush1.bf16.msra.mxu0 %v2795
    %2808 = vmatprep.subr.bf16.mxu0 %v2799
    %2809 = vmatpush1.bf16.msra.mxu0 %v2798
    %2810 = vmatprep.subr.bf16.mxu0 0
    %2811 = vmatpush1.bf16.msra.mxu0 0
    %2812 = vmatprep.subr.bf16.mxu0 0
    %2813 = vmatpush1.bf16.msra.mxu0 0
    %2814 = vmatprep.subr.bf16.mxu0 0
    %2815 = vmatpush1.bf16.msra.mxu0 0
    %2816 = vmatprep.subr.bf16.mxu0 0
    %2817 = vmatpush1.bf16.msra.mxu0 0
    %2818 = vmatprep.subr.bf16.mxu0 0
    %2819 = vmatpush1.bf16.msra.mxu0 0
    %2820 = vmatprep.subr.bf16.mxu0 0
    %2821 = vmatpush1.bf16.msra.mxu0 0
    %2822 = vmatprep.subr.bf16.mxu0 0
    %2823 = vmatpush1.bf16.msra.mxu0 0
    %2824 = vmatprep.subr.bf16.mxu0 0
    %2825 = vmatpush1.bf16.msra.mxu0 0
    %2826 = vmatprep.subr.bf16.mxu0 0
    %2827 = vmatpush1.bf16.msra.mxu0 0
    %2828 = vmatprep.subr.bf16.mxu0 0
    %2829 = vmatpush1.bf16.msra.mxu0 0
    %2830 = vmatprep.subr.bf16.mxu0 0
    %2831 = vmatpush1.bf16.msra.mxu0 0
    %2832 = vmatprep.subr.bf16.mxu0 0
    %2833 = vmatpush1.bf16.msra.mxu0 0
    %2834 = vmatprep.subr.bf16.mxu0 0
    %2835 = vmatpush1.bf16.msra.mxu0 0
    %2836 = vmatprep.mubr.bf16.mxu0 0
    %2837 = vmatmul.mubr.bf16.gmra.mrb[0].mxu0 %v2802
    %v2838 = vpop.f32.mrb[0].mxu0
    %v2839 = vadd.f32 0.0, %v2838
    %v2840 = vpop.f32.mrb[0].mxu0
    %v2841 = vadd.f32 0.0, %v2840
    %v2842 = vpop.f32.mrb[0].mxu0
    %v2843 = vpop.f32.mrb[0].mxu0
    %2844 = vdwg.mxu0
    %2845 = vmatprep.subr.bf16.mxu0 0
    %2846 = vmatpush1.bf16.msra.mxu0 %v2794
    %2847 = vmatprep.subr.bf16.mxu0 0
    %2848 = vmatpush1.bf16.msra.mxu0 %v2797
    %2849 = vmatprep.subr.bf16.mxu0 0
    %2850 = vmatpush1.bf16.msra.mxu0 %v2800
    %2851 = vmatprep.subr.bf16.mxu0 0
    %2852 = vmatpush1.bf16.msra.mxu0 0
    %2853 = vmatprep.subr.bf16.mxu0 0
    %2854 = vmatpush1.bf16.msra.mxu0 0
    %2855 = vmatprep.subr.bf16.mxu0 0
    %2856 = vmatpush1.bf16.msra.mxu0 0
    %2857 = vmatprep.subr.bf16.mxu0 0
    %2858 = vmatpush1.bf16.msra.mxu0 0
    %2859 = vmatprep.subr.bf16.mxu0 0
    %2860 = vmatpush1.bf16.msra.mxu0 0
    %2861 = vmatprep.subr.bf16.mxu0 0
    %2862 = vmatpush1.bf16.msra.mxu0 0
    %2863 = vmatprep.subr.bf16.mxu0 0
    %2864 = vmatpush1.bf16.msra.mxu0 0
    %2865 = vmatprep.subr.bf16.mxu0 0
    %2866 = vmatpush1.bf16.msra.mxu0 0
    %2867 = vmatprep.subr.bf16.mxu0 0
    %2868 = vmatpush1.bf16.msra.mxu0 0
    %2869 = vmatprep.subr.bf16.mxu0 0
    %2870 = vmatpush1.bf16.msra.mxu0 0
    %2871 = vmatprep.subr.bf16.mxu0 0
    %2872 = vmatpush1.bf16.msra.mxu0 0
    %2873 = vmatprep.subr.bf16.mxu0 0
    %2874 = vmatpush1.bf16.msra.mxu0 0
    %2875 = vmatprep.subr.bf16.mxu0 0
    %2876 = vmatpush1.bf16.msra.mxu0 0
    %2877 = vmatprep.mubr.bf16.mxu0 0
    %2878 = vmatmul.mubr.bf16.gmra.mrb[0].mxu0 %v2802
    %v2879 = vpop.f32.mrb[0].mxu0
    %v2880 = vadd.f32 0.0, %v2879
    %v2881 = vpop.f32.mrb[0].mxu0
    %v2882 = vpop.f32.mrb[0].mxu0
    %v2883 = vpop.f32.mrb[0].mxu0
    %2884 = vdwg.mxu0
    %v2885 = vadd.f32 %v2445, %v2839
    %v2886 = vadd.f32 %v2447, %v2841
    %v2887 = vadd.f32 %v2486, %v2880
    %v2888 = vld [vmem:[#allocation5 + $0x18] sm:$0x1]
    %v2889 = vpack.c.bf16 %v2888, %v2888
    %s2890 = scalar_lea.vmem [#allocation2], 864
    %v2891 = vld [vmem:[%s2890] sm:$0xff]
    %v2892 = vld [vmem:[%s2890 + $0x8] sm:$0xff]
    %v2893 = vld [vmem:[%s2890 + $0x10] sm:$0xff]
    %v2894 = vld [vmem:[%s2890 + $0x18] sm:$0xff]
    %v2895 = vld [vmem:[%s2890 + $0x20] sm:$0xff]
    %v2896 = vld [vmem:[%s2890 + $0x28] sm:$0xff]
    %v2897 = vld [vmem:[%s2890 + $0x30] sm:$0xff]
    %v2898 = vld [vmem:[%s2890 + $0x38] sm:$0xff]
    %v2899 = vld [vmem:[%s2890 + $0x40] sm:$0xff]
    %v2901 = vsel %vm1707, %v2889, 0
    %2903 = vmatprep.subr.bf16.mxu0 %v2892
    %2904 = vmatpush1.bf16.msra.mxu0 %v2891
    %2905 = vmatprep.subr.bf16.mxu0 %v2895
    %2906 = vmatpush1.bf16.msra.mxu0 %v2894
    %2907 = vmatprep.subr.bf16.mxu0 %v2898
    %2908 = vmatpush1.bf16.msra.mxu0 %v2897
    %2909 = vmatprep.subr.bf16.mxu0 0
    %2910 = vmatpush1.bf16.msra.mxu0 0
    %2911 = vmatprep.subr.bf16.mxu0 0
    %2912 = vmatpush1.bf16.msra.mxu0 0
    %2913 = vmatprep.subr.bf16.mxu0 0
    %2914 = vmatpush1.bf16.msra.mxu0 0
    %2915 = vmatprep.subr.bf16.mxu0 0
    %2916 = vmatpush1.bf16.msra.mxu0 0
    %2917 = vmatprep.subr.bf16.mxu0 0
    %2918 = vmatpush1.bf16.msra.mxu0 0
    %2919 = vmatprep.subr.bf16.mxu0 0
    %2920 = vmatpush1.bf16.msra.mxu0 0
    %2921 = vmatprep.subr.bf16.mxu0 0
    %2922 = vmatpush1.bf16.msra.mxu0 0
    %2923 = vmatprep.subr.bf16.mxu0 0
    %2924 = vmatpush1.bf16.msra.mxu0 0
    %2925 = vmatprep.subr.bf16.mxu0 0
    %2926 = vmatpush1.bf16.msra.mxu0 0
    %2927 = vmatprep.subr.bf16.mxu0 0
    %2928 = vmatpush1.bf16.msra.mxu0 0
    %2929 = vmatprep.subr.bf16.mxu0 0
    %2930 = vmatpush1.bf16.msra.mxu0 0
    %2931 = vmatprep.subr.bf16.mxu0 0
    %2932 = vmatpush1.bf16.msra.mxu0 0
    %2933 = vmatprep.subr.bf16.mxu0 0
    %2934 = vmatpush1.bf16.msra.mxu0 0
    %2935 = vmatprep.mubr.bf16.mxu0 0
    %2936 = vmatmul.mubr.bf16.gmra.mrb[0].mxu0 %v2901
    %v2937 = vpop.f32.mrb[0].mxu0
    %v2938 = vadd.f32 0.0, %v2937
    %v2939 = vpop.f32.mrb[0].mxu0
    %v2940 = vadd.f32 0.0, %v2939
    %v2941 = vpop.f32.mrb[0].mxu0
    %v2942 = vpop.f32.mrb[0].mxu0
    %2943 = vdwg.mxu0
    %2944 = vmatprep.subr.bf16.mxu0 0
    %2945 = vmatpush1.bf16.msra.mxu0 %v2893
    %2946 = vmatprep.subr.bf16.mxu0 0
    %2947 = vmatpush1.bf16.msra.mxu0 %v2896
    %2948 = vmatprep.subr.bf16.mxu0 0
    %2949 = vmatpush1.bf16.msra.mxu0 %v2899
    %2950 = vmatprep.subr.bf16.mxu0 0
    %2951 = vmatpush1.bf16.msra.mxu0 0
    %2952 = vmatprep.subr.bf16.mxu0 0
    %2953 = vmatpush1.bf16.msra.mxu0 0
    %2954 = vmatprep.subr.bf16.mxu0 0
    %2955 = vmatpush1.bf16.msra.mxu0 0
    %2956 = vmatprep.subr.bf16.mxu0 0
    %2957 = vmatpush1.bf16.msra.mxu0 0
    %2958 = vmatprep.subr.bf16.mxu0 0
    %2959 = vmatpush1.bf16.msra.mxu0 0
    %2960 = vmatprep.subr.bf16.mxu0 0
    %2961 = vmatpush1.bf16.msra.mxu0 0
    %2962 = vmatprep.subr.bf16.mxu0 0
    %2963 = vmatpush1.bf16.msra.mxu0 0
    %2964 = vmatprep.subr.bf16.mxu0 0
    %2965 = vmatpush1.bf16.msra.mxu0 0
    %2966 = vmatprep.subr.bf16.mxu0 0
    %2967 = vmatpush1.bf16.msra.mxu0 0
    %2968 = vmatprep.subr.bf16.mxu0 0
    %2969 = vmatpush1.bf16.msra.mxu0 0
    %2970 = vmatprep.subr.bf16.mxu0 0
    %2971 = vmatpush1.bf16.msra.mxu0 0
    %2972 = vmatprep.subr.bf16.mxu0 0
    %2973 = vmatpush1.bf16.msra.mxu0 0
    %2974 = vmatprep.subr.bf16.mxu0 0
    %2975 = vmatpush1.bf16.msra.mxu0 0
    %2976 = vmatprep.mubr.bf16.mxu0 0
    %2977 = vmatmul.mubr.bf16.gmra.mrb[0].mxu0 %v2901
    %v2978 = vpop.f32.mrb[0].mxu0
    %v2979 = vadd.f32 0.0, %v2978
    %v2980 = vpop.f32.mrb[0].mxu0
    %v2981 = vpop.f32.mrb[0].mxu0
    %v2982 = vpop.f32.mrb[0].mxu0
    %2983 = vdwg.mxu0
    %v2984 = vadd.f32 %v2587, %v2938
    %v2985 = vadd.f32 %v2588, %v2940
    %v2986 = vadd.f32 %v2589, %v2979
    %v2987 = vld [vmem:[#allocation5 + $0x1a] sm:$0x1]
    %v2988 = vpack.c.bf16 %v2987, %v2987
    %s2989 = scalar_lea.vmem [#allocation2], 936
    %v2990 = vld [vmem:[%s2989] sm:$0xff]
    %v2991 = vld [vmem:[%s2989 + $0x8] sm:$0xff]
    %v2992 = vld [vmem:[%s2989 + $0x10] sm:$0xff]
    %v2993 = vld [vmem:[%s2989 + $0x18] sm:$0xff]
    %v2994 = vld [vmem:[%s2989 + $0x20] sm:$0xff]
    %v2995 = vld [vmem:[%s2989 + $0x28] sm:$0xff]
    %v2996 = vld [vmem:[%s2989 + $0x30] sm:$0xff]
    %v2997 = vld [vmem:[%s2989 + $0x38] sm:$0xff]
    %v2998 = vld [vmem:[%s2989 + $0x40] sm:$0xff]
    %v3000 = vsel %vm1707, %v2988, 0
    %3002 = vmatprep.subr.bf16.mxu0 %v2991
    %3003 = vmatpush1.bf16.msra.mxu0 %v2990
    %3004 = vmatprep.subr.bf16.mxu0 %v2994
    %3005 = vmatpush1.bf16.msra.mxu0 %v2993
    %3006 = vmatprep.subr.bf16.mxu0 %v2997
    %3007 = vmatpush1.bf16.msra.mxu0 %v2996
    %3008 = vmatprep.subr.bf16.mxu0 0
    %3009 = vmatpush1.bf16.msra.mxu0 0
    %3010 = vmatprep.subr.bf16.mxu0 0
    %3011 = vmatpush1.bf16.msra.mxu0 0
    %3012 = vmatprep.subr.bf16.mxu0 0
    %3013 = vmatpush1.bf16.msra.mxu0 0
    %3014 = vmatprep.subr.bf16.mxu0 0
    %3015 = vmatpush1.bf16.msra.mxu0 0
    %3016 = vmatprep.subr.bf16.mxu0 0
    %3017 = vmatpush1.bf16.msra.mxu0 0
    %3018 = vmatprep.subr.bf16.mxu0 0
    %3019 = vmatpush1.bf16.msra.mxu0 0
    %3020 = vmatprep.subr.bf16.mxu0 0
    %3021 = vmatpush1.bf16.msra.mxu0 0
    %3022 = vmatprep.subr.bf16.mxu0 0
    %3023 = vmatpush1.bf16.msra.mxu0 0
    %3024 = vmatprep.subr.bf16.mxu0 0
    %3025 = vmatpush1.bf16.msra.mxu0 0
    %3026 = vmatprep.subr.bf16.mxu0 0
    %3027 = vmatpush1.bf16.msra.mxu0 0
    %3028 = vmatprep.subr.bf16.mxu0 0
    %3029 = vmatpush1.bf16.msra.mxu0 0
    %3030 = vmatprep.subr.bf16.mxu0 0
    %3031 = vmatpush1.bf16.msra.mxu0 0
    %3032 = vmatprep.subr.bf16.mxu0 0
    %3033 = vmatpush1.bf16.msra.mxu0 0
    %3034 = vmatprep.mubr.bf16.mxu0 0
    %3035 = vmatmul.mubr.bf16.gmra.mrb[0].mxu0 %v3000
    %v3036 = vpop.f32.mrb[0].mxu0
    %v3037 = vadd.f32 0.0, %v3036
    %v3038 = vpop.f32.mrb[0].mxu0
    %v3039 = vadd.f32 0.0, %v3038
    %v3040 = vpop.f32.mrb[0].mxu0
    %v3041 = vpop.f32.mrb[0].mxu0
    %3042 = vdwg.mxu0
    %3043 = vmatprep.subr.bf16.mxu0 0
    %3044 = vmatpush1.bf16.msra.mxu0 %v2992
    %3045 = vmatprep.subr.bf16.mxu0 0
    %3046 = vmatpush1.bf16.msra.mxu0 %v2995
    %3047 = vmatprep.subr.bf16.mxu0 0
    %3048 = vmatpush1.bf16.msra.mxu0 %v2998
    %3049 = vmatprep.subr.bf16.mxu0 0
    %3050 = vmatpush1.bf16.msra.mxu0 0
    %3051 = vmatprep.subr.bf16.mxu0 0
    %3052 = vmatpush1.bf16.msra.mxu0 0
    %3053 = vmatprep.subr.bf16.mxu0 0
    %3054 = vmatpush1.bf16.msra.mxu0 0
    %3055 = vmatprep.subr.bf16.mxu0 0
    %3056 = vmatpush1.bf16.msra.mxu0 0
    %3057 = vmatprep.subr.bf16.mxu0 0
    %3058 = vmatpush1.bf16.msra.mxu0 0
    %3059 = vmatprep.subr.bf16.mxu0 0
    %3060 = vmatpush1.bf16.msra.mxu0 0
    %3061 = vmatprep.subr.bf16.mxu0 0
    %3062 = vmatpush1.bf16.msra.mxu0 0
    %3063 = vmatprep.subr.bf16.mxu0 0
    %3064 = vmatpush1.bf16.msra.mxu0 0
    %3065 = vmatprep.subr.bf16.mxu0 0
    %3066 = vmatpush1.bf16.msra.mxu0 0
    %3067 = vmatprep.subr.bf16.mxu0 0
    %3068 = vmatpush1.bf16.msra.mxu0 0
    %3069 = vmatprep.subr.bf16.mxu0 0
    %3070 = vmatpush1.bf16.msra.mxu0 0
    %3071 = vmatprep.subr.bf16.mxu0 0
    %3072 = vmatpush1.bf16.msra.mxu0 0
    %3073 = vmatprep.subr.bf16.mxu0 0
    %3074 = vmatpush1.bf16.msra.mxu0 0
    %3075 = vmatprep.mubr.bf16.mxu0 0
    %3076 = vmatmul.mubr.bf16.gmra.mrb[0].mxu0 %v3000
    %v3077 = vpop.f32.mrb[0].mxu0
    %v3078 = vadd.f32 0.0, %v3077
    %v3079 = vpop.f32.mrb[0].mxu0
    %v3080 = vpop.f32.mrb[0].mxu0
    %v3081 = vpop.f32.mrb[0].mxu0
    %3082 = vdwg.mxu0
    %v3083 = vadd.f32 %v2686, %v3037
    %v3084 = vadd.f32 %v2687, %v3039
    %v3085 = vadd.f32 %v2688, %v3078
    %v3086 = vld [vmem:[#allocation5 + $0x1c] sm:$0x1]
    %v3087 = vpack.c.bf16 %v3086, %v3086
    %s3088 = scalar_lea.vmem [#allocation2], 1008
    %v3089 = vld [vmem:[%s3088] sm:$0xff]
    %v3090 = vld [vmem:[%s3088 + $0x8] sm:$0xff]
    %v3091 = vld [vmem:[%s3088 + $0x10] sm:$0xff]
    %v3092 = vld [vmem:[%s3088 + $0x18] sm:$0xff]
    %v3093 = vld [vmem:[%s3088 + $0x20] sm:$0xff]
    %v3094 = vld [vmem:[%s3088 + $0x28] sm:$0xff]
    %v3095 = vld [vmem:[%s3088 + $0x30] sm:$0xff]
    %v3096 = vld [vmem:[%s3088 + $0x38] sm:$0xff]
    %v3097 = vld [vmem:[%s3088 + $0x40] sm:$0xff]
    %v3099 = vsel %vm1707, %v3087, 0
    %3101 = vmatprep.subr.bf16.mxu0 %v3090
    %3102 = vmatpush1.bf16.msra.mxu0 %v3089
    %3103 = vmatprep.subr.bf16.mxu0 %v3093
    %3104 = vmatpush1.bf16.msra.mxu0 %v3092
    %3105 = vmatprep.subr.bf16.mxu0 %v3096
    %3106 = vmatpush1.bf16.msra.mxu0 %v3095
    %3107 = vmatprep.subr.bf16.mxu0 0
    %3108 = vmatpush1.bf16.msra.mxu0 0
    %3109 = vmatprep.subr.bf16.mxu0 0
    %3110 = vmatpush1.bf16.msra.mxu0 0
    %3111 = vmatprep.subr.bf16.mxu0 0
    %3112 = vmatpush1.bf16.msra.mxu0 0
    %3113 = vmatprep.subr.bf16.mxu0 0
    %3114 = vmatpush1.bf16.msra.mxu0 0
    %3115 = vmatprep.subr.bf16.mxu0 0
    %3116 = vmatpush1.bf16.msra.mxu0 0
    %3117 = vmatprep.subr.bf16.mxu0 0
    %3118 = vmatpush1.bf16.msra.mxu0 0
    %3119 = vmatprep.subr.bf16.mxu0 0
    %3120 = vmatpush1.bf16.msra.mxu0 0
    %3121 = vmatprep.subr.bf16.mxu0 0
    %3122 = vmatpush1.bf16.msra.mxu0 0
    %3123 = vmatprep.subr.bf16.mxu0 0
    %3124 = vmatpush1.bf16.msra.mxu0 0
    %3125 = vmatprep.subr.bf16.mxu0 0
    %3126 = vmatpush1.bf16.msra.mxu0 0
    %3127 = vmatprep.subr.bf16.mxu0 0
    %3128 = vmatpush1.bf16.msra.mxu0 0
    %3129 = vmatprep.subr.bf16.mxu0 0
    %3130 = vmatpush1.bf16.msra.mxu0 0
    %3131 = vmatprep.subr.bf16.mxu0 0
    %3132 = vmatpush1.bf16.msra.mxu0 0
    %3133 = vmatprep.mubr.bf16.mxu0 0
    %3134 = vmatmul.mubr.bf16.gmra.mrb[0].mxu0 %v3099
    %v3135 = vpop.f32.mrb[0].mxu0
    %v3136 = vadd.f32 0.0, %v3135
    %v3137 = vpop.f32.mrb[0].mxu0
    %v3138 = vadd.f32 0.0, %v3137
    %v3139 = vpop.f32.mrb[0].mxu0
    %v3140 = vpop.f32.mrb[0].mxu0
    %3141 = vdwg.mxu0
    %3142 = vmatprep.subr.bf16.mxu0 0
    %3143 = vmatpush1.bf16.msra.mxu0 %v3091
    %3144 = vmatprep.subr.bf16.mxu0 0
    %3145 = vmatpush1.bf16.msra.mxu0 %v3094
    %3146 = vmatprep.subr.bf16.mxu0 0
    %3147 = vmatpush1.bf16.msra.mxu0 %v3097
    %3148 = vmatprep.subr.bf16.mxu0 0
    %3149 = vmatpush1.bf16.msra.mxu0 0
    %3150 = vmatprep.subr.bf16.mxu0 0
    %3151 = vmatpush1.bf16.msra.mxu0 0
    %3152 = vmatprep.subr.bf16.mxu0 0
    %3153 = vmatpush1.bf16.msra.mxu0 0
    %3154 = vmatprep.subr.bf16.mxu0 0
    %3155 = vmatpush1.bf16.msra.mxu0 0
    %3156 = vmatprep.subr.bf16.mxu0 0
    %3157 = vmatpush1.bf16.msra.mxu0 0
    %3158 = vmatprep.subr.bf16.mxu0 0
    %3159 = vmatpush1.bf16.msra.mxu0 0
    %3160 = vmatprep.subr.bf16.mxu0 0
    %3161 = vmatpush1.bf16.msra.mxu0 0
    %3162 = vmatprep.subr.bf16.mxu0 0
    %3163 = vmatpush1.bf16.msra.mxu0 0
    %3164 = vmatprep.subr.bf16.mxu0 0
    %3165 = vmatpush1.bf16.msra.mxu0 0
    %3166 = vmatprep.subr.bf16.mxu0 0
    %3167 = vmatpush1.bf16.msra.mxu0 0
    %3168 = vmatprep.subr.bf16.mxu0 0
    %3169 = vmatpush1.bf16.msra.mxu0 0
    %3170 = vmatprep.subr.bf16.mxu0 0
    %3171 = vmatpush1.bf16.msra.mxu0 0
    %3172 = vmatprep.subr.bf16.mxu0 0
    %3173 = vmatpush1.bf16.msra.mxu0 0
    %3174 = vmatprep.mubr.bf16.mxu0 0
    %3175 = vmatmul.mubr.bf16.gmra.mrb[0].mxu0 %v3099
    %v3176 = vpop.f32.mrb[0].mxu0
    %v3177 = vadd.f32 0.0, %v3176
    %v3178 = vpop.f32.mrb[0].mxu0
    %v3179 = vpop.f32.mrb[0].mxu0
    %v3180 = vpop.f32.mrb[0].mxu0
    %3181 = vdwg.mxu0
    %v3182 = vadd.f32 %v2786, %v3136
    %v3183 = vadd.f32 %v2787, %v3138
    %v3184 = vadd.f32 %v2788, %v3177
    %v3185 = vld [vmem:[#allocation5 + $0x1e] sm:$0x1]
    %v3186 = vpack.c.bf16 %v3185, %v3185
    %s3187 = scalar_lea.vmem [#allocation2], 1080
    %v3188 = vld [vmem:[%s3187] sm:$0xff]
    %v3189 = vld [vmem:[%s3187 + $0x8] sm:$0xff]
    %v3190 = vld [vmem:[%s3187 + $0x10] sm:$0xff]
    %v3191 = vld [vmem:[%s3187 + $0x18] sm:$0xff]
    %v3192 = vld [vmem:[%s3187 + $0x20] sm:$0xff]
    %v3193 = vld [vmem:[%s3187 + $0x28] sm:$0xff]
    %v3194 = vld [vmem:[%s3187 + $0x30] sm:$0xff]
    %v3195 = vld [vmem:[%s3187 + $0x38] sm:$0xff]
    %v3196 = vld [vmem:[%s3187 + $0x40] sm:$0xff]
    %v3198 = vsel %vm1707, %v3186, 0
    %3200 = vmatprep.subr.bf16.mxu0 %v3189
    %3201 = vmatpush1.bf16.msra.mxu0 %v3188
    %3202 = vmatprep.subr.bf16.mxu0 %v3192
    %3203 = vmatpush1.bf16.msra.mxu0 %v3191
    %3204 = vmatprep.subr.bf16.mxu0 %v3195
    %3205 = vmatpush1.bf16.msra.mxu0 %v3194
    %3206 = vmatprep.subr.bf16.mxu0 0
    %3207 = vmatpush1.bf16.msra.mxu0 0
    %3208 = vmatprep.subr.bf16.mxu0 0
    %3209 = vmatpush1.bf16.msra.mxu0 0
    %3210 = vmatprep.subr.bf16.mxu0 0
    %3211 = vmatpush1.bf16.msra.mxu0 0
    %3212 = vmatprep.subr.bf16.mxu0 0
    %3213 = vmatpush1.bf16.msra.mxu0 0
    %3214 = vmatprep.subr.bf16.mxu0 0
    %3215 = vmatpush1.bf16.msra.mxu0 0
    %3216 = vmatprep.subr.bf16.mxu0 0
    %3217 = vmatpush1.bf16.msra.mxu0 0
    %3218 = vmatprep.subr.bf16.mxu0 0
    %3219 = vmatpush1.bf16.msra.mxu0 0
    %3220 = vmatprep.subr.bf16.mxu0 0
    %3221 = vmatpush1.bf16.msra.mxu0 0
    %3222 = vmatprep.subr.bf16.mxu0 0
    %3223 = vmatpush1.bf16.msra.mxu0 0
    %3224 = vmatprep.subr.bf16.mxu0 0
    %3225 = vmatpush1.bf16.msra.mxu0 0
    %3226 = vmatprep.subr.bf16.mxu0 0
    %3227 = vmatpush1.bf16.msra.mxu0 0
    %3228 = vmatprep.subr.bf16.mxu0 0
    %3229 = vmatpush1.bf16.msra.mxu0 0
    %3230 = vmatprep.subr.bf16.mxu0 0
    %3231 = vmatpush1.bf16.msra.mxu0 0
    %3232 = vmatprep.mubr.bf16.mxu0 0
    %3233 = vmatmul.mubr.bf16.gmra.mrb[0].mxu0 %v3198
    %v3234 = vpop.f32.mrb[0].mxu0
    %v3235 = vadd.f32 0.0, %v3234
    %v3236 = vpop.f32.mrb[0].mxu0
    %v3237 = vadd.f32 0.0, %v3236
    %v3238 = vpop.f32.mrb[0].mxu0
    %v3239 = vpop.f32.mrb[0].mxu0
    %3240 = vdwg.mxu0
    %3241 = vmatprep.subr.bf16.mxu0 0
    %3242 = vmatpush1.bf16.msra.mxu0 %v3190
    %3243 = vmatprep.subr.bf16.mxu0 0
    %3244 = vmatpush1.bf16.msra.mxu0 %v3193
    %3245 = vmatprep.subr.bf16.mxu0 0
    %3246 = vmatpush1.bf16.msra.mxu0 %v3196
    %3247 = vmatprep.subr.bf16.mxu0 0
    %3248 = vmatpush1.bf16.msra.mxu0 0
    %3249 = vmatprep.subr.bf16.mxu0 0
    %3250 = vmatpush1.bf16.msra.mxu0 0
    %3251 = vmatprep.subr.bf16.mxu0 0
    %3252 = vmatpush1.bf16.msra.mxu0 0
    %3253 = vmatprep.subr.bf16.mxu0 0
    %3254 = vmatpush1.bf16.msra.mxu0 0
    %3255 = vmatprep.subr.bf16.mxu0 0
    %3256 = vmatpush1.bf16.msra.mxu0 0
    %3257 = vmatprep.subr.bf16.mxu0 0
    %3258 = vmatpush1.bf16.msra.mxu0 0
    %3259 = vmatprep.subr.bf16.mxu0 0
    %3260 = vmatpush1.bf16.msra.mxu0 0
    %3261 = vmatprep.subr.bf16.mxu0 0
    %3262 = vmatpush1.bf16.msra.mxu0 0
    %3263 = vmatprep.subr.bf16.mxu0 0
    %3264 = vmatpush1.bf16.msra.mxu0 0
    %3265 = vmatprep.subr.bf16.mxu0 0
    %3266 = vmatpush1.bf16.msra.mxu0 0
    %3267 = vmatprep.subr.bf16.mxu0 0
    %3268 = vmatpush1.bf16.msra.mxu0 0
    %3269 = vmatprep.subr.bf16.mxu0 0
    %3270 = vmatpush1.bf16.msra.mxu0 0
    %3271 = vmatprep.subr.bf16.mxu0 0
    %3272 = vmatpush1.bf16.msra.mxu0 0
    %3273 = vmatprep.mubr.bf16.mxu0 0
    %3274 = vmatmul.mubr.bf16.gmra.mrb[0].mxu0 %v3198
    %v3275 = vpop.f32.mrb[0].mxu0
    %v3276 = vadd.f32 0.0, %v3275
    %v3277 = vpop.f32.mrb[0].mxu0
    %v3278 = vpop.f32.mrb[0].mxu0
    %v3279 = vpop.f32.mrb[0].mxu0
    %3280 = vdwg.mxu0
    %v3281 = vadd.f32 %v2885, %v3235
    %v3282 = vadd.f32 %v2886, %v3237
    %v3283 = vadd.f32 %v2887, %v3276
    %v3284 = vld [vmem:[#allocation5 + $0x20] sm:$0x1]
    %v3285 = vpack.c.bf16 %v3284, %v3284
    %s3286 = scalar_lea.vmem [#allocation2], 1152
    %v3287 = vld [vmem:[%s3286] sm:$0xff]
    %v3288 = vld [vmem:[%s3286 + $0x8] sm:$0xff]
    %v3289 = vld [vmem:[%s3286 + $0x10] sm:$0xff]
    %v3290 = vld [vmem:[%s3286 + $0x18] sm:$0xff]
    %v3291 = vld [vmem:[%s3286 + $0x20] sm:$0xff]
    %v3292 = vld [vmem:[%s3286 + $0x28] sm:$0xff]
    %v3293 = vld [vmem:[%s3286 + $0x30] sm:$0xff]
    %v3294 = vld [vmem:[%s3286 + $0x38] sm:$0xff]
    %v3295 = vld [vmem:[%s3286 + $0x40] sm:$0xff]
    %v3297 = vsel %vm1707, %v3285, 0
    %3299 = vmatprep.subr.bf16.mxu0 %v3288
    %3300 = vmatpush1.bf16.msra.mxu0 %v3287
    %3301 = vmatprep.subr.bf16.mxu0 %v3291
    %3302 = vmatpush1.bf16.msra.mxu0 %v3290
    %3303 = vmatprep.subr.bf16.mxu0 %v3294
    %3304 = vmatpush1.bf16.msra.mxu0 %v3293
    %3305 = vmatprep.subr.bf16.mxu0 0
    %3306 = vmatpush1.bf16.msra.mxu0 0
    %3307 = vmatprep.subr.bf16.mxu0 0
    %3308 = vmatpush1.bf16.msra.mxu0 0
    %3309 = vmatprep.subr.bf16.mxu0 0
    %3310 = vmatpush1.bf16.msra.mxu0 0
    %3311 = vmatprep.subr.bf16.mxu0 0
    %3312 = vmatpush1.bf16.msra.mxu0 0
    %3313 = vmatprep.subr.bf16.mxu0 0
    %3314 = vmatpush1.bf16.msra.mxu0 0
    %3315 = vmatprep.subr.bf16.mxu0 0
    %3316 = vmatpush1.bf16.msra.mxu0 0
    %3317 = vmatprep.subr.bf16.mxu0 0
    %3318 = vmatpush1.bf16.msra.mxu0 0
    %3319 = vmatprep.subr.bf16.mxu0 0
    %3320 = vmatpush1.bf16.msra.mxu0 0
    %3321 = vmatprep.subr.bf16.mxu0 0
    %3322 = vmatpush1.bf16.msra.mxu0 0
    %3323 = vmatprep.subr.bf16.mxu0 0
    %3324 = vmatpush1.bf16.msra.mxu0 0
    %3325 = vmatprep.subr.bf16.mxu0 0
    %3326 = vmatpush1.bf16.msra.mxu0 0
    %3327 = vmatprep.subr.bf16.mxu0 0
    %3328 = vmatpush1.bf16.msra.mxu0 0
    %3329 = vmatprep.subr.bf16.mxu0 0
    %3330 = vmatpush1.bf16.msra.mxu0 0
    %3331 = vmatprep.mubr.bf16.mxu0 0
    %3332 = vmatmul.mubr.bf16.gmra.mrb[0].mxu0 %v3297
    %v3333 = vpop.f32.mrb[0].mxu0
    %v3334 = vadd.f32 0.0, %v3333
    %v3335 = vpop.f32.mrb[0].mxu0
    %v3336 = vadd.f32 0.0, %v3335
    %v3337 = vpop.f32.mrb[0].mxu0
    %v3338 = vpop.f32.mrb[0].mxu0
    %3339 = vdwg.mxu0
    %3340 = vmatprep.subr.bf16.mxu0 0
    %3341 = vmatpush1.bf16.msra.mxu0 %v3289
    %3342 = vmatprep.subr.bf16.mxu0 0
    %3343 = vmatpush1.bf16.msra.mxu0 %v3292
    %3344 = vmatprep.subr.bf16.mxu0 0
    %3345 = vmatpush1.bf16.msra.mxu0 %v3295
    %3346 = vmatprep.subr.bf16.mxu0 0
    %3347 = vmatpush1.bf16.msra.mxu0 0
    %3348 = vmatprep.subr.bf16.mxu0 0
    %3349 = vmatpush1.bf16.msra.mxu0 0
    %3350 = vmatprep.subr.bf16.mxu0 0
    %3351 = vmatpush1.bf16.msra.mxu0 0
    %3352 = vmatprep.subr.bf16.mxu0 0
    %3353 = vmatpush1.bf16.msra.mxu0 0
    %3354 = vmatprep.subr.bf16.mxu0 0
    %3355 = vmatpush1.bf16.msra.mxu0 0
    %3356 = vmatprep.subr.bf16.mxu0 0
    %3357 = vmatpush1.bf16.msra.mxu0 0
    %3358 = vmatprep.subr.bf16.mxu0 0
    %3359 = vmatpush1.bf16.msra.mxu0 0
    %3360 = vmatprep.subr.bf16.mxu0 0
    %3361 = vmatpush1.bf16.msra.mxu0 0
    %3362 = vmatprep.subr.bf16.mxu0 0
    %3363 = vmatpush1.bf16.msra.mxu0 0
    %3364 = vmatprep.subr.bf16.mxu0 0
    %3365 = vmatpush1.bf16.msra.mxu0 0
    %3366 = vmatprep.subr.bf16.mxu0 0
    %3367 = vmatpush1.bf16.msra.mxu0 0
    %3368 = vmatprep.subr.bf16.mxu0 0
    %3369 = vmatpush1.bf16.msra.mxu0 0
    %3370 = vmatprep.subr.bf16.mxu0 0
    %3371 = vmatpush1.bf16.msra.mxu0 0
    %3372 = vmatprep.mubr.bf16.mxu0 0
    %3373 = vmatmul.mubr.bf16.gmra.mrb[0].mxu0 %v3297
    %v3374 = vpop.f32.mrb[0].mxu0
    %v3375 = vadd.f32 0.0, %v3374
    %v3376 = vpop.f32.mrb[0].mxu0
    %v3377 = vpop.f32.mrb[0].mxu0
    %v3378 = vpop.f32.mrb[0].mxu0
    %3379 = vdwg.mxu0
    %v3380 = vadd.f32 %v2984, %v3334
    %v3381 = vadd.f32 %v2985, %v3336
    %v3382 = vadd.f32 %v2986, %v3375
    %v3383 = vld [vmem:[#allocation5 + $0x22] sm:$0x1]
    %v3384 = vpack.c.bf16 %v3383, %v3383
    %s3385 = scalar_lea.vmem [#allocation2], 1224
    %v3386 = vld [vmem:[%s3385] sm:$0xff]
    %v3387 = vld [vmem:[%s3385 + $0x8] sm:$0xff]
    %v3388 = vld [vmem:[%s3385 + $0x10] sm:$0xff]
    %v3389 = vld [vmem:[%s3385 + $0x18] sm:$0xff]
    %v3390 = vld [vmem:[%s3385 + $0x20] sm:$0xff]
    %v3391 = vld [vmem:[%s3385 + $0x28] sm:$0xff]
    %v3392 = vld [vmem:[%s3385 + $0x30] sm:$0xff]
    %v3393 = vld [vmem:[%s3385 + $0x38] sm:$0xff]
    %v3394 = vld [vmem:[%s3385 + $0x40] sm:$0xff]
    %v3396 = vsel %vm1707, %v3384, 0
    %3398 = vmatprep.subr.bf16.mxu0 %v3387
    %3399 = vmatpush1.bf16.msra.mxu0 %v3386
    %3400 = vmatprep.subr.bf16.mxu0 %v3390
    %3401 = vmatpush1.bf16.msra.mxu0 %v3389
    %3402 = vmatprep.subr.bf16.mxu0 %v3393
    %3403 = vmatpush1.bf16.msra.mxu0 %v3392
    %3404 = vmatprep.subr.bf16.mxu0 0
    %3405 = vmatpush1.bf16.msra.mxu0 0
    %3406 = vmatprep.subr.bf16.mxu0 0
    %3407 = vmatpush1.bf16.msra.mxu0 0
    %3408 = vmatprep.subr.bf16.mxu0 0
    %3409 = vmatpush1.bf16.msra.mxu0 0
    %3410 = vmatprep.subr.bf16.mxu0 0
    %3411 = vmatpush1.bf16.msra.mxu0 0
    %3412 = vmatprep.subr.bf16.mxu0 0
    %3413 = vmatpush1.bf16.msra.mxu0 0
    %3414 = vmatprep.subr.bf16.mxu0 0
    %3415 = vmatpush1.bf16.msra.mxu0 0
    %3416 = vmatprep.subr.bf16.mxu0 0
    %3417 = vmatpush1.bf16.msra.mxu0 0
    %3418 = vmatprep.subr.bf16.mxu0 0
    %3419 = vmatpush1.bf16.msra.mxu0 0
    %3420 = vmatprep.subr.bf16.mxu0 0
    %3421 = vmatpush1.bf16.msra.mxu0 0
    %3422 = vmatprep.subr.bf16.mxu0 0
    %3423 = vmatpush1.bf16.msra.mxu0 0
    %3424 = vmatprep.subr.bf16.mxu0 0
    %3425 = vmatpush1.bf16.msra.mxu0 0
    %3426 = vmatprep.subr.bf16.mxu0 0
    %3427 = vmatpush1.bf16.msra.mxu0 0
    %3428 = vmatprep.subr.bf16.mxu0 0
    %3429 = vmatpush1.bf16.msra.mxu0 0
    %3430 = vmatprep.mubr.bf16.mxu0 0
    %3431 = vmatmul.mubr.bf16.gmra.mrb[0].mxu0 %v3396
    %v3432 = vpop.f32.mrb[0].mxu0
    %v3433 = vadd.f32 0.0, %v3432
    %v3434 = vpop.f32.mrb[0].mxu0
    %v3435 = vadd.f32 0.0, %v3434
    %v3436 = vpop.f32.mrb[0].mxu0
    %v3437 = vpop.f32.mrb[0].mxu0
    %3438 = vdwg.mxu0
    %3439 = vmatprep.subr.bf16.mxu0 0
    %3440 = vmatpush1.bf16.msra.mxu0 %v3388
    %3441 = vmatprep.subr.bf16.mxu0 0
    %3442 = vmatpush1.bf16.msra.mxu0 %v3391
    %3443 = vmatprep.subr.bf16.mxu0 0
    %3444 = vmatpush1.bf16.msra.mxu0 %v3394
    %3445 = vmatprep.subr.bf16.mxu0 0
    %3446 = vmatpush1.bf16.msra.mxu0 0
    %3447 = vmatprep.subr.bf16.mxu0 0
    %3448 = vmatpush1.bf16.msra.mxu0 0
    %3449 = vmatprep.subr.bf16.mxu0 0
    %3450 = vmatpush1.bf16.msra.mxu0 0
    %3451 = vmatprep.subr.bf16.mxu0 0
    %3452 = vmatpush1.bf16.msra.mxu0 0
    %3453 = vmatprep.subr.bf16.mxu0 0
    %3454 = vmatpush1.bf16.msra.mxu0 0
    %3455 = vmatprep.subr.bf16.mxu0 0
    %3456 = vmatpush1.bf16.msra.mxu0 0
    %3457 = vmatprep.subr.bf16.mxu0 0
    %3458 = vmatpush1.bf16.msra.mxu0 0
    %3459 = vmatprep.subr.bf16.mxu0 0
    %3460 = vmatpush1.bf16.msra.mxu0 0
    %3461 = vmatprep.subr.bf16.mxu0 0
    %3462 = vmatpush1.bf16.msra.mxu0 0
    %3463 = vmatprep.subr.bf16.mxu0 0
    %3464 = vmatpush1.bf16.msra.mxu0 0
    %3465 = vmatprep.subr.bf16.mxu0 0
    %3466 = vmatpush1.bf16.msra.mxu0 0
    %3467 = vmatprep.subr.bf16.mxu0 0
    %3468 = vmatpush1.bf16.msra.mxu0 0
    %3469 = vmatprep.subr.bf16.mxu0 0
    %3470 = vmatpush1.bf16.msra.mxu0 0
    %3471 = vmatprep.mubr.bf16.mxu0 0
    %3472 = vmatmul.mubr.bf16.gmra.mrb[0].mxu0 %v3396
    %v3473 = vpop.f32.mrb[0].mxu0
    %v3474 = vadd.f32 0.0, %v3473
    %v3475 = vpop.f32.mrb[0].mxu0
    %v3476 = vpop.f32.mrb[0].mxu0
    %v3477 = vpop.f32.mrb[0].mxu0
    %3478 = vdwg.mxu0
    %v3479 = vadd.f32 %v3083, %v3433
    %v3480 = vadd.f32 %v3084, %v3435
    %v3481 = vadd.f32 %v3085, %v3474
    %v3482 = vld [vmem:[#allocation5 + $0x24] sm:$0x1]
    %v3483 = vpack.c.bf16 %v3482, %v3482
    %s3484 = scalar_lea.vmem [#allocation2], 1296
    %v3485 = vld [vmem:[%s3484] sm:$0xff]
    %v3486 = vld [vmem:[%s3484 + $0x8] sm:$0xff]
    %v3487 = vld [vmem:[%s3484 + $0x10] sm:$0xff]
    %v3488 = vld [vmem:[%s3484 + $0x18] sm:$0xff]
    %v3489 = vld [vmem:[%s3484 + $0x20] sm:$0xff]
    %v3490 = vld [vmem:[%s3484 + $0x28] sm:$0xff]
    %v3491 = vld [vmem:[%s3484 + $0x30] sm:$0xff]
    %v3492 = vld [vmem:[%s3484 + $0x38] sm:$0xff]
    %v3493 = vld [vmem:[%s3484 + $0x40] sm:$0xff]
    %v3495 = vsel %vm1707, %v3483, 0
    %3497 = vmatprep.subr.bf16.mxu0 %v3486
    %3498 = vmatpush1.bf16.msra.mxu0 %v3485
    %3499 = vmatprep.subr.bf16.mxu0 %v3489
    %3500 = vmatpush1.bf16.msra.mxu0 %v3488
    %3501 = vmatprep.subr.bf16.mxu0 %v3492
    %3502 = vmatpush1.bf16.msra.mxu0 %v3491
    %3503 = vmatprep.subr.bf16.mxu0 0
    %3504 = vmatpush1.bf16.msra.mxu0 0
    %3505 = vmatprep.subr.bf16.mxu0 0
    %3506 = vmatpush1.bf16.msra.mxu0 0
    %3507 = vmatprep.subr.bf16.mxu0 0
    %3508 = vmatpush1.bf16.msra.mxu0 0
    %3509 = vmatprep.subr.bf16.mxu0 0
    %3510 = vmatpush1.bf16.msra.mxu0 0
    %3511 = vmatprep.subr.bf16.mxu0 0
    %3512 = vmatpush1.bf16.msra.mxu0 0
    %3513 = vmatprep.subr.bf16.mxu0 0
    %3514 = vmatpush1.bf16.msra.mxu0 0
    %3515 = vmatprep.subr.bf16.mxu0 0
    %3516 = vmatpush1.bf16.msra.mxu0 0
    %3517 = vmatprep.subr.bf16.mxu0 0
    %3518 = vmatpush1.bf16.msra.mxu0 0
    %3519 = vmatprep.subr.bf16.mxu0 0
    %3520 = vmatpush1.bf16.msra.mxu0 0
    %3521 = vmatprep.subr.bf16.mxu0 0
    %3522 = vmatpush1.bf16.msra.mxu0 0
    %3523 = vmatprep.subr.bf16.mxu0 0
    %3524 = vmatpush1.bf16.msra.mxu0 0
    %3525 = vmatprep.subr.bf16.mxu0 0
    %3526 = vmatpush1.bf16.msra.mxu0 0
    %3527 = vmatprep.subr.bf16.mxu0 0
    %3528 = vmatpush1.bf16.msra.mxu0 0
    %3529 = vmatprep.mubr.bf16.mxu0 0
    %3530 = vmatmul.mubr.bf16.gmra.mrb[0].mxu0 %v3495
    %v3531 = vpop.f32.mrb[0].mxu0
    %v3532 = vadd.f32 0.0, %v3531
    %v3533 = vpop.f32.mrb[0].mxu0
    %v3534 = vadd.f32 0.0, %v3533
    %v3535 = vpop.f32.mrb[0].mxu0
    %v3536 = vpop.f32.mrb[0].mxu0
    %3537 = vdwg.mxu0
    %3538 = vmatprep.subr.bf16.mxu0 0
    %3539 = vmatpush1.bf16.msra.mxu0 %v3487
    %3540 = vmatprep.subr.bf16.mxu0 0
    %3541 = vmatpush1.bf16.msra.mxu0 %v3490
    %3542 = vmatprep.subr.bf16.mxu0 0
    %3543 = vmatpush1.bf16.msra.mxu0 %v3493
    %3544 = vmatprep.subr.bf16.mxu0 0
    %3545 = vmatpush1.bf16.msra.mxu0 0
    %3546 = vmatprep.subr.bf16.mxu0 0
    %3547 = vmatpush1.bf16.msra.mxu0 0
    %3548 = vmatprep.subr.bf16.mxu0 0
    %3549 = vmatpush1.bf16.msra.mxu0 0
    %3550 = vmatprep.subr.bf16.mxu0 0
    %3551 = vmatpush1.bf16.msra.mxu0 0
    %3552 = vmatprep.subr.bf16.mxu0 0
    %3553 = vmatpush1.bf16.msra.mxu0 0
    %3554 = vmatprep.subr.bf16.mxu0 0
    %3555 = vmatpush1.bf16.msra.mxu0 0
    %3556 = vmatprep.subr.bf16.mxu0 0
    %3557 = vmatpush1.bf16.msra.mxu0 0
    %3558 = vmatprep.subr.bf16.mxu0 0
    %3559 = vmatpush1.bf16.msra.mxu0 0
    %3560 = vmatprep.subr.bf16.mxu0 0
    %3561 = vmatpush1.bf16.msra.mxu0 0
    %3562 = vmatprep.subr.bf16.mxu0 0
    %3563 = vmatpush1.bf16.msra.mxu0 0
    %3564 = vmatprep.subr.bf16.mxu0 0
    %3565 = vmatpush1.bf16.msra.mxu0 0
    %3566 = vmatprep.subr.bf16.mxu0 0
    %3567 = vmatpush1.bf16.msra.mxu0 0
    %3568 = vmatprep.subr.bf16.mxu0 0
    %3569 = vmatpush1.bf16.msra.mxu0 0
    %3570 = vmatprep.mubr.bf16.mxu0 0
    %3571 = vmatmul.mubr.bf16.gmra.mrb[0].mxu0 %v3495
    %v3572 = vpop.f32.mrb[0].mxu0
    %v3573 = vadd.f32 0.0, %v3572
    %v3574 = vpop.f32.mrb[0].mxu0
    %v3575 = vpop.f32.mrb[0].mxu0
    %v3576 = vpop.f32.mrb[0].mxu0
    %3577 = vdwg.mxu0
    %v3578 = vadd.f32 %v3182, %v3532
    %v3579 = vadd.f32 %v3183, %v3534
    %v3580 = vadd.f32 %v3184, %v3573
    %v3581 = vld [vmem:[#allocation5 + $0x26] sm:$0x1]
    %v3582 = vpack.c.bf16 %v3581, %v3581
    %s3583 = scalar_lea.vmem [#allocation2], 1368
    %v3584 = vld [vmem:[%s3583] sm:$0xff]
    %v3585 = vld [vmem:[%s3583 + $0x8] sm:$0xff]
    %v3586 = vld [vmem:[%s3583 + $0x10] sm:$0xff]
    %v3587 = vld [vmem:[%s3583 + $0x18] sm:$0xff]
    %v3588 = vld [vmem:[%s3583 + $0x20] sm:$0xff]
    %v3589 = vld [vmem:[%s3583 + $0x28] sm:$0xff]
    %v3590 = vld [vmem:[%s3583 + $0x30] sm:$0xff]
    %v3591 = vld [vmem:[%s3583 + $0x38] sm:$0xff]
    %v3592 = vld [vmem:[%s3583 + $0x40] sm:$0xff]
    %v3594 = vsel %vm1707, %v3582, 0
    %3596 = vmatprep.subr.bf16.mxu0 %v3585
    %3597 = vmatpush1.bf16.msra.mxu0 %v3584
    %3598 = vmatprep.subr.bf16.mxu0 %v3588
    %3599 = vmatpush1.bf16.msra.mxu0 %v3587
    %3600 = vmatprep.subr.bf16.mxu0 %v3591
    %3601 = vmatpush1.bf16.msra.mxu0 %v3590
    %3602 = vmatprep.subr.bf16.mxu0 0
    %3603 = vmatpush1.bf16.msra.mxu0 0
    %3604 = vmatprep.subr.bf16.mxu0 0
    %3605 = vmatpush1.bf16.msra.mxu0 0
    %3606 = vmatprep.subr.bf16.mxu0 0
    %3607 = vmatpush1.bf16.msra.mxu0 0
    %3608 = vmatprep.subr.bf16.mxu0 0
    %3609 = vmatpush1.bf16.msra.mxu0 0
    %3610 = vmatprep.subr.bf16.mxu0 0
    %3611 = vmatpush1.bf16.msra.mxu0 0
    %3612 = vmatprep.subr.bf16.mxu0 0
    %3613 = vmatpush1.bf16.msra.mxu0 0
    %3614 = vmatprep.subr.bf16.mxu0 0
    %3615 = vmatpush1.bf16.msra.mxu0 0
    %3616 = vmatprep.subr.bf16.mxu0 0
    %3617 = vmatpush1.bf16.msra.mxu0 0
    %3618 = vmatprep.subr.bf16.mxu0 0
    %3619 = vmatpush1.bf16.msra.mxu0 0
    %3620 = vmatprep.subr.bf16.mxu0 0
    %3621 = vmatpush1.bf16.msra.mxu0 0
    %3622 = vmatprep.subr.bf16.mxu0 0
    %3623 = vmatpush1.bf16.msra.mxu0 0
    %3624 = vmatprep.subr.bf16.mxu0 0
    %3625 = vmatpush1.bf16.msra.mxu0 0
    %3626 = vmatprep.subr.bf16.mxu0 0
    %3627 = vmatpush1.bf16.msra.mxu0 0
    %3628 = vmatprep.mubr.bf16.mxu0 0
    %3629 = vmatmul.mubr.bf16.gmra.mrb[0].mxu0 %v3594
    %v3630 = vpop.f32.mrb[0].mxu0
    %v3631 = vadd.f32 0.0, %v3630
    %v3632 = vpop.f32.mrb[0].mxu0
    %v3633 = vadd.f32 0.0, %v3632
    %v3634 = vpop.f32.mrb[0].mxu0
    %v3635 = vpop.f32.mrb[0].mxu0
    %3636 = vdwg.mxu0
    %3637 = vmatprep.subr.bf16.mxu0 0
    %3638 = vmatpush1.bf16.msra.mxu0 %v3586
    %3639 = vmatprep.subr.bf16.mxu0 0
    %3640 = vmatpush1.bf16.msra.mxu0 %v3589
    %3641 = vmatprep.subr.bf16.mxu0 0
    %3642 = vmatpush1.bf16.msra.mxu0 %v3592
    %3643 = vmatprep.subr.bf16.mxu0 0
    %3644 = vmatpush1.bf16.msra.mxu0 0
    %3645 = vmatprep.subr.bf16.mxu0 0
    %3646 = vmatpush1.bf16.msra.mxu0 0
    %3647 = vmatprep.subr.bf16.mxu0 0
    %3648 = vmatpush1.bf16.msra.mxu0 0
    %3649 = vmatprep.subr.bf16.mxu0 0
    %3650 = vmatpush1.bf16.msra.mxu0 0
    %3651 = vmatprep.subr.bf16.mxu0 0
    %3652 = vmatpush1.bf16.msra.mxu0 0
    %3653 = vmatprep.subr.bf16.mxu0 0
    %3654 = vmatpush1.bf16.msra.mxu0 0
    %3655 = vmatprep.subr.bf16.mxu0 0
    %3656 = vmatpush1.bf16.msra.mxu0 0
    %3657 = vmatprep.subr.bf16.mxu0 0
    %3658 = vmatpush1.bf16.msra.mxu0 0
    %3659 = vmatprep.subr.bf16.mxu0 0
    %3660 = vmatpush1.bf16.msra.mxu0 0
    %3661 = vmatprep.subr.bf16.mxu0 0
    %3662 = vmatpush1.bf16.msra.mxu0 0
    %3663 = vmatprep.subr.bf16.mxu0 0
    %3664 = vmatpush1.bf16.msra.mxu0 0
    %3665 = vmatprep.subr.bf16.mxu0 0
    %3666 = vmatpush1.bf16.msra.mxu0 0
    %3667 = vmatprep.subr.bf16.mxu0 0
    %3668 = vmatpush1.bf16.msra.mxu0 0
    %3669 = vmatprep.mubr.bf16.mxu0 0
    %3670 = vmatmul.mubr.bf16.gmra.mrb[0].mxu0 %v3594
    %v3671 = vpop.f32.mrb[0].mxu0
    %v3672 = vadd.f32 0.0, %v3671
    %v3673 = vpop.f32.mrb[0].mxu0
    %v3674 = vpop.f32.mrb[0].mxu0
    %v3675 = vpop.f32.mrb[0].mxu0
    %3676 = vdwg.mxu0
    %v3677 = vadd.f32 %v3281, %v3631
    %v3678 = vadd.f32 %v3282, %v3633
    %v3679 = vadd.f32 %v3283, %v3672
    %s3680 = sshll.u32 %s1721, 4
    %3681 = dma.done %s163, %s3680
    %v3682 = vld [vmem:[#allocation5 + $0x28] sm:$0x1]
    %v3683 = vpack.c.bf16 %v3682, %v3682
    %v3684 = vld [vmem:[%s162] sm:$0xff]
    %v3685 = vld [vmem:[%s162 + $0x8] sm:$0xff]
    %v3686 = vld [vmem:[%s162 + $0x10] sm:$0xff]
    %v3687 = vld [vmem:[%s162 + $0x18] sm:$0xff]
    %v3688 = vld [vmem:[%s162 + $0x20] sm:$0xff]
    %v3689 = vld [vmem:[%s162 + $0x28] sm:$0xff]
    %v3690 = vld [vmem:[%s162 + $0x30] sm:$0xff]
    %v3691 = vld [vmem:[%s162 + $0x38] sm:$0xff]
    %v3692 = vld [vmem:[%s162 + $0x40] sm:$0xff]
    %v3694 = vsel %vm1707, %v3683, 0
    %3696 = vmatprep.subr.bf16.mxu0 %v3685
    %3697 = vmatpush1.bf16.msra.mxu0 %v3684
    %3698 = vmatprep.subr.bf16.mxu0 %v3688
    %3699 = vmatpush1.bf16.msra.mxu0 %v3687
    %3700 = vmatprep.subr.bf16.mxu0 %v3691
    %3701 = vmatpush1.bf16.msra.mxu0 %v3690
    %3702 = vmatprep.subr.bf16.mxu0 0
    %3703 = vmatpush1.bf16.msra.mxu0 0
    %3704 = vmatprep.subr.bf16.mxu0 0
    %3705 = vmatpush1.bf16.msra.mxu0 0
    %3706 = vmatprep.subr.bf16.mxu0 0
    %3707 = vmatpush1.bf16.msra.mxu0 0
    %3708 = vmatprep.subr.bf16.mxu0 0
    %3709 = vmatpush1.bf16.msra.mxu0 0
    %3710 = vmatprep.subr.bf16.mxu0 0
    %3711 = vmatpush1.bf16.msra.mxu0 0
    %3712 = vmatprep.subr.bf16.mxu0 0
    %3713 = vmatpush1.bf16.msra.mxu0 0
    %3714 = vmatprep.subr.bf16.mxu0 0
    %3715 = vmatpush1.bf16.msra.mxu0 0
    %3716 = vmatprep.subr.bf16.mxu0 0
    %3717 = vmatpush1.bf16.msra.mxu0 0
    %3718 = vmatprep.subr.bf16.mxu0 0
    %3719 = vmatpush1.bf16.msra.mxu0 0
    %3720 = vmatprep.subr.bf16.mxu0 0
    %3721 = vmatpush1.bf16.msra.mxu0 0
    %3722 = vmatprep.subr.bf16.mxu0 0
    %3723 = vmatpush1.bf16.msra.mxu0 0
    %3724 = vmatprep.subr.bf16.mxu0 0
    %3725 = vmatpush1.bf16.msra.mxu0 0
    %3726 = vmatprep.subr.bf16.mxu0 0
    %3727 = vmatpush1.bf16.msra.mxu0 0
    %3728 = vmatprep.mubr.bf16.mxu0 0
    %3729 = vmatmul.mubr.bf16.gmra.mrb[0].mxu0 %v3694
    %v3730 = vpop.f32.mrb[0].mxu0
    %v3731 = vadd.f32 0.0, %v3730
    %v3732 = vpop.f32.mrb[0].mxu0
    %v3733 = vadd.f32 0.0, %v3732
    %v3734 = vpop.f32.mrb[0].mxu0
    %v3735 = vpop.f32.mrb[0].mxu0
    %3736 = vdwg.mxu0
    %3737 = vmatprep.subr.bf16.mxu0 0
    %3738 = vmatpush1.bf16.msra.mxu0 %v3686
    %3739 = vmatprep.subr.bf16.mxu0 0
    %3740 = vmatpush1.bf16.msra.mxu0 %v3689
    %3741 = vmatprep.subr.bf16.mxu0 0
    %3742 = vmatpush1.bf16.msra.mxu0 %v3692
    %3743 = vmatprep.subr.bf16.mxu0 0
    %3744 = vmatpush1.bf16.msra.mxu0 0
    %3745 = vmatprep.subr.bf16.mxu0 0
    %3746 = vmatpush1.bf16.msra.mxu0 0
    %3747 = vmatprep.subr.bf16.mxu0 0
    %3748 = vmatpush1.bf16.msra.mxu0 0
    %3749 = vmatprep.subr.bf16.mxu0 0
    %3750 = vmatpush1.bf16.msra.mxu0 0
    %3751 = vmatprep.subr.bf16.mxu0 0
    %3752 = vmatpush1.bf16.msra.mxu0 0
    %3753 = vmatprep.subr.bf16.mxu0 0
    %3754 = vmatpush1.bf16.msra.mxu0 0
    %3755 = vmatprep.subr.bf16.mxu0 0
    %3756 = vmatpush1.bf16.msra.mxu0 0
    %3757 = vmatprep.subr.bf16.mxu0 0
    %3758 = vmatpush1.bf16.msra.mxu0 0
    %3759 = vmatprep.subr.bf16.mxu0 0
    %3760 = vmatpush1.bf16.msra.mxu0 0
    %3761 = vmatprep.subr.bf16.mxu0 0
    %3762 = vmatpush1.bf16.msra.mxu0 0
    %3763 = vmatprep.subr.bf16.mxu0 0
    %3764 = vmatpush1.bf16.msra.mxu0 0
    %3765 = vmatprep.subr.bf16.mxu0 0
    %3766 = vmatpush1.bf16.msra.mxu0 0
    %3767 = vmatprep.subr.bf16.mxu0 0
    %3768 = vmatpush1.bf16.msra.mxu0 0
    %3769 = vmatprep.mubr.bf16.mxu0 0
    %3770 = vmatmul.mubr.bf16.gmra.mrb[0].mxu0 %v3694
    %v3771 = vpop.f32.mrb[0].mxu0
    %v3772 = vadd.f32 0.0, %v3771
    %v3773 = vpop.f32.mrb[0].mxu0
    %v3774 = vpop.f32.mrb[0].mxu0
    %v3775 = vpop.f32.mrb[0].mxu0
    %3776 = vdwg.mxu0
    %v3777 = vadd.f32 %v3380, %v3731
    %v3778 = vadd.f32 %v3381, %v3733
    %v3779 = vadd.f32 %v3382, %v3772
    %v3780 = vld [vmem:[#allocation5 + $0x2a] sm:$0x1]
    %v3781 = vpack.c.bf16 %v3780, %v3780
    %s3782 = scalar_lea.vmem [#allocation2], 1512
    %v3783 = vld [vmem:[%s3782] sm:$0xff]
    %v3784 = vld [vmem:[%s3782 + $0x8] sm:$0xff]
    %v3785 = vld [vmem:[%s3782 + $0x10] sm:$0xff]
    %v3786 = vld [vmem:[%s3782 + $0x18] sm:$0xff]
    %v3787 = vld [vmem:[%s3782 + $0x20] sm:$0xff]
    %v3788 = vld [vmem:[%s3782 + $0x28] sm:$0xff]
    %v3789 = vld [vmem:[%s3782 + $0x30] sm:$0xff]
    %v3790 = vld [vmem:[%s3782 + $0x38] sm:$0xff]
    %v3791 = vld [vmem:[%s3782 + $0x40] sm:$0xff]
    %v3793 = vsel %vm1707, %v3781, 0
    %3795 = vmatprep.subr.bf16.mxu0 %v3784
    %3796 = vmatpush1.bf16.msra.mxu0 %v3783
    %3797 = vmatprep.subr.bf16.mxu0 %v3787
    %3798 = vmatpush1.bf16.msra.mxu0 %v3786
    %3799 = vmatprep.subr.bf16.mxu0 %v3790
    %3800 = vmatpush1.bf16.msra.mxu0 %v3789
    %3801 = vmatprep.subr.bf16.mxu0 0
    %3802 = vmatpush1.bf16.msra.mxu0 0
    %3803 = vmatprep.subr.bf16.mxu0 0
    %3804 = vmatpush1.bf16.msra.mxu0 0
    %3805 = vmatprep.subr.bf16.mxu0 0
    %3806 = vmatpush1.bf16.msra.mxu0 0
    %3807 = vmatprep.subr.bf16.mxu0 0
    %3808 = vmatpush1.bf16.msra.mxu0 0
    %3809 = vmatprep.subr.bf16.mxu0 0
    %3810 = vmatpush1.bf16.msra.mxu0 0
    %3811 = vmatprep.subr.bf16.mxu0 0
    %3812 = vmatpush1.bf16.msra.mxu0 0
    %3813 = vmatprep.subr.bf16.mxu0 0
    %3814 = vmatpush1.bf16.msra.mxu0 0
    %3815 = vmatprep.subr.bf16.mxu0 0
    %3816 = vmatpush1.bf16.msra.mxu0 0
    %3817 = vmatprep.subr.bf16.mxu0 0
    %3818 = vmatpush1.bf16.msra.mxu0 0
    %3819 = vmatprep.subr.bf16.mxu0 0
    %3820 = vmatpush1.bf16.msra.mxu0 0
    %3821 = vmatprep.subr.bf16.mxu0 0
    %3822 = vmatpush1.bf16.msra.mxu0 0
    %3823 = vmatprep.subr.bf16.mxu0 0
    %3824 = vmatpush1.bf16.msra.mxu0 0
    %3825 = vmatprep.subr.bf16.mxu0 0
    %3826 = vmatpush1.bf16.msra.mxu0 0
    %3827 = vmatprep.mubr.bf16.mxu0 0
    %3828 = vmatmul.mubr.bf16.gmra.mrb[0].mxu0 %v3793
    %v3829 = vpop.f32.mrb[0].mxu0
    %v3830 = vadd.f32 0.0, %v3829
    %v3831 = vpop.f32.mrb[0].mxu0
    %v3832 = vadd.f32 0.0, %v3831
    %v3833 = vpop.f32.mrb[0].mxu0
    %v3834 = vpop.f32.mrb[0].mxu0
    %3835 = vdwg.mxu0
    %3836 = vmatprep.subr.bf16.mxu0 0
    %3837 = vmatpush1.bf16.msra.mxu0 %v3785
    %3838 = vmatprep.subr.bf16.mxu0 0
    %3839 = vmatpush1.bf16.msra.mxu0 %v3788
    %3840 = vmatprep.subr.bf16.mxu0 0
    %3841 = vmatpush1.bf16.msra.mxu0 %v3791
    %3842 = vmatprep.subr.bf16.mxu0 0
    %3843 = vmatpush1.bf16.msra.mxu0 0
    %3844 = vmatprep.subr.bf16.mxu0 0
    %3845 = vmatpush1.bf16.msra.mxu0 0
    %3846 = vmatprep.subr.bf16.mxu0 0
    %3847 = vmatpush1.bf16.msra.mxu0 0
    %3848 = vmatprep.subr.bf16.mxu0 0
    %3849 = vmatpush1.bf16.msra.mxu0 0
    %3850 = vmatprep.subr.bf16.mxu0 0
    %3851 = vmatpush1.bf16.msra.mxu0 0
    %3852 = vmatprep.subr.bf16.mxu0 0
    %3853 = vmatpush1.bf16.msra.mxu0 0
    %3854 = vmatprep.subr.bf16.mxu0 0
    %3855 = vmatpush1.bf16.msra.mxu0 0
    %3856 = vmatprep.subr.bf16.mxu0 0
    %3857 = vmatpush1.bf16.msra.mxu0 0
    %3858 = vmatprep.subr.bf16.mxu0 0
    %3859 = vmatpush1.bf16.msra.mxu0 0
    %3860 = vmatprep.subr.bf16.mxu0 0
    %3861 = vmatpush1.bf16.msra.mxu0 0
    %3862 = vmatprep.subr.bf16.mxu0 0
    %3863 = vmatpush1.bf16.msra.mxu0 0
    %3864 = vmatprep.subr.bf16.mxu0 0
    %3865 = vmatpush1.bf16.msra.mxu0 0
    %3866 = vmatprep.subr.bf16.mxu0 0
    %3867 = vmatpush1.bf16.msra.mxu0 0
    %3868 = vmatprep.mubr.bf16.mxu0 0
    %3869 = vmatmul.mubr.bf16.gmra.mrb[0].mxu0 %v3793
    %v3870 = vpop.f32.mrb[0].mxu0
    %v3871 = vadd.f32 0.0, %v3870
    %v3872 = vpop.f32.mrb[0].mxu0
    %v3873 = vpop.f32.mrb[0].mxu0
    %v3874 = vpop.f32.mrb[0].mxu0
    %3875 = vdwg.mxu0
    %v3876 = vadd.f32 %v3479, %v3830
    %v3877 = vadd.f32 %v3480, %v3832
    %v3878 = vadd.f32 %v3481, %v3871
    %v3879 = vld [vmem:[#allocation5 + $0x2c] sm:$0x1]
    %v3880 = vpack.c.bf16 %v3879, %v3879
    %s3881 = scalar_lea.vmem [#allocation2], 1584
    %v3882 = vld [vmem:[%s3881] sm:$0xff]
    %v3883 = vld [vmem:[%s3881 + $0x8] sm:$0xff]
    %v3884 = vld [vmem:[%s3881 + $0x10] sm:$0xff]
    %v3885 = vld [vmem:[%s3881 + $0x18] sm:$0xff]
    %v3886 = vld [vmem:[%s3881 + $0x20] sm:$0xff]
    %v3887 = vld [vmem:[%s3881 + $0x28] sm:$0xff]
    %v3888 = vld [vmem:[%s3881 + $0x30] sm:$0xff]
    %v3889 = vld [vmem:[%s3881 + $0x38] sm:$0xff]
    %v3890 = vld [vmem:[%s3881 + $0x40] sm:$0xff]
    %v3892 = vsel %vm1707, %v3880, 0
    %3894 = vmatprep.subr.bf16.mxu0 %v3883
    %3895 = vmatpush1.bf16.msra.mxu0 %v3882
    %3896 = vmatprep.subr.bf16.mxu0 %v3886
    %3897 = vmatpush1.bf16.msra.mxu0 %v3885
    %3898 = vmatprep.subr.bf16.mxu0 %v3889
    %3899 = vmatpush1.bf16.msra.mxu0 %v3888
    %3900 = vmatprep.subr.bf16.mxu0 0
    %3901 = vmatpush1.bf16.msra.mxu0 0
    %3902 = vmatprep.subr.bf16.mxu0 0
    %3903 = vmatpush1.bf16.msra.mxu0 0
    %3904 = vmatprep.subr.bf16.mxu0 0
    %3905 = vmatpush1.bf16.msra.mxu0 0
    %3906 = vmatprep.subr.bf16.mxu0 0
    %3907 = vmatpush1.bf16.msra.mxu0 0
    %3908 = vmatprep.subr.bf16.mxu0 0
    %3909 = vmatpush1.bf16.msra.mxu0 0
    %3910 = vmatprep.subr.bf16.mxu0 0
    %3911 = vmatpush1.bf16.msra.mxu0 0
    %3912 = vmatprep.subr.bf16.mxu0 0
    %3913 = vmatpush1.bf16.msra.mxu0 0
    %3914 = vmatprep.subr.bf16.mxu0 0
    %3915 = vmatpush1.bf16.msra.mxu0 0
    %3916 = vmatprep.subr.bf16.mxu0 0
    %3917 = vmatpush1.bf16.msra.mxu0 0
    %3918 = vmatprep.subr.bf16.mxu0 0
    %3919 = vmatpush1.bf16.msra.mxu0 0
    %3920 = vmatprep.subr.bf16.mxu0 0
    %3921 = vmatpush1.bf16.msra.mxu0 0
    %3922 = vmatprep.subr.bf16.mxu0 0
    %3923 = vmatpush1.bf16.msra.mxu0 0
    %3924 = vmatprep.subr.bf16.mxu0 0
    %3925 = vmatpush1.bf16.msra.mxu0 0
    %3926 = vmatprep.mubr.bf16.mxu0 0
    %3927 = vmatmul.mubr.bf16.gmra.mrb[0].mxu0 %v3892
    %v3928 = vpop.f32.mrb[0].mxu0
    %v3929 = vadd.f32 0.0, %v3928
    %v3930 = vpop.f32.mrb[0].mxu0
    %v3931 = vadd.f32 0.0, %v3930
    %v3932 = vpop.f32.mrb[0].mxu0
    %v3933 = vpop.f32.mrb[0].mxu0
    %3934 = vdwg.mxu0
    %3935 = vmatprep.subr.bf16.mxu0 0
    %3936 = vmatpush1.bf16.msra.mxu0 %v3884
    %3937 = vmatprep.subr.bf16.mxu0 0
    %3938 = vmatpush1.bf16.msra.mxu0 %v3887
    %3939 = vmatprep.subr.bf16.mxu0 0
    %3940 = vmatpush1.bf16.msra.mxu0 %v3890
    %3941 = vmatprep.subr.bf16.mxu0 0
    %3942 = vmatpush1.bf16.msra.mxu0 0
    %3943 = vmatprep.subr.bf16.mxu0 0
    %3944 = vmatpush1.bf16.msra.mxu0 0
    %3945 = vmatprep.subr.bf16.mxu0 0
    %3946 = vmatpush1.bf16.msra.mxu0 0
    %3947 = vmatprep.subr.bf16.mxu0 0
    %3948 = vmatpush1.bf16.msra.mxu0 0
    %3949 = vmatprep.subr.bf16.mxu0 0
    %3950 = vmatpush1.bf16.msra.mxu0 0
    %3951 = vmatprep.subr.bf16.mxu0 0
    %3952 = vmatpush1.bf16.msra.mxu0 0
    %3953 = vmatprep.subr.bf16.mxu0 0
    %3954 = vmatpush1.bf16.msra.mxu0 0
    %3955 = vmatprep.subr.bf16.mxu0 0
    %3956 = vmatpush1.bf16.msra.mxu0 0
    %3957 = vmatprep.subr.bf16.mxu0 0
    %3958 = vmatpush1.bf16.msra.mxu0 0
    %3959 = vmatprep.subr.bf16.mxu0 0
    %3960 = vmatpush1.bf16.msra.mxu0 0
    %3961 = vmatprep.subr.bf16.mxu0 0
    %3962 = vmatpush1.bf16.msra.mxu0 0
    %3963 = vmatprep.subr.bf16.mxu0 0
    %3964 = vmatpush1.bf16.msra.mxu0 0
    %3965 = vmatprep.subr.bf16.mxu0 0
    %3966 = vmatpush1.bf16.msra.mxu0 0
    %3967 = vmatprep.mubr.bf16.mxu0 0
    %3968 = vmatmul.mubr.bf16.gmra.mrb[0].mxu0 %v3892
    %v3969 = vpop.f32.mrb[0].mxu0
    %v3970 = vadd.f32 0.0, %v3969
    %v3971 = vpop.f32.mrb[0].mxu0
    %v3972 = vpop.f32.mrb[0].mxu0
    %v3973 = vpop.f32.mrb[0].mxu0
    %3974 = vdwg.mxu0
    %v3975 = vadd.f32 %v3578, %v3929
    %v3976 = vadd.f32 %v3579, %v3931
    %v3977 = vadd.f32 %v3580, %v3970
    %v3978 = vld [vmem:[#allocation5 + $0x2e] sm:$0x1]
    %v3979 = vpack.c.bf16 %v3978, %v3978
    %s3980 = scalar_lea.vmem [#allocation2], 1656
    %v3981 = vld [vmem:[%s3980] sm:$0xff]
    %v3982 = vld [vmem:[%s3980 + $0x8] sm:$0xff]
    %v3983 = vld [vmem:[%s3980 + $0x10] sm:$0xff]
    %v3984 = vld [vmem:[%s3980 + $0x18] sm:$0xff]
    %v3985 = vld [vmem:[%s3980 + $0x20] sm:$0xff]
    %v3986 = vld [vmem:[%s3980 + $0x28] sm:$0xff]
    %v3987 = vld [vmem:[%s3980 + $0x30] sm:$0xff]
    %v3988 = vld [vmem:[%s3980 + $0x38] sm:$0xff]
    %v3989 = vld [vmem:[%s3980 + $0x40] sm:$0xff]
    %v3991 = vsel %vm1707, %v3979, 0
    %3993 = vmatprep.subr.bf16.mxu0 %v3982
    %3994 = vmatpush1.bf16.msra.mxu0 %v3981
    %3995 = vmatprep.subr.bf16.mxu0 %v3985
    %3996 = vmatpush1.bf16.msra.mxu0 %v3984
    %3997 = vmatprep.subr.bf16.mxu0 %v3988
    %3998 = vmatpush1.bf16.msra.mxu0 %v3987
    %3999 = vmatprep.subr.bf16.mxu0 0
    %4000 = vmatpush1.bf16.msra.mxu0 0
    %4001 = vmatprep.subr.bf16.mxu0 0
    %4002 = vmatpush1.bf16.msra.mxu0 0
    %4003 = vmatprep.subr.bf16.mxu0 0
    %4004 = vmatpush1.bf16.msra.mxu0 0
    %4005 = vmatprep.subr.bf16.mxu0 0
    %4006 = vmatpush1.bf16.msra.mxu0 0
    %4007 = vmatprep.subr.bf16.mxu0 0
    %4008 = vmatpush1.bf16.msra.mxu0 0
    %4009 = vmatprep.subr.bf16.mxu0 0
    %4010 = vmatpush1.bf16.msra.mxu0 0
    %4011 = vmatprep.subr.bf16.mxu0 0
    %4012 = vmatpush1.bf16.msra.mxu0 0
    %4013 = vmatprep.subr.bf16.mxu0 0
    %4014 = vmatpush1.bf16.msra.mxu0 0
    %4015 = vmatprep.subr.bf16.mxu0 0
    %4016 = vmatpush1.bf16.msra.mxu0 0
    %4017 = vmatprep.subr.bf16.mxu0 0
    %4018 = vmatpush1.bf16.msra.mxu0 0
    %4019 = vmatprep.subr.bf16.mxu0 0
    %4020 = vmatpush1.bf16.msra.mxu0 0
    %4021 = vmatprep.subr.bf16.mxu0 0
    %4022 = vmatpush1.bf16.msra.mxu0 0
    %4023 = vmatprep.subr.bf16.mxu0 0
    %4024 = vmatpush1.bf16.msra.mxu0 0
    %4025 = vmatprep.mubr.bf16.mxu0 0
    %4026 = vmatmul.mubr.bf16.gmra.mrb[0].mxu0 %v3991
    %v4027 = vpop.f32.mrb[0].mxu0
    %v4028 = vadd.f32 0.0, %v4027
    %v4029 = vpop.f32.mrb[0].mxu0
    %v4030 = vadd.f32 0.0, %v4029
    %v4031 = vpop.f32.mrb[0].mxu0
    %v4032 = vpop.f32.mrb[0].mxu0
    %4033 = vdwg.mxu0
    %4034 = vmatprep.subr.bf16.mxu0 0
    %4035 = vmatpush1.bf16.msra.mxu0 %v3983
    %4036 = vmatprep.subr.bf16.mxu0 0
    %4037 = vmatpush1.bf16.msra.mxu0 %v3986
    %4038 = vmatprep.subr.bf16.mxu0 0
    %4039 = vmatpush1.bf16.msra.mxu0 %v3989
    %4040 = vmatprep.subr.bf16.mxu0 0
    %4041 = vmatpush1.bf16.msra.mxu0 0
    %4042 = vmatprep.subr.bf16.mxu0 0
    %4043 = vmatpush1.bf16.msra.mxu0 0
    %4044 = vmatprep.subr.bf16.mxu0 0
    %4045 = vmatpush1.bf16.msra.mxu0 0
    %4046 = vmatprep.subr.bf16.mxu0 0
    %4047 = vmatpush1.bf16.msra.mxu0 0
    %4048 = vmatprep.subr.bf16.mxu0 0
    %4049 = vmatpush1.bf16.msra.mxu0 0
    %4050 = vmatprep.subr.bf16.mxu0 0
    %4051 = vmatpush1.bf16.msra.mxu0 0
    %4052 = vmatprep.subr.bf16.mxu0 0
    %4053 = vmatpush1.bf16.msra.mxu0 0
    %4054 = vmatprep.subr.bf16.mxu0 0
    %4055 = vmatpush1.bf16.msra.mxu0 0
    %4056 = vmatprep.subr.bf16.mxu0 0
    %4057 = vmatpush1.bf16.msra.mxu0 0
    %4058 = vmatprep.subr.bf16.mxu0 0
    %4059 = vmatpush1.bf16.msra.mxu0 0
    %4060 = vmatprep.subr.bf16.mxu0 0
    %4061 = vmatpush1.bf16.msra.mxu0 0
    %4062 = vmatprep.subr.bf16.mxu0 0
    %4063 = vmatpush1.bf16.msra.mxu0 0
    %4064 = vmatprep.subr.bf16.mxu0 0
    %4065 = vmatpush1.bf16.msra.mxu0 0
    %4066 = vmatprep.mubr.bf16.mxu0 0
    %4067 = vmatmul.mubr.bf16.gmra.mrb[0].mxu0 %v3991
    %v4068 = vpop.f32.mrb[0].mxu0
    %v4069 = vadd.f32 0.0, %v4068
    %v4070 = vpop.f32.mrb[0].mxu0
    %v4071 = vpop.f32.mrb[0].mxu0
    %v4072 = vpop.f32.mrb[0].mxu0
    %4073 = vdwg.mxu0
    %v4074 = vadd.f32 %v3677, %v4028
    %v4075 = vadd.f32 %v3678, %v4030
    %v4076 = vadd.f32 %v3679, %v4069
    %v4077 = vld [vmem:[#allocation5 + $0x30] sm:$0x1]
    %v4078 = vpack.c.bf16 %v4077, %v4077
    %s4079 = scalar_lea.vmem [#allocation2], 1728
    %v4080 = vld [vmem:[%s4079] sm:$0xff]
    %v4081 = vld [vmem:[%s4079 + $0x8] sm:$0xff]
    %v4082 = vld [vmem:[%s4079 + $0x10] sm:$0xff]
    %v4083 = vld [vmem:[%s4079 + $0x18] sm:$0xff]
    %v4084 = vld [vmem:[%s4079 + $0x20] sm:$0xff]
    %v4085 = vld [vmem:[%s4079 + $0x28] sm:$0xff]
    %v4086 = vld [vmem:[%s4079 + $0x30] sm:$0xff]
    %v4087 = vld [vmem:[%s4079 + $0x38] sm:$0xff]
    %v4088 = vld [vmem:[%s4079 + $0x40] sm:$0xff]
    %v4090 = vsel %vm1707, %v4078, 0
    %4092 = vmatprep.subr.bf16.mxu0 %v4081
    %4093 = vmatpush1.bf16.msra.mxu0 %v4080
    %4094 = vmatprep.subr.bf16.mxu0 %v4084
    %4095 = vmatpush1.bf16.msra.mxu0 %v4083
    %4096 = vmatprep.subr.bf16.mxu0 %v4087
    %4097 = vmatpush1.bf16.msra.mxu0 %v4086
    %4098 = vmatprep.subr.bf16.mxu0 0
    %4099 = vmatpush1.bf16.msra.mxu0 0
    %4100 = vmatprep.subr.bf16.mxu0 0
    %4101 = vmatpush1.bf16.msra.mxu0 0
    %4102 = vmatprep.subr.bf16.mxu0 0
    %4103 = vmatpush1.bf16.msra.mxu0 0
    %4104 = vmatprep.subr.bf16.mxu0 0
    %4105 = vmatpush1.bf16.msra.mxu0 0
    %4106 = vmatprep.subr.bf16.mxu0 0
    %4107 = vmatpush1.bf16.msra.mxu0 0
    %4108 = vmatprep.subr.bf16.mxu0 0
    %4109 = vmatpush1.bf16.msra.mxu0 0
    %4110 = vmatprep.subr.bf16.mxu0 0
    %4111 = vmatpush1.bf16.msra.mxu0 0
    %4112 = vmatprep.subr.bf16.mxu0 0
    %4113 = vmatpush1.bf16.msra.mxu0 0
    %4114 = vmatprep.subr.bf16.mxu0 0
    %4115 = vmatpush1.bf16.msra.mxu0 0
    %4116 = vmatprep.subr.bf16.mxu0 0
    %4117 = vmatpush1.bf16.msra.mxu0 0
    %4118 = vmatprep.subr.bf16.mxu0 0
    %4119 = vmatpush1.bf16.msra.mxu0 0
    %4120 = vmatprep.subr.bf16.mxu0 0
    %4121 = vmatpush1.bf16.msra.mxu0 0
    %4122 = vmatprep.subr.bf16.mxu0 0
    %4123 = vmatpush1.bf16.msra.mxu0 0
    %4124 = vmatprep.mubr.bf16.mxu0 0
    %4125 = vmatmul.mubr.bf16.gmra.mrb[0].mxu0 %v4090
    %v4126 = vpop.f32.mrb[0].mxu0
    %v4127 = vadd.f32 0.0, %v4126
    %v4128 = vpop.f32.mrb[0].mxu0
    %v4129 = vadd.f32 0.0, %v4128
    %v4130 = vpop.f32.mrb[0].mxu0
    %v4131 = vpop.f32.mrb[0].mxu0
    %4132 = vdwg.mxu0
    %4133 = vmatprep.subr.bf16.mxu0 0
    %4134 = vmatpush1.bf16.msra.mxu0 %v4082
    %4135 = vmatprep.subr.bf16.mxu0 0
    %4136 = vmatpush1.bf16.msra.mxu0 %v4085
    %4137 = vmatprep.subr.bf16.mxu0 0
    %4138 = vmatpush1.bf16.msra.mxu0 %v4088
    %4139 = vmatprep.subr.bf16.mxu0 0
    %4140 = vmatpush1.bf16.msra.mxu0 0
    %4141 = vmatprep.subr.bf16.mxu0 0
    %4142 = vmatpush1.bf16.msra.mxu0 0
    %4143 = vmatprep.subr.bf16.mxu0 0
    %4144 = vmatpush1.bf16.msra.mxu0 0
    %4145 = vmatprep.subr.bf16.mxu0 0
    %4146 = vmatpush1.bf16.msra.mxu0 0
    %4147 = vmatprep.subr.bf16.mxu0 0
    %4148 = vmatpush1.bf16.msra.mxu0 0
    %4149 = vmatprep.subr.bf16.mxu0 0
    %4150 = vmatpush1.bf16.msra.mxu0 0
    %4151 = vmatprep.subr.bf16.mxu0 0
    %4152 = vmatpush1.bf16.msra.mxu0 0
    %4153 = vmatprep.subr.bf16.mxu0 0
    %4154 = vmatpush1.bf16.msra.mxu0 0
    %4155 = vmatprep.subr.bf16.mxu0 0
    %4156 = vmatpush1.bf16.msra.mxu0 0
    %4157 = vmatprep.subr.bf16.mxu0 0
    %4158 = vmatpush1.bf16.msra.mxu0 0
    %4159 = vmatprep.subr.bf16.mxu0 0
    %4160 = vmatpush1.bf16.msra.mxu0 0
    %4161 = vmatprep.subr.bf16.mxu0 0
    %4162 = vmatpush1.bf16.msra.mxu0 0
    %4163 = vmatprep.subr.bf16.mxu0 0
    %4164 = vmatpush1.bf16.msra.mxu0 0
    %4165 = vmatprep.mubr.bf16.mxu0 0
    %4166 = vmatmul.mubr.bf16.gmra.mrb[0].mxu0 %v4090
    %v4167 = vpop.f32.mrb[0].mxu0
    %v4168 = vadd.f32 0.0, %v4167
    %v4169 = vpop.f32.mrb[0].mxu0
    %v4170 = vpop.f32.mrb[0].mxu0
    %v4171 = vpop.f32.mrb[0].mxu0
    %4172 = vdwg.mxu0
    %v4173 = vadd.f32 %v3777, %v4127
    %v4174 = vadd.f32 %v3778, %v4129
    %v4175 = vadd.f32 %v3779, %v4168
    %v4176 = vld [vmem:[#allocation5 + $0x32] sm:$0x1]
    %v4177 = vpack.c.bf16 %v4176, %v4176
    %s4178 = scalar_lea.vmem [#allocation2], 1800
    %v4179 = vld [vmem:[%s4178] sm:$0xff]
    %v4180 = vld [vmem:[%s4178 + $0x8] sm:$0xff]
    %v4181 = vld [vmem:[%s4178 + $0x10] sm:$0xff]
    %v4182 = vld [vmem:[%s4178 + $0x18] sm:$0xff]
    %v4183 = vld [vmem:[%s4178 + $0x20] sm:$0xff]
    %v4184 = vld [vmem:[%s4178 + $0x28] sm:$0xff]
    %v4185 = vld [vmem:[%s4178 + $0x30] sm:$0xff]
    %v4186 = vld [vmem:[%s4178 + $0x38] sm:$0xff]
    %v4187 = vld [vmem:[%s4178 + $0x40] sm:$0xff]
    %v4189 = vsel %vm1707, %v4177, 0
    %4191 = vmatprep.subr.bf16.mxu0 %v4180
    %4192 = vmatpush1.bf16.msra.mxu0 %v4179
    %4193 = vmatprep.subr.bf16.mxu0 %v4183
    %4194 = vmatpush1.bf16.msra.mxu0 %v4182
    %4195 = vmatprep.subr.bf16.mxu0 %v4186
    %4196 = vmatpush1.bf16.msra.mxu0 %v4185
    %4197 = vmatprep.subr.bf16.mxu0 0
    %4198 = vmatpush1.bf16.msra.mxu0 0
    %4199 = vmatprep.subr.bf16.mxu0 0
    %4200 = vmatpush1.bf16.msra.mxu0 0
    %4201 = vmatprep.subr.bf16.mxu0 0
    %4202 = vmatpush1.bf16.msra.mxu0 0
    %4203 = vmatprep.subr.bf16.mxu0 0
    %4204 = vmatpush1.bf16.msra.mxu0 0
    %4205 = vmatprep.subr.bf16.mxu0 0
    %4206 = vmatpush1.bf16.msra.mxu0 0
    %4207 = vmatprep.subr.bf16.mxu0 0
    %4208 = vmatpush1.bf16.msra.mxu0 0
    %4209 = vmatprep.subr.bf16.mxu0 0
    %4210 = vmatpush1.bf16.msra.mxu0 0
    %4211 = vmatprep.subr.bf16.mxu0 0
    %4212 = vmatpush1.bf16.msra.mxu0 0
    %4213 = vmatprep.subr.bf16.mxu0 0
    %4214 = vmatpush1.bf16.msra.mxu0 0
    %4215 = vmatprep.subr.bf16.mxu0 0
    %4216 = vmatpush1.bf16.msra.mxu0 0
    %4217 = vmatprep.subr.bf16.mxu0 0
    %4218 = vmatpush1.bf16.msra.mxu0 0
    %4219 = vmatprep.subr.bf16.mxu0 0
    %4220 = vmatpush1.bf16.msra.mxu0 0
    %4221 = vmatprep.subr.bf16.mxu0 0
    %4222 = vmatpush1.bf16.msra.mxu0 0
    %4223 = vmatprep.mubr.bf16.mxu0 0
    %4224 = vmatmul.mubr.bf16.gmra.mrb[0].mxu0 %v4189
    %v4225 = vpop.f32.mrb[0].mxu0
    %v4226 = vadd.f32 0.0, %v4225
    %v4227 = vpop.f32.mrb[0].mxu0
    %v4228 = vadd.f32 0.0, %v4227
    %v4229 = vpop.f32.mrb[0].mxu0
    %v4230 = vpop.f32.mrb[0].mxu0
    %4231 = vdwg.mxu0
    %4232 = vmatprep.subr.bf16.mxu0 0
    %4233 = vmatpush1.bf16.msra.mxu0 %v4181
    %4234 = vmatprep.subr.bf16.mxu0 0
    %4235 = vmatpush1.bf16.msra.mxu0 %v4184
    %4236 = vmatprep.subr.bf16.mxu0 0
    %4237 = vmatpush1.bf16.msra.mxu0 %v4187
    %4238 = vmatprep.subr.bf16.mxu0 0
    %4239 = vmatpush1.bf16.msra.mxu0 0
    %4240 = vmatprep.subr.bf16.mxu0 0
    %4241 = vmatpush1.bf16.msra.mxu0 0
    %4242 = vmatprep.subr.bf16.mxu0 0
    %4243 = vmatpush1.bf16.msra.mxu0 0
    %4244 = vmatprep.subr.bf16.mxu0 0
    %4245 = vmatpush1.bf16.msra.mxu0 0
    %4246 = vmatprep.subr.bf16.mxu0 0
    %4247 = vmatpush1.bf16.msra.mxu0 0
    %4248 = vmatprep.subr.bf16.mxu0 0
    %4249 = vmatpush1.bf16.msra.mxu0 0
    %4250 = vmatprep.subr.bf16.mxu0 0
    %4251 = vmatpush1.bf16.msra.mxu0 0
    %4252 = vmatprep.subr.bf16.mxu0 0
    %4253 = vmatpush1.bf16.msra.mxu0 0
    %4254 = vmatprep.subr.bf16.mxu0 0
    %4255 = vmatpush1.bf16.msra.mxu0 0
    %4256 = vmatprep.subr.bf16.mxu0 0
    %4257 = vmatpush1.bf16.msra.mxu0 0
    %4258 = vmatprep.subr.bf16.mxu0 0
    %4259 = vmatpush1.bf16.msra.mxu0 0
    %4260 = vmatprep.subr.bf16.mxu0 0
    %4261 = vmatpush1.bf16.msra.mxu0 0
    %4262 = vmatprep.subr.bf16.mxu0 0
    %4263 = vmatpush1.bf16.msra.mxu0 0
    %4264 = vmatprep.mubr.bf16.mxu0 0
    %4265 = vmatmul.mubr.bf16.gmra.mrb[0].mxu0 %v4189
    %v4266 = vpop.f32.mrb[0].mxu0
    %v4267 = vadd.f32 0.0, %v4266
    %v4268 = vpop.f32.mrb[0].mxu0
    %v4269 = vpop.f32.mrb[0].mxu0
    %v4270 = vpop.f32.mrb[0].mxu0
    %4271 = vdwg.mxu0
    %v4272 = vadd.f32 %v3876, %v4226
    %v4273 = vadd.f32 %v3877, %v4228
    %v4274 = vadd.f32 %v3878, %v4267
    %v4275 = vld [vmem:[#allocation5 + $0x34] sm:$0x1]
    %v4276 = vpack.c.bf16 %v4275, %v4275
    %s4277 = scalar_lea.vmem [#allocation2], 1872
    %v4278 = vld [vmem:[%s4277] sm:$0xff]
    %v4279 = vld [vmem:[%s4277 + $0x8] sm:$0xff]
    %v4280 = vld [vmem:[%s4277 + $0x10] sm:$0xff]
    %v4281 = vld [vmem:[%s4277 + $0x18] sm:$0xff]
    %v4282 = vld [vmem:[%s4277 + $0x20] sm:$0xff]
    %v4283 = vld [vmem:[%s4277 + $0x28] sm:$0xff]
    %v4284 = vld [vmem:[%s4277 + $0x30] sm:$0xff]
    %v4285 = vld [vmem:[%s4277 + $0x38] sm:$0xff]
    %v4286 = vld [vmem:[%s4277 + $0x40] sm:$0xff]
    %v4288 = vsel %vm1707, %v4276, 0
    %4290 = vmatprep.subr.bf16.mxu0 %v4279
    %4291 = vmatpush1.bf16.msra.mxu0 %v4278
    %4292 = vmatprep.subr.bf16.mxu0 %v4282
    %4293 = vmatpush1.bf16.msra.mxu0 %v4281
    %4294 = vmatprep.subr.bf16.mxu0 %v4285
    %4295 = vmatpush1.bf16.msra.mxu0 %v4284
    %4296 = vmatprep.subr.bf16.mxu0 0
    %4297 = vmatpush1.bf16.msra.mxu0 0
    %4298 = vmatprep.subr.bf16.mxu0 0
    %4299 = vmatpush1.bf16.msra.mxu0 0
    %4300 = vmatprep.subr.bf16.mxu0 0
    %4301 = vmatpush1.bf16.msra.mxu0 0
    %4302 = vmatprep.subr.bf16.mxu0 0
    %4303 = vmatpush1.bf16.msra.mxu0 0
    %4304 = vmatprep.subr.bf16.mxu0 0
    %4305 = vmatpush1.bf16.msra.mxu0 0
    %4306 = vmatprep.subr.bf16.mxu0 0
    %4307 = vmatpush1.bf16.msra.mxu0 0
    %4308 = vmatprep.subr.bf16.mxu0 0
    %4309 = vmatpush1.bf16.msra.mxu0 0
    %4310 = vmatprep.subr.bf16.mxu0 0
    %4311 = vmatpush1.bf16.msra.mxu0 0
    %4312 = vmatprep.subr.bf16.mxu0 0
    %4313 = vmatpush1.bf16.msra.mxu0 0
    %4314 = vmatprep.subr.bf16.mxu0 0
    %4315 = vmatpush1.bf16.msra.mxu0 0
    %4316 = vmatprep.subr.bf16.mxu0 0
    %4317 = vmatpush1.bf16.msra.mxu0 0
    %4318 = vmatprep.subr.bf16.mxu0 0
    %4319 = vmatpush1.bf16.msra.mxu0 0
    %4320 = vmatprep.subr.bf16.mxu0 0
    %4321 = vmatpush1.bf16.msra.mxu0 0
    %4322 = vmatprep.mubr.bf16.mxu0 0
    %4323 = vmatmul.mubr.bf16.gmra.mrb[0].mxu0 %v4288
    %v4324 = vpop.f32.mrb[0].mxu0
    %v4325 = vadd.f32 0.0, %v4324
    %v4326 = vpop.f32.mrb[0].mxu0
    %v4327 = vadd.f32 0.0, %v4326
    %v4328 = vpop.f32.mrb[0].mxu0
    %v4329 = vpop.f32.mrb[0].mxu0
    %4330 = vdwg.mxu0
    %4331 = vmatprep.subr.bf16.mxu0 0
    %4332 = vmatpush1.bf16.msra.mxu0 %v4280
    %4333 = vmatprep.subr.bf16.mxu0 0
    %4334 = vmatpush1.bf16.msra.mxu0 %v4283
    %4335 = vmatprep.subr.bf16.mxu0 0
    %4336 = vmatpush1.bf16.msra.mxu0 %v4286
    %4337 = vmatprep.subr.bf16.mxu0 0
    %4338 = vmatpush1.bf16.msra.mxu0 0
    %4339 = vmatprep.subr.bf16.mxu0 0
    %4340 = vmatpush1.bf16.msra.mxu0 0
    %4341 = vmatprep.subr.bf16.mxu0 0
    %4342 = vmatpush1.bf16.msra.mxu0 0
    %4343 = vmatprep.subr.bf16.mxu0 0
    %4344 = vmatpush1.bf16.msra.mxu0 0
    %4345 = vmatprep.subr.bf16.mxu0 0
    %4346 = vmatpush1.bf16.msra.mxu0 0
    %4347 = vmatprep.subr.bf16.mxu0 0
    %4348 = vmatpush1.bf16.msra.mxu0 0
    %4349 = vmatprep.subr.bf16.mxu0 0
    %4350 = vmatpush1.bf16.msra.mxu0 0
    %4351 = vmatprep.subr.bf16.mxu0 0
    %4352 = vmatpush1.bf16.msra.mxu0 0
    %4353 = vmatprep.subr.bf16.mxu0 0
    %4354 = vmatpush1.bf16.msra.mxu0 0
    %4355 = vmatprep.subr.bf16.mxu0 0
    %4356 = vmatpush1.bf16.msra.mxu0 0
    %4357 = vmatprep.subr.bf16.mxu0 0
    %4358 = vmatpush1.bf16.msra.mxu0 0
    %4359 = vmatprep.subr.bf16.mxu0 0
    %4360 = vmatpush1.bf16.msra.mxu0 0
    %4361 = vmatprep.subr.bf16.mxu0 0
    %4362 = vmatpush1.bf16.msra.mxu0 0
    %4363 = vmatprep.mubr.bf16.mxu0 0
    %4364 = vmatmul.mubr.bf16.gmra.mrb[0].mxu0 %v4288
    %v4365 = vpop.f32.mrb[0].mxu0
    %v4366 = vadd.f32 0.0, %v4365
    %v4367 = vpop.f32.mrb[0].mxu0
    %v4368 = vpop.f32.mrb[0].mxu0
    %v4369 = vpop.f32.mrb[0].mxu0
    %4370 = vdwg.mxu0
    %v4371 = vadd.f32 %v3975, %v4325
    %v4372 = vadd.f32 %v3976, %v4327
    %v4373 = vadd.f32 %v3977, %v4366
    %v4374 = vld [vmem:[#allocation5 + $0x36] sm:$0x1]
    %v4375 = vpack.c.bf16 %v4374, %v4374
    %s4376 = scalar_lea.vmem [#allocation2], 1944
    %v4377 = vld [vmem:[%s4376] sm:$0xff]
    %v4378 = vld [vmem:[%s4376 + $0x8] sm:$0xff]
    %v4379 = vld [vmem:[%s4376 + $0x10] sm:$0xff]
    %v4380 = vld [vmem:[%s4376 + $0x18] sm:$0xff]
    %v4381 = vld [vmem:[%s4376 + $0x20] sm:$0xff]
    %v4382 = vld [vmem:[%s4376 + $0x28] sm:$0xff]
    %v4383 = vld [vmem:[%s4376 + $0x30] sm:$0xff]
    %v4384 = vld [vmem:[%s4376 + $0x38] sm:$0xff]
    %v4385 = vld [vmem:[%s4376 + $0x40] sm:$0xff]
    %v4387 = vsel %vm1707, %v4375, 0
    %4389 = vmatprep.subr.bf16.mxu0 %v4378
    %4390 = vmatpush1.bf16.msra.mxu0 %v4377
    %4391 = vmatprep.subr.bf16.mxu0 %v4381
    %4392 = vmatpush1.bf16.msra.mxu0 %v4380
    %4393 = vmatprep.subr.bf16.mxu0 %v4384
    %4394 = vmatpush1.bf16.msra.mxu0 %v4383
    %4395 = vmatprep.subr.bf16.mxu0 0
    %4396 = vmatpush1.bf16.msra.mxu0 0
    %4397 = vmatprep.subr.bf16.mxu0 0
    %4398 = vmatpush1.bf16.msra.mxu0 0
    %4399 = vmatprep.subr.bf16.mxu0 0
    %4400 = vmatpush1.bf16.msra.mxu0 0
    %4401 = vmatprep.subr.bf16.mxu0 0
    %4402 = vmatpush1.bf16.msra.mxu0 0
    %4403 = vmatprep.subr.bf16.mxu0 0
    %4404 = vmatpush1.bf16.msra.mxu0 0
    %4405 = vmatprep.subr.bf16.mxu0 0
    %4406 = vmatpush1.bf16.msra.mxu0 0
    %4407 = vmatprep.subr.bf16.mxu0 0
    %4408 = vmatpush1.bf16.msra.mxu0 0
    %4409 = vmatprep.subr.bf16.mxu0 0
    %4410 = vmatpush1.bf16.msra.mxu0 0
    %4411 = vmatprep.subr.bf16.mxu0 0
    %4412 = vmatpush1.bf16.msra.mxu0 0
    %4413 = vmatprep.subr.bf16.mxu0 0
    %4414 = vmatpush1.bf16.msra.mxu0 0
    %4415 = vmatprep.subr.bf16.mxu0 0
    %4416 = vmatpush1.bf16.msra.mxu0 0
    %4417 = vmatprep.subr.bf16.mxu0 0
    %4418 = vmatpush1.bf16.msra.mxu0 0
    %4419 = vmatprep.subr.bf16.mxu0 0
    %4420 = vmatpush1.bf16.msra.mxu0 0
    %4421 = vmatprep.mubr.bf16.mxu0 0
    %4422 = vmatmul.mubr.bf16.gmra.mrb[0].mxu0 %v4387
    %v4423 = vpop.f32.mrb[0].mxu0
    %v4424 = vadd.f32 0.0, %v4423
    %v4425 = vpop.f32.mrb[0].mxu0
    %v4426 = vadd.f32 0.0, %v4425
    %v4427 = vpop.f32.mrb[0].mxu0
    %v4428 = vpop.f32.mrb[0].mxu0
    %4429 = vdwg.mxu0
    %4430 = vmatprep.subr.bf16.mxu0 0
    %4431 = vmatpush1.bf16.msra.mxu0 %v4379
    %4432 = vmatprep.subr.bf16.mxu0 0
    %4433 = vmatpush1.bf16.msra.mxu0 %v4382
    %4434 = vmatprep.subr.bf16.mxu0 0
    %4435 = vmatpush1.bf16.msra.mxu0 %v4385
    %4436 = vmatprep.subr.bf16.mxu0 0
    %4437 = vmatpush1.bf16.msra.mxu0 0
    %4438 = vmatprep.subr.bf16.mxu0 0
    %4439 = vmatpush1.bf16.msra.mxu0 0
    %4440 = vmatprep.subr.bf16.mxu0 0
    %4441 = vmatpush1.bf16.msra.mxu0 0
    %4442 = vmatprep.subr.bf16.mxu0 0
    %4443 = vmatpush1.bf16.msra.mxu0 0
    %4444 = vmatprep.subr.bf16.mxu0 0
    %4445 = vmatpush1.bf16.msra.mxu0 0
    %4446 = vmatprep.subr.bf16.mxu0 0
    %4447 = vmatpush1.bf16.msra.mxu0 0
    %4448 = vmatprep.subr.bf16.mxu0 0
    %4449 = vmatpush1.bf16.msra.mxu0 0
    %4450 = vmatprep.subr.bf16.mxu0 0
    %4451 = vmatpush1.bf16.msra.mxu0 0
    %4452 = vmatprep.subr.bf16.mxu0 0
    %4453 = vmatpush1.bf16.msra.mxu0 0
    %4454 = vmatprep.subr.bf16.mxu0 0
    %4455 = vmatpush1.bf16.msra.mxu0 0
    %4456 = vmatprep.subr.bf16.mxu0 0
    %4457 = vmatpush1.bf16.msra.mxu0 0
    %4458 = vmatprep.subr.bf16.mxu0 0
    %4459 = vmatpush1.bf16.msra.mxu0 0
    %4460 = vmatprep.subr.bf16.mxu0 0
    %4461 = vmatpush1.bf16.msra.mxu0 0
    %4462 = vmatprep.mubr.bf16.mxu0 0
    %4463 = vmatmul.mubr.bf16.gmra.mrb[0].mxu0 %v4387
    %v4464 = vpop.f32.mrb[0].mxu0
    %v4465 = vadd.f32 0.0, %v4464
    %v4466 = vpop.f32.mrb[0].mxu0
    %v4467 = vpop.f32.mrb[0].mxu0
    %v4468 = vpop.f32.mrb[0].mxu0
    %4469 = vdwg.mxu0
    %v4470 = vadd.f32 %v4074, %v4424
    %v4471 = vadd.f32 %v4075, %v4426
    %v4472 = vadd.f32 %v4076, %v4465
    %v4473 = vld [vmem:[#allocation5 + $0x38] sm:$0x1]
    %v4474 = vpack.c.bf16 %v4473, %v4473
    %s4475 = scalar_lea.vmem [#allocation2], 2016
    %v4476 = vld [vmem:[%s4475] sm:$0xff]
    %v4477 = vld [vmem:[%s4475 + $0x8] sm:$0xff]
    %v4478 = vld [vmem:[%s4475 + $0x10] sm:$0xff]
    %v4479 = vld [vmem:[%s4475 + $0x18] sm:$0xff]
    %v4480 = vld [vmem:[%s4475 + $0x20] sm:$0xff]
    %v4481 = vld [vmem:[%s4475 + $0x28] sm:$0xff]
    %v4482 = vld [vmem:[%s4475 + $0x30] sm:$0xff]
    %v4483 = vld [vmem:[%s4475 + $0x38] sm:$0xff]
    %v4484 = vld [vmem:[%s4475 + $0x40] sm:$0xff]
    %v4486 = vsel %vm1707, %v4474, 0
    %4488 = vmatprep.subr.bf16.mxu0 %v4477
    %4489 = vmatpush1.bf16.msra.mxu0 %v4476
    %4490 = vmatprep.subr.bf16.mxu0 %v4480
    %4491 = vmatpush1.bf16.msra.mxu0 %v4479
    %4492 = vmatprep.subr.bf16.mxu0 %v4483
    %4493 = vmatpush1.bf16.msra.mxu0 %v4482
    %4494 = vmatprep.subr.bf16.mxu0 0
    %4495 = vmatpush1.bf16.msra.mxu0 0
    %4496 = vmatprep.subr.bf16.mxu0 0
    %4497 = vmatpush1.bf16.msra.mxu0 0
    %4498 = vmatprep.subr.bf16.mxu0 0
    %4499 = vmatpush1.bf16.msra.mxu0 0
    %4500 = vmatprep.subr.bf16.mxu0 0
    %4501 = vmatpush1.bf16.msra.mxu0 0
    %4502 = vmatprep.subr.bf16.mxu0 0
    %4503 = vmatpush1.bf16.msra.mxu0 0
    %4504 = vmatprep.subr.bf16.mxu0 0
    %4505 = vmatpush1.bf16.msra.mxu0 0
    %4506 = vmatprep.subr.bf16.mxu0 0
    %4507 = vmatpush1.bf16.msra.mxu0 0
    %4508 = vmatprep.subr.bf16.mxu0 0
    %4509 = vmatpush1.bf16.msra.mxu0 0
    %4510 = vmatprep.subr.bf16.mxu0 0
    %4511 = vmatpush1.bf16.msra.mxu0 0
    %4512 = vmatprep.subr.bf16.mxu0 0
    %4513 = vmatpush1.bf16.msra.mxu0 0
    %4514 = vmatprep.subr.bf16.mxu0 0
    %4515 = vmatpush1.bf16.msra.mxu0 0
    %4516 = vmatprep.subr.bf16.mxu0 0
    %4517 = vmatpush1.bf16.msra.mxu0 0
    %4518 = vmatprep.subr.bf16.mxu0 0
    %4519 = vmatpush1.bf16.msra.mxu0 0
    %4520 = vmatprep.mubr.bf16.mxu0 0
    %4521 = vmatmul.mubr.bf16.gmra.mrb[0].mxu0 %v4486
    %v4522 = vpop.f32.mrb[0].mxu0
    %v4523 = vadd.f32 0.0, %v4522
    %v4524 = vpop.f32.mrb[0].mxu0
    %v4525 = vadd.f32 0.0, %v4524
    %v4526 = vpop.f32.mrb[0].mxu0
    %v4527 = vpop.f32.mrb[0].mxu0
    %4528 = vdwg.mxu0
    %4529 = vmatprep.subr.bf16.mxu0 0
    %4530 = vmatpush1.bf16.msra.mxu0 %v4478
    %4531 = vmatprep.subr.bf16.mxu0 0
    %4532 = vmatpush1.bf16.msra.mxu0 %v4481
    %4533 = vmatprep.subr.bf16.mxu0 0
    %4534 = vmatpush1.bf16.msra.mxu0 %v4484
    %4535 = vmatprep.subr.bf16.mxu0 0
    %4536 = vmatpush1.bf16.msra.mxu0 0
    %4537 = vmatprep.subr.bf16.mxu0 0
    %4538 = vmatpush1.bf16.msra.mxu0 0
    %4539 = vmatprep.subr.bf16.mxu0 0
    %4540 = vmatpush1.bf16.msra.mxu0 0
    %4541 = vmatprep.subr.bf16.mxu0 0
    %4542 = vmatpush1.bf16.msra.mxu0 0
    %4543 = vmatprep.subr.bf16.mxu0 0
    %4544 = vmatpush1.bf16.msra.mxu0 0
    %4545 = vmatprep.subr.bf16.mxu0 0
    %4546 = vmatpush1.bf16.msra.mxu0 0
    %4547 = vmatprep.subr.bf16.mxu0 0
    %4548 = vmatpush1.bf16.msra.mxu0 0
    %4549 = vmatprep.subr.bf16.mxu0 0
    %4550 = vmatpush1.bf16.msra.mxu0 0
    %4551 = vmatprep.subr.bf16.mxu0 0
    %4552 = vmatpush1.bf16.msra.mxu0 0
    %4553 = vmatprep.subr.bf16.mxu0 0
    %4554 = vmatpush1.bf16.msra.mxu0 0
    %4555 = vmatprep.subr.bf16.mxu0 0
    %4556 = vmatpush1.bf16.msra.mxu0 0
    %4557 = vmatprep.subr.bf16.mxu0 0
    %4558 = vmatpush1.bf16.msra.mxu0 0
    %4559 = vmatprep.subr.bf16.mxu0 0
    %4560 = vmatpush1.bf16.msra.mxu0 0
    %4561 = vmatprep.mubr.bf16.mxu0 0
    %4562 = vmatmul.mubr.bf16.gmra.mrb[0].mxu0 %v4486
    %v4563 = vpop.f32.mrb[0].mxu0
    %v4564 = vadd.f32 0.0, %v4563
    %v4565 = vpop.f32.mrb[0].mxu0
    %v4566 = vpop.f32.mrb[0].mxu0
    %v4567 = vpop.f32.mrb[0].mxu0
    %4568 = vdwg.mxu0
    %v4569 = vadd.f32 %v4173, %v4523
    %v4570 = vadd.f32 %v4174, %v4525
    %v4571 = vadd.f32 %v4175, %v4564
    %v4572 = vld [vmem:[#allocation5 + $0x3a] sm:$0x1]
    %v4573 = vpack.c.bf16 %v4572, %v4572
    %s4574 = scalar_lea.vmem [#allocation2], 2088
    %v4575 = vld [vmem:[%s4574] sm:$0xff]
    %v4576 = vld [vmem:[%s4574 + $0x8] sm:$0xff]
    %v4577 = vld [vmem:[%s4574 + $0x10] sm:$0xff]
    %v4578 = vld [vmem:[%s4574 + $0x18] sm:$0xff]
    %v4579 = vld [vmem:[%s4574 + $0x20] sm:$0xff]
    %v4580 = vld [vmem:[%s4574 + $0x28] sm:$0xff]
    %v4581 = vld [vmem:[%s4574 + $0x30] sm:$0xff]
    %v4582 = vld [vmem:[%s4574 + $0x38] sm:$0xff]
    %v4583 = vld [vmem:[%s4574 + $0x40] sm:$0xff]
    %v4585 = vsel %vm1707, %v4573, 0
    %4587 = vmatprep.subr.bf16.mxu0 %v4576
    %4588 = vmatpush1.bf16.msra.mxu0 %v4575
    %4589 = vmatprep.subr.bf16.mxu0 %v4579
    %4590 = vmatpush1.bf16.msra.mxu0 %v4578
    %4591 = vmatprep.subr.bf16.mxu0 %v4582
    %4592 = vmatpush1.bf16.msra.mxu0 %v4581
    %4593 = vmatprep.subr.bf16.mxu0 0
    %4594 = vmatpush1.bf16.msra.mxu0 0
    %4595 = vmatprep.subr.bf16.mxu0 0
    %4596 = vmatpush1.bf16.msra.mxu0 0
    %4597 = vmatprep.subr.bf16.mxu0 0
    %4598 = vmatpush1.bf16.msra.mxu0 0
    %4599 = vmatprep.subr.bf16.mxu0 0
    %4600 = vmatpush1.bf16.msra.mxu0 0
    %4601 = vmatprep.subr.bf16.mxu0 0
    %4602 = vmatpush1.bf16.msra.mxu0 0
    %4603 = vmatprep.subr.bf16.mxu0 0
    %4604 = vmatpush1.bf16.msra.mxu0 0
    %4605 = vmatprep.subr.bf16.mxu0 0
    %4606 = vmatpush1.bf16.msra.mxu0 0
    %4607 = vmatprep.subr.bf16.mxu0 0
    %4608 = vmatpush1.bf16.msra.mxu0 0
    %4609 = vmatprep.subr.bf16.mxu0 0
    %4610 = vmatpush1.bf16.msra.mxu0 0
    %4611 = vmatprep.subr.bf16.mxu0 0
    %4612 = vmatpush1.bf16.msra.mxu0 0
    %4613 = vmatprep.subr.bf16.mxu0 0
    %4614 = vmatpush1.bf16.msra.mxu0 0
    %4615 = vmatprep.subr.bf16.mxu0 0
    %4616 = vmatpush1.bf16.msra.mxu0 0
    %4617 = vmatprep.subr.bf16.mxu0 0
    %4618 = vmatpush1.bf16.msra.mxu0 0
    %4619 = vmatprep.mubr.bf16.mxu0 0
    %4620 = vmatmul.mubr.bf16.gmra.mrb[0].mxu0 %v4585
    %v4621 = vpop.f32.mrb[0].mxu0
    %v4622 = vadd.f32 0.0, %v4621
    %v4623 = vpop.f32.mrb[0].mxu0
    %v4624 = vadd.f32 0.0, %v4623
    %v4625 = vpop.f32.mrb[0].mxu0
    %v4626 = vpop.f32.mrb[0].mxu0
    %4627 = vdwg.mxu0
    %4628 = vmatprep.subr.bf16.mxu0 0
    %4629 = vmatpush1.bf16.msra.mxu0 %v4577
    %4630 = vmatprep.subr.bf16.mxu0 0
    %4631 = vmatpush1.bf16.msra.mxu0 %v4580
    %4632 = vmatprep.subr.bf16.mxu0 0
    %4633 = vmatpush1.bf16.msra.mxu0 %v4583
    %4634 = vmatprep.subr.bf16.mxu0 0
    %4635 = vmatpush1.bf16.msra.mxu0 0
    %4636 = vmatprep.subr.bf16.mxu0 0
    %4637 = vmatpush1.bf16.msra.mxu0 0
    %4638 = vmatprep.subr.bf16.mxu0 0
    %4639 = vmatpush1.bf16.msra.mxu0 0
    %4640 = vmatprep.subr.bf16.mxu0 0
    %4641 = vmatpush1.bf16.msra.mxu0 0
    %4642 = vmatprep.subr.bf16.mxu0 0
    %4643 = vmatpush1.bf16.msra.mxu0 0
    %4644 = vmatprep.subr.bf16.mxu0 0
    %4645 = vmatpush1.bf16.msra.mxu0 0
    %4646 = vmatprep.subr.bf16.mxu0 0
    %4647 = vmatpush1.bf16.msra.mxu0 0
    %4648 = vmatprep.subr.bf16.mxu0 0
    %4649 = vmatpush1.bf16.msra.mxu0 0
    %4650 = vmatprep.subr.bf16.mxu0 0
    %4651 = vmatpush1.bf16.msra.mxu0 0
    %4652 = vmatprep.subr.bf16.mxu0 0
    %4653 = vmatpush1.bf16.msra.mxu0 0
    %4654 = vmatprep.subr.bf16.mxu0 0
    %4655 = vmatpush1.bf16.msra.mxu0 0
    %4656 = vmatprep.subr.bf16.mxu0 0
    %4657 = vmatpush1.bf16.msra.mxu0 0
    %4658 = vmatprep.subr.bf16.mxu0 0
    %4659 = vmatpush1.bf16.msra.mxu0 0
    %4660 = vmatprep.mubr.bf16.mxu0 0
    %4661 = vmatmul.mubr.bf16.gmra.mrb[0].mxu0 %v4585
    %v4662 = vpop.f32.mrb[0].mxu0
    %v4663 = vadd.f32 0.0, %v4662
    %v4664 = vpop.f32.mrb[0].mxu0
    %v4665 = vpop.f32.mrb[0].mxu0
    %v4666 = vpop.f32.mrb[0].mxu0
    %4667 = vdwg.mxu0
    %v4668 = vadd.f32 %v4272, %v4622
    %v4669 = vadd.f32 %v4273, %v4624
    %v4670 = vadd.f32 %v4274, %v4663
    %s4671 = smul.u32 4, 7
    %s4672 = smul.u32 %s4671, 6
    %s4673 = smul.u32 %s4672, 3
    %s4674 = sshll.u32 %s4673, 4
    %4675 = dma.done %s200, %s4674
    %v4676 = vld [vmem:[#allocation5 + $0x3c] sm:$0x1]
    %v4677 = vpack.c.bf16 %v4676, %v4676
    %v4678 = vld [vmem:[%s199] sm:$0xff]
    %v4679 = vld [vmem:[%s199 + $0x8] sm:$0xff]
    %v4680 = vld [vmem:[%s199 + $0x10] sm:$0xff]
    %v4681 = vld [vmem:[%s199 + $0x18] sm:$0xff]
    %v4682 = vld [vmem:[%s199 + $0x20] sm:$0xff]
    %v4683 = vld [vmem:[%s199 + $0x28] sm:$0xff]
    %v4684 = vld [vmem:[%s199 + $0x30] sm:$0xff]
    %v4685 = vld [vmem:[%s199 + $0x38] sm:$0xff]
    %v4686 = vld [vmem:[%s199 + $0x40] sm:$0xff]
    %v4688 = vsel %vm1707, %v4677, 0
    %4690 = vmatprep.subr.bf16.mxu0 %v4679
    %4691 = vmatpush1.bf16.msra.mxu0 %v4678
    %4692 = vmatprep.subr.bf16.mxu0 %v4682
    %4693 = vmatpush1.bf16.msra.mxu0 %v4681
    %4694 = vmatprep.subr.bf16.mxu0 %v4685
    %4695 = vmatpush1.bf16.msra.mxu0 %v4684
    %4696 = vmatprep.subr.bf16.mxu0 0
    %4697 = vmatpush1.bf16.msra.mxu0 0
    %4698 = vmatprep.subr.bf16.mxu0 0
    %4699 = vmatpush1.bf16.msra.mxu0 0
    %4700 = vmatprep.subr.bf16.mxu0 0
    %4701 = vmatpush1.bf16.msra.mxu0 0
    %4702 = vmatprep.subr.bf16.mxu0 0
    %4703 = vmatpush1.bf16.msra.mxu0 0
    %4704 = vmatprep.subr.bf16.mxu0 0
    %4705 = vmatpush1.bf16.msra.mxu0 0
    %4706 = vmatprep.subr.bf16.mxu0 0
    %4707 = vmatpush1.bf16.msra.mxu0 0
    %4708 = vmatprep.subr.bf16.mxu0 0
    %4709 = vmatpush1.bf16.msra.mxu0 0
    %4710 = vmatprep.subr.bf16.mxu0 0
    %4711 = vmatpush1.bf16.msra.mxu0 0
    %4712 = vmatprep.subr.bf16.mxu0 0
    %4713 = vmatpush1.bf16.msra.mxu0 0
    %4714 = vmatprep.subr.bf16.mxu0 0
    %4715 = vmatpush1.bf16.msra.mxu0 0
    %4716 = vmatprep.subr.bf16.mxu0 0
    %4717 = vmatpush1.bf16.msra.mxu0 0
    %4718 = vmatprep.subr.bf16.mxu0 0
    %4719 = vmatpush1.bf16.msra.mxu0 0
    %4720 = vmatprep.subr.bf16.mxu0 0
    %4721 = vmatpush1.bf16.msra.mxu0 0
    %4722 = vmatprep.mubr.bf16.mxu0 0
    %4723 = vmatmul.mubr.bf16.gmra.mrb[0].mxu0 %v4688
    %v4724 = vpop.f32.mrb[0].mxu0
    %v4725 = vadd.f32 0.0, %v4724
    %v4726 = vpop.f32.mrb[0].mxu0
    %v4727 = vadd.f32 0.0, %v4726
    %v4728 = vpop.f32.mrb[0].mxu0
    %v4729 = vpop.f32.mrb[0].mxu0
    %4730 = vdwg.mxu0
    %4731 = vmatprep.subr.bf16.mxu0 0
    %4732 = vmatpush1.bf16.msra.mxu0 %v4680
    %4733 = vmatprep.subr.bf16.mxu0 0
    %4734 = vmatpush1.bf16.msra.mxu0 %v4683
    %4735 = vmatprep.subr.bf16.mxu0 0
    %4736 = vmatpush1.bf16.msra.mxu0 %v4686
    %4737 = vmatprep.subr.bf16.mxu0 0
    %4738 = vmatpush1.bf16.msra.mxu0 0
    %4739 = vmatprep.subr.bf16.mxu0 0
    %4740 = vmatpush1.bf16.msra.mxu0 0
    %4741 = vmatprep.subr.bf16.mxu0 0
    %4742 = vmatpush1.bf16.msra.mxu0 0
    %4743 = vmatprep.subr.bf16.mxu0 0
    %4744 = vmatpush1.bf16.msra.mxu0 0
    %4745 = vmatprep.subr.bf16.mxu0 0
    %4746 = vmatpush1.bf16.msra.mxu0 0
    %4747 = vmatprep.subr.bf16.mxu0 0
    %4748 = vmatpush1.bf16.msra.mxu0 0
    %4749 = vmatprep.subr.bf16.mxu0 0
    %4750 = vmatpush1.bf16.msra.mxu0 0
    %4751 = vmatprep.subr.bf16.mxu0 0
    %4752 = vmatpush1.bf16.msra.mxu0 0
    %4753 = vmatprep.subr.bf16.mxu0 0
    %4754 = vmatpush1.bf16.msra.mxu0 0
    %4755 = vmatprep.subr.bf16.mxu0 0
    %4756 = vmatpush1.bf16.msra.mxu0 0
    %4757 = vmatprep.subr.bf16.mxu0 0
    %4758 = vmatpush1.bf16.msra.mxu0 0
    %4759 = vmatprep.subr.bf16.mxu0 0
    %4760 = vmatpush1.bf16.msra.mxu0 0
    %4761 = vmatprep.subr.bf16.mxu0 0
    %4762 = vmatpush1.bf16.msra.mxu0 0
    %4763 = vmatprep.mubr.bf16.mxu0 0
    %4764 = vmatmul.mubr.bf16.gmra.mrb[0].mxu0 %v4688
    %v4765 = vpop.f32.mrb[0].mxu0
    %v4766 = vadd.f32 0.0, %v4765
    %v4767 = vpop.f32.mrb[0].mxu0
    %v4768 = vpop.f32.mrb[0].mxu0
    %v4769 = vpop.f32.mrb[0].mxu0
    %4770 = vdwg.mxu0
    %v4771 = vadd.f32 %v4371, %v4725
    %v4772 = vadd.f32 %v4372, %v4727
    %v4773 = vadd.f32 %v4373, %v4766
    %v4774 = vld [vmem:[#allocation5 + $0x3e] sm:$0x1]
    %v4775 = vpack.c.bf16 %v4774, %v4774
    %s4776 = scalar_lea.vmem [#allocation2], 2232
    %v4777 = vld [vmem:[%s4776] sm:$0xff]
    %v4778 = vld [vmem:[%s4776 + $0x8] sm:$0xff]
    %v4779 = vld [vmem:[%s4776 + $0x10] sm:$0xff]
    %v4780 = vld [vmem:[%s4776 + $0x18] sm:$0xff]
    %v4781 = vld [vmem:[%s4776 + $0x20] sm:$0xff]
    %v4782 = vld [vmem:[%s4776 + $0x28] sm:$0xff]
    %v4783 = vld [vmem:[%s4776 + $0x30] sm:$0xff]
    %v4784 = vld [vmem:[%s4776 + $0x38] sm:$0xff]
    %v4785 = vld [vmem:[%s4776 + $0x40] sm:$0xff]
    %v4787 = vsel %vm1707, %v4775, 0
    %4789 = vmatprep.subr.bf16.mxu0 %v4778
    %4790 = vmatpush1.bf16.msra.mxu0 %v4777
    %4791 = vmatprep.subr.bf16.mxu0 %v4781
    %4792 = vmatpush1.bf16.msra.mxu0 %v4780
    %4793 = vmatprep.subr.bf16.mxu0 %v4784
    %4794 = vmatpush1.bf16.msra.mxu0 %v4783
    %4795 = vmatprep.subr.bf16.mxu0 0
    %4796 = vmatpush1.bf16.msra.mxu0 0
    %4797 = vmatprep.subr.bf16.mxu0 0
    %4798 = vmatpush1.bf16.msra.mxu0 0
    %4799 = vmatprep.subr.bf16.mxu0 0
    %4800 = vmatpush1.bf16.msra.mxu0 0
    %4801 = vmatprep.subr.bf16.mxu0 0
    %4802 = vmatpush1.bf16.msra.mxu0 0
    %4803 = vmatprep.subr.bf16.mxu0 0
    %4804 = vmatpush1.bf16.msra.mxu0 0
    %4805 = vmatprep.subr.bf16.mxu0 0
    %4806 = vmatpush1.bf16.msra.mxu0 0
    %4807 = vmatprep.subr.bf16.mxu0 0
    %4808 = vmatpush1.bf16.msra.mxu0 0
    %4809 = vmatprep.subr.bf16.mxu0 0
    %4810 = vmatpush1.bf16.msra.mxu0 0
    %4811 = vmatprep.subr.bf16.mxu0 0
    %4812 = vmatpush1.bf16.msra.mxu0 0
    %4813 = vmatprep.subr.bf16.mxu0 0
    %4814 = vmatpush1.bf16.msra.mxu0 0
    %4815 = vmatprep.subr.bf16.mxu0 0
    %4816 = vmatpush1.bf16.msra.mxu0 0
    %4817 = vmatprep.subr.bf16.mxu0 0
    %4818 = vmatpush1.bf16.msra.mxu0 0
    %4819 = vmatprep.subr.bf16.mxu0 0
    %4820 = vmatpush1.bf16.msra.mxu0 0
    %4821 = vmatprep.mubr.bf16.mxu0 0
    %4822 = vmatmul.mubr.bf16.gmra.mrb[0].mxu0 %v4787
    %v4823 = vpop.f32.mrb[0].mxu0
    %v4824 = vadd.f32 0.0, %v4823
    %v4825 = vpop.f32.mrb[0].mxu0
    %v4826 = vadd.f32 0.0, %v4825
    %v4827 = vpop.f32.mrb[0].mxu0
    %v4828 = vpop.f32.mrb[0].mxu0
    %4829 = vdwg.mxu0
    %4830 = vmatprep.subr.bf16.mxu0 0
    %4831 = vmatpush1.bf16.msra.mxu0 %v4779
    %4832 = vmatprep.subr.bf16.mxu0 0
    %4833 = vmatpush1.bf16.msra.mxu0 %v4782
    %4834 = vmatprep.subr.bf16.mxu0 0
    %4835 = vmatpush1.bf16.msra.mxu0 %v4785
    %4836 = vmatprep.subr.bf16.mxu0 0
    %4837 = vmatpush1.bf16.msra.mxu0 0
    %4838 = vmatprep.subr.bf16.mxu0 0
    %4839 = vmatpush1.bf16.msra.mxu0 0
    %4840 = vmatprep.subr.bf16.mxu0 0
    %4841 = vmatpush1.bf16.msra.mxu0 0
    %4842 = vmatprep.subr.bf16.mxu0 0
    %4843 = vmatpush1.bf16.msra.mxu0 0
    %4844 = vmatprep.subr.bf16.mxu0 0
    %4845 = vmatpush1.bf16.msra.mxu0 0
    %4846 = vmatprep.subr.bf16.mxu0 0
    %4847 = vmatpush1.bf16.msra.mxu0 0
    %4848 = vmatprep.subr.bf16.mxu0 0
    %4849 = vmatpush1.bf16.msra.mxu0 0
    %4850 = vmatprep.subr.bf16.mxu0 0
    %4851 = vmatpush1.bf16.msra.mxu0 0
    %4852 = vmatprep.subr.bf16.mxu0 0
    %4853 = vmatpush1.bf16.msra.mxu0 0
    %4854 = vmatprep.subr.bf16.mxu0 0
    %4855 = vmatpush1.bf16.msra.mxu0 0
    %4856 = vmatprep.subr.bf16.mxu0 0
    %4857 = vmatpush1.bf16.msra.mxu0 0
    %4858 = vmatprep.subr.bf16.mxu0 0
    %4859 = vmatpush1.bf16.msra.mxu0 0
    %4860 = vmatprep.subr.bf16.mxu0 0
    %4861 = vmatpush1.bf16.msra.mxu0 0
    %4862 = vmatprep.mubr.bf16.mxu0 0
    %4863 = vmatmul.mubr.bf16.gmra.mrb[0].mxu0 %v4787
    %v4864 = vpop.f32.mrb[0].mxu0
    %v4865 = vadd.f32 0.0, %v4864
    %v4866 = vpop.f32.mrb[0].mxu0
    %v4867 = vpop.f32.mrb[0].mxu0
    %v4868 = vpop.f32.mrb[0].mxu0
    %4869 = vdwg.mxu0
    %v4870 = vadd.f32 %v4470, %v4824
    %v4871 = vadd.f32 %v4471, %v4826
    %v4872 = vadd.f32 %v4472, %v4865
    %v4873 = vld [vmem:[#allocation5 + $0x40] sm:$0x1]
    %v4874 = vpack.c.bf16 %v4873, %v4873
    %s4875 = scalar_lea.vmem [#allocation2], 2304
    %v4876 = vld [vmem:[%s4875] sm:$0xff]
    %v4877 = vld [vmem:[%s4875 + $0x8] sm:$0xff]
    %v4878 = vld [vmem:[%s4875 + $0x10] sm:$0xff]
    %v4879 = vld [vmem:[%s4875 + $0x18] sm:$0xff]
    %v4880 = vld [vmem:[%s4875 + $0x20] sm:$0xff]
    %v4881 = vld [vmem:[%s4875 + $0x28] sm:$0xff]
    %v4882 = vld [vmem:[%s4875 + $0x30] sm:$0xff]
    %v4883 = vld [vmem:[%s4875 + $0x38] sm:$0xff]
    %v4884 = vld [vmem:[%s4875 + $0x40] sm:$0xff]
    %v4886 = vsel %vm1707, %v4874, 0
    %4888 = vmatprep.subr.bf16.mxu0 %v4877
    %4889 = vmatpush1.bf16.msra.mxu0 %v4876
    %4890 = vmatprep.subr.bf16.mxu0 %v4880
    %4891 = vmatpush1.bf16.msra.mxu0 %v4879
    %4892 = vmatprep.subr.bf16.mxu0 %v4883
    %4893 = vmatpush1.bf16.msra.mxu0 %v4882
    %4894 = vmatprep.subr.bf16.mxu0 0
    %4895 = vmatpush1.bf16.msra.mxu0 0
    %4896 = vmatprep.subr.bf16.mxu0 0
    %4897 = vmatpush1.bf16.msra.mxu0 0
    %4898 = vmatprep.subr.bf16.mxu0 0
    %4899 = vmatpush1.bf16.msra.mxu0 0
    %4900 = vmatprep.subr.bf16.mxu0 0
    %4901 = vmatpush1.bf16.msra.mxu0 0
    %4902 = vmatprep.subr.bf16.mxu0 0
    %4903 = vmatpush1.bf16.msra.mxu0 0
    %4904 = vmatprep.subr.bf16.mxu0 0
    %4905 = vmatpush1.bf16.msra.mxu0 0
    %4906 = vmatprep.subr.bf16.mxu0 0
    %4907 = vmatpush1.bf16.msra.mxu0 0
    %4908 = vmatprep.subr.bf16.mxu0 0
    %4909 = vmatpush1.bf16.msra.mxu0 0
    %4910 = vmatprep.subr.bf16.mxu0 0
    %4911 = vmatpush1.bf16.msra.mxu0 0
    %4912 = vmatprep.subr.bf16.mxu0 0
    %4913 = vmatpush1.bf16.msra.mxu0 0
    %4914 = vmatprep.subr.bf16.mxu0 0
    %4915 = vmatpush1.bf16.msra.mxu0 0
    %4916 = vmatprep.subr.bf16.mxu0 0
    %4917 = vmatpush1.bf16.msra.mxu0 0
    %4918 = vmatprep.subr.bf16.mxu0 0
    %4919 = vmatpush1.bf16.msra.mxu0 0
    %4920 = vmatprep.mubr.bf16.mxu0 0
    %4921 = vmatmul.mubr.bf16.gmra.mrb[0].mxu0 %v4886
    %v4922 = vpop.f32.mrb[0].mxu0
    %v4923 = vadd.f32 0.0, %v4922
    %v4924 = vpop.f32.mrb[0].mxu0
    %v4925 = vadd.f32 0.0, %v4924
    %v4926 = vpop.f32.mrb[0].mxu0
    %v4927 = vpop.f32.mrb[0].mxu0
    %4928 = vdwg.mxu0
    %4929 = vmatprep.subr.bf16.mxu0 0
    %4930 = vmatpush1.bf16.msra.mxu0 %v4878
    %4931 = vmatprep.subr.bf16.mxu0 0
    %4932 = vmatpush1.bf16.msra.mxu0 %v4881
    %4933 = vmatprep.subr.bf16.mxu0 0
    %4934 = vmatpush1.bf16.msra.mxu0 %v4884
    %4935 = vmatprep.subr.bf16.mxu0 0
    %4936 = vmatpush1.bf16.msra.mxu0 0
    %4937 = vmatprep.subr.bf16.mxu0 0
    %4938 = vmatpush1.bf16.msra.mxu0 0
    %4939 = vmatprep.subr.bf16.mxu0 0
    %4940 = vmatpush1.bf16.msra.mxu0 0
    %4941 = vmatprep.subr.bf16.mxu0 0
    %4942 = vmatpush1.bf16.msra.mxu0 0
    %4943 = vmatprep.subr.bf16.mxu0 0
    %4944 = vmatpush1.bf16.msra.mxu0 0
    %4945 = vmatprep.subr.bf16.mxu0 0
    %4946 = vmatpush1.bf16.msra.mxu0 0
    %4947 = vmatprep.subr.bf16.mxu0 0
    %4948 = vmatpush1.bf16.msra.mxu0 0
    %4949 = vmatprep.subr.bf16.mxu0 0
    %4950 = vmatpush1.bf16.msra.mxu0 0
    %4951 = vmatprep.subr.bf16.mxu0 0
    %4952 = vmatpush1.bf16.msra.mxu0 0
    %4953 = vmatprep.subr.bf16.mxu0 0
    %4954 = vmatpush1.bf16.msra.mxu0 0
    %4955 = vmatprep.subr.bf16.mxu0 0
    %4956 = vmatpush1.bf16.msra.mxu0 0
    %4957 = vmatprep.subr.bf16.mxu0 0
    %4958 = vmatpush1.bf16.msra.mxu0 0
    %4959 = vmatprep.subr.bf16.mxu0 0
    %4960 = vmatpush1.bf16.msra.mxu0 0
    %4961 = vmatprep.mubr.bf16.mxu0 0
    %4962 = vmatmul.mubr.bf16.gmra.mrb[0].mxu0 %v4886
    %v4963 = vpop.f32.mrb[0].mxu0
    %v4964 = vadd.f32 0.0, %v4963
    %v4965 = vpop.f32.mrb[0].mxu0
    %v4966 = vpop.f32.mrb[0].mxu0
    %v4967 = vpop.f32.mrb[0].mxu0
    %4968 = vdwg.mxu0
    %v4969 = vadd.f32 %v4569, %v4923
    %v4970 = vadd.f32 %v4570, %v4925
    %v4971 = vadd.f32 %v4571, %v4964
    %v4972 = vld [vmem:[#allocation5 + $0x42] sm:$0x1]
    %v4973 = vpack.c.bf16 %v4972, %v4972
    %s4974 = scalar_lea.vmem [#allocation2], 2376
    %v4975 = vld [vmem:[%s4974] sm:$0xff]
    %v4976 = vld [vmem:[%s4974 + $0x8] sm:$0xff]
    %v4977 = vld [vmem:[%s4974 + $0x10] sm:$0xff]
    %v4978 = vld [vmem:[%s4974 + $0x18] sm:$0xff]
    %v4979 = vld [vmem:[%s4974 + $0x20] sm:$0xff]
    %v4980 = vld [vmem:[%s4974 + $0x28] sm:$0xff]
    %v4981 = vld [vmem:[%s4974 + $0x30] sm:$0xff]
    %v4982 = vld [vmem:[%s4974 + $0x38] sm:$0xff]
    %v4983 = vld [vmem:[%s4974 + $0x40] sm:$0xff]
    %v4985 = vsel %vm1707, %v4973, 0
    %4987 = vmatprep.subr.bf16.mxu0 %v4976
    %4988 = vmatpush1.bf16.msra.mxu0 %v4975
    %4989 = vmatprep.subr.bf16.mxu0 %v4979
    %4990 = vmatpush1.bf16.msra.mxu0 %v4978
    %4991 = vmatprep.subr.bf16.mxu0 %v4982
    %4992 = vmatpush1.bf16.msra.mxu0 %v4981
    %4993 = vmatprep.subr.bf16.mxu0 0
    %4994 = vmatpush1.bf16.msra.mxu0 0
    %4995 = vmatprep.subr.bf16.mxu0 0
    %4996 = vmatpush1.bf16.msra.mxu0 0
    %4997 = vmatprep.subr.bf16.mxu0 0
    %4998 = vmatpush1.bf16.msra.mxu0 0
    %4999 = vmatprep.subr.bf16.mxu0 0
    %5000 = vmatpush1.bf16.msra.mxu0 0
    %5001 = vmatprep.subr.bf16.mxu0 0
    %5002 = vmatpush1.bf16.msra.mxu0 0
    %5003 = vmatprep.subr.bf16.mxu0 0
    %5004 = vmatpush1.bf16.msra.mxu0 0
    %5005 = vmatprep.subr.bf16.mxu0 0
    %5006 = vmatpush1.bf16.msra.mxu0 0
    %5007 = vmatprep.subr.bf16.mxu0 0
    %5008 = vmatpush1.bf16.msra.mxu0 0
    %5009 = vmatprep.subr.bf16.mxu0 0
    %5010 = vmatpush1.bf16.msra.mxu0 0
    %5011 = vmatprep.subr.bf16.mxu0 0
    %5012 = vmatpush1.bf16.msra.mxu0 0
    %5013 = vmatprep.subr.bf16.mxu0 0
    %5014 = vmatpush1.bf16.msra.mxu0 0
    %5015 = vmatprep.subr.bf16.mxu0 0
    %5016 = vmatpush1.bf16.msra.mxu0 0
    %5017 = vmatprep.subr.bf16.mxu0 0
    %5018 = vmatpush1.bf16.msra.mxu0 0
    %5019 = vmatprep.mubr.bf16.mxu0 0
    %5020 = vmatmul.mubr.bf16.gmra.mrb[0].mxu0 %v4985
    %v5021 = vpop.f32.mrb[0].mxu0
    %v5022 = vadd.f32 0.0, %v5021
    %v5023 = vpop.f32.mrb[0].mxu0
    %v5024 = vadd.f32 0.0, %v5023
    %v5025 = vpop.f32.mrb[0].mxu0
    %v5026 = vpop.f32.mrb[0].mxu0
    %5027 = vdwg.mxu0
    %5028 = vmatprep.subr.bf16.mxu0 0
    %5029 = vmatpush1.bf16.msra.mxu0 %v4977
    %5030 = vmatprep.subr.bf16.mxu0 0
    %5031 = vmatpush1.bf16.msra.mxu0 %v4980
    %5032 = vmatprep.subr.bf16.mxu0 0
    %5033 = vmatpush1.bf16.msra.mxu0 %v4983
    %5034 = vmatprep.subr.bf16.mxu0 0
    %5035 = vmatpush1.bf16.msra.mxu0 0
    %5036 = vmatprep.subr.bf16.mxu0 0
    %5037 = vmatpush1.bf16.msra.mxu0 0
    %5038 = vmatprep.subr.bf16.mxu0 0
    %5039 = vmatpush1.bf16.msra.mxu0 0
    %5040 = vmatprep.subr.bf16.mxu0 0
    %5041 = vmatpush1.bf16.msra.mxu0 0
    %5042 = vmatprep.subr.bf16.mxu0 0
    %5043 = vmatpush1.bf16.msra.mxu0 0
    %5044 = vmatprep.subr.bf16.mxu0 0
    %5045 = vmatpush1.bf16.msra.mxu0 0
    %5046 = vmatprep.subr.bf16.mxu0 0
    %5047 = vmatpush1.bf16.msra.mxu0 0
    %5048 = vmatprep.subr.bf16.mxu0 0
    %5049 = vmatpush1.bf16.msra.mxu0 0
    %5050 = vmatprep.subr.bf16.mxu0 0
    %5051 = vmatpush1.bf16.msra.mxu0 0
    %5052 = vmatprep.subr.bf16.mxu0 0
    %5053 = vmatpush1.bf16.msra.mxu0 0
    %5054 = vmatprep.subr.bf16.mxu0 0
    %5055 = vmatpush1.bf16.msra.mxu0 0
    %5056 = vmatprep.subr.bf16.mxu0 0
    %5057 = vmatpush1.bf16.msra.mxu0 0
    %5058 = vmatprep.subr.bf16.mxu0 0
    %5059 = vmatpush1.bf16.msra.mxu0 0
    %5060 = vmatprep.mubr.bf16.mxu0 0
    %5061 = vmatmul.mubr.bf16.gmra.mrb[0].mxu0 %v4985
    %v5062 = vpop.f32.mrb[0].mxu0
    %v5063 = vadd.f32 0.0, %v5062
    %v5064 = vpop.f32.mrb[0].mxu0
    %v5065 = vpop.f32.mrb[0].mxu0
    %v5066 = vpop.f32.mrb[0].mxu0
    %5067 = vdwg.mxu0
    %v5068 = vadd.f32 %v4668, %v5022
    %v5069 = vadd.f32 %v4669, %v5024
    %v5070 = vadd.f32 %v4670, %v5063
    %v5071 = vld [vmem:[#allocation5 + $0x44] sm:$0x1]
    %v5072 = vpack.c.bf16 %v5071, %v5071
    %s5073 = scalar_lea.vmem [#allocation2], 2448
    %v5074 = vld [vmem:[%s5073] sm:$0xff]
    %v5075 = vld [vmem:[%s5073 + $0x8] sm:$0xff]
    %v5076 = vld [vmem:[%s5073 + $0x10] sm:$0xff]
    %v5077 = vld [vmem:[%s5073 + $0x18] sm:$0xff]
    %v5078 = vld [vmem:[%s5073 + $0x20] sm:$0xff]
    %v5079 = vld [vmem:[%s5073 + $0x28] sm:$0xff]
    %v5080 = vld [vmem:[%s5073 + $0x30] sm:$0xff]
    %v5081 = vld [vmem:[%s5073 + $0x38] sm:$0xff]
    %v5082 = vld [vmem:[%s5073 + $0x40] sm:$0xff]
    %v5084 = vsel %vm1707, %v5072, 0
    %5086 = vmatprep.subr.bf16.mxu0 %v5075
    %5087 = vmatpush1.bf16.msra.mxu0 %v5074
    %5088 = vmatprep.subr.bf16.mxu0 %v5078
    %5089 = vmatpush1.bf16.msra.mxu0 %v5077
    %5090 = vmatprep.subr.bf16.mxu0 %v5081
    %5091 = vmatpush1.bf16.msra.mxu0 %v5080
    %5092 = vmatprep.subr.bf16.mxu0 0
    %5093 = vmatpush1.bf16.msra.mxu0 0
    %5094 = vmatprep.subr.bf16.mxu0 0
    %5095 = vmatpush1.bf16.msra.mxu0 0
    %5096 = vmatprep.subr.bf16.mxu0 0
    %5097 = vmatpush1.bf16.msra.mxu0 0
    %5098 = vmatprep.subr.bf16.mxu0 0
    %5099 = vmatpush1.bf16.msra.mxu0 0
    %5100 = vmatprep.subr.bf16.mxu0 0
    %5101 = vmatpush1.bf16.msra.mxu0 0
    %5102 = vmatprep.subr.bf16.mxu0 0
    %5103 = vmatpush1.bf16.msra.mxu0 0
    %5104 = vmatprep.subr.bf16.mxu0 0
    %5105 = vmatpush1.bf16.msra.mxu0 0
    %5106 = vmatprep.subr.bf16.mxu0 0
    %5107 = vmatpush1.bf16.msra.mxu0 0
    %5108 = vmatprep.subr.bf16.mxu0 0
    %5109 = vmatpush1.bf16.msra.mxu0 0
    %5110 = vmatprep.subr.bf16.mxu0 0
    %5111 = vmatpush1.bf16.msra.mxu0 0
    %5112 = vmatprep.subr.bf16.mxu0 0
    %5113 = vmatpush1.bf16.msra.mxu0 0
    %5114 = vmatprep.subr.bf16.mxu0 0
    %5115 = vmatpush1.bf16.msra.mxu0 0
    %5116 = vmatprep.subr.bf16.mxu0 0
    %5117 = vmatpush1.bf16.msra.mxu0 0
    %5118 = vmatprep.mubr.bf16.mxu0 0
    %5119 = vmatmul.mubr.bf16.gmra.mrb[0].mxu0 %v5084
    %v5120 = vpop.f32.mrb[0].mxu0
    %v5121 = vadd.f32 0.0, %v5120
    %v5122 = vpop.f32.mrb[0].mxu0
    %v5123 = vadd.f32 0.0, %v5122
    %v5124 = vpop.f32.mrb[0].mxu0
    %v5125 = vpop.f32.mrb[0].mxu0
    %5126 = vdwg.mxu0
    %5127 = vmatprep.subr.bf16.mxu0 0
    %5128 = vmatpush1.bf16.msra.mxu0 %v5076
    %5129 = vmatprep.subr.bf16.mxu0 0
    %5130 = vmatpush1.bf16.msra.mxu0 %v5079
    %5131 = vmatprep.subr.bf16.mxu0 0
    %5132 = vmatpush1.bf16.msra.mxu0 %v5082
    %5133 = vmatprep.subr.bf16.mxu0 0
    %5134 = vmatpush1.bf16.msra.mxu0 0
    %5135 = vmatprep.subr.bf16.mxu0 0
    %5136 = vmatpush1.bf16.msra.mxu0 0
    %5137 = vmatprep.subr.bf16.mxu0 0
    %5138 = vmatpush1.bf16.msra.mxu0 0
    %5139 = vmatprep.subr.bf16.mxu0 0
    %5140 = vmatpush1.bf16.msra.mxu0 0
    %5141 = vmatprep.subr.bf16.mxu0 0
    %5142 = vmatpush1.bf16.msra.mxu0 0
    %5143 = vmatprep.subr.bf16.mxu0 0
    %5144 = vmatpush1.bf16.msra.mxu0 0
    %5145 = vmatprep.subr.bf16.mxu0 0
    %5146 = vmatpush1.bf16.msra.mxu0 0
    %5147 = vmatprep.subr.bf16.mxu0 0
    %5148 = vmatpush1.bf16.msra.mxu0 0
    %5149 = vmatprep.subr.bf16.mxu0 0
    %5150 = vmatpush1.bf16.msra.mxu0 0
    %5151 = vmatprep.subr.bf16.mxu0 0
    %5152 = vmatpush1.bf16.msra.mxu0 0
    %5153 = vmatprep.subr.bf16.mxu0 0
    %5154 = vmatpush1.bf16.msra.mxu0 0
    %5155 = vmatprep.subr.bf16.mxu0 0
    %5156 = vmatpush1.bf16.msra.mxu0 0
    %5157 = vmatprep.subr.bf16.mxu0 0
    %5158 = vmatpush1.bf16.msra.mxu0 0
    %5159 = vmatprep.mubr.bf16.mxu0 0
    %5160 = vmatmul.mubr.bf16.gmra.mrb[0].mxu0 %v5084
    %v5161 = vpop.f32.mrb[0].mxu0
    %v5162 = vadd.f32 0.0, %v5161
    %v5163 = vpop.f32.mrb[0].mxu0
    %v5164 = vpop.f32.mrb[0].mxu0
    %v5165 = vpop.f32.mrb[0].mxu0
    %5166 = vdwg.mxu0
    %v5167 = vadd.f32 %v4771, %v5121
    %v5168 = vadd.f32 %v4772, %v5123
    %v5169 = vadd.f32 %v4773, %v5162
    %v5170 = vld [vmem:[#allocation5 + $0x46] sm:$0x1]
    %v5171 = vpack.c.bf16 %v5170, %v5170
    %s5172 = scalar_lea.vmem [#allocation2], 2520
    %v5173 = vld [vmem:[%s5172] sm:$0xff]
    %v5174 = vld [vmem:[%s5172 + $0x8] sm:$0xff]
    %v5175 = vld [vmem:[%s5172 + $0x10] sm:$0xff]
    %v5176 = vld [vmem:[%s5172 + $0x18] sm:$0xff]
    %v5177 = vld [vmem:[%s5172 + $0x20] sm:$0xff]
    %v5178 = vld [vmem:[%s5172 + $0x28] sm:$0xff]
    %v5179 = vld [vmem:[%s5172 + $0x30] sm:$0xff]
    %v5180 = vld [vmem:[%s5172 + $0x38] sm:$0xff]
    %v5181 = vld [vmem:[%s5172 + $0x40] sm:$0xff]
    %v5183 = vsel %vm1707, %v5171, 0
    %5185 = vmatprep.subr.bf16.mxu0 %v5174
    %5186 = vmatpush1.bf16.msra.mxu0 %v5173
    %5187 = vmatprep.subr.bf16.mxu0 %v5177
    %5188 = vmatpush1.bf16.msra.mxu0 %v5176
    %5189 = vmatprep.subr.bf16.mxu0 %v5180
    %5190 = vmatpush1.bf16.msra.mxu0 %v5179
    %5191 = vmatprep.subr.bf16.mxu0 0
    %5192 = vmatpush1.bf16.msra.mxu0 0
    %5193 = vmatprep.subr.bf16.mxu0 0
    %5194 = vmatpush1.bf16.msra.mxu0 0
    %5195 = vmatprep.subr.bf16.mxu0 0
    %5196 = vmatpush1.bf16.msra.mxu0 0
    %5197 = vmatprep.subr.bf16.mxu0 0
    %5198 = vmatpush1.bf16.msra.mxu0 0
    %5199 = vmatprep.subr.bf16.mxu0 0
    %5200 = vmatpush1.bf16.msra.mxu0 0
    %5201 = vmatprep.subr.bf16.mxu0 0
    %5202 = vmatpush1.bf16.msra.mxu0 0
    %5203 = vmatprep.subr.bf16.mxu0 0
    %5204 = vmatpush1.bf16.msra.mxu0 0
    %5205 = vmatprep.subr.bf16.mxu0 0
    %5206 = vmatpush1.bf16.msra.mxu0 0
    %5207 = vmatprep.subr.bf16.mxu0 0
    %5208 = vmatpush1.bf16.msra.mxu0 0
    %5209 = vmatprep.subr.bf16.mxu0 0
    %5210 = vmatpush1.bf16.msra.mxu0 0
    %5211 = vmatprep.subr.bf16.mxu0 0
    %5212 = vmatpush1.bf16.msra.mxu0 0
    %5213 = vmatprep.subr.bf16.mxu0 0
    %5214 = vmatpush1.bf16.msra.mxu0 0
    %5215 = vmatprep.subr.bf16.mxu0 0
    %5216 = vmatpush1.bf16.msra.mxu0 0
    %5217 = vmatprep.mubr.bf16.mxu0 0
    %5218 = vmatmul.mubr.bf16.gmra.mrb[0].mxu0 %v5183
    %v5219 = vpop.f32.mrb[0].mxu0
    %v5220 = vadd.f32 0.0, %v5219
    %v5221 = vpop.f32.mrb[0].mxu0
    %v5222 = vadd.f32 0.0, %v5221
    %v5223 = vpop.f32.mrb[0].mxu0
    %v5224 = vpop.f32.mrb[0].mxu0
    %5225 = vdwg.mxu0
    %5226 = vmatprep.subr.bf16.mxu0 0
    %5227 = vmatpush1.bf16.msra.mxu0 %v5175
    %5228 = vmatprep.subr.bf16.mxu0 0
    %5229 = vmatpush1.bf16.msra.mxu0 %v5178
    %5230 = vmatprep.subr.bf16.mxu0 0
    %5231 = vmatpush1.bf16.msra.mxu0 %v5181
    %5232 = vmatprep.subr.bf16.mxu0 0
    %5233 = vmatpush1.bf16.msra.mxu0 0
    %5234 = vmatprep.subr.bf16.mxu0 0
    %5235 = vmatpush1.bf16.msra.mxu0 0
    %5236 = vmatprep.subr.bf16.mxu0 0
    %5237 = vmatpush1.bf16.msra.mxu0 0
    %5238 = vmatprep.subr.bf16.mxu0 0
    %5239 = vmatpush1.bf16.msra.mxu0 0
    %5240 = vmatprep.subr.bf16.mxu0 0
    %5241 = vmatpush1.bf16.msra.mxu0 0
    %5242 = vmatprep.subr.bf16.mxu0 0
    %5243 = vmatpush1.bf16.msra.mxu0 0
    %5244 = vmatprep.subr.bf16.mxu0 0
    %5245 = vmatpush1.bf16.msra.mxu0 0
    %5246 = vmatprep.subr.bf16.mxu0 0
    %5247 = vmatpush1.bf16.msra.mxu0 0
    %5248 = vmatprep.subr.bf16.mxu0 0
    %5249 = vmatpush1.bf16.msra.mxu0 0
    %5250 = vmatprep.subr.bf16.mxu0 0
    %5251 = vmatpush1.bf16.msra.mxu0 0
    %5252 = vmatprep.subr.bf16.mxu0 0
    %5253 = vmatpush1.bf16.msra.mxu0 0
    %5254 = vmatprep.subr.bf16.mxu0 0
    %5255 = vmatpush1.bf16.msra.mxu0 0
    %5256 = vmatprep.subr.bf16.mxu0 0
    %5257 = vmatpush1.bf16.msra.mxu0 0
    %5258 = vmatprep.mubr.bf16.mxu0 0
    %5259 = vmatmul.mubr.bf16.gmra.mrb[0].mxu0 %v5183
    %v5260 = vpop.f32.mrb[0].mxu0
    %v5261 = vadd.f32 0.0, %v5260
    %v5262 = vpop.f32.mrb[0].mxu0
    %v5263 = vpop.f32.mrb[0].mxu0
    %v5264 = vpop.f32.mrb[0].mxu0
    %5265 = vdwg.mxu0
    %v5266 = vadd.f32 %v4870, %v5220
    %v5267 = vadd.f32 %v4871, %v5222
    %v5268 = vadd.f32 %v4872, %v5261
    %v5269 = vld [vmem:[#allocation5 + $0x48] sm:$0x1]
    %v5270 = vpack.c.bf16 %v5269, %v5269
    %s5271 = scalar_lea.vmem [#allocation2], 2592
    %v5272 = vld [vmem:[%s5271] sm:$0xff]
    %v5273 = vld [vmem:[%s5271 + $0x8] sm:$0xff]
    %v5274 = vld [vmem:[%s5271 + $0x10] sm:$0xff]
    %v5275 = vld [vmem:[%s5271 + $0x18] sm:$0xff]
    %v5276 = vld [vmem:[%s5271 + $0x20] sm:$0xff]
    %v5277 = vld [vmem:[%s5271 + $0x28] sm:$0xff]
    %v5278 = vld [vmem:[%s5271 + $0x30] sm:$0xff]
    %v5279 = vld [vmem:[%s5271 + $0x38] sm:$0xff]
    %v5280 = vld [vmem:[%s5271 + $0x40] sm:$0xff]
    %v5282 = vsel %vm1707, %v5270, 0
    %5284 = vmatprep.subr.bf16.mxu0 %v5273
    %5285 = vmatpush1.bf16.msra.mxu0 %v5272
    %5286 = vmatprep.subr.bf16.mxu0 %v5276
    %5287 = vmatpush1.bf16.msra.mxu0 %v5275
    %5288 = vmatprep.subr.bf16.mxu0 %v5279
    %5289 = vmatpush1.bf16.msra.mxu0 %v5278
    %5290 = vmatprep.subr.bf16.mxu0 0
    %5291 = vmatpush1.bf16.msra.mxu0 0
    %5292 = vmatprep.subr.bf16.mxu0 0
    %5293 = vmatpush1.bf16.msra.mxu0 0
    %5294 = vmatprep.subr.bf16.mxu0 0
    %5295 = vmatpush1.bf16.msra.mxu0 0
    %5296 = vmatprep.subr.bf16.mxu0 0
    %5297 = vmatpush1.bf16.msra.mxu0 0
    %5298 = vmatprep.subr.bf16.mxu0 0
    %5299 = vmatpush1.bf16.msra.mxu0 0
    %5300 = vmatprep.subr.bf16.mxu0 0
    %5301 = vmatpush1.bf16.msra.mxu0 0
    %5302 = vmatprep.subr.bf16.mxu0 0
    %5303 = vmatpush1.bf16.msra.mxu0 0
    %5304 = vmatprep.subr.bf16.mxu0 0
    %5305 = vmatpush1.bf16.msra.mxu0 0
    %5306 = vmatprep.subr.bf16.mxu0 0
    %5307 = vmatpush1.bf16.msra.mxu0 0
    %5308 = vmatprep.subr.bf16.mxu0 0
    %5309 = vmatpush1.bf16.msra.mxu0 0
    %5310 = vmatprep.subr.bf16.mxu0 0
    %5311 = vmatpush1.bf16.msra.mxu0 0
    %5312 = vmatprep.subr.bf16.mxu0 0
    %5313 = vmatpush1.bf16.msra.mxu0 0
    %5314 = vmatprep.subr.bf16.mxu0 0
    %5315 = vmatpush1.bf16.msra.mxu0 0
    %5316 = vmatprep.mubr.bf16.mxu0 0
    %5317 = vmatmul.mubr.bf16.gmra.mrb[0].mxu0 %v5282
    %v5318 = vpop.f32.mrb[0].mxu0
    %v5319 = vadd.f32 0.0, %v5318
    %v5320 = vpop.f32.mrb[0].mxu0
    %v5321 = vadd.f32 0.0, %v5320
    %v5322 = vpop.f32.mrb[0].mxu0
    %v5323 = vpop.f32.mrb[0].mxu0
    %5324 = vdwg.mxu0
    %5325 = vmatprep.subr.bf16.mxu0 0
    %5326 = vmatpush1.bf16.msra.mxu0 %v5274
    %5327 = vmatprep.subr.bf16.mxu0 0
    %5328 = vmatpush1.bf16.msra.mxu0 %v5277
    %5329 = vmatprep.subr.bf16.mxu0 0
    %5330 = vmatpush1.bf16.msra.mxu0 %v5280
    %5331 = vmatprep.subr.bf16.mxu0 0
    %5332 = vmatpush1.bf16.msra.mxu0 0
    %5333 = vmatprep.subr.bf16.mxu0 0
    %5334 = vmatpush1.bf16.msra.mxu0 0
    %5335 = vmatprep.subr.bf16.mxu0 0
    %5336 = vmatpush1.bf16.msra.mxu0 0
    %5337 = vmatprep.subr.bf16.mxu0 0
    %5338 = vmatpush1.bf16.msra.mxu0 0
    %5339 = vmatprep.subr.bf16.mxu0 0
    %5340 = vmatpush1.bf16.msra.mxu0 0
    %5341 = vmatprep.subr.bf16.mxu0 0
    %5342 = vmatpush1.bf16.msra.mxu0 0
    %5343 = vmatprep.subr.bf16.mxu0 0
    %5344 = vmatpush1.bf16.msra.mxu0 0
    %5345 = vmatprep.subr.bf16.mxu0 0
    %5346 = vmatpush1.bf16.msra.mxu0 0
    %5347 = vmatprep.subr.bf16.mxu0 0
    %5348 = vmatpush1.bf16.msra.mxu0 0
    %5349 = vmatprep.subr.bf16.mxu0 0
    %5350 = vmatpush1.bf16.msra.mxu0 0
    %5351 = vmatprep.subr.bf16.mxu0 0
    %5352 = vmatpush1.bf16.msra.mxu0 0
    %5353 = vmatprep.subr.bf16.mxu0 0
    %5354 = vmatpush1.bf16.msra.mxu0 0
    %5355 = vmatprep.subr.bf16.mxu0 0
    %5356 = vmatpush1.bf16.msra.mxu0 0
    %5357 = vmatprep.mubr.bf16.mxu0 0
    %5358 = vmatmul.mubr.bf16.gmra.mrb[0].mxu0 %v5282
    %v5359 = vpop.f32.mrb[0].mxu0
    %v5360 = vadd.f32 0.0, %v5359
    %v5361 = vpop.f32.mrb[0].mxu0
    %v5362 = vpop.f32.mrb[0].mxu0
    %v5363 = vpop.f32.mrb[0].mxu0
    %5364 = vdwg.mxu0
    %v5365 = vadd.f32 %v4969, %v5319
    %v5366 = vadd.f32 %v4970, %v5321
    %v5367 = vadd.f32 %v4971, %v5360
    %v5368 = vadd.f32 %v5365, %v5068
    %v5369 = vadd.f32 %v5366, %v5069
    %v5370 = vadd.f32 %v5367, %v5070
    %v5371 = vadd.f32 %v5167, %v5266
    %v5372 = vadd.f32 %v5168, %v5267
    %v5373 = vadd.f32 %v5169, %v5268
    %v5374 = vadd.f32 %v5368, %v5371
    %v5375 = vadd.f32 %v5369, %v5372
    %v5376 = vadd.f32 %v5370, %v5373
    %v5377 = vld [vmem:[#allocation13] sm:$0x7]
    %v5379 = vlaneseq
    %v5380 = vshrl.u32 %v5379, 7
    %v5381 = vsub.s32 0, %v5380
    %v5382 = vrot.slane %v5377, %v5381
    %v5383 = vlaneseq
    %v5384 = vshrl.u32 %v5383, 7
    %v5385 = vsub.s32 1, %v5384
    %v5386 = vrot.slane %v5377, %v5385
    %v5387 = vlaneseq
    %v5388 = vshrl.u32 %v5387, 7
    %v5389 = vsub.s32 2, %v5388
    %v5390 = vrot.slane %v5377, %v5389
    %v5394 = vadd.f32 %v5374, %v5382
    %v5395 = vadd.f32 %v5375, %v5386
    %v5396 = vadd.f32 %v5376, %v5390
    %v5397 = vmax.f32 %v5394, 0.0
    %v5398 = vmax.f32 %v5395, 0.0
    %v5399 = vmax.f32 %v5396, 0.0
    %s5400 = smul.u32 4, 48
    %s5401 = smul.u32 %s5400, 1
    %s5402 = sshll.u32 %s5401, 4
    %5403 = dma.done %s235, %s5402
    %v5404 = vpack.c.bf16 %v5397, %v5397
    %v5405 = vpack.c.bf16 %v5398, %v5398
    %v5406 = vpack.c.bf16 %v5399, %v5399
    %v5407 = vld [vmem:[#allocation3] sm:$0xff]
    %v5408 = vld [vmem:[#allocation3 + $0x8] sm:$0xff]
    %v5409 = vld [vmem:[#allocation3 + $0x10] sm:$0xff]
    %v5410 = vld [vmem:[#allocation3 + $0x18] sm:$0xff]
    %v5411 = vld [vmem:[#allocation3 + $0x20] sm:$0xff]
    %v5412 = vld [vmem:[#allocation3 + $0x28] sm:$0xff]
    %v5413 = vld [vmem:[#allocation3 + $0x30] sm:$0xff]
    %v5414 = vld [vmem:[#allocation3 + $0x38] sm:$0xff]
    %v5415 = vld [vmem:[#allocation3 + $0x40] sm:$0xff]
    %v5416 = vld [vmem:[#allocation3 + $0x48] sm:$0xff]
    %v5417 = vld [vmem:[#allocation3 + $0x50] sm:$0xff]
    %v5418 = vld [vmem:[#allocation3 + $0x58] sm:$0xff]
    %v5419 = vld [vmem:[#allocation3 + $0x60] sm:$0xff]
    %v5420 = vld [vmem:[#allocation3 + $0x68] sm:$0xff]
    %v5421 = vld [vmem:[#allocation3 + $0x70] sm:$0xff]
    %v5422 = vld [vmem:[#allocation3 + $0x78] sm:$0xff]
    %v5423 = vld [vmem:[#allocation3 + $0x80] sm:$0xff]
    %v5424 = vld [vmem:[#allocation3 + $0x88] sm:$0xff]
    %v5425 = vld [vmem:[#allocation3 + $0x90] sm:$0xff]
    %v5426 = vld [vmem:[#allocation3 + $0x98] sm:$0xff]
    %v5427 = vld [vmem:[#allocation3 + $0xa0] sm:$0xff]
    %v5428 = vld [vmem:[#allocation3 + $0xa8] sm:$0xff]
    %v5429 = vld [vmem:[#allocation3 + $0xb0] sm:$0xff]
    %v5430 = vld [vmem:[#allocation3 + $0xb8] sm:$0xff]
    %v5431 = vld [vmem:[#allocation15] sm:$0x1]
    %5432 = vmatprep.subr.bf16.mxu0 0
    %5433 = vmatpush1.bf16.msra.mxu0 %v5407
    %5434 = vmatprep.subr.bf16.mxu0 0
    %5435 = vmatpush1.bf16.msra.mxu0 %v5408
    %5436 = vmatprep.subr.bf16.mxu0 0
    %5437 = vmatpush1.bf16.msra.mxu0 %v5409
    %5438 = vmatprep.subr.bf16.mxu0 0
    %5439 = vmatpush1.bf16.msra.mxu0 %v5410
    %5440 = vmatprep.subr.bf16.mxu0 0
    %5441 = vmatpush1.bf16.msra.mxu0 %v5411
    %5442 = vmatprep.subr.bf16.mxu0 0
    %5443 = vmatpush1.bf16.msra.mxu0 %v5412
    %5444 = vmatprep.subr.bf16.mxu0 0
    %5445 = vmatpush1.bf16.msra.mxu0 %v5413
    %5446 = vmatprep.subr.bf16.mxu0 0
    %5447 = vmatpush1.bf16.msra.mxu0 %v5414
    %5448 = vmatprep.subr.bf16.mxu0 0
    %5449 = vmatpush1.bf16.msra.mxu0 %v5415
    %5450 = vmatprep.subr.bf16.mxu0 0
    %5451 = vmatpush1.bf16.msra.mxu0 %v5416
    %5452 = vmatprep.subr.bf16.mxu0 0
    %5453 = vmatpush1.bf16.msra.mxu0 %v5417
    %5454 = vmatprep.subr.bf16.mxu0 0
    %5455 = vmatpush1.bf16.msra.mxu0 %v5418
    %5456 = vmatprep.subr.bf16.mxu0 0
    %5457 = vmatpush1.bf16.msra.mxu0 %v5419
    %5458 = vmatprep.subr.bf16.mxu0 0
    %5459 = vmatpush1.bf16.msra.mxu0 %v5420
    %5460 = vmatprep.subr.bf16.mxu0 0
    %5461 = vmatpush1.bf16.msra.mxu0 %v5421
    %5462 = vmatprep.subr.bf16.mxu0 0
    %5463 = vmatpush1.bf16.msra.mxu0 %v5422
    %5464 = vmatprep.mubr.bf16.mxu0 %v5405
    %5465 = vmatmul.mubr.bf16.gmra.mrb[0].mxu0 %v5404
    %v5466 = vpop.f32.mrb[0].mxu0
    %v5467 = vadd.f32 %v5431, %v5466
    %v5468 = vpop.f32.mrb[0].mxu0
    %v5469 = vpop.f32.mrb[0].mxu0
    %v5470 = vpop.f32.mrb[0].mxu0
    %5471 = vdwg.mxu0
    %5472 = vmatprep.subr.bf16.mxu0 0
    %5473 = vmatpush1.bf16.msra.mxu0 %v5423
    %5474 = vmatprep.subr.bf16.mxu0 0
    %5475 = vmatpush1.bf16.msra.mxu0 %v5424
    %5476 = vmatprep.subr.bf16.mxu0 0
    %5477 = vmatpush1.bf16.msra.mxu0 %v5425
    %5478 = vmatprep.subr.bf16.mxu0 0
    %5479 = vmatpush1.bf16.msra.mxu0 %v5426
    %5480 = vmatprep.subr.bf16.mxu0 0
    %5481 = vmatpush1.bf16.msra.mxu0 %v5427
    %5482 = vmatprep.subr.bf16.mxu0 0
    %5483 = vmatpush1.bf16.msra.mxu0 %v5428
    %5484 = vmatprep.subr.bf16.mxu0 0
    %5485 = vmatpush1.bf16.msra.mxu0 %v5429
    %5486 = vmatprep.subr.bf16.mxu0 0
    %5487 = vmatpush1.bf16.msra.mxu0 %v5430
    %5488 = vmatprep.subr.bf16.mxu0 0
    %5489 = vmatpush1.bf16.msra.mxu0 0
    %5490 = vmatprep.subr.bf16.mxu0 0
    %5491 = vmatpush1.bf16.msra.mxu0 0
    %5492 = vmatprep.subr.bf16.mxu0 0
    %5493 = vmatpush1.bf16.msra.mxu0 0
    %5494 = vmatprep.subr.bf16.mxu0 0
    %5495 = vmatpush1.bf16.msra.mxu0 0
    %5496 = vmatprep.subr.bf16.mxu0 0
    %5497 = vmatpush1.bf16.msra.mxu0 0
    %5498 = vmatprep.subr.bf16.mxu0 0
    %5499 = vmatpush1.bf16.msra.mxu0 0
    %5500 = vmatprep.subr.bf16.mxu0 0
    %5501 = vmatpush1.bf16.msra.mxu0 0
    %5502 = vmatprep.subr.bf16.mxu0 0
    %5503 = vmatpush1.bf16.msra.mxu0 0
    %5504 = vmatprep.mubr.bf16.mxu0 0
    %5505 = vmatmul.mubr.bf16.gmra.mrb[0].mxu0 %v5406
    %v5506 = vpop.f32.mrb[0].mxu0
    %v5507 = vadd.f32 %v5467, %v5506
    %v5508 = vpop.f32.mrb[0].mxu0
    %v5509 = vpop.f32.mrb[0].mxu0
    %v5510 = vpop.f32.mrb[0].mxu0
    %5511 = vdwg.mxu0
    %v5512 = vmax.f32 %v5507, 0.0
    %s5513 = smul.u32 4, 16
    %s5514 = smul.u32 %s5513, 1
    %s5515 = sshll.u32 %s5514, 4
    %5516 = dma.done %s247, %s5515
    %v5517 = vpack.c.bf16 %v5512, %v5512
    %v5518 = vld [vmem:[#allocation4] sm:$0xff]
    %v5519 = vld [vmem:[#allocation4 + $0x8] sm:$0xff]
    %v5520 = vld [vmem:[#allocation4 + $0x10] sm:$0xff]
    %v5521 = vld [vmem:[#allocation4 + $0x18] sm:$0xff]
    %v5522 = vld [vmem:[#allocation4 + $0x20] sm:$0xff]
    %v5523 = vld [vmem:[#allocation4 + $0x28] sm:$0xff]
    %v5524 = vld [vmem:[#allocation4 + $0x30] sm:$0xff]
    %v5525 = vld [vmem:[#allocation4 + $0x38] sm:$0xff]
    %v5526 = vld [vmem:[#allocation16] sm:$0x1]
    %5527 = vmatprep.subr.bf16.mxu0 0
    %5528 = vmatpush1.bf16.msra.mxu0 %v5518
    %5529 = vmatprep.subr.bf16.mxu0 0
    %5530 = vmatpush1.bf16.msra.mxu0 %v5519
    %5531 = vmatprep.subr.bf16.mxu0 0
    %5532 = vmatpush1.bf16.msra.mxu0 %v5520
    %5533 = vmatprep.subr.bf16.mxu0 0
    %5534 = vmatpush1.bf16.msra.mxu0 %v5521
    %5535 = vmatprep.subr.bf16.mxu0 0
    %5536 = vmatpush1.bf16.msra.mxu0 %v5522
    %5537 = vmatprep.subr.bf16.mxu0 0
    %5538 = vmatpush1.bf16.msra.mxu0 %v5523
    %5539 = vmatprep.subr.bf16.mxu0 0
    %5540 = vmatpush1.bf16.msra.mxu0 %v5524
    %5541 = vmatprep.subr.bf16.mxu0 0
    %5542 = vmatpush1.bf16.msra.mxu0 %v5525
    %5543 = vmatprep.subr.bf16.mxu0 0
    %5544 = vmatpush1.bf16.msra.mxu0 0
    %5545 = vmatprep.subr.bf16.mxu0 0
    %5546 = vmatpush1.bf16.msra.mxu0 0
    %5547 = vmatprep.subr.bf16.mxu0 0
    %5548 = vmatpush1.bf16.msra.mxu0 0
    %5549 = vmatprep.subr.bf16.mxu0 0
    %5550 = vmatpush1.bf16.msra.mxu0 0
    %5551 = vmatprep.subr.bf16.mxu0 0
    %5552 = vmatpush1.bf16.msra.mxu0 0
    %5553 = vmatprep.subr.bf16.mxu0 0
    %5554 = vmatpush1.bf16.msra.mxu0 0
    %5555 = vmatprep.subr.bf16.mxu0 0
    %5556 = vmatpush1.bf16.msra.mxu0 0
    %5557 = vmatprep.subr.bf16.mxu0 0
    %5558 = vmatpush1.bf16.msra.mxu0 0
    %5559 = vmatprep.mubr.bf16.mxu0 0
    %5560 = vmatmul.mubr.bf16.gmra.mrb[0].mxu0 %v5517
    %v5561 = vpop.f32.mrb[0].mxu0
    %v5562 = vadd.f32 %v5526, %v5561
    %v5563 = vpop.f32.mrb[0].mxu0
    %v5564 = vpop.f32.mrb[0].mxu0
    %v5565 = vpop.f32.mrb[0].mxu0
    %5566 = vdwg.mxu0
    %5567 = vst [vmem:[#allocation18] sm:$0x1] %v5562
    // Predicated region
    $region54: #{convnet2_forward.1} parent=1 // pred_check
      _
    $region55: #{convnet2_forward.1} parent=1 // pred_check_branch
      %5569 = sbr.rel (0) target = $region57
    $region56: #{convnet2_forward.1} parent=1 // pred_region
      %s5571 = ssub.s32 16, 16
      %5572 = vsyncadd [#allocation10], %s5571
      %s5574 = sshll.u32 [#allocation18], 4
      %s5575 = int_to_ptr.vmem [resolvable:$true] %s5574
      %5577 = dma.vmem_to_hbm [thread:$0]  %s5575, 16, %s9, [#allocation10]
    $region57: #{convnet2_forward.1} parent=1 // pred_fallthru
      _
    // Predicated region
    $region58: #{convnet2_forward.1} parent=1 // pred_check
      _
    $region59: #{convnet2_forward.1} parent=1 // pred_check_branch
      %5579 = sbr.rel (0) target = $region61
    $region60: #{convnet2_forward.1} parent=1 // pred_region
      %5580 = dma.done [#allocation10], 16
    $region61: #{convnet2_forward.1} parent=1 // pred_fallthru
      _
    %5581 = vsyncpa [#allocation9], 1
    %5582 = vsyncpa [#allocation14], 1
    %5583 = vsyncpa [#allocation17], 1
    %5584 = vsyncpa [#allocation10], 1
    %5585 = vsyncpa [#allocation11], 1
  %5586 = vsyncmov [#allocation6]
  %s5587 = vpop.sfrf %5586
  %p5588 = scmp.eq.s32.totalorder %s5587, 0
  %p5589 = pneg %p5588
  %5591 = shalt.err (%p5589)
  %s5592 = scalar_lea.sflag [#allocation6], 1
  %5593 = vsyncmov %s5592
  %s5594 = vpop.sfrf %5593
  %p5595 = scmp.eq.s32.totalorder %s5594, 0
  %p5596 = pneg %p5595
  %5598 = shalt.err (%p5596)
  %s5599 = scalar_lea.sflag [#allocation6], 2
  %5600 = vsyncmov %s5599
  %s5601 = vpop.sfrf %5600
  %p5602 = scmp.eq.s32.totalorder %s5601, 0
  %p5603 = pneg %p5602
  %5605 = shalt.err (%p5603)
  %s5606 = scalar_lea.sflag [#allocation6], 3
  %5607 = vsyncmov %s5606
  %s5608 = vpop.sfrf %5607
  %p5609 = scmp.eq.s32.totalorder %s5608, 0
  %p5610 = pneg %p5609
  %5612 = shalt.err (%p5610)
  %s5613 = scalar_lea.sflag [#allocation6], 4
  %5614 = vsyncmov %s5613
  %s5615 = vpop.sfrf %5614
  %p5616 = scmp.eq.s32.totalorder %s5615, 0
  %p5617 = pneg %p5616
  %5619 = shalt.err (%p5617)
  %s5620 = scalar_lea.sflag [#allocation6], 5
  %5621 = vsyncmov %s5620
  %s5622 = vpop.sfrf %5621
  %p5623 = scmp.eq.s32.totalorder %s5622, 0
  %p5624 = pneg %p5623
  %5626 = shalt.err (%p5624)

</llo_original>
